<compile_context>
chip_gen: v7x
topology: tpu7x:2x2x1
jax: 0.10.0
libtpu: 0.0.40
codegen_flags: <defaults>
</compile_context>

<pallas_src>
import functools

import jax
import jax.numpy as jnp
from jax import lax
from jax.experimental import pallas as pl
from jax.experimental.pallas import tpu as pltpu


_VMEM = pl.BlockSpec(memory_space=pltpu.MemorySpace.VMEM)
# Raise v5e's 16 MiB default scoped-VMEM limit; 32 MiB is <= physical on all gens.
_VMEM_LIMIT = 32 * 1024 * 1024


def _ceil_to(n, m):
    return -(-n // m) * m


# ----------------------------- Encoder kernel -----------------------------
# Single-layer LSTM over the whole input sequence.  One pallas_call, no grid;
# the time recurrence is a lax.fori_loop inside the kernel.  The input
# projection is hoisted out of the loop (one M=T*B matmul per gate).
def _encoder_kernel(x2d_ref, w_ih_ref, w_hh_ref, b_ref,
                    enc_out_ref, h_out_ref, c_out_ref,
                    xp_i, xp_f, xp_g, xp_o):
    T, B, H = enc_out_ref.shape
    x2d = x2d_ref[...]                                   # (T*B, D_in)

    # Hoisted input projection (per-gate weights -> no lane slicing later).
    xp_refs = (xp_i, xp_f, xp_g, xp_o)
    for g in range(4):
        xp_refs[g][...] = jnp.dot(
            x2d, w_ih_ref[g], preferred_element_type=jnp.float32
        ).reshape(T, B, H)

    w_hh = [w_hh_ref[g] for g in range(4)]               # 4 x (H, H)
    b = [b_ref[g] for g in range(4)]                     # 4 x (1, H)

    def step(t, carry):
        h, c = carry
        pre_i = xp_i[t] + jnp.dot(h, w_hh[0], preferred_element_type=jnp.float32) + b[0]
        pre_f = xp_f[t] + jnp.dot(h, w_hh[1], preferred_element_type=jnp.float32) + b[1]
        pre_g = xp_g[t] + jnp.dot(h, w_hh[2], preferred_element_type=jnp.float32) + b[2]
        pre_o = xp_o[t] + jnp.dot(h, w_hh[3], preferred_element_type=jnp.float32) + b[3]
        i = jax.nn.sigmoid(pre_i)
        f = jax.nn.sigmoid(pre_f)
        g_ = jnp.tanh(pre_g)
        o = jax.nn.sigmoid(pre_o)
        c_new = f * c + i * g_
        h_new = o * jnp.tanh(c_new)
        enc_out_ref[t] = h_new                           # (B, H) slab, time-major
        return h_new, c_new

    h0 = jnp.zeros((B, H), jnp.float32)
    c0 = jnp.zeros((B, H), jnp.float32)
    h, c = lax.fori_loop(0, T, step, (h0, c0), unroll=(T <= 32))
    h_out_ref[...] = h
    c_out_ref[...] = c


def encoder_forward(x2d, w_ih, w_hh, b, T, B, H):
    return pl.pallas_call(
        _encoder_kernel,
        out_shape=(
            jax.ShapeDtypeStruct((T, B, H), jnp.float32),   # enc_out (time-major)
            jax.ShapeDtypeStruct((B, H), jnp.float32),      # h_enc
            jax.ShapeDtypeStruct((B, H), jnp.float32),      # c_enc
        ),
        in_specs=[_VMEM] * 4,
        out_specs=(_VMEM, _VMEM, _VMEM),
        scratch_shapes=[pltpu.VMEM((T, B, H), jnp.float32)] * 4,
        compiler_params=pltpu.CompilerParams(vmem_limit_bytes=_VMEM_LIMIT),
    )(x2d, w_ih, w_hh, b)


# --------------------------- Fused decoder kernel ---------------------------
# One pallas_call for the whole teacher-forcing decoder loop.
#   grid = (num_batch_tiles, T_y)   ("parallel", "arbitrary")
# Per grid step: dot-product attention over enc_out (MXU), LSTM cell with
# per-gate weights, fused fc1+fc2 head.  h/c carried in VMEM scratch.
def _decoder_kernel(act_ref, tar_ref, enc_ref, h0_ref, c0_ref,
                    wxa_ref, wxt_ref, wc_ref, whh_ref, b_ref,
                    wfc_ref, bfc_ref,
                    logits_ref, h_scr, c_scr):
    t = pl.program_id(1)

    @pl.when(t == 0)
    def _():
        h_scr[...] = h0_ref[...]
        c_scr[...] = c0_ref[...]

    h_prev = h_scr[...]                                  # (Bt, H)
    c_prev = c_scr[...]
    enc = enc_ref[...]                                   # (Bt, T_x, H)

    # --- attention: scores/context as MXU dot_generals ---
    hq = h_prev[:, None, :]                              # (Bt, 1, H)
    scores = jnp.einsum('bqh,bth->bqt', hq, enc,
                        preferred_element_type=jnp.float32)      # (Bt, 1, T_x)
    m = jnp.max(scores, axis=-1, keepdims=True)
    e = jnp.exp(scores - m)
    attn = e / jnp.sum(e, axis=-1, keepdims=True)
    context = jnp.einsum('bqt,bth->bqh', attn, enc,
                         preferred_element_type=jnp.float32)     # (Bt, 1, H)
    context = context[:, 0, :]                           # (Bt, H)

    # --- LSTM cell: input = [act_scalar, tar_scalar, context] ---
    act_t = act_ref[t]                                   # (Bt, 1)
    tar_t = tar_ref[t]                                   # (Bt, 1)

    pre = []
    for g in range(4):
        pre.append(act_t * wxa_ref[g] + tar_t * wxt_ref[g]
                   + jnp.dot(context, wc_ref[g], preferred_element_type=jnp.float32)
                   + jnp.dot(h_prev, whh_ref[g], preferred_element_type=jnp.float32)
                   + b_ref[g])
    i = jax.nn.sigmoid(pre[0])
    f = jax.nn.sigmoid(pre[1])
    g_ = jnp.tanh(pre[2])
    o = jax.nn.sigmoid(pre[3])
    c_new = f * c_prev + i * g_
    h_new = o * jnp.tanh(c_new)
    h_scr[...] = h_new
    c_scr[...] = c_new

    # --- fused output heads (fc1 ++ fc2) ---
    logits = (jnp.dot(h_new, wfc_ref[...], preferred_element_type=jnp.float32)
              + bfc_ref[...])                            # (Bt, O1+O2)
    logits_ref[0] = logits


def decoder_forward(act, tar, enc_bth, h0, c0, params, b_tile):
    T_y, B, _ = act.shape
    _, T_x, H = enc_bth.shape
    Osum = params["w_fc"].shape[-1]
    nb = B // b_tile

    in_specs = [
        pl.BlockSpec((T_y, b_tile, 1), lambda b, t: (0, b, 0)),   # act
        pl.BlockSpec((T_y, b_tile, 1), lambda b, t: (0, b, 0)),   # tar
        pl.BlockSpec((b_tile, T_x, H), lambda b, t: (b, 0, 0)),   # enc_out (resident per b-tile)
        pl.BlockSpec((b_tile, H), lambda b, t: (b, 0)),           # h_enc
        pl.BlockSpec((b_tile, H), lambda b, t: (b, 0)),           # c_enc
        pl.BlockSpec((4, 1, H), lambda b, t: (0, 0, 0)),          # w_xa
        pl.BlockSpec((4, 1, H), lambda b, t: (0, 0, 0)),          # w_xt
        pl.BlockSpec((4, H, H), lambda b, t: (0, 0, 0)),          # w_c
        pl.BlockSpec((4, H, H), lambda b, t: (0, 0, 0)),          # w_hh_dec
        pl.BlockSpec((4, 1, H), lambda b, t: (0, 0, 0)),          # b_dec
        pl.BlockSpec((H, Osum), lambda b, t: (0, 0)),             # w_fc (fc1 ++ fc2)
        pl.BlockSpec((1, Osum), lambda b, t: (0, 0)),             # b_fc
    ]
    out_specs = pl.BlockSpec((1, b_tile, Osum), lambda b, t: (t, b, 0))

    return pl.pallas_call(
        _decoder_kernel,
        out_shape=jax.ShapeDtypeStruct((T_y, B, Osum), jnp.float32),
        grid=(nb, T_y),
        in_specs=in_specs,
        out_specs=out_specs,
        scratch_shapes=[pltpu.VMEM((b_tile, H), jnp.float32),
                        pltpu.VMEM((b_tile, H), jnp.float32)],
        compiler_params=pltpu.CompilerParams(
            dimension_semantics=("parallel", "arbitrary"),
            vmem_limit_bytes=_VMEM_LIMIT),
    )(act, tar, enc_bth, h0, c0,
      params["w_xa"], params["w_xt"], params["w_c"], params["w_hh_dec"],
      params["b_dec"], params["w_fc"], params["b_fc"])


# ------------------------------ Full forward ------------------------------
def att_encoder_decoder_forward(params, x, x_length, y, *, output_dim1):
    """Teacher-forcing branch of AttEncoderDecoder.forward (y is not None)."""
    # TODO(synk): pack_padded_sequence length masking not implemented; full-length
    # sequences are assumed (x_length is ignored).
    # TODO(synk): the y-is-None autoregressive branch (argmax feedback +
    # data-dependent early break) is not implemented.
    del x_length
    B0, T_x, D_in = x.shape
    T_y = y.shape[1]
    H = params["w_hh_enc"].shape[-1]

    # Pad batch to a sublane-friendly multiple of 8; padded rows are sliced off.
    B_pad = _ceil_to(max(B0, 8), 8)
    b_tile = B_pad if B_pad <= 128 else 128
    B_pad = _ceil_to(B_pad, b_tile)
    pad = B_pad - B0
    if pad:
        x = jnp.pad(x, ((0, pad), (0, 0), (0, 0)))
        y = jnp.pad(y, ((0, pad), (0, 0), (0, 0)))

    # Encoder: time-major, flattened (T*B, D_in) input for the hoisted projection.
    x2d = jnp.transpose(x, (1, 0, 2)).reshape(T_x * B_pad, D_in)
    enc_tbh, h_enc, c_enc = encoder_forward(
        x2d, params["w_ih_enc"], params["w_hh_enc"], params["b_enc"],
        T_x, B_pad, H)
    enc_bth = jnp.transpose(enc_tbh, (1, 0, 2))          # (B, T_x, H) for MXU attention

    act = jnp.transpose(y[:, :, 0])[:, :, None]          # (T_y, B, 1)
    tar = jnp.transpose(y[:, :, 1])[:, :, None]          # (T_y, B, 1)

    logits = decoder_forward(act, tar, enc_bth, h_enc, c_enc, params, b_tile)
    logits = jnp.transpose(logits, (1, 0, 2))[:B0]       # (B0, T_y, O1+O2)
    action_result = logits[..., :output_dim1]
    target_result = logits[..., output_dim1:]
    return action_result, target_result


# ------------------------------ Param init --------------------------------
def init_params(key, d_in, hidden_dim, out1, out2):
    ks = jax.random.split(key, 10)
    s = 0.1
    H = hidden_dim
    return {
        # encoder LSTM, per-gate stacked weights (gate order i, f, g, o)
        "w_ih_enc": s * jax.random.normal(ks[0], (4, d_in, H), jnp.float32),
        "w_hh_enc": s * jax.random.normal(ks[1], (4, H, H), jnp.float32),
        "b_enc":    s * jax.random.normal(ks[2], (4, 1, H), jnp.float32),
        # decoder LSTM (input = [act, tar] scalars + attention context)
        "w_xa":     s * jax.random.normal(ks[3], (4, 1, H), jnp.float32),
        "w_xt":     s * jax.random.normal(ks[4], (4, 1, H), jnp.float32),
        "w_c":      s * jax.random.normal(ks[5], (4, H, H), jnp.float32),
        "w_hh_dec": s * jax.random.normal(ks[6], (4, H, H), jnp.float32),
        "b_dec":    s * jax.random.normal(ks[7], (4, 1, H), jnp.float32),
        # fused output heads: fc1 (H->out1) ++ fc2 (H->out2)
        "w_fc":     s * jax.random.normal(ks[8], (H, out1 + out2), jnp.float32),
        "b_fc":     s * jax.random.normal(ks[9], (1, out1 + out2), jnp.float32),
    }


if __name__ == "__main__":
    B, T_x, D_in = 2, 8, 4
    H, O1, O2 = 32, 8, 16
    T_y = 6

    key = jax.random.PRNGKey(0)
    k_x, k_y, k_p = jax.random.split(key, 3)

    x = jax.random.normal(k_x, (B, T_x, D_in), jnp.float32)
    x_length = jnp.full((B,), T_x, jnp.int32)
    # y[:, :, 0] = action token ids, y[:, :, 1] = target token ids (as floats,
    # matching the PyTorch module which slices them out of a float tensor).
    y = jax.random.randint(k_y, (B, T_y, 2), 0, O1).astype(jnp.float32)

    params = init_params(k_p, D_in, H, O1, O2)

    fwd = jax.jit(functools.partial(att_encoder_decoder_forward, params,
                                    output_dim1=O1))
    action_result, target_result = fwd(x, x_length, y)
    jax.block_until_ready((action_result, target_result))

    assert action_result.shape == (B, T_y, O1)
    assert target_result.shape == (B, T_y, O2)
    assert jnp.all(jnp.isfinite(action_result))
    assert jnp.all(jnp.isfinite(target_result))
    print("KERNEL_OK")
</pallas_src>

<mosaic_0001>
module attributes {stable_mosaic.version = 11 : i64} {
  func.func @_decoder_kernel(%arg0: i32, %arg1: i32, %arg2: memref<6x8x1xf32, #tpu.memory_space<vmem>>, %arg3: memref<6x8x1xf32, #tpu.memory_space<vmem>>, %arg4: memref<8x8x32xf32, #tpu.memory_space<vmem>>, %arg5: memref<8x32xf32, #tpu.memory_space<vmem>>, %arg6: memref<8x32xf32, #tpu.memory_space<vmem>>, %arg7: memref<4x1x32xf32, #tpu.memory_space<vmem>>, %arg8: memref<4x1x32xf32, #tpu.memory_space<vmem>>, %arg9: memref<4x32x32xf32, #tpu.memory_space<vmem>>, %arg10: memref<4x32x32xf32, #tpu.memory_space<vmem>>, %arg11: memref<4x1x32xf32, #tpu.memory_space<vmem>>, %arg12: memref<32x24xf32, #tpu.memory_space<vmem>>, %arg13: memref<1x24xf32, #tpu.memory_space<vmem>>, %arg14: memref<1x8x24xf32, #tpu.memory_space<vmem>>, %arg15: memref<8x32xf32, #tpu.memory_space<vmem>>, %arg16: memref<8x32xf32, #tpu.memory_space<vmem>>) attributes {dimension_semantics = [#tpu.dimension_semantics<parallel>, #tpu.dimension_semantics<arbitrary>], iteration_bounds = array<i64: 1, 6>, scalar_prefetch = 0 : i64, scratch_operands = 2 : i64, tpu.core_type = #tpu.core_type<tc>, window_params = [{transform_indices = @transform_0, window_bounds = array<i64: 6, 8, 1>}, {transform_indices = @transform_1, window_bounds = array<i64: 6, 8, 1>}, {transform_indices = @transform_2, window_bounds = array<i64: 8, 8, 32>}, {transform_indices = @transform_3, window_bounds = array<i64: 8, 32>}, {transform_indices = @transform_4, window_bounds = array<i64: 8, 32>}, {pipeline_mode = #tpu.pipeline_mode<synchronous>, transform_indices = @transform_5, window_bounds = array<i64: 4, 1, 32>}, {pipeline_mode = #tpu.pipeline_mode<synchronous>, transform_indices = @transform_6, window_bounds = array<i64: 4, 1, 32>}, {pipeline_mode = #tpu.pipeline_mode<synchronous>, transform_indices = @transform_7, window_bounds = array<i64: 4, 32, 32>}, {pipeline_mode = #tpu.pipeline_mode<synchronous>, transform_indices = @transform_8, window_bounds = array<i64: 4, 32, 32>}, {pipeline_mode = #tpu.pipeline_mode<synchronous>, transform_indices = @transform_9, window_bounds = array<i64: 4, 1, 32>}, {pipeline_mode = #tpu.pipeline_mode<synchronous>, transform_indices = @transform_10, window_bounds = array<i64: 32, 24>}, {pipeline_mode = #tpu.pipeline_mode<synchronous>, transform_indices = @transform_11, window_bounds = array<i64: 1, 24>}, {transform_indices = @transform_12, window_bounds = array<i64: 1, 8, 24>}]} {
    %c0_i32 = arith.constant 0 : i32
    %0 = arith.cmpi eq, %arg1, %c0_i32 : i32
    %1 = arith.extui %0 : i1 to i32
    %c0_i32_0 = arith.constant 0 : i32
    %2 = arith.cmpi ne, %1, %c0_i32_0 : i32
    scf.if %2 {
      %c0_94 = arith.constant 0 : index
      %c0_95 = arith.constant 0 : index
      %148 = vector.load %arg5[%c0_94, %c0_95] : memref<8x32xf32, #tpu.memory_space<vmem>>, vector<8x32xf32>
      %c0_96 = arith.constant 0 : index
      %c0_97 = arith.constant 0 : index
      %149 = vector.load %arg15[%c0_96, %c0_97] : memref<8x32xf32, #tpu.memory_space<vmem>>, vector<8x32xf32>
      tpu.vector_store %arg15[%c0_96, %c0_97], %148 {strides = array<i32>} : memref<8x32xf32, #tpu.memory_space<vmem>>, vector<8x32xf32>,
      %c0_98 = arith.constant 0 : index
      %c0_99 = arith.constant 0 : index
      %150 = vector.load %arg6[%c0_98, %c0_99] : memref<8x32xf32, #tpu.memory_space<vmem>>, vector<8x32xf32>
      %c0_100 = arith.constant 0 : index
      %c0_101 = arith.constant 0 : index
      %151 = vector.load %arg16[%c0_100, %c0_101] : memref<8x32xf32, #tpu.memory_space<vmem>>, vector<8x32xf32>
      tpu.vector_store %arg16[%c0_100, %c0_101], %150 {strides = array<i32>} : memref<8x32xf32, #tpu.memory_space<vmem>>, vector<8x32xf32>,
    } else {
    }
    %c0 = arith.constant 0 : index
    %c0_1 = arith.constant 0 : index
    %3 = vector.load %arg15[%c0, %c0_1] : memref<8x32xf32, #tpu.memory_space<vmem>>, vector<8x32xf32>
    %c0_2 = arith.constant 0 : index
    %c0_3 = arith.constant 0 : index
    %4 = vector.load %arg16[%c0_2, %c0_3] : memref<8x32xf32, #tpu.memory_space<vmem>>, vector<8x32xf32>
    %c0_4 = arith.constant 0 : index
    %c0_5 = arith.constant 0 : index
    %c0_6 = arith.constant 0 : index
    %5 = vector.load %arg4[%c0_4, %c0_5, %c0_6] : memref<8x8x32xf32, #tpu.memory_space<vmem>>, vector<8x8x32xf32>
    %6 = vector.shape_cast %3 : vector<8x32xf32> to vector<8x1x32xf32>
    "tpu.trace_start"() <{level = 10 : i32, message = "bqh,bth->bqt"}> : () -> ()
    %cst = arith.constant dense<0.000000e+00> : vector<8x1x8xf32>
    %7 = tpu.matmul %6, %5, %cst {dimension_numbers = #tpu.dot_dimension_numbers<[2], [2], [1], [1], [0, 0, 0, 1, 1, 1], [0], [0]>} : vector<8x1x32xf32>, vector<8x8x32xf32>, vector<8x1x8xf32> -> vector<8x1x8xf32>
    "tpu.trace_stop"() : () -> ()
    %cst_7 = arith.constant dense<0xFF800000> : vector<8x1xf32>
    %8 = vector.multi_reduction <maximumf>, %7, %cst_7 [2] : vector<8x1x8xf32> to vector<8x1xf32>
    %9 = vector.shape_cast %8 : vector<8x1xf32> to vector<8x1x1xf32>
    %10 = vector.broadcast %9 : vector<8x1x1xf32> to vector<8x1x8xf32>
    %11 = arith.subf %7, %10 : vector<8x1x8xf32>
    %12 = math.exp %11 : vector<8x1x8xf32>
    %cst_8 = arith.constant dense<0.000000e+00> : vector<8x1xf32>
    %13 = vector.multi_reduction <add>, %12, %cst_8 [2] : vector<8x1x8xf32> to vector<8x1xf32>
    %14 = vector.shape_cast %13 : vector<8x1xf32> to vector<8x1x1xf32>
    %15 = vector.broadcast %14 : vector<8x1x1xf32> to vector<8x1x8xf32>
    %16 = arith.divf %12, %15 : vector<8x1x8xf32>
    "tpu.trace_start"() <{level = 10 : i32, message = "bqt,bth->bqh"}> : () -> ()
    %cst_9 = arith.constant dense<0.000000e+00> : vector<8x1x32xf32>
    %17 = tpu.matmul %16, %5, %cst_9 {dimension_numbers = #tpu.dot_dimension_numbers<[2], [1], [1], [2], [0, 0, 0, 1, 1, 2], [0], [0]>} : vector<8x1x8xf32>, vector<8x8x32xf32>, vector<8x1x32xf32> -> vector<8x1x32xf32>
    "tpu.trace_stop"() : () -> ()
    %18 = vector.shape_cast %17 : vector<8x1x32xf32> to vector<8x32xf32>
    %19 = arith.index_cast %arg1 : i32 to index
    %c0_10 = arith.constant 0 : index
    %c0_11 = arith.constant 0 : index
    %20 = vector.load %arg2[%19, %c0_10, %c0_11] : memref<6x8x1xf32, #tpu.memory_space<vmem>>, vector<1x8x1xf32>
    %21 = vector.shape_cast %20 : vector<1x8x1xf32> to vector<8x1xf32>
    %22 = arith.index_cast %arg1 : i32 to index
    %c0_12 = arith.constant 0 : index
    %c0_13 = arith.constant 0 : index
    %23 = vector.load %arg3[%22, %c0_12, %c0_13] : memref<6x8x1xf32, #tpu.memory_space<vmem>>, vector<1x8x1xf32>
    %24 = vector.shape_cast %23 : vector<1x8x1xf32> to vector<8x1xf32>
    %c0_14 = arith.constant 0 : index
    %c0_15 = arith.constant 0 : index
    %c0_16 = arith.constant 0 : index
    %25 = vector.load %arg7[%c0_14, %c0_15, %c0_16] : memref<4x1x32xf32, #tpu.memory_space<vmem>>, vector<1x1x32xf32>
    %26 = vector.shape_cast %25 : vector<1x1x32xf32> to vector<1x32xf32>
    %27 = vector.broadcast %21 : vector<8x1xf32> to vector<8x32xf32>
    %28 = vector.broadcast %26 : vector<1x32xf32> to vector<8x32xf32>
    %29 = arith.mulf %27, %28 : vector<8x32xf32>
    %c0_17 = arith.constant 0 : index
    %c0_18 = arith.constant 0 : index
    %c0_19 = arith.constant 0 : index
    %30 = vector.load %arg8[%c0_17, %c0_18, %c0_19] : memref<4x1x32xf32, #tpu.memory_space<vmem>>, vector<1x1x32xf32>
    %31 = vector.shape_cast %30 : vector<1x1x32xf32> to vector<1x32xf32>
    %32 = vector.broadcast %24 : vector<8x1xf32> to vector<8x32xf32>
    %33 = vector.broadcast %31 : vector<1x32xf32> to vector<8x32xf32>
    %34 = arith.mulf %32, %33 : vector<8x32xf32>
    %35 = arith.addf %29, %34 : vector<8x32xf32>
    %c0_20 = arith.constant 0 : index
    %c0_21 = arith.constant 0 : index
    %c0_22 = arith.constant 0 : index
    %36 = vector.load %arg9[%c0_20, %c0_21, %c0_22] : memref<4x32x32xf32, #tpu.memory_space<vmem>>, vector<1x32x32xf32>
    %37 = vector.shape_cast %36 : vector<1x32x32xf32> to vector<32x32xf32>
    %cst_23 = arith.constant dense<0.000000e+00> : vector<8x32xf32>
    %38 = tpu.matmul %18, %37, %cst_23 {dimension_numbers = #tpu.dot_dimension_numbers<[1], [0], [0], [1], [0, 0, 1, 1], [], []>} : vector<8x32xf32>, vector<32x32xf32>, vector<8x32xf32> -> vector<8x32xf32>
    %39 = arith.addf %35, %38 : vector<8x32xf32>
    %c0_24 = arith.constant 0 : index
    %c0_25 = arith.constant 0 : index
    %c0_26 = arith.constant 0 : index
    %40 = vector.load %arg10[%c0_24, %c0_25, %c0_26] : memref<4x32x32xf32, #tpu.memory_space<vmem>>, vector<1x32x32xf32>
    %41 = vector.shape_cast %40 : vector<1x32x32xf32> to vector<32x32xf32>
    %cst_27 = arith.constant dense<0.000000e+00> : vector<8x32xf32>
    %42 = tpu.matmul %3, %41, %cst_27 {dimension_numbers = #tpu.dot_dimension_numbers<[1], [0], [0], [1], [0, 0, 1, 1], [], []>} : vector<8x32xf32>, vector<32x32xf32>, vector<8x32xf32> -> vector<8x32xf32>
    %43 = arith.addf %39, %42 : vector<8x32xf32>
    %c0_28 = arith.constant 0 : index
    %c0_29 = arith.constant 0 : index
    %c0_30 = arith.constant 0 : index
    %44 = vector.load %arg11[%c0_28, %c0_29, %c0_30] : memref<4x1x32xf32, #tpu.memory_space<vmem>>, vector<1x1x32xf32>
    %45 = vector.shape_cast %44 : vector<1x1x32xf32> to vector<1x32xf32>
    %46 = vector.broadcast %45 : vector<1x32xf32> to vector<8x32xf32>
    %47 = arith.addf %43, %46 : vector<8x32xf32>
    %c1 = arith.constant 1 : index
    %c0_31 = arith.constant 0 : index
    %c0_32 = arith.constant 0 : index
    %48 = vector.load %arg7[%c1, %c0_31, %c0_32] : memref<4x1x32xf32, #tpu.memory_space<vmem>>, vector<1x1x32xf32>
    %49 = vector.shape_cast %48 : vector<1x1x32xf32> to vector<1x32xf32>
    %50 = vector.broadcast %21 : vector<8x1xf32> to vector<8x32xf32>
    %51 = vector.broadcast %49 : vector<1x32xf32> to vector<8x32xf32>
    %52 = arith.mulf %50, %51 : vector<8x32xf32>
    %c1_33 = arith.constant 1 : index
    %c0_34 = arith.constant 0 : index
    %c0_35 = arith.constant 0 : index
    %53 = vector.load %arg8[%c1_33, %c0_34, %c0_35] : memref<4x1x32xf32, #tpu.memory_space<vmem>>, vector<1x1x32xf32>
    %54 = vector.shape_cast %53 : vector<1x1x32xf32> to vector<1x32xf32>
    %55 = vector.broadcast %24 : vector<8x1xf32> to vector<8x32xf32>
    %56 = vector.broadcast %54 : vector<1x32xf32> to vector<8x32xf32>
    %57 = arith.mulf %55, %56 : vector<8x32xf32>
    %58 = arith.addf %52, %57 : vector<8x32xf32>
    %c1_36 = arith.constant 1 : index
    %c0_37 = arith.constant 0 : index
    %c0_38 = arith.constant 0 : index
    %59 = vector.load %arg9[%c1_36, %c0_37, %c0_38] : memref<4x32x32xf32, #tpu.memory_space<vmem>>, vector<1x32x32xf32>
    %60 = vector.shape_cast %59 : vector<1x32x32xf32> to vector<32x32xf32>
    %cst_39 = arith.constant dense<0.000000e+00> : vector<8x32xf32>
    %61 = tpu.matmul %18, %60, %cst_39 {dimension_numbers = #tpu.dot_dimension_numbers<[1], [0], [0], [1], [0, 0, 1, 1], [], []>} : vector<8x32xf32>, vector<32x32xf32>, vector<8x32xf32> -> vector<8x32xf32>
    %62 = arith.addf %58, %61 : vector<8x32xf32>
    %c1_40 = arith.constant 1 : index
    %c0_41 = arith.constant 0 : index
    %c0_42 = arith.constant 0 : index
    %63 = vector.load %arg10[%c1_40, %c0_41, %c0_42] : memref<4x32x32xf32, #tpu.memory_space<vmem>>, vector<1x32x32xf32>
    %64 = vector.shape_cast %63 : vector<1x32x32xf32> to vector<32x32xf32>
    %cst_43 = arith.constant dense<0.000000e+00> : vector<8x32xf32>
    %65 = tpu.matmul %3, %64, %cst_43 {dimension_numbers = #tpu.dot_dimension_numbers<[1], [0], [0], [1], [0, 0, 1, 1], [], []>} : vector<8x32xf32>, vector<32x32xf32>, vector<8x32xf32> -> vector<8x32xf32>
    %66 = arith.addf %62, %65 : vector<8x32xf32>
    %c1_44 = arith.constant 1 : index
    %c0_45 = arith.constant 0 : index
    %c0_46 = arith.constant 0 : index
    %67 = vector.load %arg11[%c1_44, %c0_45, %c0_46] : memref<4x1x32xf32, #tpu.memory_space<vmem>>, vector<1x1x32xf32>
    %68 = vector.shape_cast %67 : vector<1x1x32xf32> to vector<1x32xf32>
    %69 = vector.broadcast %68 : vector<1x32xf32> to vector<8x32xf32>
    %70 = arith.addf %66, %69 : vector<8x32xf32>
    %c2 = arith.constant 2 : index
    %c0_47 = arith.constant 0 : index
    %c0_48 = arith.constant 0 : index
    %71 = vector.load %arg7[%c2, %c0_47, %c0_48] : memref<4x1x32xf32, #tpu.memory_space<vmem>>, vector<1x1x32xf32>
    %72 = vector.shape_cast %71 : vector<1x1x32xf32> to vector<1x32xf32>
    %73 = vector.broadcast %21 : vector<8x1xf32> to vector<8x32xf32>
    %74 = vector.broadcast %72 : vector<1x32xf32> to vector<8x32xf32>
    %75 = arith.mulf %73, %74 : vector<8x32xf32>
    %c2_49 = arith.constant 2 : index
    %c0_50 = arith.constant 0 : index
    %c0_51 = arith.constant 0 : index
    %76 = vector.load %arg8[%c2_49, %c0_50, %c0_51] : memref<4x1x32xf32, #tpu.memory_space<vmem>>, vector<1x1x32xf32>
    %77 = vector.shape_cast %76 : vector<1x1x32xf32> to vector<1x32xf32>
    %78 = vector.broadcast %24 : vector<8x1xf32> to vector<8x32xf32>
    %79 = vector.broadcast %77 : vector<1x32xf32> to vector<8x32xf32>
    %80 = arith.mulf %78, %79 : vector<8x32xf32>
    %81 = arith.addf %75, %80 : vector<8x32xf32>
    %c2_52 = arith.constant 2 : index
    %c0_53 = arith.constant 0 : index
    %c0_54 = arith.constant 0 : index
    %82 = vector.load %arg9[%c2_52, %c0_53, %c0_54] : memref<4x32x32xf32, #tpu.memory_space<vmem>>, vector<1x32x32xf32>
    %83 = vector.shape_cast %82 : vector<1x32x32xf32> to vector<32x32xf32>
    %cst_55 = arith.constant dense<0.000000e+00> : vector<8x32xf32>
    %84 = tpu.matmul %18, %83, %cst_55 {dimension_numbers = #tpu.dot_dimension_numbers<[1], [0], [0], [1], [0, 0, 1, 1], [], []>} : vector<8x32xf32>, vector<32x32xf32>, vector<8x32xf32> -> vector<8x32xf32>
    %85 = arith.addf %81, %84 : vector<8x32xf32>
    %c2_56 = arith.constant 2 : index
    %c0_57 = arith.constant 0 : index
    %c0_58 = arith.constant 0 : index
    %86 = vector.load %arg10[%c2_56, %c0_57, %c0_58] : memref<4x32x32xf32, #tpu.memory_space<vmem>>, vector<1x32x32xf32>
    %87 = vector.shape_cast %86 : vector<1x32x32xf32> to vector<32x32xf32>
    %cst_59 = arith.constant dense<0.000000e+00> : vector<8x32xf32>
    %88 = tpu.matmul %3, %87, %cst_59 {dimension_numbers = #tpu.dot_dimension_numbers<[1], [0], [0], [1], [0, 0, 1, 1], [], []>} : vector<8x32xf32>, vector<32x32xf32>, vector<8x32xf32> -> vector<8x32xf32>
    %89 = arith.addf %85, %88 : vector<8x32xf32>
    %c2_60 = arith.constant 2 : index
    %c0_61 = arith.constant 0 : index
    %c0_62 = arith.constant 0 : index
    %90 = vector.load %arg11[%c2_60, %c0_61, %c0_62] : memref<4x1x32xf32, #tpu.memory_space<vmem>>, vector<1x1x32xf32>
    %91 = vector.shape_cast %90 : vector<1x1x32xf32> to vector<1x32xf32>
    %92 = vector.broadcast %91 : vector<1x32xf32> to vector<8x32xf32>
    %93 = arith.addf %89, %92 : vector<8x32xf32>
    %c3 = arith.constant 3 : index
    %c0_63 = arith.constant 0 : index
    %c0_64 = arith.constant 0 : index
    %94 = vector.load %arg7[%c3, %c0_63, %c0_64] : memref<4x1x32xf32, #tpu.memory_space<vmem>>, vector<1x1x32xf32>
    %95 = vector.shape_cast %94 : vector<1x1x32xf32> to vector<1x32xf32>
    %96 = vector.broadcast %21 : vector<8x1xf32> to vector<8x32xf32>
    %97 = vector.broadcast %95 : vector<1x32xf32> to vector<8x32xf32>
    %98 = arith.mulf %96, %97 : vector<8x32xf32>
    %c3_65 = arith.constant 3 : index
    %c0_66 = arith.constant 0 : index
    %c0_67 = arith.constant 0 : index
    %99 = vector.load %arg8[%c3_65, %c0_66, %c0_67] : memref<4x1x32xf32, #tpu.memory_space<vmem>>, vector<1x1x32xf32>
    %100 = vector.shape_cast %99 : vector<1x1x32xf32> to vector<1x32xf32>
    %101 = vector.broadcast %24 : vector<8x1xf32> to vector<8x32xf32>
    %102 = vector.broadcast %100 : vector<1x32xf32> to vector<8x32xf32>
    %103 = arith.mulf %101, %102 : vector<8x32xf32>
    %104 = arith.addf %98, %103 : vector<8x32xf32>
    %c3_68 = arith.constant 3 : index
    %c0_69 = arith.constant 0 : index
    %c0_70 = arith.constant 0 : index
    %105 = vector.load %arg9[%c3_68, %c0_69, %c0_70] : memref<4x32x32xf32, #tpu.memory_space<vmem>>, vector<1x32x32xf32>
    %106 = vector.shape_cast %105 : vector<1x32x32xf32> to vector<32x32xf32>
    %cst_71 = arith.constant dense<0.000000e+00> : vector<8x32xf32>
    %107 = tpu.matmul %18, %106, %cst_71 {dimension_numbers = #tpu.dot_dimension_numbers<[1], [0], [0], [1], [0, 0, 1, 1], [], []>} : vector<8x32xf32>, vector<32x32xf32>, vector<8x32xf32> -> vector<8x32xf32>
    %108 = arith.addf %104, %107 : vector<8x32xf32>
    %c3_72 = arith.constant 3 : index
    %c0_73 = arith.constant 0 : index
    %c0_74 = arith.constant 0 : index
    %109 = vector.load %arg10[%c3_72, %c0_73, %c0_74] : memref<4x32x32xf32, #tpu.memory_space<vmem>>, vector<1x32x32xf32>
    %110 = vector.shape_cast %109 : vector<1x32x32xf32> to vector<32x32xf32>
    %cst_75 = arith.constant dense<0.000000e+00> : vector<8x32xf32>
    %111 = tpu.matmul %3, %110, %cst_75 {dimension_numbers = #tpu.dot_dimension_numbers<[1], [0], [0], [1], [0, 0, 1, 1], [], []>} : vector<8x32xf32>, vector<32x32xf32>, vector<8x32xf32> -> vector<8x32xf32>
    %112 = arith.addf %108, %111 : vector<8x32xf32>
    %c3_76 = arith.constant 3 : index
    %c0_77 = arith.constant 0 : index
    %c0_78 = arith.constant 0 : index
    %113 = vector.load %arg11[%c3_76, %c0_77, %c0_78] : memref<4x1x32xf32, #tpu.memory_space<vmem>>, vector<1x1x32xf32>
    %114 = vector.shape_cast %113 : vector<1x1x32xf32> to vector<1x32xf32>
    %115 = vector.broadcast %114 : vector<1x32xf32> to vector<8x32xf32>
    %116 = arith.addf %112, %115 : vector<8x32xf32>
    %117 = arith.negf %47 : vector<8x32xf32>
    %118 = math.exp %117 : vector<8x32xf32>
    %cst_79 = arith.constant 1.000000e+00 : f32
    %119 = vector.broadcast %cst_79 : f32 to vector<8x32xf32>
    %120 = arith.addf %119, %118 : vector<8x32xf32>
    %121 = arith.divf %119, %120 : vector<8x32xf32>
    %122 = arith.negf %70 : vector<8x32xf32>
    %123 = math.exp %122 : vector<8x32xf32>
    %cst_80 = arith.constant 1.000000e+00 : f32
    %124 = vector.broadcast %cst_80 : f32 to vector<8x32xf32>
    %125 = arith.addf %124, %123 : vector<8x32xf32>
    %126 = arith.divf %124, %125 : vector<8x32xf32>
    %127 = math.tanh %93 : vector<8x32xf32>
    %128 = arith.negf %116 : vector<8x32xf32>
    %129 = math.exp %128 : vector<8x32xf32>
    %cst_81 = arith.constant 1.000000e+00 : f32
    %130 = vector.broadcast %cst_81 : f32 to vector<8x32xf32>
    %131 = arith.addf %130, %129 : vector<8x32xf32>
    %132 = arith.divf %130, %131 : vector<8x32xf32>
    %133 = arith.mulf %126, %4 : vector<8x32xf32>
    %134 = arith.mulf %121, %127 : vector<8x32xf32>
    %135 = arith.addf %133, %134 : vector<8x32xf32>
    %136 = math.tanh %135 : vector<8x32xf32>
    %137 = arith.mulf %132, %136 : vector<8x32xf32>
    %c0_82 = arith.constant 0 : index
    %c0_83 = arith.constant 0 : index
    %138 = vector.load %arg15[%c0_82, %c0_83] : memref<8x32xf32, #tpu.memory_space<vmem>>, vector<8x32xf32>
    tpu.vector_store %arg15[%c0_82, %c0_83], %137 {strides = array<i32>} : memref<8x32xf32, #tpu.memory_space<vmem>>, vector<8x32xf32>,
    %c0_84 = arith.constant 0 : index
    %c0_85 = arith.constant 0 : index
    %139 = vector.load %arg16[%c0_84, %c0_85] : memref<8x32xf32, #tpu.memory_space<vmem>>, vector<8x32xf32>
    tpu.vector_store %arg16[%c0_84, %c0_85], %135 {strides = array<i32>} : memref<8x32xf32, #tpu.memory_space<vmem>>, vector<8x32xf32>,
    %c0_86 = arith.constant 0 : index
    %c0_87 = arith.constant 0 : index
    %140 = vector.load %arg12[%c0_86, %c0_87] : memref<32x24xf32, #tpu.memory_space<vmem>>, vector<32x24xf32>
    %cst_88 = arith.constant dense<0.000000e+00> : vector<8x24xf32>
    %141 = tpu.matmul %137, %140, %cst_88 {dimension_numbers = #tpu.dot_dimension_numbers<[1], [0], [0], [1], [0, 0, 1, 1], [], []>} : vector<8x32xf32>, vector<32x24xf32>, vector<8x24xf32> -> vector<8x24xf32>
    %c0_89 = arith.constant 0 : index
    %c0_90 = arith.constant 0 : index
    %142 = vector.load %arg13[%c0_89, %c0_90] : memref<1x24xf32, #tpu.memory_space<vmem>>, vector<1x24xf32>
    %143 = vector.broadcast %142 : vector<1x24xf32> to vector<8x24xf32>
    %144 = arith.addf %141, %143 : vector<8x24xf32>
    %c0_91 = arith.constant 0 : index
    %c0_92 = arith.constant 0 : index
    %c0_93 = arith.constant 0 : index
    %145 = vector.load %arg14[%c0_91, %c0_92, %c0_93] : memref<1x8x24xf32, #tpu.memory_space<vmem>>, vector<1x8x24xf32>
    %146 = vector.shape_cast %145 : vector<1x8x24xf32> to vector<8x24xf32>
    %147 = vector.shape_cast %144 : vector<8x24xf32> to vector<1x8x24xf32>
    tpu.vector_store %arg14[%c0_91, %c0_92, %c0_93], %147 {strides = array<i32>} : memref<1x8x24xf32, #tpu.memory_space<vmem>>, vector<1x8x24xf32>,
    return
  }
  func.func @transform_0(%arg0: i32, %arg1: i32) -> (i32, i32, i32) {
    %c0_i32 = arith.constant 0 : i32
    %c0_i32_0 = arith.constant 0 : i32
    %c0_i32_1 = arith.constant 0 : i32
    return %c0_i32, %arg0, %c0_i32_0 : i32, i32, i32
  }
  func.func @transform_1(%arg0: i32, %arg1: i32) -> (i32, i32, i32) {
    %c0_i32 = arith.constant 0 : i32
    %c0_i32_0 = arith.constant 0 : i32
    %c0_i32_1 = arith.constant 0 : i32
    return %c0_i32, %arg0, %c0_i32_0 : i32, i32, i32
  }
  func.func @transform_2(%arg0: i32, %arg1: i32) -> (i32, i32, i32) {
    %c0_i32 = arith.constant 0 : i32
    %c0_i32_0 = arith.constant 0 : i32
    %c0_i32_1 = arith.constant 0 : i32
    return %arg0, %c0_i32, %c0_i32_0 : i32, i32, i32
  }
  func.func @transform_3(%arg0: i32, %arg1: i32) -> (i32, i32) {
    %c0_i32 = arith.constant 0 : i32
    %c0_i32_0 = arith.constant 0 : i32
    return %arg0, %c0_i32 : i32, i32
  }
  func.func @transform_4(%arg0: i32, %arg1: i32) -> (i32, i32) {
    %c0_i32 = arith.constant 0 : i32
    %c0_i32_0 = arith.constant 0 : i32
    return %arg0, %c0_i32 : i32, i32
  }
  func.func @transform_5(%arg0: i32, %arg1: i32) -> (i32, i32, i32) {
    %c0_i32 = arith.constant 0 : i32
    %c0_i32_0 = arith.constant 0 : i32
    %c0_i32_1 = arith.constant 0 : i32
    %c0_i32_2 = arith.constant 0 : i32
    return %c0_i32, %c0_i32_0, %c0_i32_1 : i32, i32, i32
  }
  func.func @transform_6(%arg0: i32, %arg1: i32) -> (i32, i32, i32) {
    %c0_i32 = arith.constant 0 : i32
    %c0_i32_0 = arith.constant 0 : i32
    %c0_i32_1 = arith.constant 0 : i32
    %c0_i32_2 = arith.constant 0 : i32
    return %c0_i32, %c0_i32_0, %c0_i32_1 : i32, i32, i32
  }
  func.func @transform_7(%arg0: i32, %arg1: i32) -> (i32, i32, i32) {
    %c0_i32 = arith.constant 0 : i32
    %c0_i32_0 = arith.constant 0 : i32
    %c0_i32_1 = arith.constant 0 : i32
    %c0_i32_2 = arith.constant 0 : i32
    return %c0_i32, %c0_i32_0, %c0_i32_1 : i32, i32, i32
  }
  func.func @transform_8(%arg0: i32, %arg1: i32) -> (i32, i32, i32) {
    %c0_i32 = arith.constant 0 : i32
    %c0_i32_0 = arith.constant 0 : i32
    %c0_i32_1 = arith.constant 0 : i32
    %c0_i32_2 = arith.constant 0 : i32
    return %c0_i32, %c0_i32_0, %c0_i32_1 : i32, i32, i32
  }
  func.func @transform_9(%arg0: i32, %arg1: i32) -> (i32, i32, i32) {
    %c0_i32 = arith.constant 0 : i32
    %c0_i32_0 = arith.constant 0 : i32
    %c0_i32_1 = arith.constant 0 : i32
    %c0_i32_2 = arith.constant 0 : i32
    return %c0_i32, %c0_i32_0, %c0_i32_1 : i32, i32, i32
  }
  func.func @transform_10(%arg0: i32, %arg1: i32) -> (i32, i32) {
    %c0_i32 = arith.constant 0 : i32
    %c0_i32_0 = arith.constant 0 : i32
    %c0_i32_1 = arith.constant 0 : i32
    return %c0_i32, %c0_i32_0 : i32, i32
  }
  func.func @transform_11(%arg0: i32, %arg1: i32) -> (i32, i32) {
    %c0_i32 = arith.constant 0 : i32
    %c0_i32_0 = arith.constant 0 : i32
    %c0_i32_1 = arith.constant 0 : i32
    return %c0_i32, %c0_i32_0 : i32, i32
  }
  func.func @transform_12(%arg0: i32, %arg1: i32) -> (i32, i32, i32) {
    %c0_i32 = arith.constant 0 : i32
    %c0_i32_0 = arith.constant 0 : i32
    return %arg1, %arg0, %c0_i32 : i32, i32, i32
  }
}

module attributes {stable_mosaic.version = 11 : i64} {
  func.func @_encoder_kernel(%arg0: memref<64x4xf32, #tpu.memory_space<vmem>>, %arg1: memref<4x4x32xf32, #tpu.memory_space<vmem>>, %arg2: memref<4x32x32xf32, #tpu.memory_space<vmem>>, %arg3: memref<4x1x32xf32, #tpu.memory_space<vmem>>, %arg4: memref<8x8x32xf32, #tpu.memory_space<vmem>>, %arg5: memref<8x32xf32, #tpu.memory_space<vmem>>, %arg6: memref<8x32xf32, #tpu.memory_space<vmem>>, %arg7: memref<8x8x32xf32, #tpu.memory_space<vmem>>, %arg8: memref<8x8x32xf32, #tpu.memory_space<vmem>>, %arg9: memref<8x8x32xf32, #tpu.memory_space<vmem>>, %arg10: memref<8x8x32xf32, #tpu.memory_space<vmem>>) attributes {dimension_semantics = [], scalar_prefetch = 0 : i64, scratch_operands = 4 : i64, tpu.core_type = #tpu.core_type<tc>} {
    %c0 = arith.constant 0 : index
    %c0_0 = arith.constant 0 : index
    %0 = vector.load %arg0[%c0, %c0_0] : memref<64x4xf32, #tpu.memory_space<vmem>>, vector<64x4xf32>
    %c0_1 = arith.constant 0 : index
    %c0_2 = arith.constant 0 : index
    %c0_3 = arith.constant 0 : index
    %1 = vector.load %arg1[%c0_1, %c0_2, %c0_3] : memref<4x4x32xf32, #tpu.memory_space<vmem>>, vector<1x4x32xf32>
    %2 = vector.shape_cast %1 : vector<1x4x32xf32> to vector<4x32xf32>
    %cst = arith.constant dense<0.000000e+00> : vector<64x32xf32>
    %3 = tpu.matmul %0, %2, %cst {dimension_numbers = #tpu.dot_dimension_numbers<[1], [0], [0], [1], [0, 0, 1, 1], [], []>} : vector<64x4xf32>, vector<4x32xf32>, vector<64x32xf32> -> vector<64x32xf32>
    %4 = vector.shape_cast %3 : vector<64x32xf32> to vector<8x8x32xf32>
    %c0_4 = arith.constant 0 : index
    %c0_5 = arith.constant 0 : index
    %c0_6 = arith.constant 0 : index
    %5 = vector.load %arg7[%c0_4, %c0_5, %c0_6] : memref<8x8x32xf32, #tpu.memory_space<vmem>>, vector<8x8x32xf32>
    tpu.vector_store %arg7[%c0_4, %c0_5, %c0_6], %4 {strides = array<i32>} : memref<8x8x32xf32, #tpu.memory_space<vmem>>, vector<8x8x32xf32>,
    %c1 = arith.constant 1 : index
    %c0_7 = arith.constant 0 : index
    %c0_8 = arith.constant 0 : index
    %6 = vector.load %arg1[%c1, %c0_7, %c0_8] : memref<4x4x32xf32, #tpu.memory_space<vmem>>, vector<1x4x32xf32>
    %7 = vector.shape_cast %6 : vector<1x4x32xf32> to vector<4x32xf32>
    %cst_9 = arith.constant dense<0.000000e+00> : vector<64x32xf32>
    %8 = tpu.matmul %0, %7, %cst_9 {dimension_numbers = #tpu.dot_dimension_numbers<[1], [0], [0], [1], [0, 0, 1, 1], [], []>} : vector<64x4xf32>, vector<4x32xf32>, vector<64x32xf32> -> vector<64x32xf32>
    %9 = vector.shape_cast %8 : vector<64x32xf32> to vector<8x8x32xf32>
    %c0_10 = arith.constant 0 : index
    %c0_11 = arith.constant 0 : index
    %c0_12 = arith.constant 0 : index
    %10 = vector.load %arg8[%c0_10, %c0_11, %c0_12] : memref<8x8x32xf32, #tpu.memory_space<vmem>>, vector<8x8x32xf32>
    tpu.vector_store %arg8[%c0_10, %c0_11, %c0_12], %9 {strides = array<i32>} : memref<8x8x32xf32, #tpu.memory_space<vmem>>, vector<8x8x32xf32>,
    %c2 = arith.constant 2 : index
    %c0_13 = arith.constant 0 : index
    %c0_14 = arith.constant 0 : index
    %11 = vector.load %arg1[%c2, %c0_13, %c0_14] : memref<4x4x32xf32, #tpu.memory_space<vmem>>, vector<1x4x32xf32>
    %12 = vector.shape_cast %11 : vector<1x4x32xf32> to vector<4x32xf32>
    %cst_15 = arith.constant dense<0.000000e+00> : vector<64x32xf32>
    %13 = tpu.matmul %0, %12, %cst_15 {dimension_numbers = #tpu.dot_dimension_numbers<[1], [0], [0], [1], [0, 0, 1, 1], [], []>} : vector<64x4xf32>, vector<4x32xf32>, vector<64x32xf32> -> vector<64x32xf32>
    %14 = vector.shape_cast %13 : vector<64x32xf32> to vector<8x8x32xf32>
    %c0_16 = arith.constant 0 : index
    %c0_17 = arith.constant 0 : index
    %c0_18 = arith.constant 0 : index
    %15 = vector.load %arg9[%c0_16, %c0_17, %c0_18] : memref<8x8x32xf32, #tpu.memory_space<vmem>>, vector<8x8x32xf32>
    tpu.vector_store %arg9[%c0_16, %c0_17, %c0_18], %14 {strides = array<i32>} : memref<8x8x32xf32, #tpu.memory_space<vmem>>, vector<8x8x32xf32>,
    %c3 = arith.constant 3 : index
    %c0_19 = arith.constant 0 : index
    %c0_20 = arith.constant 0 : index
    %16 = vector.load %arg1[%c3, %c0_19, %c0_20] : memref<4x4x32xf32, #tpu.memory_space<vmem>>, vector<1x4x32xf32>
    %17 = vector.shape_cast %16 : vector<1x4x32xf32> to vector<4x32xf32>
    %cst_21 = arith.constant dense<0.000000e+00> : vector<64x32xf32>
    %18 = tpu.matmul %0, %17, %cst_21 {dimension_numbers = #tpu.dot_dimension_numbers<[1], [0], [0], [1], [0, 0, 1, 1], [], []>} : vector<64x4xf32>, vector<4x32xf32>, vector<64x32xf32> -> vector<64x32xf32>
    %19 = vector.shape_cast %18 : vector<64x32xf32> to vector<8x8x32xf32>
    %c0_22 = arith.constant 0 : index
    %c0_23 = arith.constant 0 : index
    %c0_24 = arith.constant 0 : index
    %20 = vector.load %arg10[%c0_22, %c0_23, %c0_24] : memref<8x8x32xf32, #tpu.memory_space<vmem>>, vector<8x8x32xf32>
    tpu.vector_store %arg10[%c0_22, %c0_23, %c0_24], %19 {strides = array<i32>} : memref<8x8x32xf32, #tpu.memory_space<vmem>>, vector<8x8x32xf32>,
    %c0_25 = arith.constant 0 : index
    %c0_26 = arith.constant 0 : index
    %c0_27 = arith.constant 0 : index
    %21 = vector.load %arg2[%c0_25, %c0_26, %c0_27] : memref<4x32x32xf32, #tpu.memory_space<vmem>>, vector<1x32x32xf32>
    %22 = vector.shape_cast %21 : vector<1x32x32xf32> to vector<32x32xf32>
    %c1_28 = arith.constant 1 : index
    %c0_29 = arith.constant 0 : index
    %c0_30 = arith.constant 0 : index
    %23 = vector.load %arg2[%c1_28, %c0_29, %c0_30] : memref<4x32x32xf32, #tpu.memory_space<vmem>>, vector<1x32x32xf32>
    %24 = vector.shape_cast %23 : vector<1x32x32xf32> to vector<32x32xf32>
    %c2_31 = arith.constant 2 : index
    %c0_32 = arith.constant 0 : index
    %c0_33 = arith.constant 0 : index
    %25 = vector.load %arg2[%c2_31, %c0_32, %c0_33] : memref<4x32x32xf32, #tpu.memory_space<vmem>>, vector<1x32x32xf32>
    %26 = vector.shape_cast %25 : vector<1x32x32xf32> to vector<32x32xf32>
    %c3_34 = arith.constant 3 : index
    %c0_35 = arith.constant 0 : index
    %c0_36 = arith.constant 0 : index
    %27 = vector.load %arg2[%c3_34, %c0_35, %c0_36] : memref<4x32x32xf32, #tpu.memory_space<vmem>>, vector<1x32x32xf32>
    %28 = vector.shape_cast %27 : vector<1x32x32xf32> to vector<32x32xf32>
    %c0_37 = arith.constant 0 : index
    %c0_38 = arith.constant 0 : index
    %c0_39 = arith.constant 0 : index
    %29 = vector.load %arg3[%c0_37, %c0_38, %c0_39] : memref<4x1x32xf32, #tpu.memory_space<vmem>>, vector<1x1x32xf32>
    %30 = vector.shape_cast %29 : vector<1x1x32xf32> to vector<1x32xf32>
    %c1_40 = arith.constant 1 : index
    %c0_41 = arith.constant 0 : index
    %c0_42 = arith.constant 0 : index
    %31 = vector.load %arg3[%c1_40, %c0_41, %c0_42] : memref<4x1x32xf32, #tpu.memory_space<vmem>>, vector<1x1x32xf32>
    %32 = vector.shape_cast %31 : vector<1x1x32xf32> to vector<1x32xf32>
    %c2_43 = arith.constant 2 : index
    %c0_44 = arith.constant 0 : index
    %c0_45 = arith.constant 0 : index
    %33 = vector.load %arg3[%c2_43, %c0_44, %c0_45] : memref<4x1x32xf32, #tpu.memory_space<vmem>>, vector<1x1x32xf32>
    %34 = vector.shape_cast %33 : vector<1x1x32xf32> to vector<1x32xf32>
    %c3_46 = arith.constant 3 : index
    %c0_47 = arith.constant 0 : index
    %c0_48 = arith.constant 0 : index
    %35 = vector.load %arg3[%c3_46, %c0_47, %c0_48] : memref<4x1x32xf32, #tpu.memory_space<vmem>>, vector<1x1x32xf32>
    %36 = vector.shape_cast %35 : vector<1x1x32xf32> to vector<1x32xf32>
    %cst_49 = arith.constant 0.000000e+00 : f32
    %37 = vector.broadcast %cst_49 : f32 to vector<8x32xf32>
    %cst_50 = arith.constant 0.000000e+00 : f32
    %38 = vector.broadcast %cst_50 : f32 to vector<8x32xf32>
    %c0_i32 = arith.constant 0 : i32
    %39 = arith.index_cast %c0_i32 : i32 to index
    %c0_51 = arith.constant 0 : index
    %c0_52 = arith.constant 0 : index
    %40 = vector.load %arg7[%39, %c0_51, %c0_52] : memref<8x8x32xf32, #tpu.memory_space<vmem>>, vector<1x8x32xf32>
    %41 = vector.shape_cast %40 : vector<1x8x32xf32> to vector<8x32xf32>
    %cst_53 = arith.constant dense<0.000000e+00> : vector<8x32xf32>
    %42 = tpu.matmul %37, %22, %cst_53 {dimension_numbers = #tpu.dot_dimension_numbers<[1], [0], [0], [1], [0, 0, 1, 1], [], []>} : vector<8x32xf32>, vector<32x32xf32>, vector<8x32xf32> -> vector<8x32xf32>
    %43 = arith.addf %41, %42 : vector<8x32xf32>
    %44 = vector.broadcast %30 : vector<1x32xf32> to vector<8x32xf32>
    %45 = arith.addf %43, %44 : vector<8x32xf32>
    %46 = arith.index_cast %c0_i32 : i32 to index
    %c0_54 = arith.constant 0 : index
    %c0_55 = arith.constant 0 : index
    %47 = vector.load %arg8[%46, %c0_54, %c0_55] : memref<8x8x32xf32, #tpu.memory_space<vmem>>, vector<1x8x32xf32>
    %48 = vector.shape_cast %47 : vector<1x8x32xf32> to vector<8x32xf32>
    %cst_56 = arith.constant dense<0.000000e+00> : vector<8x32xf32>
    %49 = tpu.matmul %37, %24, %cst_56 {dimension_numbers = #tpu.dot_dimension_numbers<[1], [0], [0], [1], [0, 0, 1, 1], [], []>} : vector<8x32xf32>, vector<32x32xf32>, vector<8x32xf32> -> vector<8x32xf32>
    %50 = arith.addf %48, %49 : vector<8x32xf32>
    %51 = vector.broadcast %32 : vector<1x32xf32> to vector<8x32xf32>
    %52 = arith.addf %50, %51 : vector<8x32xf32>
    %53 = arith.index_cast %c0_i32 : i32 to index
    %c0_57 = arith.constant 0 : index
    %c0_58 = arith.constant 0 : index
    %54 = vector.load %arg9[%53, %c0_57, %c0_58] : memref<8x8x32xf32, #tpu.memory_space<vmem>>, vector<1x8x32xf32>
    %55 = vector.shape_cast %54 : vector<1x8x32xf32> to vector<8x32xf32>
    %cst_59 = arith.constant dense<0.000000e+00> : vector<8x32xf32>
    %56 = tpu.matmul %37, %26, %cst_59 {dimension_numbers = #tpu.dot_dimension_numbers<[1], [0], [0], [1], [0, 0, 1, 1], [], []>} : vector<8x32xf32>, vector<32x32xf32>, vector<8x32xf32> -> vector<8x32xf32>
    %57 = arith.addf %55, %56 : vector<8x32xf32>
    %58 = vector.broadcast %34 : vector<1x32xf32> to vector<8x32xf32>
    %59 = arith.addf %57, %58 : vector<8x32xf32>
    %60 = arith.index_cast %c0_i32 : i32 to index
    %c0_60 = arith.constant 0 : index
    %c0_61 = arith.constant 0 : index
    %61 = vector.load %arg10[%60, %c0_60, %c0_61] : memref<8x8x32xf32, #tpu.memory_space<vmem>>, vector<1x8x32xf32>
    %62 = vector.shape_cast %61 : vector<1x8x32xf32> to vector<8x32xf32>
    %cst_62 = arith.constant dense<0.000000e+00> : vector<8x32xf32>
    %63 = tpu.matmul %37, %28, %cst_62 {dimension_numbers = #tpu.dot_dimension_numbers<[1], [0], [0], [1], [0, 0, 1, 1], [], []>} : vector<8x32xf32>, vector<32x32xf32>, vector<8x32xf32> -> vector<8x32xf32>
    %64 = arith.addf %62, %63 : vector<8x32xf32>
    %65 = vector.broadcast %36 : vector<1x32xf32> to vector<8x32xf32>
    %66 = arith.addf %64, %65 : vector<8x32xf32>
    %67 = arith.negf %45 : vector<8x32xf32>
    %68 = math.exp %67 : vector<8x32xf32>
    %cst_63 = arith.constant 1.000000e+00 : f32
    %69 = vector.broadcast %cst_63 : f32 to vector<8x32xf32>
    %70 = arith.addf %69, %68 : vector<8x32xf32>
    %71 = arith.divf %69, %70 : vector<8x32xf32>
    %72 = arith.negf %52 : vector<8x32xf32>
    %73 = math.exp %72 : vector<8x32xf32>
    %cst_64 = arith.constant 1.000000e+00 : f32
    %74 = vector.broadcast %cst_64 : f32 to vector<8x32xf32>
    %75 = arith.addf %74, %73 : vector<8x32xf32>
    %76 = arith.divf %74, %75 : vector<8x32xf32>
    %77 = math.tanh %59 : vector<8x32xf32>
    %78 = arith.negf %66 : vector<8x32xf32>
    %79 = math.exp %78 : vector<8x32xf32>
    %cst_65 = arith.constant 1.000000e+00 : f32
    %80 = vector.broadcast %cst_65 : f32 to vector<8x32xf32>
    %81 = arith.addf %80, %79 : vector<8x32xf32>
    %82 = arith.divf %80, %81 : vector<8x32xf32>
    %83 = arith.mulf %76, %38 : vector<8x32xf32>
    %84 = arith.mulf %71, %77 : vector<8x32xf32>
    %85 = arith.addf %83, %84 : vector<8x32xf32>
    %86 = math.tanh %85 : vector<8x32xf32>
    %87 = arith.mulf %82, %86 : vector<8x32xf32>
    %88 = arith.index_cast %c0_i32 : i32 to index
    %c0_66 = arith.constant 0 : index
    %c0_67 = arith.constant 0 : index
    %89 = vector.load %arg4[%88, %c0_66, %c0_67] : memref<8x8x32xf32, #tpu.memory_space<vmem>>, vector<1x8x32xf32>
    %90 = vector.shape_cast %89 : vector<1x8x32xf32> to vector<8x32xf32>
    %91 = vector.shape_cast %87 : vector<8x32xf32> to vector<1x8x32xf32>
    tpu.vector_store %arg4[%88, %c0_66, %c0_67], %91 {strides = array<i32>} : memref<8x8x32xf32, #tpu.memory_space<vmem>>, vector<1x8x32xf32>,
    %c1_i32 = arith.constant 1 : i32
    %92 = arith.index_cast %c1_i32 : i32 to index
    %c0_68 = arith.constant 0 : index
    %c0_69 = arith.constant 0 : index
    %93 = vector.load %arg7[%92, %c0_68, %c0_69] : memref<8x8x32xf32, #tpu.memory_space<vmem>>, vector<1x8x32xf32>
    %94 = vector.shape_cast %93 : vector<1x8x32xf32> to vector<8x32xf32>
    %cst_70 = arith.constant dense<0.000000e+00> : vector<8x32xf32>
    %95 = tpu.matmul %87, %22, %cst_70 {dimension_numbers = #tpu.dot_dimension_numbers<[1], [0], [0], [1], [0, 0, 1, 1], [], []>} : vector<8x32xf32>, vector<32x32xf32>, vector<8x32xf32> -> vector<8x32xf32>
    %96 = arith.addf %94, %95 : vector<8x32xf32>
    %97 = vector.broadcast %30 : vector<1x32xf32> to vector<8x32xf32>
    %98 = arith.addf %96, %97 : vector<8x32xf32>
    %99 = arith.index_cast %c1_i32 : i32 to index
    %c0_71 = arith.constant 0 : index
    %c0_72 = arith.constant 0 : index
    %100 = vector.load %arg8[%99, %c0_71, %c0_72] : memref<8x8x32xf32, #tpu.memory_space<vmem>>, vector<1x8x32xf32>
    %101 = vector.shape_cast %100 : vector<1x8x32xf32> to vector<8x32xf32>
    %cst_73 = arith.constant dense<0.000000e+00> : vector<8x32xf32>
    %102 = tpu.matmul %87, %24, %cst_73 {dimension_numbers = #tpu.dot_dimension_numbers<[1], [0], [0], [1], [0, 0, 1, 1], [], []>} : vector<8x32xf32>, vector<32x32xf32>, vector<8x32xf32> -> vector<8x32xf32>
    %103 = arith.addf %101, %102 : vector<8x32xf32>
    %104 = vector.broadcast %32 : vector<1x32xf32> to vector<8x32xf32>
    %105 = arith.addf %103, %104 : vector<8x32xf32>
    %106 = arith.index_cast %c1_i32 : i32 to index
    %c0_74 = arith.constant 0 : index
    %c0_75 = arith.constant 0 : index
    %107 = vector.load %arg9[%106, %c0_74, %c0_75] : memref<8x8x32xf32, #tpu.memory_space<vmem>>, vector<1x8x32xf32>
    %108 = vector.shape_cast %107 : vector<1x8x32xf32> to vector<8x32xf32>
    %cst_76 = arith.constant dense<0.000000e+00> : vector<8x32xf32>
    %109 = tpu.matmul %87, %26, %cst_76 {dimension_numbers = #tpu.dot_dimension_numbers<[1], [0], [0], [1], [0, 0, 1, 1], [], []>} : vector<8x32xf32>, vector<32x32xf32>, vector<8x32xf32> -> vector<8x32xf32>
    %110 = arith.addf %108, %109 : vector<8x32xf32>
    %111 = vector.broadcast %34 : vector<1x32xf32> to vector<8x32xf32>
    %112 = arith.addf %110, %111 : vector<8x32xf32>
    %113 = arith.index_cast %c1_i32 : i32 to index
    %c0_77 = arith.constant 0 : index
    %c0_78 = arith.constant 0 : index
    %114 = vector.load %arg10[%113, %c0_77, %c0_78] : memref<8x8x32xf32, #tpu.memory_space<vmem>>, vector<1x8x32xf32>
    %115 = vector.shape_cast %114 : vector<1x8x32xf32> to vector<8x32xf32>
    %cst_79 = arith.constant dense<0.000000e+00> : vector<8x32xf32>
    %116 = tpu.matmul %87, %28, %cst_79 {dimension_numbers = #tpu.dot_dimension_numbers<[1], [0], [0], [1], [0, 0, 1, 1], [], []>} : vector<8x32xf32>, vector<32x32xf32>, vector<8x32xf32> -> vector<8x32xf32>
    %117 = arith.addf %115, %116 : vector<8x32xf32>
    %118 = vector.broadcast %36 : vector<1x32xf32> to vector<8x32xf32>
    %119 = arith.addf %117, %118 : vector<8x32xf32>
    %120 = arith.negf %98 : vector<8x32xf32>
    %121 = math.exp %120 : vector<8x32xf32>
    %cst_80 = arith.constant 1.000000e+00 : f32
    %122 = vector.broadcast %cst_80 : f32 to vector<8x32xf32>
    %123 = arith.addf %122, %121 : vector<8x32xf32>
    %124 = arith.divf %122, %123 : vector<8x32xf32>
    %125 = arith.negf %105 : vector<8x32xf32>
    %126 = math.exp %125 : vector<8x32xf32>
    %cst_81 = arith.constant 1.000000e+00 : f32
    %127 = vector.broadcast %cst_81 : f32 to vector<8x32xf32>
    %128 = arith.addf %127, %126 : vector<8x32xf32>
    %129 = arith.divf %127, %128 : vector<8x32xf32>
    %130 = math.tanh %112 : vector<8x32xf32>
    %131 = arith.negf %119 : vector<8x32xf32>
    %132 = math.exp %131 : vector<8x32xf32>
    %cst_82 = arith.constant 1.000000e+00 : f32
    %133 = vector.broadcast %cst_82 : f32 to vector<8x32xf32>
    %134 = arith.addf %133, %132 : vector<8x32xf32>
    %135 = arith.divf %133, %134 : vector<8x32xf32>
    %136 = arith.mulf %129, %85 : vector<8x32xf32>
    %137 = arith.mulf %124, %130 : vector<8x32xf32>
    %138 = arith.addf %136, %137 : vector<8x32xf32>
    %139 = math.tanh %138 : vector<8x32xf32>
    %140 = arith.mulf %135, %139 : vector<8x32xf32>
    %141 = arith.index_cast %c1_i32 : i32 to index
    %c0_83 = arith.constant 0 : index
    %c0_84 = arith.constant 0 : index
    %142 = vector.load %arg4[%141, %c0_83, %c0_84] : memref<8x8x32xf32, #tpu.memory_space<vmem>>, vector<1x8x32xf32>
    %143 = vector.shape_cast %142 : vector<1x8x32xf32> to vector<8x32xf32>
    %144 = vector.shape_cast %140 : vector<8x32xf32> to vector<1x8x32xf32>
    tpu.vector_store %arg4[%141, %c0_83, %c0_84], %144 {strides = array<i32>} : memref<8x8x32xf32, #tpu.memory_space<vmem>>, vector<1x8x32xf32>,
    %c2_i32 = arith.constant 2 : i32
    %145 = arith.index_cast %c2_i32 : i32 to index
    %c0_85 = arith.constant 0 : index
    %c0_86 = arith.constant 0 : index
    %146 = vector.load %arg7[%145, %c0_85, %c0_86] : memref<8x8x32xf32, #tpu.memory_space<vmem>>, vector<1x8x32xf32>
    %147 = vector.shape_cast %146 : vector<1x8x32xf32> to vector<8x32xf32>
    %cst_87 = arith.constant dense<0.000000e+00> : vector<8x32xf32>
    %148 = tpu.matmul %140, %22, %cst_87 {dimension_numbers = #tpu.dot_dimension_numbers<[1], [0], [0], [1], [0, 0, 1, 1], [], []>} : vector<8x32xf32>, vector<32x32xf32>, vector<8x32xf32> -> vector<8x32xf32>
    %149 = arith.addf %147, %148 : vector<8x32xf32>
    %150 = vector.broadcast %30 : vector<1x32xf32> to vector<8x32xf32>
    %151 = arith.addf %149, %150 : vector<8x32xf32>
    %152 = arith.index_cast %c2_i32 : i32 to index
    %c0_88 = arith.constant 0 : index
    %c0_89 = arith.constant 0 : index
    %153 = vector.load %arg8[%152, %c0_88, %c0_89] : memref<8x8x32xf32, #tpu.memory_space<vmem>>, vector<1x8x32xf32>
    %154 = vector.shape_cast %153 : vector<1x8x32xf32> to vector<8x32xf32>
    %cst_90 = arith.constant dense<0.000000e+00> : vector<8x32xf32>
    %155 = tpu.matmul %140, %24, %cst_90 {dimension_numbers = #tpu.dot_dimension_numbers<[1], [0], [0], [1], [0, 0, 1, 1], [], []>} : vector<8x32xf32>, vector<32x32xf32>, vector<8x32xf32> -> vector<8x32xf32>
    %156 = arith.addf %154, %155 : vector<8x32xf32>
    %157 = vector.broadcast %32 : vector<1x32xf32> to vector<8x32xf32>
    %158 = arith.addf %156, %157 : vector<8x32xf32>
    %159 = arith.index_cast %c2_i32 : i32 to index
    %c0_91 = arith.constant 0 : index
    %c0_92 = arith.constant 0 : index
    %160 = vector.load %arg9[%159, %c0_91, %c0_92] : memref<8x8x32xf32, #tpu.memory_space<vmem>>, vector<1x8x32xf32>
    %161 = vector.shape_cast %160 : vector<1x8x32xf32> to vector<8x32xf32>
    %cst_93 = arith.constant dense<0.000000e+00> : vector<8x32xf32>
    %162 = tpu.matmul %140, %26, %cst_93 {dimension_numbers = #tpu.dot_dimension_numbers<[1], [0], [0], [1], [0, 0, 1, 1], [], []>} : vector<8x32xf32>, vector<32x32xf32>, vector<8x32xf32> -> vector<8x32xf32>
    %163 = arith.addf %161, %162 : vector<8x32xf32>
    %164 = vector.broadcast %34 : vector<1x32xf32> to vector<8x32xf32>
    %165 = arith.addf %163, %164 : vector<8x32xf32>
    %166 = arith.index_cast %c2_i32 : i32 to index
    %c0_94 = arith.constant 0 : index
    %c0_95 = arith.constant 0 : index
    %167 = vector.load %arg10[%166, %c0_94, %c0_95] : memref<8x8x32xf32, #tpu.memory_space<vmem>>, vector<1x8x32xf32>
    %168 = vector.shape_cast %167 : vector<1x8x32xf32> to vector<8x32xf32>
    %cst_96 = arith.constant dense<0.000000e+00> : vector<8x32xf32>
    %169 = tpu.matmul %140, %28, %cst_96 {dimension_numbers = #tpu.dot_dimension_numbers<[1], [0], [0], [1], [0, 0, 1, 1], [], []>} : vector<8x32xf32>, vector<32x32xf32>, vector<8x32xf32> -> vector<8x32xf32>
    %170 = arith.addf %168, %169 : vector<8x32xf32>
    %171 = vector.broadcast %36 : vector<1x32xf32> to vector<8x32xf32>
    %172 = arith.addf %170, %171 : vector<8x32xf32>
    %173 = arith.negf %151 : vector<8x32xf32>
    %174 = math.exp %173 : vector<8x32xf32>
    %cst_97 = arith.constant 1.000000e+00 : f32
    %175 = vector.broadcast %cst_97 : f32 to vector<8x32xf32>
    %176 = arith.addf %175, %174 : vector<8x32xf32>
    %177 = arith.divf %175, %176 : vector<8x32xf32>
    %178 = arith.negf %158 : vector<8x32xf32>
    %179 = math.exp %178 : vector<8x32xf32>
    %cst_98 = arith.constant 1.000000e+00 : f32
    %180 = vector.broadcast %cst_98 : f32 to vector<8x32xf32>
    %181 = arith.addf %180, %179 : vector<8x32xf32>
    %182 = arith.divf %180, %181 : vector<8x32xf32>
    %183 = math.tanh %165 : vector<8x32xf32>
    %184 = arith.negf %172 : vector<8x32xf32>
    %185 = math.exp %184 : vector<8x32xf32>
    %cst_99 = arith.constant 1.000000e+00 : f32
    %186 = vector.broadcast %cst_99 : f32 to vector<8x32xf32>
    %187 = arith.addf %186, %185 : vector<8x32xf32>
    %188 = arith.divf %186, %187 : vector<8x32xf32>
    %189 = arith.mulf %182, %138 : vector<8x32xf32>
    %190 = arith.mulf %177, %183 : vector<8x32xf32>
    %191 = arith.addf %189, %190 : vector<8x32xf32>
    %192 = math.tanh %191 : vector<8x32xf32>
    %193 = arith.mulf %188, %192 : vector<8x32xf32>
    %194 = arith.index_cast %c2_i32 : i32 to index
    %c0_100 = arith.constant 0 : index
    %c0_101 = arith.constant 0 : index
    %195 = vector.load %arg4[%194, %c0_100, %c0_101] : memref<8x8x32xf32, #tpu.memory_space<vmem>>, vector<1x8x32xf32>
    %196 = vector.shape_cast %195 : vector<1x8x32xf32> to vector<8x32xf32>
    %197 = vector.shape_cast %193 : vector<8x32xf32> to vector<1x8x32xf32>
    tpu.vector_store %arg4[%194, %c0_100, %c0_101], %197 {strides = array<i32>} : memref<8x8x32xf32, #tpu.memory_space<vmem>>, vector<1x8x32xf32>,
    %c3_i32 = arith.constant 3 : i32
    %198 = arith.index_cast %c3_i32 : i32 to index
    %c0_102 = arith.constant 0 : index
    %c0_103 = arith.constant 0 : index
    %199 = vector.load %arg7[%198, %c0_102, %c0_103] : memref<8x8x32xf32, #tpu.memory_space<vmem>>, vector<1x8x32xf32>
    %200 = vector.shape_cast %199 : vector<1x8x32xf32> to vector<8x32xf32>
    %cst_104 = arith.constant dense<0.000000e+00> : vector<8x32xf32>
    %201 = tpu.matmul %193, %22, %cst_104 {dimension_numbers = #tpu.dot_dimension_numbers<[1], [0], [0], [1], [0, 0, 1, 1], [], []>} : vector<8x32xf32>, vector<32x32xf32>, vector<8x32xf32> -> vector<8x32xf32>
    %202 = arith.addf %200, %201 : vector<8x32xf32>
    %203 = vector.broadcast %30 : vector<1x32xf32> to vector<8x32xf32>
    %204 = arith.addf %202, %203 : vector<8x32xf32>
    %205 = arith.index_cast %c3_i32 : i32 to index
    %c0_105 = arith.constant 0 : index
    %c0_106 = arith.constant 0 : index
    %206 = vector.load %arg8[%205, %c0_105, %c0_106] : memref<8x8x32xf32, #tpu.memory_space<vmem>>, vector<1x8x32xf32>
    %207 = vector.shape_cast %206 : vector<1x8x32xf32> to vector<8x32xf32>
    %cst_107 = arith.constant dense<0.000000e+00> : vector<8x32xf32>
    %208 = tpu.matmul %193, %24, %cst_107 {dimension_numbers = #tpu.dot_dimension_numbers<[1], [0], [0], [1], [0, 0, 1, 1], [], []>} : vector<8x32xf32>, vector<32x32xf32>, vector<8x32xf32> -> vector<8x32xf32>
    %209 = arith.addf %207, %208 : vector<8x32xf32>
    %210 = vector.broadcast %32 : vector<1x32xf32> to vector<8x32xf32>
    %211 = arith.addf %209, %210 : vector<8x32xf32>
    %212 = arith.index_cast %c3_i32 : i32 to index
    %c0_108 = arith.constant 0 : index
    %c0_109 = arith.constant 0 : index
    %213 = vector.load %arg9[%212, %c0_108, %c0_109] : memref<8x8x32xf32, #tpu.memory_space<vmem>>, vector<1x8x32xf32>
    %214 = vector.shape_cast %213 : vector<1x8x32xf32> to vector<8x32xf32>
    %cst_110 = arith.constant dense<0.000000e+00> : vector<8x32xf32>
    %215 = tpu.matmul %193, %26, %cst_110 {dimension_numbers = #tpu.dot_dimension_numbers<[1], [0], [0], [1], [0, 0, 1, 1], [], []>} : vector<8x32xf32>, vector<32x32xf32>, vector<8x32xf32> -> vector<8x32xf32>
    %216 = arith.addf %214, %215 : vector<8x32xf32>
    %217 = vector.broadcast %34 : vector<1x32xf32> to vector<8x32xf32>
    %218 = arith.addf %216, %217 : vector<8x32xf32>
    %219 = arith.index_cast %c3_i32 : i32 to index
    %c0_111 = arith.constant 0 : index
    %c0_112 = arith.constant 0 : index
    %220 = vector.load %arg10[%219, %c0_111, %c0_112] : memref<8x8x32xf32, #tpu.memory_space<vmem>>, vector<1x8x32xf32>
    %221 = vector.shape_cast %220 : vector<1x8x32xf32> to vector<8x32xf32>
    %cst_113 = arith.constant dense<0.000000e+00> : vector<8x32xf32>
    %222 = tpu.matmul %193, %28, %cst_113 {dimension_numbers = #tpu.dot_dimension_numbers<[1], [0], [0], [1], [0, 0, 1, 1], [], []>} : vector<8x32xf32>, vector<32x32xf32>, vector<8x32xf32> -> vector<8x32xf32>
    %223 = arith.addf %221, %222 : vector<8x32xf32>
    %224 = vector.broadcast %36 : vector<1x32xf32> to vector<8x32xf32>
    %225 = arith.addf %223, %224 : vector<8x32xf32>
    %226 = arith.negf %204 : vector<8x32xf32>
    %227 = math.exp %226 : vector<8x32xf32>
    %cst_114 = arith.constant 1.000000e+00 : f32
    %228 = vector.broadcast %cst_114 : f32 to vector<8x32xf32>
    %229 = arith.addf %228, %227 : vector<8x32xf32>
    %230 = arith.divf %228, %229 : vector<8x32xf32>
    %231 = arith.negf %211 : vector<8x32xf32>
    %232 = math.exp %231 : vector<8x32xf32>
    %cst_115 = arith.constant 1.000000e+00 : f32
    %233 = vector.broadcast %cst_115 : f32 to vector<8x32xf32>
    %234 = arith.addf %233, %232 : vector<8x32xf32>
    %235 = arith.divf %233, %234 : vector<8x32xf32>
    %236 = math.tanh %218 : vector<8x32xf32>
    %237 = arith.negf %225 : vector<8x32xf32>
    %238 = math.exp %237 : vector<8x32xf32>
    %cst_116 = arith.constant 1.000000e+00 : f32
    %239 = vector.broadcast %cst_116 : f32 to vector<8x32xf32>
    %240 = arith.addf %239, %238 : vector<8x32xf32>
    %241 = arith.divf %239, %240 : vector<8x32xf32>
    %242 = arith.mulf %235, %191 : vector<8x32xf32>
    %243 = arith.mulf %230, %236 : vector<8x32xf32>
    %244 = arith.addf %242, %243 : vector<8x32xf32>
    %245 = math.tanh %244 : vector<8x32xf32>
    %246 = arith.mulf %241, %245 : vector<8x32xf32>
    %247 = arith.index_cast %c3_i32 : i32 to index
    %c0_117 = arith.constant 0 : index
    %c0_118 = arith.constant 0 : index
    %248 = vector.load %arg4[%247, %c0_117, %c0_118] : memref<8x8x32xf32, #tpu.memory_space<vmem>>, vector<1x8x32xf32>
    %249 = vector.shape_cast %248 : vector<1x8x32xf32> to vector<8x32xf32>
    %250 = vector.shape_cast %246 : vector<8x32xf32> to vector<1x8x32xf32>
    tpu.vector_store %arg4[%247, %c0_117, %c0_118], %250 {strides = array<i32>} : memref<8x8x32xf32, #tpu.memory_space<vmem>>, vector<1x8x32xf32>,
    %c4_i32 = arith.constant 4 : i32
    %251 = arith.index_cast %c4_i32 : i32 to index
    %c0_119 = arith.constant 0 : index
    %c0_120 = arith.constant 0 : index
    %252 = vector.load %arg7[%251, %c0_119, %c0_120] : memref<8x8x32xf32, #tpu.memory_space<vmem>>, vector<1x8x32xf32>
    %253 = vector.shape_cast %252 : vector<1x8x32xf32> to vector<8x32xf32>
    %cst_121 = arith.constant dense<0.000000e+00> : vector<8x32xf32>
    %254 = tpu.matmul %246, %22, %cst_121 {dimension_numbers = #tpu.dot_dimension_numbers<[1], [0], [0], [1], [0, 0, 1, 1], [], []>} : vector<8x32xf32>, vector<32x32xf32>, vector<8x32xf32> -> vector<8x32xf32>
    %255 = arith.addf %253, %254 : vector<8x32xf32>
    %256 = vector.broadcast %30 : vector<1x32xf32> to vector<8x32xf32>
    %257 = arith.addf %255, %256 : vector<8x32xf32>
    %258 = arith.index_cast %c4_i32 : i32 to index
    %c0_122 = arith.constant 0 : index
    %c0_123 = arith.constant 0 : index
    %259 = vector.load %arg8[%258, %c0_122, %c0_123] : memref<8x8x32xf32, #tpu.memory_space<vmem>>, vector<1x8x32xf32>
    %260 = vector.shape_cast %259 : vector<1x8x32xf32> to vector<8x32xf32>
    %cst_124 = arith.constant dense<0.000000e+00> : vector<8x32xf32>
    %261 = tpu.matmul %246, %24, %cst_124 {dimension_numbers = #tpu.dot_dimension_numbers<[1], [0], [0], [1], [0, 0, 1, 1], [], []>} : vector<8x32xf32>, vector<32x32xf32>, vector<8x32xf32> -> vector<8x32xf32>
    %262 = arith.addf %260, %261 : vector<8x32xf32>
    %263 = vector.broadcast %32 : vector<1x32xf32> to vector<8x32xf32>
    %264 = arith.addf %262, %263 : vector<8x32xf32>
    %265 = arith.index_cast %c4_i32 : i32 to index
    %c0_125 = arith.constant 0 : index
    %c0_126 = arith.constant 0 : index
    %266 = vector.load %arg9[%265, %c0_125, %c0_126] : memref<8x8x32xf32, #tpu.memory_space<vmem>>, vector<1x8x32xf32>
    %267 = vector.shape_cast %266 : vector<1x8x32xf32> to vector<8x32xf32>
    %cst_127 = arith.constant dense<0.000000e+00> : vector<8x32xf32>
    %268 = tpu.matmul %246, %26, %cst_127 {dimension_numbers = #tpu.dot_dimension_numbers<[1], [0], [0], [1], [0, 0, 1, 1], [], []>} : vector<8x32xf32>, vector<32x32xf32>, vector<8x32xf32> -> vector<8x32xf32>
    %269 = arith.addf %267, %268 : vector<8x32xf32>
    %270 = vector.broadcast %34 : vector<1x32xf32> to vector<8x32xf32>
    %271 = arith.addf %269, %270 : vector<8x32xf32>
    %272 = arith.index_cast %c4_i32 : i32 to index
    %c0_128 = arith.constant 0 : index
    %c0_129 = arith.constant 0 : index
    %273 = vector.load %arg10[%272, %c0_128, %c0_129] : memref<8x8x32xf32, #tpu.memory_space<vmem>>, vector<1x8x32xf32>
    %274 = vector.shape_cast %273 : vector<1x8x32xf32> to vector<8x32xf32>
    %cst_130 = arith.constant dense<0.000000e+00> : vector<8x32xf32>
    %275 = tpu.matmul %246, %28, %cst_130 {dimension_numbers = #tpu.dot_dimension_numbers<[1], [0], [0], [1], [0, 0, 1, 1], [], []>} : vector<8x32xf32>, vector<32x32xf32>, vector<8x32xf32> -> vector<8x32xf32>
    %276 = arith.addf %274, %275 : vector<8x32xf32>
    %277 = vector.broadcast %36 : vector<1x32xf32> to vector<8x32xf32>
    %278 = arith.addf %276, %277 : vector<8x32xf32>
    %279 = arith.negf %257 : vector<8x32xf32>
    %280 = math.exp %279 : vector<8x32xf32>
    %cst_131 = arith.constant 1.000000e+00 : f32
    %281 = vector.broadcast %cst_131 : f32 to vector<8x32xf32>
    %282 = arith.addf %281, %280 : vector<8x32xf32>
    %283 = arith.divf %281, %282 : vector<8x32xf32>
    %284 = arith.negf %264 : vector<8x32xf32>
    %285 = math.exp %284 : vector<8x32xf32>
    %cst_132 = arith.constant 1.000000e+00 : f32
    %286 = vector.broadcast %cst_132 : f32 to vector<8x32xf32>
    %287 = arith.addf %286, %285 : vector<8x32xf32>
    %288 = arith.divf %286, %287 : vector<8x32xf32>
    %289 = math.tanh %271 : vector<8x32xf32>
    %290 = arith.negf %278 : vector<8x32xf32>
    %291 = math.exp %290 : vector<8x32xf32>
    %cst_133 = arith.constant 1.000000e+00 : f32
    %292 = vector.broadcast %cst_133 : f32 to vector<8x32xf32>
    %293 = arith.addf %292, %291 : vector<8x32xf32>
    %294 = arith.divf %292, %293 : vector<8x32xf32>
    %295 = arith.mulf %288, %244 : vector<8x32xf32>
    %296 = arith.mulf %283, %289 : vector<8x32xf32>
    %297 = arith.addf %295, %296 : vector<8x32xf32>
    %298 = math.tanh %297 : vector<8x32xf32>
    %299 = arith.mulf %294, %298 : vector<8x32xf32>
    %300 = arith.index_cast %c4_i32 : i32 to index
    %c0_134 = arith.constant 0 : index
    %c0_135 = arith.constant 0 : index
    %301 = vector.load %arg4[%300, %c0_134, %c0_135] : memref<8x8x32xf32, #tpu.memory_space<vmem>>, vector<1x8x32xf32>
    %302 = vector.shape_cast %301 : vector<1x8x32xf32> to vector<8x32xf32>
    %303 = vector.shape_cast %299 : vector<8x32xf32> to vector<1x8x32xf32>
    tpu.vector_store %arg4[%300, %c0_134, %c0_135], %303 {strides = array<i32>} : memref<8x8x32xf32, #tpu.memory_space<vmem>>, vector<1x8x32xf32>,
    %c5_i32 = arith.constant 5 : i32
    %304 = arith.index_cast %c5_i32 : i32 to index
    %c0_136 = arith.constant 0 : index
    %c0_137 = arith.constant 0 : index
    %305 = vector.load %arg7[%304, %c0_136, %c0_137] : memref<8x8x32xf32, #tpu.memory_space<vmem>>, vector<1x8x32xf32>
    %306 = vector.shape_cast %305 : vector<1x8x32xf32> to vector<8x32xf32>
    %cst_138 = arith.constant dense<0.000000e+00> : vector<8x32xf32>
    %307 = tpu.matmul %299, %22, %cst_138 {dimension_numbers = #tpu.dot_dimension_numbers<[1], [0], [0], [1], [0, 0, 1, 1], [], []>} : vector<8x32xf32>, vector<32x32xf32>, vector<8x32xf32> -> vector<8x32xf32>
    %308 = arith.addf %306, %307 : vector<8x32xf32>
    %309 = vector.broadcast %30 : vector<1x32xf32> to vector<8x32xf32>
    %310 = arith.addf %308, %309 : vector<8x32xf32>
    %311 = arith.index_cast %c5_i32 : i32 to index
    %c0_139 = arith.constant 0 : index
    %c0_140 = arith.constant 0 : index
    %312 = vector.load %arg8[%311, %c0_139, %c0_140] : memref<8x8x32xf32, #tpu.memory_space<vmem>>, vector<1x8x32xf32>
    %313 = vector.shape_cast %312 : vector<1x8x32xf32> to vector<8x32xf32>
    %cst_141 = arith.constant dense<0.000000e+00> : vector<8x32xf32>
    %314 = tpu.matmul %299, %24, %cst_141 {dimension_numbers = #tpu.dot_dimension_numbers<[1], [0], [0], [1], [0, 0, 1, 1], [], []>} : vector<8x32xf32>, vector<32x32xf32>, vector<8x32xf32> -> vector<8x32xf32>
    %315 = arith.addf %313, %314 : vector<8x32xf32>
    %316 = vector.broadcast %32 : vector<1x32xf32> to vector<8x32xf32>
    %317 = arith.addf %315, %316 : vector<8x32xf32>
    %318 = arith.index_cast %c5_i32 : i32 to index
    %c0_142 = arith.constant 0 : index
    %c0_143 = arith.constant 0 : index
    %319 = vector.load %arg9[%318, %c0_142, %c0_143] : memref<8x8x32xf32, #tpu.memory_space<vmem>>, vector<1x8x32xf32>
    %320 = vector.shape_cast %319 : vector<1x8x32xf32> to vector<8x32xf32>
    %cst_144 = arith.constant dense<0.000000e+00> : vector<8x32xf32>
    %321 = tpu.matmul %299, %26, %cst_144 {dimension_numbers = #tpu.dot_dimension_numbers<[1], [0], [0], [1], [0, 0, 1, 1], [], []>} : vector<8x32xf32>, vector<32x32xf32>, vector<8x32xf32> -> vector<8x32xf32>
    %322 = arith.addf %320, %321 : vector<8x32xf32>
    %323 = vector.broadcast %34 : vector<1x32xf32> to vector<8x32xf32>
    %324 = arith.addf %322, %323 : vector<8x32xf32>
    %325 = arith.index_cast %c5_i32 : i32 to index
    %c0_145 = arith.constant 0 : index
    %c0_146 = arith.constant 0 : index
    %326 = vector.load %arg10[%325, %c0_145, %c0_146] : memref<8x8x32xf32, #tpu.memory_space<vmem>>, vector<1x8x32xf32>
    %327 = vector.shape_cast %326 : vector<1x8x32xf32> to vector<8x32xf32>
    %cst_147 = arith.constant dense<0.000000e+00> : vector<8x32xf32>
    %328 = tpu.matmul %299, %28, %cst_147 {dimension_numbers = #tpu.dot_dimension_numbers<[1], [0], [0], [1], [0, 0, 1, 1], [], []>} : vector<8x32xf32>, vector<32x32xf32>, vector<8x32xf32> -> vector<8x32xf32>
    %329 = arith.addf %327, %328 : vector<8x32xf32>
    %330 = vector.broadcast %36 : vector<1x32xf32> to vector<8x32xf32>
    %331 = arith.addf %329, %330 : vector<8x32xf32>
    %332 = arith.negf %310 : vector<8x32xf32>
    %333 = math.exp %332 : vector<8x32xf32>
    %cst_148 = arith.constant 1.000000e+00 : f32
    %334 = vector.broadcast %cst_148 : f32 to vector<8x32xf32>
    %335 = arith.addf %334, %333 : vector<8x32xf32>
    %336 = arith.divf %334, %335 : vector<8x32xf32>
    %337 = arith.negf %317 : vector<8x32xf32>
    %338 = math.exp %337 : vector<8x32xf32>
    %cst_149 = arith.constant 1.000000e+00 : f32
    %339 = vector.broadcast %cst_149 : f32 to vector<8x32xf32>
    %340 = arith.addf %339, %338 : vector<8x32xf32>
    %341 = arith.divf %339, %340 : vector<8x32xf32>
    %342 = math.tanh %324 : vector<8x32xf32>
    %343 = arith.negf %331 : vector<8x32xf32>
    %344 = math.exp %343 : vector<8x32xf32>
    %cst_150 = arith.constant 1.000000e+00 : f32
    %345 = vector.broadcast %cst_150 : f32 to vector<8x32xf32>
    %346 = arith.addf %345, %344 : vector<8x32xf32>
    %347 = arith.divf %345, %346 : vector<8x32xf32>
    %348 = arith.mulf %341, %297 : vector<8x32xf32>
    %349 = arith.mulf %336, %342 : vector<8x32xf32>
    %350 = arith.addf %348, %349 : vector<8x32xf32>
    %351 = math.tanh %350 : vector<8x32xf32>
    %352 = arith.mulf %347, %351 : vector<8x32xf32>
    %353 = arith.index_cast %c5_i32 : i32 to index
    %c0_151 = arith.constant 0 : index
    %c0_152 = arith.constant 0 : index
    %354 = vector.load %arg4[%353, %c0_151, %c0_152] : memref<8x8x32xf32, #tpu.memory_space<vmem>>, vector<1x8x32xf32>
    %355 = vector.shape_cast %354 : vector<1x8x32xf32> to vector<8x32xf32>
    %356 = vector.shape_cast %352 : vector<8x32xf32> to vector<1x8x32xf32>
    tpu.vector_store %arg4[%353, %c0_151, %c0_152], %356 {strides = array<i32>} : memref<8x8x32xf32, #tpu.memory_space<vmem>>, vector<1x8x32xf32>,
    %c6_i32 = arith.constant 6 : i32
    %357 = arith.index_cast %c6_i32 : i32 to index
    %c0_153 = arith.constant 0 : index
    %c0_154 = arith.constant 0 : index
    %358 = vector.load %arg7[%357, %c0_153, %c0_154] : memref<8x8x32xf32, #tpu.memory_space<vmem>>, vector<1x8x32xf32>
    %359 = vector.shape_cast %358 : vector<1x8x32xf32> to vector<8x32xf32>
    %cst_155 = arith.constant dense<0.000000e+00> : vector<8x32xf32>
    %360 = tpu.matmul %352, %22, %cst_155 {dimension_numbers = #tpu.dot_dimension_numbers<[1], [0], [0], [1], [0, 0, 1, 1], [], []>} : vector<8x32xf32>, vector<32x32xf32>, vector<8x32xf32> -> vector<8x32xf32>
    %361 = arith.addf %359, %360 : vector<8x32xf32>
    %362 = vector.broadcast %30 : vector<1x32xf32> to vector<8x32xf32>
    %363 = arith.addf %361, %362 : vector<8x32xf32>
    %364 = arith.index_cast %c6_i32 : i32 to index
    %c0_156 = arith.constant 0 : index
    %c0_157 = arith.constant 0 : index
    %365 = vector.load %arg8[%364, %c0_156, %c0_157] : memref<8x8x32xf32, #tpu.memory_space<vmem>>, vector<1x8x32xf32>
    %366 = vector.shape_cast %365 : vector<1x8x32xf32> to vector<8x32xf32>
    %cst_158 = arith.constant dense<0.000000e+00> : vector<8x32xf32>
    %367 = tpu.matmul %352, %24, %cst_158 {dimension_numbers = #tpu.dot_dimension_numbers<[1], [0], [0], [1], [0, 0, 1, 1], [], []>} : vector<8x32xf32>, vector<32x32xf32>, vector<8x32xf32> -> vector<8x32xf32>
    %368 = arith.addf %366, %367 : vector<8x32xf32>
    %369 = vector.broadcast %32 : vector<1x32xf32> to vector<8x32xf32>
    %370 = arith.addf %368, %369 : vector<8x32xf32>
    %371 = arith.index_cast %c6_i32 : i32 to index
    %c0_159 = arith.constant 0 : index
    %c0_160 = arith.constant 0 : index
    %372 = vector.load %arg9[%371, %c0_159, %c0_160] : memref<8x8x32xf32, #tpu.memory_space<vmem>>, vector<1x8x32xf32>
    %373 = vector.shape_cast %372 : vector<1x8x32xf32> to vector<8x32xf32>
    %cst_161 = arith.constant dense<0.000000e+00> : vector<8x32xf32>
    %374 = tpu.matmul %352, %26, %cst_161 {dimension_numbers = #tpu.dot_dimension_numbers<[1], [0], [0], [1], [0, 0, 1, 1], [], []>} : vector<8x32xf32>, vector<32x32xf32>, vector<8x32xf32> -> vector<8x32xf32>
    %375 = arith.addf %373, %374 : vector<8x32xf32>
    %376 = vector.broadcast %34 : vector<1x32xf32> to vector<8x32xf32>
    %377 = arith.addf %375, %376 : vector<8x32xf32>
    %378 = arith.index_cast %c6_i32 : i32 to index
    %c0_162 = arith.constant 0 : index
    %c0_163 = arith.constant 0 : index
    %379 = vector.load %arg10[%378, %c0_162, %c0_163] : memref<8x8x32xf32, #tpu.memory_space<vmem>>, vector<1x8x32xf32>
    %380 = vector.shape_cast %379 : vector<1x8x32xf32> to vector<8x32xf32>
    %cst_164 = arith.constant dense<0.000000e+00> : vector<8x32xf32>
    %381 = tpu.matmul %352, %28, %cst_164 {dimension_numbers = #tpu.dot_dimension_numbers<[1], [0], [0], [1], [0, 0, 1, 1], [], []>} : vector<8x32xf32>, vector<32x32xf32>, vector<8x32xf32> -> vector<8x32xf32>
    %382 = arith.addf %380, %381 : vector<8x32xf32>
    %383 = vector.broadcast %36 : vector<1x32xf32> to vector<8x32xf32>
    %384 = arith.addf %382, %383 : vector<8x32xf32>
    %385 = arith.negf %363 : vector<8x32xf32>
    %386 = math.exp %385 : vector<8x32xf32>
    %cst_165 = arith.constant 1.000000e+00 : f32
    %387 = vector.broadcast %cst_165 : f32 to vector<8x32xf32>
    %388 = arith.addf %387, %386 : vector<8x32xf32>
    %389 = arith.divf %387, %388 : vector<8x32xf32>
    %390 = arith.negf %370 : vector<8x32xf32>
    %391 = math.exp %390 : vector<8x32xf32>
    %cst_166 = arith.constant 1.000000e+00 : f32
    %392 = vector.broadcast %cst_166 : f32 to vector<8x32xf32>
    %393 = arith.addf %392, %391 : vector<8x32xf32>
    %394 = arith.divf %392, %393 : vector<8x32xf32>
    %395 = math.tanh %377 : vector<8x32xf32>
    %396 = arith.negf %384 : vector<8x32xf32>
    %397 = math.exp %396 : vector<8x32xf32>
    %cst_167 = arith.constant 1.000000e+00 : f32
    %398 = vector.broadcast %cst_167 : f32 to vector<8x32xf32>
    %399 = arith.addf %398, %397 : vector<8x32xf32>
    %400 = arith.divf %398, %399 : vector<8x32xf32>
    %401 = arith.mulf %394, %350 : vector<8x32xf32>
    %402 = arith.mulf %389, %395 : vector<8x32xf32>
    %403 = arith.addf %401, %402 : vector<8x32xf32>
    %404 = math.tanh %403 : vector<8x32xf32>
    %405 = arith.mulf %400, %404 : vector<8x32xf32>
    %406 = arith.index_cast %c6_i32 : i32 to index
    %c0_168 = arith.constant 0 : index
    %c0_169 = arith.constant 0 : index
    %407 = vector.load %arg4[%406, %c0_168, %c0_169] : memref<8x8x32xf32, #tpu.memory_space<vmem>>, vector<1x8x32xf32>
    %408 = vector.shape_cast %407 : vector<1x8x32xf32> to vector<8x32xf32>
    %409 = vector.shape_cast %405 : vector<8x32xf32> to vector<1x8x32xf32>
    tpu.vector_store %arg4[%406, %c0_168, %c0_169], %409 {strides = array<i32>} : memref<8x8x32xf32, #tpu.memory_space<vmem>>, vector<1x8x32xf32>,
    %c7_i32 = arith.constant 7 : i32
    %410 = arith.index_cast %c7_i32 : i32 to index
    %c0_170 = arith.constant 0 : index
    %c0_171 = arith.constant 0 : index
    %411 = vector.load %arg7[%410, %c0_170, %c0_171] : memref<8x8x32xf32, #tpu.memory_space<vmem>>, vector<1x8x32xf32>
    %412 = vector.shape_cast %411 : vector<1x8x32xf32> to vector<8x32xf32>
    %cst_172 = arith.constant dense<0.000000e+00> : vector<8x32xf32>
    %413 = tpu.matmul %405, %22, %cst_172 {dimension_numbers = #tpu.dot_dimension_numbers<[1], [0], [0], [1], [0, 0, 1, 1], [], []>} : vector<8x32xf32>, vector<32x32xf32>, vector<8x32xf32> -> vector<8x32xf32>
    %414 = arith.addf %412, %413 : vector<8x32xf32>
    %415 = vector.broadcast %30 : vector<1x32xf32> to vector<8x32xf32>
    %416 = arith.addf %414, %415 : vector<8x32xf32>
    %417 = arith.index_cast %c7_i32 : i32 to index
    %c0_173 = arith.constant 0 : index
    %c0_174 = arith.constant 0 : index
    %418 = vector.load %arg8[%417, %c0_173, %c0_174] : memref<8x8x32xf32, #tpu.memory_space<vmem>>, vector<1x8x32xf32>
    %419 = vector.shape_cast %418 : vector<1x8x32xf32> to vector<8x32xf32>
    %cst_175 = arith.constant dense<0.000000e+00> : vector<8x32xf32>
    %420 = tpu.matmul %405, %24, %cst_175 {dimension_numbers = #tpu.dot_dimension_numbers<[1], [0], [0], [1], [0, 0, 1, 1], [], []>} : vector<8x32xf32>, vector<32x32xf32>, vector<8x32xf32> -> vector<8x32xf32>
    %421 = arith.addf %419, %420 : vector<8x32xf32>
    %422 = vector.broadcast %32 : vector<1x32xf32> to vector<8x32xf32>
    %423 = arith.addf %421, %422 : vector<8x32xf32>
    %424 = arith.index_cast %c7_i32 : i32 to index
    %c0_176 = arith.constant 0 : index
    %c0_177 = arith.constant 0 : index
    %425 = vector.load %arg9[%424, %c0_176, %c0_177] : memref<8x8x32xf32, #tpu.memory_space<vmem>>, vector<1x8x32xf32>
    %426 = vector.shape_cast %425 : vector<1x8x32xf32> to vector<8x32xf32>
    %cst_178 = arith.constant dense<0.000000e+00> : vector<8x32xf32>
    %427 = tpu.matmul %405, %26, %cst_178 {dimension_numbers = #tpu.dot_dimension_numbers<[1], [0], [0], [1], [0, 0, 1, 1], [], []>} : vector<8x32xf32>, vector<32x32xf32>, vector<8x32xf32> -> vector<8x32xf32>
    %428 = arith.addf %426, %427 : vector<8x32xf32>
    %429 = vector.broadcast %34 : vector<1x32xf32> to vector<8x32xf32>
    %430 = arith.addf %428, %429 : vector<8x32xf32>
    %431 = arith.index_cast %c7_i32 : i32 to index
    %c0_179 = arith.constant 0 : index
    %c0_180 = arith.constant 0 : index
    %432 = vector.load %arg10[%431, %c0_179, %c0_180] : memref<8x8x32xf32, #tpu.memory_space<vmem>>, vector<1x8x32xf32>
    %433 = vector.shape_cast %432 : vector<1x8x32xf32> to vector<8x32xf32>
    %cst_181 = arith.constant dense<0.000000e+00> : vector<8x32xf32>
    %434 = tpu.matmul %405, %28, %cst_181 {dimension_numbers = #tpu.dot_dimension_numbers<[1], [0], [0], [1], [0, 0, 1, 1], [], []>} : vector<8x32xf32>, vector<32x32xf32>, vector<8x32xf32> -> vector<8x32xf32>
    %435 = arith.addf %433, %434 : vector<8x32xf32>
    %436 = vector.broadcast %36 : vector<1x32xf32> to vector<8x32xf32>
    %437 = arith.addf %435, %436 : vector<8x32xf32>
    %438 = arith.negf %416 : vector<8x32xf32>
    %439 = math.exp %438 : vector<8x32xf32>
    %cst_182 = arith.constant 1.000000e+00 : f32
    %440 = vector.broadcast %cst_182 : f32 to vector<8x32xf32>
    %441 = arith.addf %440, %439 : vector<8x32xf32>
    %442 = arith.divf %440, %441 : vector<8x32xf32>
    %443 = arith.negf %423 : vector<8x32xf32>
    %444 = math.exp %443 : vector<8x32xf32>
    %cst_183 = arith.constant 1.000000e+00 : f32
    %445 = vector.broadcast %cst_183 : f32 to vector<8x32xf32>
    %446 = arith.addf %445, %444 : vector<8x32xf32>
    %447 = arith.divf %445, %446 : vector<8x32xf32>
    %448 = math.tanh %430 : vector<8x32xf32>
    %449 = arith.negf %437 : vector<8x32xf32>
    %450 = math.exp %449 : vector<8x32xf32>
    %cst_184 = arith.constant 1.000000e+00 : f32
    %451 = vector.broadcast %cst_184 : f32 to vector<8x32xf32>
    %452 = arith.addf %451, %450 : vector<8x32xf32>
    %453 = arith.divf %451, %452 : vector<8x32xf32>
    %454 = arith.mulf %447, %403 : vector<8x32xf32>
    %455 = arith.mulf %442, %448 : vector<8x32xf32>
    %456 = arith.addf %454, %455 : vector<8x32xf32>
    %457 = math.tanh %456 : vector<8x32xf32>
    %458 = arith.mulf %453, %457 : vector<8x32xf32>
    %459 = arith.index_cast %c7_i32 : i32 to index
    %c0_185 = arith.constant 0 : index
    %c0_186 = arith.constant 0 : index
    %460 = vector.load %arg4[%459, %c0_185, %c0_186] : memref<8x8x32xf32, #tpu.memory_space<vmem>>, vector<1x8x32xf32>
    %461 = vector.shape_cast %460 : vector<1x8x32xf32> to vector<8x32xf32>
    %462 = vector.shape_cast %458 : vector<8x32xf32> to vector<1x8x32xf32>
    tpu.vector_store %arg4[%459, %c0_185, %c0_186], %462 {strides = array<i32>} : memref<8x8x32xf32, #tpu.memory_space<vmem>>, vector<1x8x32xf32>,
    %c8_i32 = arith.constant 8 : i32
    %c0_187 = arith.constant 0 : index
    %c0_188 = arith.constant 0 : index
    %463 = vector.load %arg5[%c0_187, %c0_188] : memref<8x32xf32, #tpu.memory_space<vmem>>, vector<8x32xf32>
    tpu.vector_store %arg5[%c0_187, %c0_188], %458 {strides = array<i32>} : memref<8x32xf32, #tpu.memory_space<vmem>>, vector<8x32xf32>,
    %c0_189 = arith.constant 0 : index
    %c0_190 = arith.constant 0 : index
    %464 = vector.load %arg6[%c0_189, %c0_190] : memref<8x32xf32, #tpu.memory_space<vmem>>, vector<8x32xf32>
    tpu.vector_store %arg6[%c0_189, %c0_190], %456 {strides = array<i32>} : memref<8x32xf32, #tpu.memory_space<vmem>>, vector<8x32xf32>,
    return
  }
}

</mosaic_0001>

<llo_original>
// kernel: att_encoder_decoder_forward.3
$region0: #{att_encoder_decoder_forward.3}
  #allocation0 [shape = 'u32[]', space=smem, size = 0x4, offset = 0x4, fixed_abs, tag = 'smem constant byte address 0x4 - core index']
  #allocation1 [shape = 'u32[144,128]{1,0:T(1,128)}', space=vmem, size = 0x12000, scoped, tag = 'internal scratch']
  #allocation2 [shape = 'f32[8,32]{1,0:T(8,128)}', space=vmem, size = 0x1000, scoped, tag = 'scratch operand']
  #allocation3 [shape = 'f32[8,32]{1,0:T(8,128)}', space=vmem, size = 0x1000, scoped, tag = 'scratch operand']
  %s0 = inlined_call_operand.vmem [shape: f32[6,8,1], index: 0, kind: input, shape index: {}]
  %s1 = inlined_call_operand.vmem [shape: f32[6,8,1], index: 1, kind: input, shape index: {}]
  %s2 = inlined_call_operand.vmem [shape: f32[8,8,32], index: 2, kind: input, shape index: {}]
  %s3 = inlined_call_operand.vmem [shape: f32[8,32], index: 3, kind: input, shape index: {}]
  %s4 = inlined_call_operand.vmem [shape: f32[8,32], index: 4, kind: input, shape index: {}]
  %s5 = inlined_call_operand.vmem [shape: f32[4,1,32], index: 5, kind: input, shape index: {}]
  %s6 = inlined_call_operand.vmem [shape: f32[4,1,32], index: 6, kind: input, shape index: {}]
  %s7 = inlined_call_operand.vmem [shape: f32[4,32,32], index: 7, kind: input, shape index: {}]
  %s8 = inlined_call_operand.vmem [shape: f32[4,32,32], index: 8, kind: input, shape index: {}]
  %s9 = inlined_call_operand.vmem [shape: f32[4,1,32], index: 9, kind: input, shape index: {}]
  %s10 = inlined_call_operand.vmem [shape: f32[32,24], index: 10, kind: input, shape index: {}]
  %s11 = inlined_call_operand.vmem [shape: f32[1,24], index: 11, kind: input, shape index: {}]
  %s12 = inlined_call_operand.vmem [shape: f32[6,8,24], index: 12, kind: output, shape index: {}]
  %s13 = sld [smem:[#allocation0]]
  $region85: #{att_encoder_decoder_forward.3} parent=0
    _
  %s15 = ssub.s32 1, %s13
  %s16 = scalar_select 0, %s15, %s13
  loop: start=0, step=1, limit=8
  $region2: #{att_encoder_decoder_forward.3} parent=0 // loop_pre_header
    _
  $region3: #{att_encoder_decoder_forward.3} parent=0 // loop_header
    %s18 = sphi 0, %s22
    %p19 = scmp.ge.s32.totalorder %s18, 8
    %s25 = sphi 0, %s37
    %s26 = sphi 0, %s33
    %s27 = sphi 0, %s25
    %s28 = sphi 0, %s26
    %s29 = sphi 0, %s27
    %s30 = sphi 0, %s28
    %s40 = sphi 0, %s42
    %s43 = sphi 0, %s40
    %s44 = sphi 0, %s43
    %s60 = sphi 0, %s44
    %s66 = sphi 0, %s68
    %s69 = sphi 0, %s66
    %s70 = sphi 0, %s69
    %s86 = sphi 0, %s70
    %s92 = sphi 0, %s94
    %s95 = sphi 0, %s92
    %s96 = sphi 0, %s95
    %s112 = sphi 0, %s96
    %s118 = sphi 0, %s120
    %s121 = sphi 0, %s118
    %s122 = sphi 0, %s121
    %s138 = sphi 0, %s122
    %s144 = sphi 0, %s146
    %s147 = sphi 0, %s144
    %s148 = sphi 0, %s147
    %s164 = sphi 0, %s148
    %s168 = sphi 0, %s168
    %s170 = sphi 0, %s168
    %s171 = sphi 0, %s170
    %s185 = sphi 0, %s171
    %s189 = sphi 0, %s189
    %s191 = sphi 0, %s189
    %s192 = sphi 0, %s191
    %s206 = sphi 0, %s192
    %s210 = sphi 0, %s210
    %s212 = sphi 0, %s210
    %s213 = sphi 0, %s212
    %s227 = sphi 0, %s213
    %s231 = sphi 0, %s231
    %s233 = sphi 0, %s231
    %s234 = sphi 0, %s233
    %s248 = sphi 0, %s234
    %s252 = sphi 0, %s252
    %s254 = sphi 0, %s252
    %s255 = sphi 0, %s254
    %s269 = sphi 0, %s255
    %s273 = sphi 0, %s273
    %s275 = sphi 0, %s273
    %s276 = sphi 0, %s275
    %s290 = sphi 0, %s276
    %s294 = sphi 0, %s294
    %s296 = sphi 0, %s294
    %s297 = sphi 0, %s296
    %s311 = sphi 0, %s297
    %s319 = sphi 0, %s321
    %s322 = sphi 0, %s319
    %s323 = sphi 0, %s322
    %s339 = sphi 0, %s323
  $region4: #{att_encoder_decoder_forward.3} parent=0 // loop_header_branch
    %21 = sbr.rel (%p19) target = $region8
  $region5: #{att_encoder_decoder_forward.3} parent=0 // loop_body
    %s23 = ssub.s32 %s18, 1
    %s24 = ssub.s32 %s18, 2
    %s31 = sadd.s32 1, %s26
    %p32 = scmp.ge.s32.totalorder %s31, 6
    %s33 = scalar_select %p32, 0, %s31
    %s34 = sadd.s32 1, %s25
    %s35 = scalar_select %p32, %s34, %s25
    %p36 = scmp.ge.s32.totalorder %s35, 1
    %s37 = scalar_select %p36, 0, %s35
    %s38 = ssub.s32 %s25, %s37
    %p39 = scmp.eq.s32.totalorder %s38, 0
    %s41 = sadd.s32 %s40, 1
    %s42 = scalar_select %p39, %s40, %s41
    %p45 = pneg %p39
    %p46 = scmp.eq.s32.totalorder %s18, 5
    %p47 = por %p45, %p46
    %p48 = scmp.ne.s32.totalorder %s40, %s43
    %p49 = scmp.eq.s32.totalorder %s18, 0
    %p50 = por %p48, %p49
    %p51 = scmp.ne.s32.totalorder %s40, %s43
    %p52 = scmp.eq.s32.totalorder %s23, 5
    %p53 = por %p51, %p52
    %p54 = scmp.ne.s32.totalorder %s43, %s44
    %p55 = scmp.eq.s32.totalorder %s23, 0
    %p56 = por %p54, %p55
    %p57 = scmp.ne.s32.totalorder %s43, %s44
    %p58 = scmp.eq.s32.totalorder %s24, 5
    %p59 = por %p57, %p58
    %p61 = scmp.ne.s32.totalorder %s44, %s60
    %p62 = scmp.eq.s32.totalorder %s24, 0
    %p63 = por %p61, %p62
    %s64 = ssub.s32 %s25, %s37
    %p65 = scmp.eq.s32.totalorder %s64, 0
    %s67 = sadd.s32 %s66, 1
    %s68 = scalar_select %p65, %s66, %s67
    %p71 = pneg %p65
    %p72 = scmp.eq.s32.totalorder %s18, 5
    %p73 = por %p71, %p72
    %p74 = scmp.ne.s32.totalorder %s66, %s69
    %p75 = scmp.eq.s32.totalorder %s18, 0
    %p76 = por %p74, %p75
    %p77 = scmp.ne.s32.totalorder %s66, %s69
    %p78 = scmp.eq.s32.totalorder %s23, 5
    %p79 = por %p77, %p78
    %p80 = scmp.ne.s32.totalorder %s69, %s70
    %p81 = scmp.eq.s32.totalorder %s23, 0
    %p82 = por %p80, %p81
    %p83 = scmp.ne.s32.totalorder %s69, %s70
    %p84 = scmp.eq.s32.totalorder %s24, 5
    %p85 = por %p83, %p84
    %p87 = scmp.ne.s32.totalorder %s70, %s86
    %p88 = scmp.eq.s32.totalorder %s24, 0
    %p89 = por %p87, %p88
    %s90 = ssub.s32 %s25, %s37
    %p91 = scmp.eq.s32.totalorder %s90, 0
    %s93 = sadd.s32 %s92, 1
    %s94 = scalar_select %p91, %s92, %s93
    %p97 = pneg %p91
    %p98 = scmp.eq.s32.totalorder %s18, 5
    %p99 = por %p97, %p98
    %p100 = scmp.ne.s32.totalorder %s92, %s95
    %p101 = scmp.eq.s32.totalorder %s18, 0
    %p102 = por %p100, %p101
    %p103 = scmp.ne.s32.totalorder %s92, %s95
    %p104 = scmp.eq.s32.totalorder %s23, 5
    %p105 = por %p103, %p104
    %p106 = scmp.ne.s32.totalorder %s95, %s96
    %p107 = scmp.eq.s32.totalorder %s23, 0
    %p108 = por %p106, %p107
    %p109 = scmp.ne.s32.totalorder %s95, %s96
    %p110 = scmp.eq.s32.totalorder %s24, 5
    %p111 = por %p109, %p110
    %p113 = scmp.ne.s32.totalorder %s96, %s112
    %p114 = scmp.eq.s32.totalorder %s24, 0
    %p115 = por %p113, %p114
    %s116 = ssub.s32 %s25, %s37
    %p117 = scmp.eq.s32.totalorder %s116, 0
    %s119 = sadd.s32 %s118, 1
    %s120 = scalar_select %p117, %s118, %s119
    %p123 = pneg %p117
    %p124 = scmp.eq.s32.totalorder %s18, 5
    %p125 = por %p123, %p124
    %p126 = scmp.ne.s32.totalorder %s118, %s121
    %p127 = scmp.eq.s32.totalorder %s18, 0
    %p128 = por %p126, %p127
    %p129 = scmp.ne.s32.totalorder %s118, %s121
    %p130 = scmp.eq.s32.totalorder %s23, 5
    %p131 = por %p129, %p130
    %p132 = scmp.ne.s32.totalorder %s121, %s122
    %p133 = scmp.eq.s32.totalorder %s23, 0
    %p134 = por %p132, %p133
    %p135 = scmp.ne.s32.totalorder %s121, %s122
    %p136 = scmp.eq.s32.totalorder %s24, 5
    %p137 = por %p135, %p136
    %p139 = scmp.ne.s32.totalorder %s122, %s138
    %p140 = scmp.eq.s32.totalorder %s24, 0
    %p141 = por %p139, %p140
    %s142 = ssub.s32 %s25, %s37
    %p143 = scmp.eq.s32.totalorder %s142, 0
    %s145 = sadd.s32 %s144, 1
    %s146 = scalar_select %p143, %s144, %s145
    %p149 = pneg %p143
    %p150 = scmp.eq.s32.totalorder %s18, 5
    %p151 = por %p149, %p150
    %p152 = scmp.ne.s32.totalorder %s144, %s147
    %p153 = scmp.eq.s32.totalorder %s18, 0
    %p154 = por %p152, %p153
    %p155 = scmp.ne.s32.totalorder %s144, %s147
    %p156 = scmp.eq.s32.totalorder %s23, 5
    %p157 = por %p155, %p156
    %p158 = scmp.ne.s32.totalorder %s147, %s148
    %p159 = scmp.eq.s32.totalorder %s23, 0
    %p160 = por %p158, %p159
    %p161 = scmp.ne.s32.totalorder %s147, %s148
    %p162 = scmp.eq.s32.totalorder %s24, 5
    %p163 = por %p161, %p162
    %p165 = scmp.ne.s32.totalorder %s148, %s164
    %p166 = scmp.eq.s32.totalorder %s24, 0
    %p167 = por %p165, %p166
    %s169 = sadd.s32 %s168, 1
    %p172 = scmp.eq.s32.totalorder %s18, 5
    %p173 = scmp.ne.s32.totalorder %s168, %s170
    %p174 = scmp.eq.s32.totalorder %s18, 0
    %p175 = por %p173, %p174
    %p176 = scmp.ne.s32.totalorder %s168, %s170
    %p177 = scmp.eq.s32.totalorder %s23, 5
    %p178 = por %p176, %p177
    %p179 = scmp.ne.s32.totalorder %s170, %s171
    %p180 = scmp.eq.s32.totalorder %s23, 0
    %p181 = por %p179, %p180
    %p182 = scmp.ne.s32.totalorder %s170, %s171
    %p183 = scmp.eq.s32.totalorder %s24, 5
    %p184 = por %p182, %p183
    %p186 = scmp.ne.s32.totalorder %s171, %s185
    %p187 = scmp.eq.s32.totalorder %s24, 0
    %p188 = por %p186, %p187
    %s190 = sadd.s32 %s189, 1
    %p193 = scmp.eq.s32.totalorder %s18, 5
    %p194 = scmp.ne.s32.totalorder %s189, %s191
    %p195 = scmp.eq.s32.totalorder %s18, 0
    %p196 = por %p194, %p195
    %p197 = scmp.ne.s32.totalorder %s189, %s191
    %p198 = scmp.eq.s32.totalorder %s23, 5
    %p199 = por %p197, %p198
    %p200 = scmp.ne.s32.totalorder %s191, %s192
    %p201 = scmp.eq.s32.totalorder %s23, 0
    %p202 = por %p200, %p201
    %p203 = scmp.ne.s32.totalorder %s191, %s192
    %p204 = scmp.eq.s32.totalorder %s24, 5
    %p205 = por %p203, %p204
    %p207 = scmp.ne.s32.totalorder %s192, %s206
    %p208 = scmp.eq.s32.totalorder %s24, 0
    %p209 = por %p207, %p208
    %s211 = sadd.s32 %s210, 1
    %p214 = scmp.eq.s32.totalorder %s18, 5
    %p215 = scmp.ne.s32.totalorder %s210, %s212
    %p216 = scmp.eq.s32.totalorder %s18, 0
    %p217 = por %p215, %p216
    %p218 = scmp.ne.s32.totalorder %s210, %s212
    %p219 = scmp.eq.s32.totalorder %s23, 5
    %p220 = por %p218, %p219
    %p221 = scmp.ne.s32.totalorder %s212, %s213
    %p222 = scmp.eq.s32.totalorder %s23, 0
    %p223 = por %p221, %p222
    %p224 = scmp.ne.s32.totalorder %s212, %s213
    %p225 = scmp.eq.s32.totalorder %s24, 5
    %p226 = por %p224, %p225
    %p228 = scmp.ne.s32.totalorder %s213, %s227
    %p229 = scmp.eq.s32.totalorder %s24, 0
    %p230 = por %p228, %p229
    %s232 = sadd.s32 %s231, 1
    %p235 = scmp.eq.s32.totalorder %s18, 5
    %p236 = scmp.ne.s32.totalorder %s231, %s233
    %p237 = scmp.eq.s32.totalorder %s18, 0
    %p238 = por %p236, %p237
    %p239 = scmp.ne.s32.totalorder %s231, %s233
    %p240 = scmp.eq.s32.totalorder %s23, 5
    %p241 = por %p239, %p240
    %p242 = scmp.ne.s32.totalorder %s233, %s234
    %p243 = scmp.eq.s32.totalorder %s23, 0
    %p244 = por %p242, %p243
    %p245 = scmp.ne.s32.totalorder %s233, %s234
    %p246 = scmp.eq.s32.totalorder %s24, 5
    %p247 = por %p245, %p246
    %p249 = scmp.ne.s32.totalorder %s234, %s248
    %p250 = scmp.eq.s32.totalorder %s24, 0
    %p251 = por %p249, %p250
    %s253 = sadd.s32 %s252, 1
    %p256 = scmp.eq.s32.totalorder %s18, 5
    %p257 = scmp.ne.s32.totalorder %s252, %s254
    %p258 = scmp.eq.s32.totalorder %s18, 0
    %p259 = por %p257, %p258
    %p260 = scmp.ne.s32.totalorder %s252, %s254
    %p261 = scmp.eq.s32.totalorder %s23, 5
    %p262 = por %p260, %p261
    %p263 = scmp.ne.s32.totalorder %s254, %s255
    %p264 = scmp.eq.s32.totalorder %s23, 0
    %p265 = por %p263, %p264
    %p266 = scmp.ne.s32.totalorder %s254, %s255
    %p267 = scmp.eq.s32.totalorder %s24, 5
    %p268 = por %p266, %p267
    %p270 = scmp.ne.s32.totalorder %s255, %s269
    %p271 = scmp.eq.s32.totalorder %s24, 0
    %p272 = por %p270, %p271
    %s274 = sadd.s32 %s273, 1
    %p277 = scmp.eq.s32.totalorder %s18, 5
    %p278 = scmp.ne.s32.totalorder %s273, %s275
    %p279 = scmp.eq.s32.totalorder %s18, 0
    %p280 = por %p278, %p279
    %p281 = scmp.ne.s32.totalorder %s273, %s275
    %p282 = scmp.eq.s32.totalorder %s23, 5
    %p283 = por %p281, %p282
    %p284 = scmp.ne.s32.totalorder %s275, %s276
    %p285 = scmp.eq.s32.totalorder %s23, 0
    %p286 = por %p284, %p285
    %p287 = scmp.ne.s32.totalorder %s275, %s276
    %p288 = scmp.eq.s32.totalorder %s24, 5
    %p289 = por %p287, %p288
    %p291 = scmp.ne.s32.totalorder %s276, %s290
    %p292 = scmp.eq.s32.totalorder %s24, 0
    %p293 = por %p291, %p292
    %s295 = sadd.s32 %s294, 1
    %p298 = scmp.eq.s32.totalorder %s18, 5
    %p299 = scmp.ne.s32.totalorder %s294, %s296
    %p300 = scmp.eq.s32.totalorder %s18, 0
    %p301 = por %p299, %p300
    %p302 = scmp.ne.s32.totalorder %s294, %s296
    %p303 = scmp.eq.s32.totalorder %s23, 5
    %p304 = por %p302, %p303
    %p305 = scmp.ne.s32.totalorder %s296, %s297
    %p306 = scmp.eq.s32.totalorder %s23, 0
    %p307 = por %p305, %p306
    %p308 = scmp.ne.s32.totalorder %s296, %s297
    %p309 = scmp.eq.s32.totalorder %s24, 5
    %p310 = por %p308, %p309
    %p312 = scmp.ne.s32.totalorder %s297, %s311
    %p313 = scmp.eq.s32.totalorder %s24, 0
    %p314 = por %p312, %p313
    %s315 = ssub.s32 %s26, %s33
    %s316 = ssub.s32 %s25, %s37
    %s317 = sor.u32 %s315, %s316
    %p318 = scmp.eq.s32.totalorder %s317, 0
    %s320 = sadd.s32 %s319, 1
    %s321 = scalar_select %p318, %s319, %s320
    %p324 = pneg %p318
    %p325 = scmp.eq.s32.totalorder %s18, 5
    %p326 = por %p324, %p325
    %p327 = scmp.ne.s32.totalorder %s319, %s322
    %p328 = scmp.eq.s32.totalorder %s18, 0
    %p329 = por %p327, %p328
    %p330 = scmp.ne.s32.totalorder %s319, %s322
    %p331 = scmp.eq.s32.totalorder %s23, 5
    %p332 = por %p330, %p331
    %p333 = scmp.ne.s32.totalorder %s322, %s323
    %p334 = scmp.eq.s32.totalorder %s23, 0
    %p335 = por %p333, %p334
    %p336 = scmp.ne.s32.totalorder %s322, %s323
    %p337 = scmp.eq.s32.totalorder %s24, 5
    %p338 = por %p336, %p337
    %p340 = scmp.ne.s32.totalorder %s323, %s339
    %p341 = scmp.eq.s32.totalorder %s24, 0
    %p342 = por %p340, %p341
    %p343 = scmp.le.s32.totalorder 1, %s18
    %p344 = scmp.lt.s32.totalorder %s18, 7
    %p345 = pnand %p343, %p344
    %p346 = pneg %p345
    // Predicated region
    $region9: #{att_encoder_decoder_forward.3} parent=5 // pred_check
      _
    $region10: #{att_encoder_decoder_forward.3} parent=5 // pred_check_branch
      %348 = sbr.rel (%p345) target = $region12
    $region11: #{att_encoder_decoder_forward.3} parent=5 // pred_region
      %s349 = ssub.s32 %s18, 1
      // Predicated region
      $region13: #{att_encoder_decoder_forward.3} parent=11 // pred_check
        %p350 = pneg %p56
      $region14: #{att_encoder_decoder_forward.3} parent=11 // pred_check_branch
        %352 = sbr.rel (%p350) target = $region16
      $region15: #{att_encoder_decoder_forward.3} parent=11 // pred_region
        %p353 = scmp.lt.s32.totalorder %s27, 0
        %s354 = scalar_select %p353, %s27, 0
        %s355 = smul.addr %s354, 8
        %s356 = scalar_lea.vmem %s0, %s355
      $region16: #{att_encoder_decoder_forward.3} parent=11 // pred_fallthru
        _
      // Predicated region
      $region17: #{att_encoder_decoder_forward.3} parent=11 // pred_check
        %p357 = pneg %p82
      $region18: #{att_encoder_decoder_forward.3} parent=11 // pred_check_branch
        %359 = sbr.rel (%p357) target = $region20
      $region19: #{att_encoder_decoder_forward.3} parent=11 // pred_region
        %p360 = scmp.lt.s32.totalorder %s27, 0
        %s361 = scalar_select %p360, %s27, 0
        %s362 = smul.addr %s361, 8
        %s363 = scalar_lea.vmem %s1, %s362
      $region20: #{att_encoder_decoder_forward.3} parent=11 // pred_fallthru
        _
      // Predicated region
      $region21: #{att_encoder_decoder_forward.3} parent=11 // pred_check
        %p364 = pneg %p108
      $region22: #{att_encoder_decoder_forward.3} parent=11 // pred_check_branch
        %366 = sbr.rel (%p364) target = $region24
      $region23: #{att_encoder_decoder_forward.3} parent=11 // pred_region
        %s367 = smul.u32 8, %s27
        %p368 = scmp.lt.s32.totalorder %s367, 7
        %s369 = scalar_select %p368, %s367, 7
        %s370 = smul.addr %s369, 8
        %s371 = scalar_lea.vmem %s2, %s370
        %s372 = smul.u32 8, %s27
      $region24: #{att_encoder_decoder_forward.3} parent=11 // pred_fallthru
        _
      // Predicated region
      $region25: #{att_encoder_decoder_forward.3} parent=11 // pred_check
        %p373 = pneg %p134
      $region26: #{att_encoder_decoder_forward.3} parent=11 // pred_check_branch
        %375 = sbr.rel (%p373) target = $region28
      $region27: #{att_encoder_decoder_forward.3} parent=11 // pred_region
        %p376 = scmp.lt.s32.totalorder %s27, 0
        %s377 = scalar_select %p376, %s27, 0
        %s378 = smul.addr %s377, 8
        %s379 = scalar_lea.vmem %s3, %s378
      $region28: #{att_encoder_decoder_forward.3} parent=11 // pred_fallthru
        _
      // Predicated region
      $region29: #{att_encoder_decoder_forward.3} parent=11 // pred_check
        %p380 = pneg %p160
      $region30: #{att_encoder_decoder_forward.3} parent=11 // pred_check_branch
        %382 = sbr.rel (%p380) target = $region32
      $region31: #{att_encoder_decoder_forward.3} parent=11 // pred_region
        %p383 = scmp.lt.s32.totalorder %s27, 0
        %s384 = scalar_select %p383, %s27, 0
        %s385 = smul.addr %s384, 8
        %s386 = scalar_lea.vmem %s4, %s385
      $region32: #{att_encoder_decoder_forward.3} parent=11 // pred_fallthru
        _
      // Predicated region
      $region33: #{att_encoder_decoder_forward.3} parent=11 // pred_check
        %p387 = pneg %p181
      $region34: #{att_encoder_decoder_forward.3} parent=11 // pred_check_branch
        %389 = sbr.rel (%p387) target = $region36
      $region35: #{att_encoder_decoder_forward.3} parent=11 // pred_region
        _
      $region36: #{att_encoder_decoder_forward.3} parent=11 // pred_fallthru
        _
      // Predicated region
      $region37: #{att_encoder_decoder_forward.3} parent=11 // pred_check
        %p390 = pneg %p202
      $region38: #{att_encoder_decoder_forward.3} parent=11 // pred_check_branch
        %392 = sbr.rel (%p390) target = $region40
      $region39: #{att_encoder_decoder_forward.3} parent=11 // pred_region
        _
      $region40: #{att_encoder_decoder_forward.3} parent=11 // pred_fallthru
        _
      // Predicated region
      $region41: #{att_encoder_decoder_forward.3} parent=11 // pred_check
        %p393 = pneg %p223
      $region42: #{att_encoder_decoder_forward.3} parent=11 // pred_check_branch
        %395 = sbr.rel (%p393) target = $region44
      $region43: #{att_encoder_decoder_forward.3} parent=11 // pred_region
        _
      $region44: #{att_encoder_decoder_forward.3} parent=11 // pred_fallthru
        _
      // Predicated region
      $region45: #{att_encoder_decoder_forward.3} parent=11 // pred_check
        %p396 = pneg %p244
      $region46: #{att_encoder_decoder_forward.3} parent=11 // pred_check_branch
        %398 = sbr.rel (%p396) target = $region48
      $region47: #{att_encoder_decoder_forward.3} parent=11 // pred_region
        _
      $region48: #{att_encoder_decoder_forward.3} parent=11 // pred_fallthru
        _
      // Predicated region
      $region49: #{att_encoder_decoder_forward.3} parent=11 // pred_check
        %p399 = pneg %p265
      $region50: #{att_encoder_decoder_forward.3} parent=11 // pred_check_branch
        %401 = sbr.rel (%p399) target = $region52
      $region51: #{att_encoder_decoder_forward.3} parent=11 // pred_region
        _
      $region52: #{att_encoder_decoder_forward.3} parent=11 // pred_fallthru
        _
      // Predicated region
      $region53: #{att_encoder_decoder_forward.3} parent=11 // pred_check
        %p402 = pneg %p286
      $region54: #{att_encoder_decoder_forward.3} parent=11 // pred_check_branch
        %404 = sbr.rel (%p402) target = $region56
      $region55: #{att_encoder_decoder_forward.3} parent=11 // pred_region
        _
      $region56: #{att_encoder_decoder_forward.3} parent=11 // pred_fallthru
        _
      // Predicated region
      $region57: #{att_encoder_decoder_forward.3} parent=11 // pred_check
        %p405 = pneg %p307
      $region58: #{att_encoder_decoder_forward.3} parent=11 // pred_check_branch
        %407 = sbr.rel (%p405) target = $region60
      $region59: #{att_encoder_decoder_forward.3} parent=11 // pred_region
        _
      $region60: #{att_encoder_decoder_forward.3} parent=11 // pred_fallthru
        _
    $region12: #{att_encoder_decoder_forward.3} parent=5 // pred_fallthru
      _
    %p408 = scmp.lt.s32.totalorder %s18, 6
    // Predicated region
    $region61: #{att_encoder_decoder_forward.3} parent=5 // pred_check
      %p409 = pneg %p408
    $region62: #{att_encoder_decoder_forward.3} parent=5 // pred_check_branch
      %411 = sbr.rel (%p409) target = $region64
    $region63: #{att_encoder_decoder_forward.3} parent=5 // pred_region
      _
    $region64: #{att_encoder_decoder_forward.3} parent=5 // pred_fallthru
      _
    %p412 = scmp.le.s32.totalorder 1, %s18
    %p413 = scmp.lt.s32.totalorder %s18, 7
    %p414 = pnand %p412, %p413
    %p415 = pneg %p414
    // Predicated region
    $region65: #{att_encoder_decoder_forward.3} parent=5 // pred_check
      _
    $region66: #{att_encoder_decoder_forward.3} parent=5 // pred_check_branch
      %417 = sbr.rel (%p414) target = $region68
    $region67: #{att_encoder_decoder_forward.3} parent=5 // pred_region
      %s418 = ssub.s32 %s18, 1
      %p419 = scmp.lt.s32.totalorder %s27, 0
      %s420 = scalar_select %p419, %s27, 0
      %s421 = smul.addr %s420, 8
      %s422 = scalar_lea.vmem %s0, %s421
      %p423 = pneg %p56
      %p424 = pneg %p53
      %p425 = scmp.lt.s32.totalorder %s27, 0
      %s426 = scalar_select %p425, %s27, 0
      %s427 = smul.addr %s426, 8
      %s428 = scalar_lea.vmem %s1, %s427
      %p429 = pneg %p82
      %p430 = pneg %p79
      %s431 = smul.u32 8, %s27
      %p432 = scmp.lt.s32.totalorder %s431, 7
      %s433 = scalar_select %p432, %s431, 7
      %s434 = smul.addr %s433, 8
      %s435 = scalar_lea.vmem %s2, %s434
      %p436 = pneg %p108
      %p437 = pneg %p105
      %p438 = scmp.lt.s32.totalorder %s27, 0
      %s439 = scalar_select %p438, %s27, 0
      %s440 = smul.addr %s439, 8
      %s441 = scalar_lea.vmem %s3, %s440
      %p442 = pneg %p134
      %p443 = pneg %p131
      %p444 = scmp.lt.s32.totalorder %s27, 0
      %s445 = scalar_select %p444, %s27, 0
      %s446 = smul.addr %s445, 8
      %s447 = scalar_lea.vmem %s4, %s446
      %p448 = pneg %p160
      %p449 = pneg %p157
      %p450 = pneg %p181
      %p451 = pneg %p178
      %p452 = pneg %p202
      %p453 = pneg %p199
      %p454 = pneg %p223
      %p455 = pneg %p220
      %p456 = pneg %p244
      %p457 = pneg %p241
      %p458 = pneg %p265
      %p459 = pneg %p262
      %p460 = pneg %p286
      %p461 = pneg %p283
      %p462 = pneg %p307
      %p463 = pneg %p304
      %p464 = pneg %p335
      %p465 = pneg %p332
      %p466 = scmp.lt.s32.totalorder %s28, 5
      %s467 = scalar_select %p466, %s28, 5
      %p468 = scmp.lt.s32.totalorder %s27, 0
      %s469 = scalar_select %p468, %s27, 0
      %s470 = sadd.s32 %s469, %s467
      %s471 = smul.addr %s470, 8
      %s472 = scalar_lea.vmem %s12, %s471
      %p473 = scmp.lt.s32.totalorder %s27, 0
      %s474 = scalar_select %p473, %s27, 0
      %s475 = smul.addr %s474, 8
      %s476 = scalar_lea.vmem %s0, %s475
      %p477 = scmp.lt.s32.totalorder %s27, 0
      %s478 = scalar_select %p477, %s27, 0
      %s479 = smul.addr %s478, 8
      %s480 = scalar_lea.vmem %s1, %s479
      %s481 = smul.u32 8, %s27
      %p482 = scmp.lt.s32.totalorder %s481, 7
      %s483 = scalar_select %p482, %s481, 7
      %s484 = smul.addr %s483, 8
      %s485 = scalar_lea.vmem %s2, %s484
      %s486 = smul.u32 8, %s27
      %p487 = scmp.lt.s32.totalorder %s27, 0
      %s488 = scalar_select %p487, %s27, 0
      %s489 = smul.addr %s488, 8
      %s490 = scalar_lea.vmem %s3, %s489
      %p491 = scmp.lt.s32.totalorder %s27, 0
      %s492 = scalar_select %p491, %s27, 0
      %s493 = smul.addr %s492, 8
      %s494 = scalar_lea.vmem %s4, %s493
      %p495 = scmp.lt.s32.totalorder %s28, 5
      %s496 = scalar_select %p495, %s28, 5
      %p497 = scmp.lt.s32.totalorder %s27, 0
      %s498 = scalar_select %p497, %s27, 0
      %s499 = sadd.s32 %s498, %s496
      %s500 = smul.addr %s499, 8
      %s501 = scalar_lea.vmem %s12, %s500
      %p502 = scmp.eq.s32.totalorder %s28, 0
      // Predicated region
      $region69: #{att_encoder_decoder_forward.3} parent=67 // pred_check
        %p503 = pneg %p502
      $region70: #{att_encoder_decoder_forward.3} parent=67 // pred_check_branch
        %505 = sbr.rel (%p503) target = $region72
      $region71: #{att_encoder_decoder_forward.3} parent=67 // pred_region
        %v506 = vld [vmem:[%s490] sm:$0xff]
        %vm507 = vcmask 261120
        %508 = vst.msk [vmem:[#allocation2] sm:$0xff] %vm507, %v506
        %v509 = vld [vmem:[%s494] sm:$0xff]
        %510 = vst.msk [vmem:[#allocation3] sm:$0xff] %vm507, %v509
      $region72: #{att_encoder_decoder_forward.3} parent=67 // pred_fallthru
        _
      %v511 = vld [vmem:[#allocation2] sm:$0xff]
      %v512 = vld [vmem:[#allocation3] sm:$0xff]
      %v513 = vld [vmem:[%s485] sm:$0xff]
      %v514 = vld [vmem:[%s485 + $0x8] sm:$0xff]
      %v515 = vld [vmem:[%s485 + $0x10] sm:$0xff]
      %v516 = vld [vmem:[%s485 + $0x18] sm:$0xff]
      %v517 = vld [vmem:[%s485 + $0x20] sm:$0xff]
      %v518 = vld [vmem:[%s485 + $0x28] sm:$0xff]
      %v519 = vld [vmem:[%s485 + $0x30] sm:$0xff]
      %v520 = vld [vmem:[%s485 + $0x38] sm:$0xff]
      %v522 = vcombine.high %v511, %v511
      %v524 = vunpack.c.l.s4 1966171168
      %v525 = vunpack.c.0.s8 %v524
      %v526 = vlaneseq
      %v527 = vshrl.u32 %v526, 7
      %v528 = vsub.s32 %v525, %v527
      %v529 = vrot.slane %v511, %v528
      %v531 = vunpack.c.l.s4 1966171168
      %v532 = vunpack.c.0.s8 %v531
      %v533 = vlaneseq
      %v534 = vshrl.u32 %v533, 7
      %v535 = vsub.s32 %v532, %v534
      %v536 = vrot.slane %v522, %v535
      %v537 = vcombine.high %v529, %v529
      %v538 = vcombine.high %v536, %v536
      %v540 = vunpack.c.l.s4 1966171168
      %v541 = vunpack.c.0.s8 %v540
      %v542 = vlaneseq
      %v543 = vshrl.u32 %v542, 7
      %v544 = vsub.s32 %v541, %v543
      %v545 = vrot.slane %v529, %v544
      %v547 = vunpack.c.l.s4 1966171168
      %v548 = vunpack.c.0.s8 %v547
      %v549 = vlaneseq
      %v550 = vshrl.u32 %v549, 7
      %v551 = vsub.s32 %v548, %v550
      %v552 = vrot.slane %v536, %v551
      %v554 = vunpack.c.l.s4 1966171168
      %v555 = vunpack.c.0.s8 %v554
      %v556 = vlaneseq
      %v557 = vshrl.u32 %v556, 7
      %v558 = vsub.s32 %v555, %v557
      %v559 = vrot.slane %v537, %v558
      %v561 = vunpack.c.l.s4 1966171168
      %v562 = vunpack.c.0.s8 %v561
      %v563 = vlaneseq
      %v564 = vshrl.u32 %v563, 7
      %v565 = vsub.s32 %v562, %v564
      %v566 = vrot.slane %v538, %v565
      %v567 = vcombine.high %v545, %v545
      %v568 = vcombine.high %v552, %v552
      %v569 = vcombine.high %v559, %v559
      %v570 = vcombine.high %v566, %v566
      %vm571 = vcmask 261120
      %v572 = vsel %vm571, %v545, 0
      %v575 = vsel %vm571, %v513, 0
      %577 = vmatprep.subr.mxu0 0.0
      %578 = vmatpush1.xpose.msra.mxu0 %v575
      %579 = vmatprep.subr.mxu0 0.0
      %580 = vmatpush1.xpose.msra.mxu0 0.0
      %581 = vmatprep.subr.mxu0 0.0
      %582 = vmatpush1.xpose.msra.mxu0 0.0
      %583 = vmatprep.subr.mxu0 0.0
      %584 = vmatpush1.xpose.msra.mxu0 0.0
      %585 = vmatprep.subr.mxu0 0.0
      %586 = vmatpush1.xpose.msra.mxu0 0.0
      %587 = vmatprep.subr.mxu0 0.0
      %588 = vmatpush1.xpose.msra.mxu0 0.0
      %589 = vmatprep.subr.mxu0 0.0
      %590 = vmatpush1.xpose.msra.mxu0 0.0
      %591 = vmatprep.subr.mxu0 0.0
      %592 = vmatpush1.xpose.msra.mxu0 0.0
      %593 = vmatprep.subr.mxu0 0.0
      %594 = vmatpush1.xpose.msra.mxu0 0.0
      %595 = vmatprep.subr.mxu0 0.0
      %596 = vmatpush1.xpose.msra.mxu0 0.0
      %597 = vmatprep.subr.mxu0 0.0
      %598 = vmatpush1.xpose.msra.mxu0 0.0
      %599 = vmatprep.subr.mxu0 0.0
      %600 = vmatpush1.xpose.msra.mxu0 0.0
      %601 = vmatprep.subr.mxu0 0.0
      %602 = vmatpush1.xpose.msra.mxu0 0.0
      %603 = vmatprep.subr.mxu0 0.0
      %604 = vmatpush1.xpose.msra.mxu0 0.0
      %605 = vmatprep.subr.mxu0 0.0
      %606 = vmatpush1.xpose.msra.mxu0 0.0
      %607 = vmatprep.subr.mxu0 0.0
      %608 = vmatpush1.xpose.msra.mxu0 0.0
      %609 = vmatprep.subr.mxu0 0.0
      %610 = vmatpush1.xpose.msra.mxu0 0.0
      %611 = vmatprep.subr.mxu0 0.0
      %612 = vmatpush1.xpose.msra.mxu0 0.0
      %613 = vmatprep.subr.mxu0 0.0
      %614 = vmatpush1.xpose.msra.mxu0 0.0
      %615 = vmatprep.subr.mxu0 0.0
      %616 = vmatpush1.xpose.msra.mxu0 0.0
      %617 = vmatprep.subr.mxu0 0.0
      %618 = vmatpush1.xpose.msra.mxu0 0.0
      %619 = vmatprep.subr.mxu0 0.0
      %620 = vmatpush1.xpose.msra.mxu0 0.0
      %621 = vmatprep.subr.mxu0 0.0
      %622 = vmatpush1.xpose.msra.mxu0 0.0
      %623 = vmatprep.subr.mxu0 0.0
      %624 = vmatpush1.xpose.msra.mxu0 0.0
      %625 = vmatprep.subr.mxu0 0.0
      %626 = vmatpush1.xpose.msra.mxu0 0.0
      %627 = vmatprep.subr.mxu0 0.0
      %628 = vmatpush1.xpose.msra.mxu0 0.0
      %629 = vmatprep.subr.mxu0 0.0
      %630 = vmatpush1.xpose.msra.mxu0 0.0
      %631 = vmatprep.subr.mxu0 0.0
      %632 = vmatpush1.xpose.msra.mxu0 0.0
      %633 = vmatprep.subr.mxu0 0.0
      %634 = vmatpush1.xpose.msra.mxu0 0.0
      %635 = vmatprep.subr.mxu0 0.0
      %636 = vmatpush1.xpose.msra.mxu0 0.0
      %637 = vmatprep.subr.mxu0 0.0
      %638 = vmatpush1.xpose.msra.mxu0 0.0
      %639 = vmatprep.subr.mxu0 0.0
      %640 = vmatpush1.xpose.msra.mxu0 0.0
      %641 = vmatprep.mubr.f32.mxu0 0.0
      %642 = vmatmul.mubr.f32.gmra.mrb[0].mxu0 %v572
      %v643 = vpop.f32.mrb[0].mxu0
      %v644 = vadd.f32 0.0, %v643
      %v645 = vpop.f32.mrb[0].mxu0
      %646 = vdwg.mxu0
      %v647 = vsel %vm571, %v559, 0
      %v650 = vsel %vm571, %v514, 0
      %652 = vmatprep.subr.mxu0 0.0
      %653 = vmatpush1.xpose.msra.mxu0 %v650
      %654 = vmatprep.subr.mxu0 0.0
      %655 = vmatpush1.xpose.msra.mxu0 0.0
      %656 = vmatprep.subr.mxu0 0.0
      %657 = vmatpush1.xpose.msra.mxu0 0.0
      %658 = vmatprep.subr.mxu0 0.0
      %659 = vmatpush1.xpose.msra.mxu0 0.0
      %660 = vmatprep.subr.mxu0 0.0
      %661 = vmatpush1.xpose.msra.mxu0 0.0
      %662 = vmatprep.subr.mxu0 0.0
      %663 = vmatpush1.xpose.msra.mxu0 0.0
      %664 = vmatprep.subr.mxu0 0.0
      %665 = vmatpush1.xpose.msra.mxu0 0.0
      %666 = vmatprep.subr.mxu0 0.0
      %667 = vmatpush1.xpose.msra.mxu0 0.0
      %668 = vmatprep.subr.mxu0 0.0
      %669 = vmatpush1.xpose.msra.mxu0 0.0
      %670 = vmatprep.subr.mxu0 0.0
      %671 = vmatpush1.xpose.msra.mxu0 0.0
      %672 = vmatprep.subr.mxu0 0.0
      %673 = vmatpush1.xpose.msra.mxu0 0.0
      %674 = vmatprep.subr.mxu0 0.0
      %675 = vmatpush1.xpose.msra.mxu0 0.0
      %676 = vmatprep.subr.mxu0 0.0
      %677 = vmatpush1.xpose.msra.mxu0 0.0
      %678 = vmatprep.subr.mxu0 0.0
      %679 = vmatpush1.xpose.msra.mxu0 0.0
      %680 = vmatprep.subr.mxu0 0.0
      %681 = vmatpush1.xpose.msra.mxu0 0.0
      %682 = vmatprep.subr.mxu0 0.0
      %683 = vmatpush1.xpose.msra.mxu0 0.0
      %684 = vmatprep.subr.mxu0 0.0
      %685 = vmatpush1.xpose.msra.mxu0 0.0
      %686 = vmatprep.subr.mxu0 0.0
      %687 = vmatpush1.xpose.msra.mxu0 0.0
      %688 = vmatprep.subr.mxu0 0.0
      %689 = vmatpush1.xpose.msra.mxu0 0.0
      %690 = vmatprep.subr.mxu0 0.0
      %691 = vmatpush1.xpose.msra.mxu0 0.0
      %692 = vmatprep.subr.mxu0 0.0
      %693 = vmatpush1.xpose.msra.mxu0 0.0
      %694 = vmatprep.subr.mxu0 0.0
      %695 = vmatpush1.xpose.msra.mxu0 0.0
      %696 = vmatprep.subr.mxu0 0.0
      %697 = vmatpush1.xpose.msra.mxu0 0.0
      %698 = vmatprep.subr.mxu0 0.0
      %699 = vmatpush1.xpose.msra.mxu0 0.0
      %700 = vmatprep.subr.mxu0 0.0
      %701 = vmatpush1.xpose.msra.mxu0 0.0
      %702 = vmatprep.subr.mxu0 0.0
      %703 = vmatpush1.xpose.msra.mxu0 0.0
      %704 = vmatprep.subr.mxu0 0.0
      %705 = vmatpush1.xpose.msra.mxu0 0.0
      %706 = vmatprep.subr.mxu0 0.0
      %707 = vmatpush1.xpose.msra.mxu0 0.0
      %708 = vmatprep.subr.mxu0 0.0
      %709 = vmatpush1.xpose.msra.mxu0 0.0
      %710 = vmatprep.subr.mxu0 0.0
      %711 = vmatpush1.xpose.msra.mxu0 0.0
      %712 = vmatprep.subr.mxu0 0.0
      %713 = vmatpush1.xpose.msra.mxu0 0.0
      %714 = vmatprep.subr.mxu0 0.0
      %715 = vmatpush1.xpose.msra.mxu0 0.0
      %716 = vmatprep.mubr.f32.mxu0 0.0
      %717 = vmatmul.mubr.f32.gmra.mrb[0].mxu0 %v647
      %v718 = vpop.f32.mrb[0].mxu0
      %v719 = vadd.f32 0.0, %v718
      %v720 = vpop.f32.mrb[0].mxu0
      %721 = vdwg.mxu0
      %v722 = vsel %vm571, %v567, 0
      %v725 = vsel %vm571, %v515, 0
      %727 = vmatprep.subr.mxu0 0.0
      %728 = vmatpush1.xpose.msra.mxu0 %v725
      %729 = vmatprep.subr.mxu0 0.0
      %730 = vmatpush1.xpose.msra.mxu0 0.0
      %731 = vmatprep.subr.mxu0 0.0
      %732 = vmatpush1.xpose.msra.mxu0 0.0
      %733 = vmatprep.subr.mxu0 0.0
      %734 = vmatpush1.xpose.msra.mxu0 0.0
      %735 = vmatprep.subr.mxu0 0.0
      %736 = vmatpush1.xpose.msra.mxu0 0.0
      %737 = vmatprep.subr.mxu0 0.0
      %738 = vmatpush1.xpose.msra.mxu0 0.0
      %739 = vmatprep.subr.mxu0 0.0
      %740 = vmatpush1.xpose.msra.mxu0 0.0
      %741 = vmatprep.subr.mxu0 0.0
      %742 = vmatpush1.xpose.msra.mxu0 0.0
      %743 = vmatprep.subr.mxu0 0.0
      %744 = vmatpush1.xpose.msra.mxu0 0.0
      %745 = vmatprep.subr.mxu0 0.0
      %746 = vmatpush1.xpose.msra.mxu0 0.0
      %747 = vmatprep.subr.mxu0 0.0
      %748 = vmatpush1.xpose.msra.mxu0 0.0
      %749 = vmatprep.subr.mxu0 0.0
      %750 = vmatpush1.xpose.msra.mxu0 0.0
      %751 = vmatprep.subr.mxu0 0.0
      %752 = vmatpush1.xpose.msra.mxu0 0.0
      %753 = vmatprep.subr.mxu0 0.0
      %754 = vmatpush1.xpose.msra.mxu0 0.0
      %755 = vmatprep.subr.mxu0 0.0
      %756 = vmatpush1.xpose.msra.mxu0 0.0
      %757 = vmatprep.subr.mxu0 0.0
      %758 = vmatpush1.xpose.msra.mxu0 0.0
      %759 = vmatprep.subr.mxu0 0.0
      %760 = vmatpush1.xpose.msra.mxu0 0.0
      %761 = vmatprep.subr.mxu0 0.0
      %762 = vmatpush1.xpose.msra.mxu0 0.0
      %763 = vmatprep.subr.mxu0 0.0
      %764 = vmatpush1.xpose.msra.mxu0 0.0
      %765 = vmatprep.subr.mxu0 0.0
      %766 = vmatpush1.xpose.msra.mxu0 0.0
      %767 = vmatprep.subr.mxu0 0.0
      %768 = vmatpush1.xpose.msra.mxu0 0.0
      %769 = vmatprep.subr.mxu0 0.0
      %770 = vmatpush1.xpose.msra.mxu0 0.0
      %771 = vmatprep.subr.mxu0 0.0
      %772 = vmatpush1.xpose.msra.mxu0 0.0
      %773 = vmatprep.subr.mxu0 0.0
      %774 = vmatpush1.xpose.msra.mxu0 0.0
      %775 = vmatprep.subr.mxu0 0.0
      %776 = vmatpush1.xpose.msra.mxu0 0.0
      %777 = vmatprep.subr.mxu0 0.0
      %778 = vmatpush1.xpose.msra.mxu0 0.0
      %779 = vmatprep.subr.mxu0 0.0
      %780 = vmatpush1.xpose.msra.mxu0 0.0
      %781 = vmatprep.subr.mxu0 0.0
      %782 = vmatpush1.xpose.msra.mxu0 0.0
      %783 = vmatprep.subr.mxu0 0.0
      %784 = vmatpush1.xpose.msra.mxu0 0.0
      %785 = vmatprep.subr.mxu0 0.0
      %786 = vmatpush1.xpose.msra.mxu0 0.0
      %787 = vmatprep.subr.mxu0 0.0
      %788 = vmatpush1.xpose.msra.mxu0 0.0
      %789 = vmatprep.subr.mxu0 0.0
      %790 = vmatpush1.xpose.msra.mxu0 0.0
      %791 = vmatprep.mubr.f32.mxu0 0.0
      %792 = vmatmul.mubr.f32.gmra.mrb[0].mxu0 %v722
      %v793 = vpop.f32.mrb[0].mxu0
      %v794 = vadd.f32 0.0, %v793
      %v795 = vpop.f32.mrb[0].mxu0
      %796 = vdwg.mxu0
      %v797 = vsel %vm571, %v569, 0
      %v800 = vsel %vm571, %v516, 0
      %802 = vmatprep.subr.mxu0 0.0
      %803 = vmatpush1.xpose.msra.mxu0 %v800
      %804 = vmatprep.subr.mxu0 0.0
      %805 = vmatpush1.xpose.msra.mxu0 0.0
      %806 = vmatprep.subr.mxu0 0.0
      %807 = vmatpush1.xpose.msra.mxu0 0.0
      %808 = vmatprep.subr.mxu0 0.0
      %809 = vmatpush1.xpose.msra.mxu0 0.0
      %810 = vmatprep.subr.mxu0 0.0
      %811 = vmatpush1.xpose.msra.mxu0 0.0
      %812 = vmatprep.subr.mxu0 0.0
      %813 = vmatpush1.xpose.msra.mxu0 0.0
      %814 = vmatprep.subr.mxu0 0.0
      %815 = vmatpush1.xpose.msra.mxu0 0.0
      %816 = vmatprep.subr.mxu0 0.0
      %817 = vmatpush1.xpose.msra.mxu0 0.0
      %818 = vmatprep.subr.mxu0 0.0
      %819 = vmatpush1.xpose.msra.mxu0 0.0
      %820 = vmatprep.subr.mxu0 0.0
      %821 = vmatpush1.xpose.msra.mxu0 0.0
      %822 = vmatprep.subr.mxu0 0.0
      %823 = vmatpush1.xpose.msra.mxu0 0.0
      %824 = vmatprep.subr.mxu0 0.0
      %825 = vmatpush1.xpose.msra.mxu0 0.0
      %826 = vmatprep.subr.mxu0 0.0
      %827 = vmatpush1.xpose.msra.mxu0 0.0
      %828 = vmatprep.subr.mxu0 0.0
      %829 = vmatpush1.xpose.msra.mxu0 0.0
      %830 = vmatprep.subr.mxu0 0.0
      %831 = vmatpush1.xpose.msra.mxu0 0.0
      %832 = vmatprep.subr.mxu0 0.0
      %833 = vmatpush1.xpose.msra.mxu0 0.0
      %834 = vmatprep.subr.mxu0 0.0
      %835 = vmatpush1.xpose.msra.mxu0 0.0
      %836 = vmatprep.subr.mxu0 0.0
      %837 = vmatpush1.xpose.msra.mxu0 0.0
      %838 = vmatprep.subr.mxu0 0.0
      %839 = vmatpush1.xpose.msra.mxu0 0.0
      %840 = vmatprep.subr.mxu0 0.0
      %841 = vmatpush1.xpose.msra.mxu0 0.0
      %842 = vmatprep.subr.mxu0 0.0
      %843 = vmatpush1.xpose.msra.mxu0 0.0
      %844 = vmatprep.subr.mxu0 0.0
      %845 = vmatpush1.xpose.msra.mxu0 0.0
      %846 = vmatprep.subr.mxu0 0.0
      %847 = vmatpush1.xpose.msra.mxu0 0.0
      %848 = vmatprep.subr.mxu0 0.0
      %849 = vmatpush1.xpose.msra.mxu0 0.0
      %850 = vmatprep.subr.mxu0 0.0
      %851 = vmatpush1.xpose.msra.mxu0 0.0
      %852 = vmatprep.subr.mxu0 0.0
      %853 = vmatpush1.xpose.msra.mxu0 0.0
      %854 = vmatprep.subr.mxu0 0.0
      %855 = vmatpush1.xpose.msra.mxu0 0.0
      %856 = vmatprep.subr.mxu0 0.0
      %857 = vmatpush1.xpose.msra.mxu0 0.0
      %858 = vmatprep.subr.mxu0 0.0
      %859 = vmatpush1.xpose.msra.mxu0 0.0
      %860 = vmatprep.subr.mxu0 0.0
      %861 = vmatpush1.xpose.msra.mxu0 0.0
      %862 = vmatprep.subr.mxu0 0.0
      %863 = vmatpush1.xpose.msra.mxu0 0.0
      %864 = vmatprep.subr.mxu0 0.0
      %865 = vmatpush1.xpose.msra.mxu0 0.0
      %866 = vmatprep.mubr.f32.mxu0 0.0
      %867 = vmatmul.mubr.f32.gmra.mrb[0].mxu0 %v797
      %v868 = vpop.f32.mrb[0].mxu0
      %v869 = vadd.f32 0.0, %v868
      %v870 = vpop.f32.mrb[0].mxu0
      %871 = vdwg.mxu0
      %v872 = vsel %vm571, %v552, 0
      %v875 = vsel %vm571, %v517, 0
      %877 = vmatprep.subr.mxu0 0.0
      %878 = vmatpush1.xpose.msra.mxu0 %v875
      %879 = vmatprep.subr.mxu0 0.0
      %880 = vmatpush1.xpose.msra.mxu0 0.0
      %881 = vmatprep.subr.mxu0 0.0
      %882 = vmatpush1.xpose.msra.mxu0 0.0
      %883 = vmatprep.subr.mxu0 0.0
      %884 = vmatpush1.xpose.msra.mxu0 0.0
      %885 = vmatprep.subr.mxu0 0.0
      %886 = vmatpush1.xpose.msra.mxu0 0.0
      %887 = vmatprep.subr.mxu0 0.0
      %888 = vmatpush1.xpose.msra.mxu0 0.0
      %889 = vmatprep.subr.mxu0 0.0
      %890 = vmatpush1.xpose.msra.mxu0 0.0
      %891 = vmatprep.subr.mxu0 0.0
      %892 = vmatpush1.xpose.msra.mxu0 0.0
      %893 = vmatprep.subr.mxu0 0.0
      %894 = vmatpush1.xpose.msra.mxu0 0.0
      %895 = vmatprep.subr.mxu0 0.0
      %896 = vmatpush1.xpose.msra.mxu0 0.0
      %897 = vmatprep.subr.mxu0 0.0
      %898 = vmatpush1.xpose.msra.mxu0 0.0
      %899 = vmatprep.subr.mxu0 0.0
      %900 = vmatpush1.xpose.msra.mxu0 0.0
      %901 = vmatprep.subr.mxu0 0.0
      %902 = vmatpush1.xpose.msra.mxu0 0.0
      %903 = vmatprep.subr.mxu0 0.0
      %904 = vmatpush1.xpose.msra.mxu0 0.0
      %905 = vmatprep.subr.mxu0 0.0
      %906 = vmatpush1.xpose.msra.mxu0 0.0
      %907 = vmatprep.subr.mxu0 0.0
      %908 = vmatpush1.xpose.msra.mxu0 0.0
      %909 = vmatprep.subr.mxu0 0.0
      %910 = vmatpush1.xpose.msra.mxu0 0.0
      %911 = vmatprep.subr.mxu0 0.0
      %912 = vmatpush1.xpose.msra.mxu0 0.0
      %913 = vmatprep.subr.mxu0 0.0
      %914 = vmatpush1.xpose.msra.mxu0 0.0
      %915 = vmatprep.subr.mxu0 0.0
      %916 = vmatpush1.xpose.msra.mxu0 0.0
      %917 = vmatprep.subr.mxu0 0.0
      %918 = vmatpush1.xpose.msra.mxu0 0.0
      %919 = vmatprep.subr.mxu0 0.0
      %920 = vmatpush1.xpose.msra.mxu0 0.0
      %921 = vmatprep.subr.mxu0 0.0
      %922 = vmatpush1.xpose.msra.mxu0 0.0
      %923 = vmatprep.subr.mxu0 0.0
      %924 = vmatpush1.xpose.msra.mxu0 0.0
      %925 = vmatprep.subr.mxu0 0.0
      %926 = vmatpush1.xpose.msra.mxu0 0.0
      %927 = vmatprep.subr.mxu0 0.0
      %928 = vmatpush1.xpose.msra.mxu0 0.0
      %929 = vmatprep.subr.mxu0 0.0
      %930 = vmatpush1.xpose.msra.mxu0 0.0
      %931 = vmatprep.subr.mxu0 0.0
      %932 = vmatpush1.xpose.msra.mxu0 0.0
      %933 = vmatprep.subr.mxu0 0.0
      %934 = vmatpush1.xpose.msra.mxu0 0.0
      %935 = vmatprep.subr.mxu0 0.0
      %936 = vmatpush1.xpose.msra.mxu0 0.0
      %937 = vmatprep.subr.mxu0 0.0
      %938 = vmatpush1.xpose.msra.mxu0 0.0
      %939 = vmatprep.subr.mxu0 0.0
      %940 = vmatpush1.xpose.msra.mxu0 0.0
      %941 = vmatprep.mubr.f32.mxu0 0.0
      %942 = vmatmul.mubr.f32.gmra.mrb[0].mxu0 %v872
      %v943 = vpop.f32.mrb[0].mxu0
      %v944 = vadd.f32 0.0, %v943
      %v945 = vpop.f32.mrb[0].mxu0
      %946 = vdwg.mxu0
      %v947 = vsel %vm571, %v566, 0
      %v950 = vsel %vm571, %v518, 0
      %952 = vmatprep.subr.mxu0 0.0
      %953 = vmatpush1.xpose.msra.mxu0 %v950
      %954 = vmatprep.subr.mxu0 0.0
      %955 = vmatpush1.xpose.msra.mxu0 0.0
      %956 = vmatprep.subr.mxu0 0.0
      %957 = vmatpush1.xpose.msra.mxu0 0.0
      %958 = vmatprep.subr.mxu0 0.0
      %959 = vmatpush1.xpose.msra.mxu0 0.0
      %960 = vmatprep.subr.mxu0 0.0
      %961 = vmatpush1.xpose.msra.mxu0 0.0
      %962 = vmatprep.subr.mxu0 0.0
      %963 = vmatpush1.xpose.msra.mxu0 0.0
      %964 = vmatprep.subr.mxu0 0.0
      %965 = vmatpush1.xpose.msra.mxu0 0.0
      %966 = vmatprep.subr.mxu0 0.0
      %967 = vmatpush1.xpose.msra.mxu0 0.0
      %968 = vmatprep.subr.mxu0 0.0
      %969 = vmatpush1.xpose.msra.mxu0 0.0
      %970 = vmatprep.subr.mxu0 0.0
      %971 = vmatpush1.xpose.msra.mxu0 0.0
      %972 = vmatprep.subr.mxu0 0.0
      %973 = vmatpush1.xpose.msra.mxu0 0.0
      %974 = vmatprep.subr.mxu0 0.0
      %975 = vmatpush1.xpose.msra.mxu0 0.0
      %976 = vmatprep.subr.mxu0 0.0
      %977 = vmatpush1.xpose.msra.mxu0 0.0
      %978 = vmatprep.subr.mxu0 0.0
      %979 = vmatpush1.xpose.msra.mxu0 0.0
      %980 = vmatprep.subr.mxu0 0.0
      %981 = vmatpush1.xpose.msra.mxu0 0.0
      %982 = vmatprep.subr.mxu0 0.0
      %983 = vmatpush1.xpose.msra.mxu0 0.0
      %984 = vmatprep.subr.mxu0 0.0
      %985 = vmatpush1.xpose.msra.mxu0 0.0
      %986 = vmatprep.subr.mxu0 0.0
      %987 = vmatpush1.xpose.msra.mxu0 0.0
      %988 = vmatprep.subr.mxu0 0.0
      %989 = vmatpush1.xpose.msra.mxu0 0.0
      %990 = vmatprep.subr.mxu0 0.0
      %991 = vmatpush1.xpose.msra.mxu0 0.0
      %992 = vmatprep.subr.mxu0 0.0
      %993 = vmatpush1.xpose.msra.mxu0 0.0
      %994 = vmatprep.subr.mxu0 0.0
      %995 = vmatpush1.xpose.msra.mxu0 0.0
      %996 = vmatprep.subr.mxu0 0.0
      %997 = vmatpush1.xpose.msra.mxu0 0.0
      %998 = vmatprep.subr.mxu0 0.0
      %999 = vmatpush1.xpose.msra.mxu0 0.0
      %1000 = vmatprep.subr.mxu0 0.0
      %1001 = vmatpush1.xpose.msra.mxu0 0.0
      %1002 = vmatprep.subr.mxu0 0.0
      %1003 = vmatpush1.xpose.msra.mxu0 0.0
      %1004 = vmatprep.subr.mxu0 0.0
      %1005 = vmatpush1.xpose.msra.mxu0 0.0
      %1006 = vmatprep.subr.mxu0 0.0
      %1007 = vmatpush1.xpose.msra.mxu0 0.0
      %1008 = vmatprep.subr.mxu0 0.0
      %1009 = vmatpush1.xpose.msra.mxu0 0.0
      %1010 = vmatprep.subr.mxu0 0.0
      %1011 = vmatpush1.xpose.msra.mxu0 0.0
      %1012 = vmatprep.subr.mxu0 0.0
      %1013 = vmatpush1.xpose.msra.mxu0 0.0
      %1014 = vmatprep.subr.mxu0 0.0
      %1015 = vmatpush1.xpose.msra.mxu0 0.0
      %1016 = vmatprep.mubr.f32.mxu0 0.0
      %1017 = vmatmul.mubr.f32.gmra.mrb[0].mxu0 %v947
      %v1018 = vpop.f32.mrb[0].mxu0
      %v1019 = vadd.f32 0.0, %v1018
      %v1020 = vpop.f32.mrb[0].mxu0
      %1021 = vdwg.mxu0
      %v1022 = vsel %vm571, %v568, 0
      %v1025 = vsel %vm571, %v519, 0
      %1027 = vmatprep.subr.mxu0 0.0
      %1028 = vmatpush1.xpose.msra.mxu0 %v1025
      %1029 = vmatprep.subr.mxu0 0.0
      %1030 = vmatpush1.xpose.msra.mxu0 0.0
      %1031 = vmatprep.subr.mxu0 0.0
      %1032 = vmatpush1.xpose.msra.mxu0 0.0
      %1033 = vmatprep.subr.mxu0 0.0
      %1034 = vmatpush1.xpose.msra.mxu0 0.0
      %1035 = vmatprep.subr.mxu0 0.0
      %1036 = vmatpush1.xpose.msra.mxu0 0.0
      %1037 = vmatprep.subr.mxu0 0.0
      %1038 = vmatpush1.xpose.msra.mxu0 0.0
      %1039 = vmatprep.subr.mxu0 0.0
      %1040 = vmatpush1.xpose.msra.mxu0 0.0
      %1041 = vmatprep.subr.mxu0 0.0
      %1042 = vmatpush1.xpose.msra.mxu0 0.0
      %1043 = vmatprep.subr.mxu0 0.0
      %1044 = vmatpush1.xpose.msra.mxu0 0.0
      %1045 = vmatprep.subr.mxu0 0.0
      %1046 = vmatpush1.xpose.msra.mxu0 0.0
      %1047 = vmatprep.subr.mxu0 0.0
      %1048 = vmatpush1.xpose.msra.mxu0 0.0
      %1049 = vmatprep.subr.mxu0 0.0
      %1050 = vmatpush1.xpose.msra.mxu0 0.0
      %1051 = vmatprep.subr.mxu0 0.0
      %1052 = vmatpush1.xpose.msra.mxu0 0.0
      %1053 = vmatprep.subr.mxu0 0.0
      %1054 = vmatpush1.xpose.msra.mxu0 0.0
      %1055 = vmatprep.subr.mxu0 0.0
      %1056 = vmatpush1.xpose.msra.mxu0 0.0
      %1057 = vmatprep.subr.mxu0 0.0
      %1058 = vmatpush1.xpose.msra.mxu0 0.0
      %1059 = vmatprep.subr.mxu0 0.0
      %1060 = vmatpush1.xpose.msra.mxu0 0.0
      %1061 = vmatprep.subr.mxu0 0.0
      %1062 = vmatpush1.xpose.msra.mxu0 0.0
      %1063 = vmatprep.subr.mxu0 0.0
      %1064 = vmatpush1.xpose.msra.mxu0 0.0
      %1065 = vmatprep.subr.mxu0 0.0
      %1066 = vmatpush1.xpose.msra.mxu0 0.0
      %1067 = vmatprep.subr.mxu0 0.0
      %1068 = vmatpush1.xpose.msra.mxu0 0.0
      %1069 = vmatprep.subr.mxu0 0.0
      %1070 = vmatpush1.xpose.msra.mxu0 0.0
      %1071 = vmatprep.subr.mxu0 0.0
      %1072 = vmatpush1.xpose.msra.mxu0 0.0
      %1073 = vmatprep.subr.mxu0 0.0
      %1074 = vmatpush1.xpose.msra.mxu0 0.0
      %1075 = vmatprep.subr.mxu0 0.0
      %1076 = vmatpush1.xpose.msra.mxu0 0.0
      %1077 = vmatprep.subr.mxu0 0.0
      %1078 = vmatpush1.xpose.msra.mxu0 0.0
      %1079 = vmatprep.subr.mxu0 0.0
      %1080 = vmatpush1.xpose.msra.mxu0 0.0
      %1081 = vmatprep.subr.mxu0 0.0
      %1082 = vmatpush1.xpose.msra.mxu0 0.0
      %1083 = vmatprep.subr.mxu0 0.0
      %1084 = vmatpush1.xpose.msra.mxu0 0.0
      %1085 = vmatprep.subr.mxu0 0.0
      %1086 = vmatpush1.xpose.msra.mxu0 0.0
      %1087 = vmatprep.subr.mxu0 0.0
      %1088 = vmatpush1.xpose.msra.mxu0 0.0
      %1089 = vmatprep.subr.mxu0 0.0
      %1090 = vmatpush1.xpose.msra.mxu0 0.0
      %1091 = vmatprep.mubr.f32.mxu0 0.0
      %1092 = vmatmul.mubr.f32.gmra.mrb[0].mxu0 %v1022
      %v1093 = vpop.f32.mrb[0].mxu0
      %v1094 = vadd.f32 0.0, %v1093
      %v1095 = vpop.f32.mrb[0].mxu0
      %1096 = vdwg.mxu0
      %v1097 = vsel %vm571, %v570, 0
      %v1100 = vsel %vm571, %v520, 0
      %1102 = vmatprep.subr.mxu0 0.0
      %1103 = vmatpush1.xpose.msra.mxu0 %v1100
      %1104 = vmatprep.subr.mxu0 0.0
      %1105 = vmatpush1.xpose.msra.mxu0 0.0
      %1106 = vmatprep.subr.mxu0 0.0
      %1107 = vmatpush1.xpose.msra.mxu0 0.0
      %1108 = vmatprep.subr.mxu0 0.0
      %1109 = vmatpush1.xpose.msra.mxu0 0.0
      %1110 = vmatprep.subr.mxu0 0.0
      %1111 = vmatpush1.xpose.msra.mxu0 0.0
      %1112 = vmatprep.subr.mxu0 0.0
      %1113 = vmatpush1.xpose.msra.mxu0 0.0
      %1114 = vmatprep.subr.mxu0 0.0
      %1115 = vmatpush1.xpose.msra.mxu0 0.0
      %1116 = vmatprep.subr.mxu0 0.0
      %1117 = vmatpush1.xpose.msra.mxu0 0.0
      %1118 = vmatprep.subr.mxu0 0.0
      %1119 = vmatpush1.xpose.msra.mxu0 0.0
      %1120 = vmatprep.subr.mxu0 0.0
      %1121 = vmatpush1.xpose.msra.mxu0 0.0
      %1122 = vmatprep.subr.mxu0 0.0
      %1123 = vmatpush1.xpose.msra.mxu0 0.0
      %1124 = vmatprep.subr.mxu0 0.0
      %1125 = vmatpush1.xpose.msra.mxu0 0.0
      %1126 = vmatprep.subr.mxu0 0.0
      %1127 = vmatpush1.xpose.msra.mxu0 0.0
      %1128 = vmatprep.subr.mxu0 0.0
      %1129 = vmatpush1.xpose.msra.mxu0 0.0
      %1130 = vmatprep.subr.mxu0 0.0
      %1131 = vmatpush1.xpose.msra.mxu0 0.0
      %1132 = vmatprep.subr.mxu0 0.0
      %1133 = vmatpush1.xpose.msra.mxu0 0.0
      %1134 = vmatprep.subr.mxu0 0.0
      %1135 = vmatpush1.xpose.msra.mxu0 0.0
      %1136 = vmatprep.subr.mxu0 0.0
      %1137 = vmatpush1.xpose.msra.mxu0 0.0
      %1138 = vmatprep.subr.mxu0 0.0
      %1139 = vmatpush1.xpose.msra.mxu0 0.0
      %1140 = vmatprep.subr.mxu0 0.0
      %1141 = vmatpush1.xpose.msra.mxu0 0.0
      %1142 = vmatprep.subr.mxu0 0.0
      %1143 = vmatpush1.xpose.msra.mxu0 0.0
      %1144 = vmatprep.subr.mxu0 0.0
      %1145 = vmatpush1.xpose.msra.mxu0 0.0
      %1146 = vmatprep.subr.mxu0 0.0
      %1147 = vmatpush1.xpose.msra.mxu0 0.0
      %1148 = vmatprep.subr.mxu0 0.0
      %1149 = vmatpush1.xpose.msra.mxu0 0.0
      %1150 = vmatprep.subr.mxu0 0.0
      %1151 = vmatpush1.xpose.msra.mxu0 0.0
      %1152 = vmatprep.subr.mxu0 0.0
      %1153 = vmatpush1.xpose.msra.mxu0 0.0
      %1154 = vmatprep.subr.mxu0 0.0
      %1155 = vmatpush1.xpose.msra.mxu0 0.0
      %1156 = vmatprep.subr.mxu0 0.0
      %1157 = vmatpush1.xpose.msra.mxu0 0.0
      %1158 = vmatprep.subr.mxu0 0.0
      %1159 = vmatpush1.xpose.msra.mxu0 0.0
      %1160 = vmatprep.subr.mxu0 0.0
      %1161 = vmatpush1.xpose.msra.mxu0 0.0
      %1162 = vmatprep.subr.mxu0 0.0
      %1163 = vmatpush1.xpose.msra.mxu0 0.0
      %1164 = vmatprep.subr.mxu0 0.0
      %1165 = vmatpush1.xpose.msra.mxu0 0.0
      %1166 = vmatprep.mubr.f32.mxu0 0.0
      %1167 = vmatmul.mubr.f32.gmra.mrb[0].mxu0 %v1097
      %v1168 = vpop.f32.mrb[0].mxu0
      %v1169 = vadd.f32 0.0, %v1168
      %v1170 = vpop.f32.mrb[0].mxu0
      %1171 = vdwg.mxu0
      %vm1172 = vcmask 57344
      %v1173 = vsel %vm1172, %v644, -inf
      %1174 = vmax.xlane.f32.xlu0 %v1173
      %v1175 = vpop.xlane.xlu0 %1174
      %v1176 = vsel %vm1172, %v719, -inf
      %1177 = vmax.xlane.f32.xlu0 %v1176
      %v1178 = vpop.xlane.xlu0 %1177
      %v1179 = vsel %vm1172, %v794, -inf
      %1180 = vmax.xlane.f32.xlu0 %v1179
      %v1181 = vpop.xlane.xlu0 %1180
      %v1182 = vsel %vm1172, %v869, -inf
      %1183 = vmax.xlane.f32.xlu0 %v1182
      %v1184 = vpop.xlane.xlu0 %1183
      %v1185 = vsel %vm1172, %v944, -inf
      %1186 = vmax.xlane.f32.xlu0 %v1185
      %v1187 = vpop.xlane.xlu0 %1186
      %v1188 = vsel %vm1172, %v1019, -inf
      %1189 = vmax.xlane.f32.xlu0 %v1188
      %v1190 = vpop.xlane.xlu0 %1189
      %v1191 = vsel %vm1172, %v1094, -inf
      %1192 = vmax.xlane.f32.xlu0 %v1191
      %v1193 = vpop.xlane.xlu0 %1192
      %v1194 = vsel %vm1172, %v1169, -inf
      %1195 = vmax.xlane.f32.xlu0 %v1194
      %v1196 = vpop.xlane.xlu0 %1195
      %v1197 = vsub.f32 %v644, %v1175
      %v1198 = vsub.f32 %v719, %v1178
      %v1199 = vsub.f32 %v794, %v1181
      %v1200 = vsub.f32 %v869, %v1184
      %v1201 = vsub.f32 %v944, %v1187
      %v1202 = vsub.f32 %v1019, %v1190
      %v1203 = vsub.f32 %v1094, %v1193
      %v1204 = vsub.f32 %v1169, %v1196
      %v1205 = vmul.f32 %v1197, 1.442695
      %v1206 = vpow.pop %v1205
      %v1207 = vmul.f32 %v1198, 1.442695
      %v1208 = vpow.pop %v1207
      %v1209 = vmul.f32 %v1199, 1.442695
      %v1210 = vpow.pop %v1209
      %v1211 = vmul.f32 %v1200, 1.442695
      %v1212 = vpow.pop %v1211
      %v1213 = vmul.f32 %v1201, 1.442695
      %v1214 = vpow.pop %v1213
      %v1215 = vmul.f32 %v1202, 1.442695
      %v1216 = vpow.pop %v1215
      %v1217 = vmul.f32 %v1203, 1.442695
      %v1218 = vpow.pop %v1217
      %v1219 = vmul.f32 %v1204, 1.442695
      %v1220 = vpow.pop %v1219
      %v1221 = vsel %vm1172, %v1206, 0.0
      %1222 = vadd.xlane.f32.xlu0 %v1221
      %v1223 = vpop.xlane.xlu0 %1222
      %v1224 = vsel %vm1172, %v1208, 0.0
      %1225 = vadd.xlane.f32.xlu0 %v1224
      %v1226 = vpop.xlane.xlu0 %1225
      %v1227 = vsel %vm1172, %v1210, 0.0
      %1228 = vadd.xlane.f32.xlu0 %v1227
      %v1229 = vpop.xlane.xlu0 %1228
      %v1230 = vsel %vm1172, %v1212, 0.0
      %1231 = vadd.xlane.f32.xlu0 %v1230
      %v1232 = vpop.xlane.xlu0 %1231
      %v1233 = vsel %vm1172, %v1214, 0.0
      %1234 = vadd.xlane.f32.xlu0 %v1233
      %v1235 = vpop.xlane.xlu0 %1234
      %v1236 = vsel %vm1172, %v1216, 0.0
      %1237 = vadd.xlane.f32.xlu0 %v1236
      %v1238 = vpop.xlane.xlu0 %1237
      %v1239 = vsel %vm1172, %v1218, 0.0
      %1240 = vadd.xlane.f32.xlu0 %v1239
      %v1241 = vpop.xlane.xlu0 %1240
      %v1242 = vsel %vm1172, %v1220, 0.0
      %1243 = vadd.xlane.f32.xlu0 %v1242
      %v1244 = vpop.xlane.xlu0 %1243
      %v1245 = vrcp.pop %v1223
      %v1246 = vmul.f32 %v1206, %v1245
      %v1247 = vrcp.pop %v1226
      %v1248 = vmul.f32 %v1208, %v1247
      %v1249 = vrcp.pop %v1229
      %v1250 = vmul.f32 %v1210, %v1249
      %v1251 = vrcp.pop %v1232
      %v1252 = vmul.f32 %v1212, %v1251
      %v1253 = vrcp.pop %v1235
      %v1254 = vmul.f32 %v1214, %v1253
      %v1255 = vrcp.pop %v1238
      %v1256 = vmul.f32 %v1216, %v1255
      %v1257 = vrcp.pop %v1241
      %v1258 = vmul.f32 %v1218, %v1257
      %v1259 = vrcp.pop %v1244
      %v1260 = vmul.f32 %v1220, %v1259
      %vm1261 = vcmask 64512
      %v1263 = vsel %vm1261, %v1246, 0
      %1265 = vmatprep.subr.mxu0 0.0
      %1266 = vmatpush1.msra.mxu0 %v513
      %1267 = vmatprep.subr.mxu0 0.0
      %1268 = vmatpush1.msra.mxu0 0.0
      %1269 = vmatprep.subr.mxu0 0.0
      %1270 = vmatpush1.msra.mxu0 0.0
      %1271 = vmatprep.subr.mxu0 0.0
      %1272 = vmatpush1.msra.mxu0 0.0
      %1273 = vmatprep.subr.mxu0 0.0
      %1274 = vmatpush1.msra.mxu0 0.0
      %1275 = vmatprep.subr.mxu0 0.0
      %1276 = vmatpush1.msra.mxu0 0.0
      %1277 = vmatprep.subr.mxu0 0.0
      %1278 = vmatpush1.msra.mxu0 0.0
      %1279 = vmatprep.subr.mxu0 0.0
      %1280 = vmatpush1.msra.mxu0 0.0
      %1281 = vmatprep.subr.mxu0 0.0
      %1282 = vmatpush1.msra.mxu0 0.0
      %1283 = vmatprep.subr.mxu0 0.0
      %1284 = vmatpush1.msra.mxu0 0.0
      %1285 = vmatprep.subr.mxu0 0.0
      %1286 = vmatpush1.msra.mxu0 0.0
      %1287 = vmatprep.subr.mxu0 0.0
      %1288 = vmatpush1.msra.mxu0 0.0
      %1289 = vmatprep.subr.mxu0 0.0
      %1290 = vmatpush1.msra.mxu0 0.0
      %1291 = vmatprep.subr.mxu0 0.0
      %1292 = vmatpush1.msra.mxu0 0.0
      %1293 = vmatprep.subr.mxu0 0.0
      %1294 = vmatpush1.msra.mxu0 0.0
      %1295 = vmatprep.subr.mxu0 0.0
      %1296 = vmatpush1.msra.mxu0 0.0
      %1297 = vmatprep.subr.mxu0 0.0
      %1298 = vmatpush1.msra.mxu0 0.0
      %1299 = vmatprep.subr.mxu0 0.0
      %1300 = vmatpush1.msra.mxu0 0.0
      %1301 = vmatprep.subr.mxu0 0.0
      %1302 = vmatpush1.msra.mxu0 0.0
      %1303 = vmatprep.subr.mxu0 0.0
      %1304 = vmatpush1.msra.mxu0 0.0
      %1305 = vmatprep.subr.mxu0 0.0
      %1306 = vmatpush1.msra.mxu0 0.0
      %1307 = vmatprep.subr.mxu0 0.0
      %1308 = vmatpush1.msra.mxu0 0.0
      %1309 = vmatprep.subr.mxu0 0.0
      %1310 = vmatpush1.msra.mxu0 0.0
      %1311 = vmatprep.subr.mxu0 0.0
      %1312 = vmatpush1.msra.mxu0 0.0
      %1313 = vmatprep.subr.mxu0 0.0
      %1314 = vmatpush1.msra.mxu0 0.0
      %1315 = vmatprep.subr.mxu0 0.0
      %1316 = vmatpush1.msra.mxu0 0.0
      %1317 = vmatprep.subr.mxu0 0.0
      %1318 = vmatpush1.msra.mxu0 0.0
      %1319 = vmatprep.subr.mxu0 0.0
      %1320 = vmatpush1.msra.mxu0 0.0
      %1321 = vmatprep.subr.mxu0 0.0
      %1322 = vmatpush1.msra.mxu0 0.0
      %1323 = vmatprep.subr.mxu0 0.0
      %1324 = vmatpush1.msra.mxu0 0.0
      %1325 = vmatprep.subr.mxu0 0.0
      %1326 = vmatpush1.msra.mxu0 0.0
      %1327 = vmatprep.subr.mxu0 0.0
      %1328 = vmatpush1.msra.mxu0 0.0
      %1329 = vmatprep.mubr.f32.mxu0 0.0
      %1330 = vmatmul.mubr.f32.gmra.mrb[0].mxu0 %v1263
      %v1331 = vpop.f32.mrb[0].mxu0
      %v1332 = vadd.f32 0.0, %v1331
      %v1333 = vpop.f32.mrb[0].mxu0
      %1334 = vdwg.mxu0
      %v1336 = vsel %vm1261, %v1248, 0
      %1338 = vmatprep.subr.mxu0 0.0
      %1339 = vmatpush1.msra.mxu0 %v514
      %1340 = vmatprep.subr.mxu0 0.0
      %1341 = vmatpush1.msra.mxu0 0.0
      %1342 = vmatprep.subr.mxu0 0.0
      %1343 = vmatpush1.msra.mxu0 0.0
      %1344 = vmatprep.subr.mxu0 0.0
      %1345 = vmatpush1.msra.mxu0 0.0
      %1346 = vmatprep.subr.mxu0 0.0
      %1347 = vmatpush1.msra.mxu0 0.0
      %1348 = vmatprep.subr.mxu0 0.0
      %1349 = vmatpush1.msra.mxu0 0.0
      %1350 = vmatprep.subr.mxu0 0.0
      %1351 = vmatpush1.msra.mxu0 0.0
      %1352 = vmatprep.subr.mxu0 0.0
      %1353 = vmatpush1.msra.mxu0 0.0
      %1354 = vmatprep.subr.mxu0 0.0
      %1355 = vmatpush1.msra.mxu0 0.0
      %1356 = vmatprep.subr.mxu0 0.0
      %1357 = vmatpush1.msra.mxu0 0.0
      %1358 = vmatprep.subr.mxu0 0.0
      %1359 = vmatpush1.msra.mxu0 0.0
      %1360 = vmatprep.subr.mxu0 0.0
      %1361 = vmatpush1.msra.mxu0 0.0
      %1362 = vmatprep.subr.mxu0 0.0
      %1363 = vmatpush1.msra.mxu0 0.0
      %1364 = vmatprep.subr.mxu0 0.0
      %1365 = vmatpush1.msra.mxu0 0.0
      %1366 = vmatprep.subr.mxu0 0.0
      %1367 = vmatpush1.msra.mxu0 0.0
      %1368 = vmatprep.subr.mxu0 0.0
      %1369 = vmatpush1.msra.mxu0 0.0
      %1370 = vmatprep.subr.mxu0 0.0
      %1371 = vmatpush1.msra.mxu0 0.0
      %1372 = vmatprep.subr.mxu0 0.0
      %1373 = vmatpush1.msra.mxu0 0.0
      %1374 = vmatprep.subr.mxu0 0.0
      %1375 = vmatpush1.msra.mxu0 0.0
      %1376 = vmatprep.subr.mxu0 0.0
      %1377 = vmatpush1.msra.mxu0 0.0
      %1378 = vmatprep.subr.mxu0 0.0
      %1379 = vmatpush1.msra.mxu0 0.0
      %1380 = vmatprep.subr.mxu0 0.0
      %1381 = vmatpush1.msra.mxu0 0.0
      %1382 = vmatprep.subr.mxu0 0.0
      %1383 = vmatpush1.msra.mxu0 0.0
      %1384 = vmatprep.subr.mxu0 0.0
      %1385 = vmatpush1.msra.mxu0 0.0
      %1386 = vmatprep.subr.mxu0 0.0
      %1387 = vmatpush1.msra.mxu0 0.0
      %1388 = vmatprep.subr.mxu0 0.0
      %1389 = vmatpush1.msra.mxu0 0.0
      %1390 = vmatprep.subr.mxu0 0.0
      %1391 = vmatpush1.msra.mxu0 0.0
      %1392 = vmatprep.subr.mxu0 0.0
      %1393 = vmatpush1.msra.mxu0 0.0
      %1394 = vmatprep.subr.mxu0 0.0
      %1395 = vmatpush1.msra.mxu0 0.0
      %1396 = vmatprep.subr.mxu0 0.0
      %1397 = vmatpush1.msra.mxu0 0.0
      %1398 = vmatprep.subr.mxu0 0.0
      %1399 = vmatpush1.msra.mxu0 0.0
      %1400 = vmatprep.subr.mxu0 0.0
      %1401 = vmatpush1.msra.mxu0 0.0
      %1402 = vmatprep.mubr.f32.mxu0 0.0
      %1403 = vmatmul.mubr.f32.gmra.mrb[0].mxu0 %v1336
      %v1404 = vpop.f32.mrb[0].mxu0
      %v1405 = vadd.f32 0.0, %v1404
      %v1406 = vpop.f32.mrb[0].mxu0
      %1407 = vdwg.mxu0
      %v1409 = vsel %vm1261, %v1250, 0
      %1411 = vmatprep.subr.mxu0 0.0
      %1412 = vmatpush1.msra.mxu0 %v515
      %1413 = vmatprep.subr.mxu0 0.0
      %1414 = vmatpush1.msra.mxu0 0.0
      %1415 = vmatprep.subr.mxu0 0.0
      %1416 = vmatpush1.msra.mxu0 0.0
      %1417 = vmatprep.subr.mxu0 0.0
      %1418 = vmatpush1.msra.mxu0 0.0
      %1419 = vmatprep.subr.mxu0 0.0
      %1420 = vmatpush1.msra.mxu0 0.0
      %1421 = vmatprep.subr.mxu0 0.0
      %1422 = vmatpush1.msra.mxu0 0.0
      %1423 = vmatprep.subr.mxu0 0.0
      %1424 = vmatpush1.msra.mxu0 0.0
      %1425 = vmatprep.subr.mxu0 0.0
      %1426 = vmatpush1.msra.mxu0 0.0
      %1427 = vmatprep.subr.mxu0 0.0
      %1428 = vmatpush1.msra.mxu0 0.0
      %1429 = vmatprep.subr.mxu0 0.0
      %1430 = vmatpush1.msra.mxu0 0.0
      %1431 = vmatprep.subr.mxu0 0.0
      %1432 = vmatpush1.msra.mxu0 0.0
      %1433 = vmatprep.subr.mxu0 0.0
      %1434 = vmatpush1.msra.mxu0 0.0
      %1435 = vmatprep.subr.mxu0 0.0
      %1436 = vmatpush1.msra.mxu0 0.0
      %1437 = vmatprep.subr.mxu0 0.0
      %1438 = vmatpush1.msra.mxu0 0.0
      %1439 = vmatprep.subr.mxu0 0.0
      %1440 = vmatpush1.msra.mxu0 0.0
      %1441 = vmatprep.subr.mxu0 0.0
      %1442 = vmatpush1.msra.mxu0 0.0
      %1443 = vmatprep.subr.mxu0 0.0
      %1444 = vmatpush1.msra.mxu0 0.0
      %1445 = vmatprep.subr.mxu0 0.0
      %1446 = vmatpush1.msra.mxu0 0.0
      %1447 = vmatprep.subr.mxu0 0.0
      %1448 = vmatpush1.msra.mxu0 0.0
      %1449 = vmatprep.subr.mxu0 0.0
      %1450 = vmatpush1.msra.mxu0 0.0
      %1451 = vmatprep.subr.mxu0 0.0
      %1452 = vmatpush1.msra.mxu0 0.0
      %1453 = vmatprep.subr.mxu0 0.0
      %1454 = vmatpush1.msra.mxu0 0.0
      %1455 = vmatprep.subr.mxu0 0.0
      %1456 = vmatpush1.msra.mxu0 0.0
      %1457 = vmatprep.subr.mxu0 0.0
      %1458 = vmatpush1.msra.mxu0 0.0
      %1459 = vmatprep.subr.mxu0 0.0
      %1460 = vmatpush1.msra.mxu0 0.0
      %1461 = vmatprep.subr.mxu0 0.0
      %1462 = vmatpush1.msra.mxu0 0.0
      %1463 = vmatprep.subr.mxu0 0.0
      %1464 = vmatpush1.msra.mxu0 0.0
      %1465 = vmatprep.subr.mxu0 0.0
      %1466 = vmatpush1.msra.mxu0 0.0
      %1467 = vmatprep.subr.mxu0 0.0
      %1468 = vmatpush1.msra.mxu0 0.0
      %1469 = vmatprep.subr.mxu0 0.0
      %1470 = vmatpush1.msra.mxu0 0.0
      %1471 = vmatprep.subr.mxu0 0.0
      %1472 = vmatpush1.msra.mxu0 0.0
      %1473 = vmatprep.subr.mxu0 0.0
      %1474 = vmatpush1.msra.mxu0 0.0
      %1475 = vmatprep.mubr.f32.mxu0 0.0
      %1476 = vmatmul.mubr.f32.gmra.mrb[0].mxu0 %v1409
      %v1477 = vpop.f32.mrb[0].mxu0
      %v1478 = vadd.f32 0.0, %v1477
      %v1479 = vpop.f32.mrb[0].mxu0
      %1480 = vdwg.mxu0
      %v1482 = vsel %vm1261, %v1252, 0
      %1484 = vmatprep.subr.mxu0 0.0
      %1485 = vmatpush1.msra.mxu0 %v516
      %1486 = vmatprep.subr.mxu0 0.0
      %1487 = vmatpush1.msra.mxu0 0.0
      %1488 = vmatprep.subr.mxu0 0.0
      %1489 = vmatpush1.msra.mxu0 0.0
      %1490 = vmatprep.subr.mxu0 0.0
      %1491 = vmatpush1.msra.mxu0 0.0
      %1492 = vmatprep.subr.mxu0 0.0
      %1493 = vmatpush1.msra.mxu0 0.0
      %1494 = vmatprep.subr.mxu0 0.0
      %1495 = vmatpush1.msra.mxu0 0.0
      %1496 = vmatprep.subr.mxu0 0.0
      %1497 = vmatpush1.msra.mxu0 0.0
      %1498 = vmatprep.subr.mxu0 0.0
      %1499 = vmatpush1.msra.mxu0 0.0
      %1500 = vmatprep.subr.mxu0 0.0
      %1501 = vmatpush1.msra.mxu0 0.0
      %1502 = vmatprep.subr.mxu0 0.0
      %1503 = vmatpush1.msra.mxu0 0.0
      %1504 = vmatprep.subr.mxu0 0.0
      %1505 = vmatpush1.msra.mxu0 0.0
      %1506 = vmatprep.subr.mxu0 0.0
      %1507 = vmatpush1.msra.mxu0 0.0
      %1508 = vmatprep.subr.mxu0 0.0
      %1509 = vmatpush1.msra.mxu0 0.0
      %1510 = vmatprep.subr.mxu0 0.0
      %1511 = vmatpush1.msra.mxu0 0.0
      %1512 = vmatprep.subr.mxu0 0.0
      %1513 = vmatpush1.msra.mxu0 0.0
      %1514 = vmatprep.subr.mxu0 0.0
      %1515 = vmatpush1.msra.mxu0 0.0
      %1516 = vmatprep.subr.mxu0 0.0
      %1517 = vmatpush1.msra.mxu0 0.0
      %1518 = vmatprep.subr.mxu0 0.0
      %1519 = vmatpush1.msra.mxu0 0.0
      %1520 = vmatprep.subr.mxu0 0.0
      %1521 = vmatpush1.msra.mxu0 0.0
      %1522 = vmatprep.subr.mxu0 0.0
      %1523 = vmatpush1.msra.mxu0 0.0
      %1524 = vmatprep.subr.mxu0 0.0
      %1525 = vmatpush1.msra.mxu0 0.0
      %1526 = vmatprep.subr.mxu0 0.0
      %1527 = vmatpush1.msra.mxu0 0.0
      %1528 = vmatprep.subr.mxu0 0.0
      %1529 = vmatpush1.msra.mxu0 0.0
      %1530 = vmatprep.subr.mxu0 0.0
      %1531 = vmatpush1.msra.mxu0 0.0
      %1532 = vmatprep.subr.mxu0 0.0
      %1533 = vmatpush1.msra.mxu0 0.0
      %1534 = vmatprep.subr.mxu0 0.0
      %1535 = vmatpush1.msra.mxu0 0.0
      %1536 = vmatprep.subr.mxu0 0.0
      %1537 = vmatpush1.msra.mxu0 0.0
      %1538 = vmatprep.subr.mxu0 0.0
      %1539 = vmatpush1.msra.mxu0 0.0
      %1540 = vmatprep.subr.mxu0 0.0
      %1541 = vmatpush1.msra.mxu0 0.0
      %1542 = vmatprep.subr.mxu0 0.0
      %1543 = vmatpush1.msra.mxu0 0.0
      %1544 = vmatprep.subr.mxu0 0.0
      %1545 = vmatpush1.msra.mxu0 0.0
      %1546 = vmatprep.subr.mxu0 0.0
      %1547 = vmatpush1.msra.mxu0 0.0
      %1548 = vmatprep.mubr.f32.mxu0 0.0
      %1549 = vmatmul.mubr.f32.gmra.mrb[0].mxu0 %v1482
      %v1550 = vpop.f32.mrb[0].mxu0
      %v1551 = vadd.f32 0.0, %v1550
      %v1552 = vpop.f32.mrb[0].mxu0
      %1553 = vdwg.mxu0
      %v1555 = vsel %vm1261, %v1254, 0
      %1557 = vmatprep.subr.mxu0 0.0
      %1558 = vmatpush1.msra.mxu0 %v517
      %1559 = vmatprep.subr.mxu0 0.0
      %1560 = vmatpush1.msra.mxu0 0.0
      %1561 = vmatprep.subr.mxu0 0.0
      %1562 = vmatpush1.msra.mxu0 0.0
      %1563 = vmatprep.subr.mxu0 0.0
      %1564 = vmatpush1.msra.mxu0 0.0
      %1565 = vmatprep.subr.mxu0 0.0
      %1566 = vmatpush1.msra.mxu0 0.0
      %1567 = vmatprep.subr.mxu0 0.0
      %1568 = vmatpush1.msra.mxu0 0.0
      %1569 = vmatprep.subr.mxu0 0.0
      %1570 = vmatpush1.msra.mxu0 0.0
      %1571 = vmatprep.subr.mxu0 0.0
      %1572 = vmatpush1.msra.mxu0 0.0
      %1573 = vmatprep.subr.mxu0 0.0
      %1574 = vmatpush1.msra.mxu0 0.0
      %1575 = vmatprep.subr.mxu0 0.0
      %1576 = vmatpush1.msra.mxu0 0.0
      %1577 = vmatprep.subr.mxu0 0.0
      %1578 = vmatpush1.msra.mxu0 0.0
      %1579 = vmatprep.subr.mxu0 0.0
      %1580 = vmatpush1.msra.mxu0 0.0
      %1581 = vmatprep.subr.mxu0 0.0
      %1582 = vmatpush1.msra.mxu0 0.0
      %1583 = vmatprep.subr.mxu0 0.0
      %1584 = vmatpush1.msra.mxu0 0.0
      %1585 = vmatprep.subr.mxu0 0.0
      %1586 = vmatpush1.msra.mxu0 0.0
      %1587 = vmatprep.subr.mxu0 0.0
      %1588 = vmatpush1.msra.mxu0 0.0
      %1589 = vmatprep.subr.mxu0 0.0
      %1590 = vmatpush1.msra.mxu0 0.0
      %1591 = vmatprep.subr.mxu0 0.0
      %1592 = vmatpush1.msra.mxu0 0.0
      %1593 = vmatprep.subr.mxu0 0.0
      %1594 = vmatpush1.msra.mxu0 0.0
      %1595 = vmatprep.subr.mxu0 0.0
      %1596 = vmatpush1.msra.mxu0 0.0
      %1597 = vmatprep.subr.mxu0 0.0
      %1598 = vmatpush1.msra.mxu0 0.0
      %1599 = vmatprep.subr.mxu0 0.0
      %1600 = vmatpush1.msra.mxu0 0.0
      %1601 = vmatprep.subr.mxu0 0.0
      %1602 = vmatpush1.msra.mxu0 0.0
      %1603 = vmatprep.subr.mxu0 0.0
      %1604 = vmatpush1.msra.mxu0 0.0
      %1605 = vmatprep.subr.mxu0 0.0
      %1606 = vmatpush1.msra.mxu0 0.0
      %1607 = vmatprep.subr.mxu0 0.0
      %1608 = vmatpush1.msra.mxu0 0.0
      %1609 = vmatprep.subr.mxu0 0.0
      %1610 = vmatpush1.msra.mxu0 0.0
      %1611 = vmatprep.subr.mxu0 0.0
      %1612 = vmatpush1.msra.mxu0 0.0
      %1613 = vmatprep.subr.mxu0 0.0
      %1614 = vmatpush1.msra.mxu0 0.0
      %1615 = vmatprep.subr.mxu0 0.0
      %1616 = vmatpush1.msra.mxu0 0.0
      %1617 = vmatprep.subr.mxu0 0.0
      %1618 = vmatpush1.msra.mxu0 0.0
      %1619 = vmatprep.subr.mxu0 0.0
      %1620 = vmatpush1.msra.mxu0 0.0
      %1621 = vmatprep.mubr.f32.mxu0 0.0
      %1622 = vmatmul.mubr.f32.gmra.mrb[0].mxu0 %v1555
      %v1623 = vpop.f32.mrb[0].mxu0
      %v1624 = vadd.f32 0.0, %v1623
      %v1625 = vpop.f32.mrb[0].mxu0
      %1626 = vdwg.mxu0
      %v1628 = vsel %vm1261, %v1256, 0
      %1630 = vmatprep.subr.mxu0 0.0
      %1631 = vmatpush1.msra.mxu0 %v518
      %1632 = vmatprep.subr.mxu0 0.0
      %1633 = vmatpush1.msra.mxu0 0.0
      %1634 = vmatprep.subr.mxu0 0.0
      %1635 = vmatpush1.msra.mxu0 0.0
      %1636 = vmatprep.subr.mxu0 0.0
      %1637 = vmatpush1.msra.mxu0 0.0
      %1638 = vmatprep.subr.mxu0 0.0
      %1639 = vmatpush1.msra.mxu0 0.0
      %1640 = vmatprep.subr.mxu0 0.0
      %1641 = vmatpush1.msra.mxu0 0.0
      %1642 = vmatprep.subr.mxu0 0.0
      %1643 = vmatpush1.msra.mxu0 0.0
      %1644 = vmatprep.subr.mxu0 0.0
      %1645 = vmatpush1.msra.mxu0 0.0
      %1646 = vmatprep.subr.mxu0 0.0
      %1647 = vmatpush1.msra.mxu0 0.0
      %1648 = vmatprep.subr.mxu0 0.0
      %1649 = vmatpush1.msra.mxu0 0.0
      %1650 = vmatprep.subr.mxu0 0.0
      %1651 = vmatpush1.msra.mxu0 0.0
      %1652 = vmatprep.subr.mxu0 0.0
      %1653 = vmatpush1.msra.mxu0 0.0
      %1654 = vmatprep.subr.mxu0 0.0
      %1655 = vmatpush1.msra.mxu0 0.0
      %1656 = vmatprep.subr.mxu0 0.0
      %1657 = vmatpush1.msra.mxu0 0.0
      %1658 = vmatprep.subr.mxu0 0.0
      %1659 = vmatpush1.msra.mxu0 0.0
      %1660 = vmatprep.subr.mxu0 0.0
      %1661 = vmatpush1.msra.mxu0 0.0
      %1662 = vmatprep.subr.mxu0 0.0
      %1663 = vmatpush1.msra.mxu0 0.0
      %1664 = vmatprep.subr.mxu0 0.0
      %1665 = vmatpush1.msra.mxu0 0.0
      %1666 = vmatprep.subr.mxu0 0.0
      %1667 = vmatpush1.msra.mxu0 0.0
      %1668 = vmatprep.subr.mxu0 0.0
      %1669 = vmatpush1.msra.mxu0 0.0
      %1670 = vmatprep.subr.mxu0 0.0
      %1671 = vmatpush1.msra.mxu0 0.0
      %1672 = vmatprep.subr.mxu0 0.0
      %1673 = vmatpush1.msra.mxu0 0.0
      %1674 = vmatprep.subr.mxu0 0.0
      %1675 = vmatpush1.msra.mxu0 0.0
      %1676 = vmatprep.subr.mxu0 0.0
      %1677 = vmatpush1.msra.mxu0 0.0
      %1678 = vmatprep.subr.mxu0 0.0
      %1679 = vmatpush1.msra.mxu0 0.0
      %1680 = vmatprep.subr.mxu0 0.0
      %1681 = vmatpush1.msra.mxu0 0.0
      %1682 = vmatprep.subr.mxu0 0.0
      %1683 = vmatpush1.msra.mxu0 0.0
      %1684 = vmatprep.subr.mxu0 0.0
      %1685 = vmatpush1.msra.mxu0 0.0
      %1686 = vmatprep.subr.mxu0 0.0
      %1687 = vmatpush1.msra.mxu0 0.0
      %1688 = vmatprep.subr.mxu0 0.0
      %1689 = vmatpush1.msra.mxu0 0.0
      %1690 = vmatprep.subr.mxu0 0.0
      %1691 = vmatpush1.msra.mxu0 0.0
      %1692 = vmatprep.subr.mxu0 0.0
      %1693 = vmatpush1.msra.mxu0 0.0
      %1694 = vmatprep.mubr.f32.mxu0 0.0
      %1695 = vmatmul.mubr.f32.gmra.mrb[0].mxu0 %v1628
      %v1696 = vpop.f32.mrb[0].mxu0
      %v1697 = vadd.f32 0.0, %v1696
      %v1698 = vpop.f32.mrb[0].mxu0
      %1699 = vdwg.mxu0
      %v1701 = vsel %vm1261, %v1258, 0
      %1703 = vmatprep.subr.mxu0 0.0
      %1704 = vmatpush1.msra.mxu0 %v519
      %1705 = vmatprep.subr.mxu0 0.0
      %1706 = vmatpush1.msra.mxu0 0.0
      %1707 = vmatprep.subr.mxu0 0.0
      %1708 = vmatpush1.msra.mxu0 0.0
      %1709 = vmatprep.subr.mxu0 0.0
      %1710 = vmatpush1.msra.mxu0 0.0
      %1711 = vmatprep.subr.mxu0 0.0
      %1712 = vmatpush1.msra.mxu0 0.0
      %1713 = vmatprep.subr.mxu0 0.0
      %1714 = vmatpush1.msra.mxu0 0.0
      %1715 = vmatprep.subr.mxu0 0.0
      %1716 = vmatpush1.msra.mxu0 0.0
      %1717 = vmatprep.subr.mxu0 0.0
      %1718 = vmatpush1.msra.mxu0 0.0
      %1719 = vmatprep.subr.mxu0 0.0
      %1720 = vmatpush1.msra.mxu0 0.0
      %1721 = vmatprep.subr.mxu0 0.0
      %1722 = vmatpush1.msra.mxu0 0.0
      %1723 = vmatprep.subr.mxu0 0.0
      %1724 = vmatpush1.msra.mxu0 0.0
      %1725 = vmatprep.subr.mxu0 0.0
      %1726 = vmatpush1.msra.mxu0 0.0
      %1727 = vmatprep.subr.mxu0 0.0
      %1728 = vmatpush1.msra.mxu0 0.0
      %1729 = vmatprep.subr.mxu0 0.0
      %1730 = vmatpush1.msra.mxu0 0.0
      %1731 = vmatprep.subr.mxu0 0.0
      %1732 = vmatpush1.msra.mxu0 0.0
      %1733 = vmatprep.subr.mxu0 0.0
      %1734 = vmatpush1.msra.mxu0 0.0
      %1735 = vmatprep.subr.mxu0 0.0
      %1736 = vmatpush1.msra.mxu0 0.0
      %1737 = vmatprep.subr.mxu0 0.0
      %1738 = vmatpush1.msra.mxu0 0.0
      %1739 = vmatprep.subr.mxu0 0.0
      %1740 = vmatpush1.msra.mxu0 0.0
      %1741 = vmatprep.subr.mxu0 0.0
      %1742 = vmatpush1.msra.mxu0 0.0
      %1743 = vmatprep.subr.mxu0 0.0
      %1744 = vmatpush1.msra.mxu0 0.0
      %1745 = vmatprep.subr.mxu0 0.0
      %1746 = vmatpush1.msra.mxu0 0.0
      %1747 = vmatprep.subr.mxu0 0.0
      %1748 = vmatpush1.msra.mxu0 0.0
      %1749 = vmatprep.subr.mxu0 0.0
      %1750 = vmatpush1.msra.mxu0 0.0
      %1751 = vmatprep.subr.mxu0 0.0
      %1752 = vmatpush1.msra.mxu0 0.0
      %1753 = vmatprep.subr.mxu0 0.0
      %1754 = vmatpush1.msra.mxu0 0.0
      %1755 = vmatprep.subr.mxu0 0.0
      %1756 = vmatpush1.msra.mxu0 0.0
      %1757 = vmatprep.subr.mxu0 0.0
      %1758 = vmatpush1.msra.mxu0 0.0
      %1759 = vmatprep.subr.mxu0 0.0
      %1760 = vmatpush1.msra.mxu0 0.0
      %1761 = vmatprep.subr.mxu0 0.0
      %1762 = vmatpush1.msra.mxu0 0.0
      %1763 = vmatprep.subr.mxu0 0.0
      %1764 = vmatpush1.msra.mxu0 0.0
      %1765 = vmatprep.subr.mxu0 0.0
      %1766 = vmatpush1.msra.mxu0 0.0
      %1767 = vmatprep.mubr.f32.mxu0 0.0
      %1768 = vmatmul.mubr.f32.gmra.mrb[0].mxu0 %v1701
      %v1769 = vpop.f32.mrb[0].mxu0
      %v1770 = vadd.f32 0.0, %v1769
      %v1771 = vpop.f32.mrb[0].mxu0
      %1772 = vdwg.mxu0
      %v1774 = vsel %vm1261, %v1260, 0
      %1776 = vmatprep.subr.mxu0 0.0
      %1777 = vmatpush1.msra.mxu0 %v520
      %1778 = vmatprep.subr.mxu0 0.0
      %1779 = vmatpush1.msra.mxu0 0.0
      %1780 = vmatprep.subr.mxu0 0.0
      %1781 = vmatpush1.msra.mxu0 0.0
      %1782 = vmatprep.subr.mxu0 0.0
      %1783 = vmatpush1.msra.mxu0 0.0
      %1784 = vmatprep.subr.mxu0 0.0
      %1785 = vmatpush1.msra.mxu0 0.0
      %1786 = vmatprep.subr.mxu0 0.0
      %1787 = vmatpush1.msra.mxu0 0.0
      %1788 = vmatprep.subr.mxu0 0.0
      %1789 = vmatpush1.msra.mxu0 0.0
      %1790 = vmatprep.subr.mxu0 0.0
      %1791 = vmatpush1.msra.mxu0 0.0
      %1792 = vmatprep.subr.mxu0 0.0
      %1793 = vmatpush1.msra.mxu0 0.0
      %1794 = vmatprep.subr.mxu0 0.0
      %1795 = vmatpush1.msra.mxu0 0.0
      %1796 = vmatprep.subr.mxu0 0.0
      %1797 = vmatpush1.msra.mxu0 0.0
      %1798 = vmatprep.subr.mxu0 0.0
      %1799 = vmatpush1.msra.mxu0 0.0
      %1800 = vmatprep.subr.mxu0 0.0
      %1801 = vmatpush1.msra.mxu0 0.0
      %1802 = vmatprep.subr.mxu0 0.0
      %1803 = vmatpush1.msra.mxu0 0.0
      %1804 = vmatprep.subr.mxu0 0.0
      %1805 = vmatpush1.msra.mxu0 0.0
      %1806 = vmatprep.subr.mxu0 0.0
      %1807 = vmatpush1.msra.mxu0 0.0
      %1808 = vmatprep.subr.mxu0 0.0
      %1809 = vmatpush1.msra.mxu0 0.0
      %1810 = vmatprep.subr.mxu0 0.0
      %1811 = vmatpush1.msra.mxu0 0.0
      %1812 = vmatprep.subr.mxu0 0.0
      %1813 = vmatpush1.msra.mxu0 0.0
      %1814 = vmatprep.subr.mxu0 0.0
      %1815 = vmatpush1.msra.mxu0 0.0
      %1816 = vmatprep.subr.mxu0 0.0
      %1817 = vmatpush1.msra.mxu0 0.0
      %1818 = vmatprep.subr.mxu0 0.0
      %1819 = vmatpush1.msra.mxu0 0.0
      %1820 = vmatprep.subr.mxu0 0.0
      %1821 = vmatpush1.msra.mxu0 0.0
      %1822 = vmatprep.subr.mxu0 0.0
      %1823 = vmatpush1.msra.mxu0 0.0
      %1824 = vmatprep.subr.mxu0 0.0
      %1825 = vmatpush1.msra.mxu0 0.0
      %1826 = vmatprep.subr.mxu0 0.0
      %1827 = vmatpush1.msra.mxu0 0.0
      %1828 = vmatprep.subr.mxu0 0.0
      %1829 = vmatpush1.msra.mxu0 0.0
      %1830 = vmatprep.subr.mxu0 0.0
      %1831 = vmatpush1.msra.mxu0 0.0
      %1832 = vmatprep.subr.mxu0 0.0
      %1833 = vmatpush1.msra.mxu0 0.0
      %1834 = vmatprep.subr.mxu0 0.0
      %1835 = vmatpush1.msra.mxu0 0.0
      %1836 = vmatprep.subr.mxu0 0.0
      %1837 = vmatpush1.msra.mxu0 0.0
      %1838 = vmatprep.subr.mxu0 0.0
      %1839 = vmatpush1.msra.mxu0 0.0
      %1840 = vmatprep.mubr.f32.mxu0 0.0
      %1841 = vmatmul.mubr.f32.gmra.mrb[0].mxu0 %v1774
      %v1842 = vpop.f32.mrb[0].mxu0
      %v1843 = vadd.f32 0.0, %v1842
      %v1844 = vpop.f32.mrb[0].mxu0
      %1845 = vdwg.mxu0
      %s1846 = smul.u32 %s28, 8
      %s1847 = scalar_lea.vmem %s476, %s1846
      %v1848 = vld [vmem:[%s1847] sm:$0xff]
      %s1849 = scalar_lea.vmem %s480, %s1846
      %v1850 = vld [vmem:[%s1849] sm:$0xff]
      %v1851 = vld [vmem:[%s5] sm:$0x1]
      %1853 = vset.pattern.permute.xlu0 0
      %1854 = vperm.xlu0 %1853, %v1848
      %v1855 = vpop.permute.xlu0 %1854
      %v1858 = vlaneseq
      %v1859 = vshrl.u32 %v1858, 7
      %v1860 = vsub.s32 0, %v1859
      %v1861 = vrot.slane %v1851, %v1860
      %v1863 = vmul.f32 %v1855, %v1861
      %v1864 = vld [vmem:[%s6] sm:$0x1]
      %1866 = vset.pattern.permute.xlu0 0
      %1867 = vperm.xlu0 %1866, %v1850
      %v1868 = vpop.permute.xlu0 %1867
      %v1871 = vlaneseq
      %v1872 = vshrl.u32 %v1871, 7
      %v1873 = vsub.s32 0, %v1872
      %v1874 = vrot.slane %v1864, %v1873
      %v1876 = vmul.f32 %v1868, %v1874
      %v1877 = vadd.f32 %v1863, %v1876
      %v1878 = vld [vmem:[%s7] sm:$0xff]
      %v1879 = vld [vmem:[%s7 + $0x8] sm:$0xff]
      %v1880 = vld [vmem:[%s7 + $0x10] sm:$0xff]
      %v1881 = vld [vmem:[%s7 + $0x18] sm:$0xff]
      %v1890 = vrot.slane %v1405, 7
      %vm1891 = vcmask 1041409
      %v1892 = vsel %vm1891, %v1890, %v1332
      %v1893 = vrot.slane %v1478, 6
      %vm1894 = vcmask 1042434
      %v1895 = vsel %vm1894, %v1893, %v1892
      %v1896 = vrot.slane %v1551, 5
      %vm1897 = vcmask 1043459
      %v1898 = vsel %vm1897, %v1896, %v1895
      %v1899 = vrot.slane %v1624, 4
      %vm1900 = vcmask 1044484
      %v1901 = vsel %vm1900, %v1899, %v1898
      %v1902 = vrot.slane %v1697, 3
      %vm1903 = vcmask 1045509
      %v1904 = vsel %vm1903, %v1902, %v1901
      %v1905 = vrot.slane %v1770, 2
      %vm1906 = vcmask 1046534
      %v1907 = vsel %vm1906, %v1905, %v1904
      %v1908 = vrot.slane %v1843, 1
      %vm1909 = vcmask 1047559
      %v1910 = vsel %vm1909, %v1908, %v1907
      %v1911 = vsel %vm571, %v1910, 0
      %1913 = vmatprep.subr.mxu0 0.0
      %1914 = vmatpush1.msra.mxu0 %v1878
      %1915 = vmatprep.subr.mxu0 0.0
      %1916 = vmatpush1.msra.mxu0 %v1879
      %1917 = vmatprep.subr.mxu0 0.0
      %1918 = vmatpush1.msra.mxu0 %v1880
      %1919 = vmatprep.subr.mxu0 0.0
      %1920 = vmatpush1.msra.mxu0 %v1881
      %1921 = vmatprep.subr.mxu0 0.0
      %1922 = vmatpush1.msra.mxu0 0.0
      %1923 = vmatprep.subr.mxu0 0.0
      %1924 = vmatpush1.msra.mxu0 0.0
      %1925 = vmatprep.subr.mxu0 0.0
      %1926 = vmatpush1.msra.mxu0 0.0
      %1927 = vmatprep.subr.mxu0 0.0
      %1928 = vmatpush1.msra.mxu0 0.0
      %1929 = vmatprep.subr.mxu0 0.0
      %1930 = vmatpush1.msra.mxu0 0.0
      %1931 = vmatprep.subr.mxu0 0.0
      %1932 = vmatpush1.msra.mxu0 0.0
      %1933 = vmatprep.subr.mxu0 0.0
      %1934 = vmatpush1.msra.mxu0 0.0
      %1935 = vmatprep.subr.mxu0 0.0
      %1936 = vmatpush1.msra.mxu0 0.0
      %1937 = vmatprep.subr.mxu0 0.0
      %1938 = vmatpush1.msra.mxu0 0.0
      %1939 = vmatprep.subr.mxu0 0.0
      %1940 = vmatpush1.msra.mxu0 0.0
      %1941 = vmatprep.subr.mxu0 0.0
      %1942 = vmatpush1.msra.mxu0 0.0
      %1943 = vmatprep.subr.mxu0 0.0
      %1944 = vmatpush1.msra.mxu0 0.0
      %1945 = vmatprep.subr.mxu0 0.0
      %1946 = vmatpush1.msra.mxu0 0.0
      %1947 = vmatprep.subr.mxu0 0.0
      %1948 = vmatpush1.msra.mxu0 0.0
      %1949 = vmatprep.subr.mxu0 0.0
      %1950 = vmatpush1.msra.mxu0 0.0
      %1951 = vmatprep.subr.mxu0 0.0
      %1952 = vmatpush1.msra.mxu0 0.0
      %1953 = vmatprep.subr.mxu0 0.0
      %1954 = vmatpush1.msra.mxu0 0.0
      %1955 = vmatprep.subr.mxu0 0.0
      %1956 = vmatpush1.msra.mxu0 0.0
      %1957 = vmatprep.subr.mxu0 0.0
      %1958 = vmatpush1.msra.mxu0 0.0
      %1959 = vmatprep.subr.mxu0 0.0
      %1960 = vmatpush1.msra.mxu0 0.0
      %1961 = vmatprep.subr.mxu0 0.0
      %1962 = vmatpush1.msra.mxu0 0.0
      %1963 = vmatprep.subr.mxu0 0.0
      %1964 = vmatpush1.msra.mxu0 0.0
      %1965 = vmatprep.subr.mxu0 0.0
      %1966 = vmatpush1.msra.mxu0 0.0
      %1967 = vmatprep.subr.mxu0 0.0
      %1968 = vmatpush1.msra.mxu0 0.0
      %1969 = vmatprep.subr.mxu0 0.0
      %1970 = vmatpush1.msra.mxu0 0.0
      %1971 = vmatprep.subr.mxu0 0.0
      %1972 = vmatpush1.msra.mxu0 0.0
      %1973 = vmatprep.subr.mxu0 0.0
      %1974 = vmatpush1.msra.mxu0 0.0
      %1975 = vmatprep.subr.mxu0 0.0
      %1976 = vmatpush1.msra.mxu0 0.0
      %1977 = vmatprep.mubr.f32.mxu0 0.0
      %1978 = vmatmul.mubr.f32.gmra.mrb[0].mxu0 %v1911
      %v1979 = vpop.f32.mrb[0].mxu0
      %v1980 = vadd.f32 0.0, %v1979
      %v1981 = vpop.f32.mrb[0].mxu0
      %1982 = vdwg.mxu0
      %v1983 = vadd.f32 %v1877, %v1980
      %v1984 = vld [vmem:[%s8] sm:$0xff]
      %v1985 = vld [vmem:[%s8 + $0x8] sm:$0xff]
      %v1986 = vld [vmem:[%s8 + $0x10] sm:$0xff]
      %v1987 = vld [vmem:[%s8 + $0x18] sm:$0xff]
      %v1988 = vsel %vm571, %v511, 0
      %1990 = vmatprep.subr.mxu0 0.0
      %1991 = vmatpush1.msra.mxu0 %v1984
      %1992 = vmatprep.subr.mxu0 0.0
      %1993 = vmatpush1.msra.mxu0 %v1985
      %1994 = vmatprep.subr.mxu0 0.0
      %1995 = vmatpush1.msra.mxu0 %v1986
      %1996 = vmatprep.subr.mxu0 0.0
      %1997 = vmatpush1.msra.mxu0 %v1987
      %1998 = vmatprep.subr.mxu0 0.0
      %1999 = vmatpush1.msra.mxu0 0.0
      %2000 = vmatprep.subr.mxu0 0.0
      %2001 = vmatpush1.msra.mxu0 0.0
      %2002 = vmatprep.subr.mxu0 0.0
      %2003 = vmatpush1.msra.mxu0 0.0
      %2004 = vmatprep.subr.mxu0 0.0
      %2005 = vmatpush1.msra.mxu0 0.0
      %2006 = vmatprep.subr.mxu0 0.0
      %2007 = vmatpush1.msra.mxu0 0.0
      %2008 = vmatprep.subr.mxu0 0.0
      %2009 = vmatpush1.msra.mxu0 0.0
      %2010 = vmatprep.subr.mxu0 0.0
      %2011 = vmatpush1.msra.mxu0 0.0
      %2012 = vmatprep.subr.mxu0 0.0
      %2013 = vmatpush1.msra.mxu0 0.0
      %2014 = vmatprep.subr.mxu0 0.0
      %2015 = vmatpush1.msra.mxu0 0.0
      %2016 = vmatprep.subr.mxu0 0.0
      %2017 = vmatpush1.msra.mxu0 0.0
      %2018 = vmatprep.subr.mxu0 0.0
      %2019 = vmatpush1.msra.mxu0 0.0
      %2020 = vmatprep.subr.mxu0 0.0
      %2021 = vmatpush1.msra.mxu0 0.0
      %2022 = vmatprep.subr.mxu0 0.0
      %2023 = vmatpush1.msra.mxu0 0.0
      %2024 = vmatprep.subr.mxu0 0.0
      %2025 = vmatpush1.msra.mxu0 0.0
      %2026 = vmatprep.subr.mxu0 0.0
      %2027 = vmatpush1.msra.mxu0 0.0
      %2028 = vmatprep.subr.mxu0 0.0
      %2029 = vmatpush1.msra.mxu0 0.0
      %2030 = vmatprep.subr.mxu0 0.0
      %2031 = vmatpush1.msra.mxu0 0.0
      %2032 = vmatprep.subr.mxu0 0.0
      %2033 = vmatpush1.msra.mxu0 0.0
      %2034 = vmatprep.subr.mxu0 0.0
      %2035 = vmatpush1.msra.mxu0 0.0
      %2036 = vmatprep.subr.mxu0 0.0
      %2037 = vmatpush1.msra.mxu0 0.0
      %2038 = vmatprep.subr.mxu0 0.0
      %2039 = vmatpush1.msra.mxu0 0.0
      %2040 = vmatprep.subr.mxu0 0.0
      %2041 = vmatpush1.msra.mxu0 0.0
      %2042 = vmatprep.subr.mxu0 0.0
      %2043 = vmatpush1.msra.mxu0 0.0
      %2044 = vmatprep.subr.mxu0 0.0
      %2045 = vmatpush1.msra.mxu0 0.0
      %2046 = vmatprep.subr.mxu0 0.0
      %2047 = vmatpush1.msra.mxu0 0.0
      %2048 = vmatprep.subr.mxu0 0.0
      %2049 = vmatpush1.msra.mxu0 0.0
      %2050 = vmatprep.subr.mxu0 0.0
      %2051 = vmatpush1.msra.mxu0 0.0
      %2052 = vmatprep.subr.mxu0 0.0
      %2053 = vmatpush1.msra.mxu0 0.0
      %2054 = vmatprep.mubr.f32.mxu0 0.0
      %2055 = vmatmul.mubr.f32.gmra.mrb[0].mxu0 %v1988
      %v2056 = vpop.f32.mrb[0].mxu0
      %v2057 = vadd.f32 0.0, %v2056
      %v2058 = vpop.f32.mrb[0].mxu0
      %2059 = vdwg.mxu0
      %v2060 = vadd.f32 %v1983, %v2057
      %v2061 = vld [vmem:[%s9] sm:$0x1]
      %v2063 = vlaneseq
      %v2064 = vshrl.u32 %v2063, 7
      %v2065 = vsub.s32 0, %v2064
      %v2066 = vrot.slane %v2061, %v2065
      %v2068 = vadd.f32 %v2060, %v2066
      %s2069 = scalar_lea.vmem %s5, 1
      %v2070 = vld [vmem:[%s2069] sm:$0x1]
      %v2072 = vlaneseq
      %v2073 = vshrl.u32 %v2072, 7
      %v2074 = vsub.s32 0, %v2073
      %v2075 = vrot.slane %v2070, %v2074
      %v2077 = vmul.f32 %v1855, %v2075
      %s2078 = scalar_lea.vmem %s6, 1
      %v2079 = vld [vmem:[%s2078] sm:$0x1]
      %v2081 = vlaneseq
      %v2082 = vshrl.u32 %v2081, 7
      %v2083 = vsub.s32 0, %v2082
      %v2084 = vrot.slane %v2079, %v2083
      %v2086 = vmul.f32 %v1868, %v2084
      %v2087 = vadd.f32 %v2077, %v2086
      %s2088 = scalar_lea.vmem %s7, 32
      %v2089 = vld [vmem:[%s2088] sm:$0xff]
      %v2090 = vld [vmem:[%s2088 + $0x8] sm:$0xff]
      %v2091 = vld [vmem:[%s2088 + $0x10] sm:$0xff]
      %v2092 = vld [vmem:[%s2088 + $0x18] sm:$0xff]
      %2093 = vmatprep.subr.mxu0 0.0
      %2094 = vmatpush1.msra.mxu0 %v2089
      %2095 = vmatprep.subr.mxu0 0.0
      %2096 = vmatpush1.msra.mxu0 %v2090
      %2097 = vmatprep.subr.mxu0 0.0
      %2098 = vmatpush1.msra.mxu0 %v2091
      %2099 = vmatprep.subr.mxu0 0.0
      %2100 = vmatpush1.msra.mxu0 %v2092
      %2101 = vmatprep.subr.mxu0 0.0
      %2102 = vmatpush1.msra.mxu0 0.0
      %2103 = vmatprep.subr.mxu0 0.0
      %2104 = vmatpush1.msra.mxu0 0.0
      %2105 = vmatprep.subr.mxu0 0.0
      %2106 = vmatpush1.msra.mxu0 0.0
      %2107 = vmatprep.subr.mxu0 0.0
      %2108 = vmatpush1.msra.mxu0 0.0
      %2109 = vmatprep.subr.mxu0 0.0
      %2110 = vmatpush1.msra.mxu0 0.0
      %2111 = vmatprep.subr.mxu0 0.0
      %2112 = vmatpush1.msra.mxu0 0.0
      %2113 = vmatprep.subr.mxu0 0.0
      %2114 = vmatpush1.msra.mxu0 0.0
      %2115 = vmatprep.subr.mxu0 0.0
      %2116 = vmatpush1.msra.mxu0 0.0
      %2117 = vmatprep.subr.mxu0 0.0
      %2118 = vmatpush1.msra.mxu0 0.0
      %2119 = vmatprep.subr.mxu0 0.0
      %2120 = vmatpush1.msra.mxu0 0.0
      %2121 = vmatprep.subr.mxu0 0.0
      %2122 = vmatpush1.msra.mxu0 0.0
      %2123 = vmatprep.subr.mxu0 0.0
      %2124 = vmatpush1.msra.mxu0 0.0
      %2125 = vmatprep.subr.mxu0 0.0
      %2126 = vmatpush1.msra.mxu0 0.0
      %2127 = vmatprep.subr.mxu0 0.0
      %2128 = vmatpush1.msra.mxu0 0.0
      %2129 = vmatprep.subr.mxu0 0.0
      %2130 = vmatpush1.msra.mxu0 0.0
      %2131 = vmatprep.subr.mxu0 0.0
      %2132 = vmatpush1.msra.mxu0 0.0
      %2133 = vmatprep.subr.mxu0 0.0
      %2134 = vmatpush1.msra.mxu0 0.0
      %2135 = vmatprep.subr.mxu0 0.0
      %2136 = vmatpush1.msra.mxu0 0.0
      %2137 = vmatprep.subr.mxu0 0.0
      %2138 = vmatpush1.msra.mxu0 0.0
      %2139 = vmatprep.subr.mxu0 0.0
      %2140 = vmatpush1.msra.mxu0 0.0
      %2141 = vmatprep.subr.mxu0 0.0
      %2142 = vmatpush1.msra.mxu0 0.0
      %2143 = vmatprep.subr.mxu0 0.0
      %2144 = vmatpush1.msra.mxu0 0.0
      %2145 = vmatprep.subr.mxu0 0.0
      %2146 = vmatpush1.msra.mxu0 0.0
      %2147 = vmatprep.subr.mxu0 0.0
      %2148 = vmatpush1.msra.mxu0 0.0
      %2149 = vmatprep.subr.mxu0 0.0
      %2150 = vmatpush1.msra.mxu0 0.0
      %2151 = vmatprep.subr.mxu0 0.0
      %2152 = vmatpush1.msra.mxu0 0.0
      %2153 = vmatprep.subr.mxu0 0.0
      %2154 = vmatpush1.msra.mxu0 0.0
      %2155 = vmatprep.subr.mxu0 0.0
      %2156 = vmatpush1.msra.mxu0 0.0
      %2157 = vmatprep.mubr.f32.mxu0 0.0
      %2158 = vmatmul.mubr.f32.gmra.mrb[0].mxu0 %v1911
      %v2159 = vpop.f32.mrb[0].mxu0
      %v2160 = vadd.f32 0.0, %v2159
      %v2161 = vpop.f32.mrb[0].mxu0
      %2162 = vdwg.mxu0
      %v2163 = vadd.f32 %v2087, %v2160
      %s2164 = scalar_lea.vmem %s8, 32
      %v2165 = vld [vmem:[%s2164] sm:$0xff]
      %v2166 = vld [vmem:[%s2164 + $0x8] sm:$0xff]
      %v2167 = vld [vmem:[%s2164 + $0x10] sm:$0xff]
      %v2168 = vld [vmem:[%s2164 + $0x18] sm:$0xff]
      %2169 = vmatprep.subr.mxu0 0.0
      %2170 = vmatpush1.msra.mxu0 %v2165
      %2171 = vmatprep.subr.mxu0 0.0
      %2172 = vmatpush1.msra.mxu0 %v2166
      %2173 = vmatprep.subr.mxu0 0.0
      %2174 = vmatpush1.msra.mxu0 %v2167
      %2175 = vmatprep.subr.mxu0 0.0
      %2176 = vmatpush1.msra.mxu0 %v2168
      %2177 = vmatprep.subr.mxu0 0.0
      %2178 = vmatpush1.msra.mxu0 0.0
      %2179 = vmatprep.subr.mxu0 0.0
      %2180 = vmatpush1.msra.mxu0 0.0
      %2181 = vmatprep.subr.mxu0 0.0
      %2182 = vmatpush1.msra.mxu0 0.0
      %2183 = vmatprep.subr.mxu0 0.0
      %2184 = vmatpush1.msra.mxu0 0.0
      %2185 = vmatprep.subr.mxu0 0.0
      %2186 = vmatpush1.msra.mxu0 0.0
      %2187 = vmatprep.subr.mxu0 0.0
      %2188 = vmatpush1.msra.mxu0 0.0
      %2189 = vmatprep.subr.mxu0 0.0
      %2190 = vmatpush1.msra.mxu0 0.0
      %2191 = vmatprep.subr.mxu0 0.0
      %2192 = vmatpush1.msra.mxu0 0.0
      %2193 = vmatprep.subr.mxu0 0.0
      %2194 = vmatpush1.msra.mxu0 0.0
      %2195 = vmatprep.subr.mxu0 0.0
      %2196 = vmatpush1.msra.mxu0 0.0
      %2197 = vmatprep.subr.mxu0 0.0
      %2198 = vmatpush1.msra.mxu0 0.0
      %2199 = vmatprep.subr.mxu0 0.0
      %2200 = vmatpush1.msra.mxu0 0.0
      %2201 = vmatprep.subr.mxu0 0.0
      %2202 = vmatpush1.msra.mxu0 0.0
      %2203 = vmatprep.subr.mxu0 0.0
      %2204 = vmatpush1.msra.mxu0 0.0
      %2205 = vmatprep.subr.mxu0 0.0
      %2206 = vmatpush1.msra.mxu0 0.0
      %2207 = vmatprep.subr.mxu0 0.0
      %2208 = vmatpush1.msra.mxu0 0.0
      %2209 = vmatprep.subr.mxu0 0.0
      %2210 = vmatpush1.msra.mxu0 0.0
      %2211 = vmatprep.subr.mxu0 0.0
      %2212 = vmatpush1.msra.mxu0 0.0
      %2213 = vmatprep.subr.mxu0 0.0
      %2214 = vmatpush1.msra.mxu0 0.0
      %2215 = vmatprep.subr.mxu0 0.0
      %2216 = vmatpush1.msra.mxu0 0.0
      %2217 = vmatprep.subr.mxu0 0.0
      %2218 = vmatpush1.msra.mxu0 0.0
      %2219 = vmatprep.subr.mxu0 0.0
      %2220 = vmatpush1.msra.mxu0 0.0
      %2221 = vmatprep.subr.mxu0 0.0
      %2222 = vmatpush1.msra.mxu0 0.0
      %2223 = vmatprep.subr.mxu0 0.0
      %2224 = vmatpush1.msra.mxu0 0.0
      %2225 = vmatprep.subr.mxu0 0.0
      %2226 = vmatpush1.msra.mxu0 0.0
      %2227 = vmatprep.subr.mxu0 0.0
      %2228 = vmatpush1.msra.mxu0 0.0
      %2229 = vmatprep.subr.mxu0 0.0
      %2230 = vmatpush1.msra.mxu0 0.0
      %2231 = vmatprep.subr.mxu0 0.0
      %2232 = vmatpush1.msra.mxu0 0.0
      %2233 = vmatprep.mubr.f32.mxu0 0.0
      %2234 = vmatmul.mubr.f32.gmra.mrb[0].mxu0 %v1988
      %v2235 = vpop.f32.mrb[0].mxu0
      %v2236 = vadd.f32 0.0, %v2235
      %v2237 = vpop.f32.mrb[0].mxu0
      %2238 = vdwg.mxu0
      %v2239 = vadd.f32 %v2163, %v2236
      %s2240 = scalar_lea.vmem %s9, 1
      %v2241 = vld [vmem:[%s2240] sm:$0x1]
      %v2243 = vlaneseq
      %v2244 = vshrl.u32 %v2243, 7
      %v2245 = vsub.s32 0, %v2244
      %v2246 = vrot.slane %v2241, %v2245
      %v2248 = vadd.f32 %v2239, %v2246
      %s2249 = scalar_lea.vmem %s5, 2
      %v2250 = vld [vmem:[%s2249] sm:$0x1]
      %v2252 = vlaneseq
      %v2253 = vshrl.u32 %v2252, 7
      %v2254 = vsub.s32 0, %v2253
      %v2255 = vrot.slane %v2250, %v2254
      %v2257 = vmul.f32 %v1855, %v2255
      %s2258 = scalar_lea.vmem %s6, 2
      %v2259 = vld [vmem:[%s2258] sm:$0x1]
      %v2261 = vlaneseq
      %v2262 = vshrl.u32 %v2261, 7
      %v2263 = vsub.s32 0, %v2262
      %v2264 = vrot.slane %v2259, %v2263
      %v2266 = vmul.f32 %v1868, %v2264
      %v2267 = vadd.f32 %v2257, %v2266
      %s2268 = scalar_lea.vmem %s7, 64
      %v2269 = vld [vmem:[%s2268] sm:$0xff]
      %v2270 = vld [vmem:[%s2268 + $0x8] sm:$0xff]
      %v2271 = vld [vmem:[%s2268 + $0x10] sm:$0xff]
      %v2272 = vld [vmem:[%s2268 + $0x18] sm:$0xff]
      %2273 = vmatprep.subr.mxu0 0.0
      %2274 = vmatpush1.msra.mxu0 %v2269
      %2275 = vmatprep.subr.mxu0 0.0
      %2276 = vmatpush1.msra.mxu0 %v2270
      %2277 = vmatprep.subr.mxu0 0.0
      %2278 = vmatpush1.msra.mxu0 %v2271
      %2279 = vmatprep.subr.mxu0 0.0
      %2280 = vmatpush1.msra.mxu0 %v2272
      %2281 = vmatprep.subr.mxu0 0.0
      %2282 = vmatpush1.msra.mxu0 0.0
      %2283 = vmatprep.subr.mxu0 0.0
      %2284 = vmatpush1.msra.mxu0 0.0
      %2285 = vmatprep.subr.mxu0 0.0
      %2286 = vmatpush1.msra.mxu0 0.0
      %2287 = vmatprep.subr.mxu0 0.0
      %2288 = vmatpush1.msra.mxu0 0.0
      %2289 = vmatprep.subr.mxu0 0.0
      %2290 = vmatpush1.msra.mxu0 0.0
      %2291 = vmatprep.subr.mxu0 0.0
      %2292 = vmatpush1.msra.mxu0 0.0
      %2293 = vmatprep.subr.mxu0 0.0
      %2294 = vmatpush1.msra.mxu0 0.0
      %2295 = vmatprep.subr.mxu0 0.0
      %2296 = vmatpush1.msra.mxu0 0.0
      %2297 = vmatprep.subr.mxu0 0.0
      %2298 = vmatpush1.msra.mxu0 0.0
      %2299 = vmatprep.subr.mxu0 0.0
      %2300 = vmatpush1.msra.mxu0 0.0
      %2301 = vmatprep.subr.mxu0 0.0
      %2302 = vmatpush1.msra.mxu0 0.0
      %2303 = vmatprep.subr.mxu0 0.0
      %2304 = vmatpush1.msra.mxu0 0.0
      %2305 = vmatprep.subr.mxu0 0.0
      %2306 = vmatpush1.msra.mxu0 0.0
      %2307 = vmatprep.subr.mxu0 0.0
      %2308 = vmatpush1.msra.mxu0 0.0
      %2309 = vmatprep.subr.mxu0 0.0
      %2310 = vmatpush1.msra.mxu0 0.0
      %2311 = vmatprep.subr.mxu0 0.0
      %2312 = vmatpush1.msra.mxu0 0.0
      %2313 = vmatprep.subr.mxu0 0.0
      %2314 = vmatpush1.msra.mxu0 0.0
      %2315 = vmatprep.subr.mxu0 0.0
      %2316 = vmatpush1.msra.mxu0 0.0
      %2317 = vmatprep.subr.mxu0 0.0
      %2318 = vmatpush1.msra.mxu0 0.0
      %2319 = vmatprep.subr.mxu0 0.0
      %2320 = vmatpush1.msra.mxu0 0.0
      %2321 = vmatprep.subr.mxu0 0.0
      %2322 = vmatpush1.msra.mxu0 0.0
      %2323 = vmatprep.subr.mxu0 0.0
      %2324 = vmatpush1.msra.mxu0 0.0
      %2325 = vmatprep.subr.mxu0 0.0
      %2326 = vmatpush1.msra.mxu0 0.0
      %2327 = vmatprep.subr.mxu0 0.0
      %2328 = vmatpush1.msra.mxu0 0.0
      %2329 = vmatprep.subr.mxu0 0.0
      %2330 = vmatpush1.msra.mxu0 0.0
      %2331 = vmatprep.subr.mxu0 0.0
      %2332 = vmatpush1.msra.mxu0 0.0
      %2333 = vmatprep.subr.mxu0 0.0
      %2334 = vmatpush1.msra.mxu0 0.0
      %2335 = vmatprep.subr.mxu0 0.0
      %2336 = vmatpush1.msra.mxu0 0.0
      %2337 = vmatprep.mubr.f32.mxu0 0.0
      %2338 = vmatmul.mubr.f32.gmra.mrb[0].mxu0 %v1911
      %v2339 = vpop.f32.mrb[0].mxu0
      %v2340 = vadd.f32 0.0, %v2339
      %v2341 = vpop.f32.mrb[0].mxu0
      %2342 = vdwg.mxu0
      %v2343 = vadd.f32 %v2267, %v2340
      %s2344 = scalar_lea.vmem %s8, 64
      %v2345 = vld [vmem:[%s2344] sm:$0xff]
      %v2346 = vld [vmem:[%s2344 + $0x8] sm:$0xff]
      %v2347 = vld [vmem:[%s2344 + $0x10] sm:$0xff]
      %v2348 = vld [vmem:[%s2344 + $0x18] sm:$0xff]
      %2349 = vmatprep.subr.mxu0 0.0
      %2350 = vmatpush1.msra.mxu0 %v2345
      %2351 = vmatprep.subr.mxu0 0.0
      %2352 = vmatpush1.msra.mxu0 %v2346
      %2353 = vmatprep.subr.mxu0 0.0
      %2354 = vmatpush1.msra.mxu0 %v2347
      %2355 = vmatprep.subr.mxu0 0.0
      %2356 = vmatpush1.msra.mxu0 %v2348
      %2357 = vmatprep.subr.mxu0 0.0
      %2358 = vmatpush1.msra.mxu0 0.0
      %2359 = vmatprep.subr.mxu0 0.0
      %2360 = vmatpush1.msra.mxu0 0.0
      %2361 = vmatprep.subr.mxu0 0.0
      %2362 = vmatpush1.msra.mxu0 0.0
      %2363 = vmatprep.subr.mxu0 0.0
      %2364 = vmatpush1.msra.mxu0 0.0
      %2365 = vmatprep.subr.mxu0 0.0
      %2366 = vmatpush1.msra.mxu0 0.0
      %2367 = vmatprep.subr.mxu0 0.0
      %2368 = vmatpush1.msra.mxu0 0.0
      %2369 = vmatprep.subr.mxu0 0.0
      %2370 = vmatpush1.msra.mxu0 0.0
      %2371 = vmatprep.subr.mxu0 0.0
      %2372 = vmatpush1.msra.mxu0 0.0
      %2373 = vmatprep.subr.mxu0 0.0
      %2374 = vmatpush1.msra.mxu0 0.0
      %2375 = vmatprep.subr.mxu0 0.0
      %2376 = vmatpush1.msra.mxu0 0.0
      %2377 = vmatprep.subr.mxu0 0.0
      %2378 = vmatpush1.msra.mxu0 0.0
      %2379 = vmatprep.subr.mxu0 0.0
      %2380 = vmatpush1.msra.mxu0 0.0
      %2381 = vmatprep.subr.mxu0 0.0
      %2382 = vmatpush1.msra.mxu0 0.0
      %2383 = vmatprep.subr.mxu0 0.0
      %2384 = vmatpush1.msra.mxu0 0.0
      %2385 = vmatprep.subr.mxu0 0.0
      %2386 = vmatpush1.msra.mxu0 0.0
      %2387 = vmatprep.subr.mxu0 0.0
      %2388 = vmatpush1.msra.mxu0 0.0
      %2389 = vmatprep.subr.mxu0 0.0
      %2390 = vmatpush1.msra.mxu0 0.0
      %2391 = vmatprep.subr.mxu0 0.0
      %2392 = vmatpush1.msra.mxu0 0.0
      %2393 = vmatprep.subr.mxu0 0.0
      %2394 = vmatpush1.msra.mxu0 0.0
      %2395 = vmatprep.subr.mxu0 0.0
      %2396 = vmatpush1.msra.mxu0 0.0
      %2397 = vmatprep.subr.mxu0 0.0
      %2398 = vmatpush1.msra.mxu0 0.0
      %2399 = vmatprep.subr.mxu0 0.0
      %2400 = vmatpush1.msra.mxu0 0.0
      %2401 = vmatprep.subr.mxu0 0.0
      %2402 = vmatpush1.msra.mxu0 0.0
      %2403 = vmatprep.subr.mxu0 0.0
      %2404 = vmatpush1.msra.mxu0 0.0
      %2405 = vmatprep.subr.mxu0 0.0
      %2406 = vmatpush1.msra.mxu0 0.0
      %2407 = vmatprep.subr.mxu0 0.0
      %2408 = vmatpush1.msra.mxu0 0.0
      %2409 = vmatprep.subr.mxu0 0.0
      %2410 = vmatpush1.msra.mxu0 0.0
      %2411 = vmatprep.subr.mxu0 0.0
      %2412 = vmatpush1.msra.mxu0 0.0
      %2413 = vmatprep.mubr.f32.mxu0 0.0
      %2414 = vmatmul.mubr.f32.gmra.mrb[0].mxu0 %v1988
      %v2415 = vpop.f32.mrb[0].mxu0
      %v2416 = vadd.f32 0.0, %v2415
      %v2417 = vpop.f32.mrb[0].mxu0
      %2418 = vdwg.mxu0
      %v2419 = vadd.f32 %v2343, %v2416
      %s2420 = scalar_lea.vmem %s9, 2
      %v2421 = vld [vmem:[%s2420] sm:$0x1]
      %v2423 = vlaneseq
      %v2424 = vshrl.u32 %v2423, 7
      %v2425 = vsub.s32 0, %v2424
      %v2426 = vrot.slane %v2421, %v2425
      %v2428 = vadd.f32 %v2419, %v2426
      %s2429 = scalar_lea.vmem %s5, 3
      %v2430 = vld [vmem:[%s2429] sm:$0x1]
      %v2432 = vlaneseq
      %v2433 = vshrl.u32 %v2432, 7
      %v2434 = vsub.s32 0, %v2433
      %v2435 = vrot.slane %v2430, %v2434
      %v2437 = vmul.f32 %v1855, %v2435
      %s2438 = scalar_lea.vmem %s6, 3
      %v2439 = vld [vmem:[%s2438] sm:$0x1]
      %v2441 = vlaneseq
      %v2442 = vshrl.u32 %v2441, 7
      %v2443 = vsub.s32 0, %v2442
      %v2444 = vrot.slane %v2439, %v2443
      %v2446 = vmul.f32 %v1868, %v2444
      %v2447 = vadd.f32 %v2437, %v2446
      %s2448 = scalar_lea.vmem %s7, 96
      %v2449 = vld [vmem:[%s2448] sm:$0xff]
      %v2450 = vld [vmem:[%s2448 + $0x8] sm:$0xff]
      %v2451 = vld [vmem:[%s2448 + $0x10] sm:$0xff]
      %v2452 = vld [vmem:[%s2448 + $0x18] sm:$0xff]
      %2453 = vmatprep.subr.mxu0 0.0
      %2454 = vmatpush1.msra.mxu0 %v2449
      %2455 = vmatprep.subr.mxu0 0.0
      %2456 = vmatpush1.msra.mxu0 %v2450
      %2457 = vmatprep.subr.mxu0 0.0
      %2458 = vmatpush1.msra.mxu0 %v2451
      %2459 = vmatprep.subr.mxu0 0.0
      %2460 = vmatpush1.msra.mxu0 %v2452
      %2461 = vmatprep.subr.mxu0 0.0
      %2462 = vmatpush1.msra.mxu0 0.0
      %2463 = vmatprep.subr.mxu0 0.0
      %2464 = vmatpush1.msra.mxu0 0.0
      %2465 = vmatprep.subr.mxu0 0.0
      %2466 = vmatpush1.msra.mxu0 0.0
      %2467 = vmatprep.subr.mxu0 0.0
      %2468 = vmatpush1.msra.mxu0 0.0
      %2469 = vmatprep.subr.mxu0 0.0
      %2470 = vmatpush1.msra.mxu0 0.0
      %2471 = vmatprep.subr.mxu0 0.0
      %2472 = vmatpush1.msra.mxu0 0.0
      %2473 = vmatprep.subr.mxu0 0.0
      %2474 = vmatpush1.msra.mxu0 0.0
      %2475 = vmatprep.subr.mxu0 0.0
      %2476 = vmatpush1.msra.mxu0 0.0
      %2477 = vmatprep.subr.mxu0 0.0
      %2478 = vmatpush1.msra.mxu0 0.0
      %2479 = vmatprep.subr.mxu0 0.0
      %2480 = vmatpush1.msra.mxu0 0.0
      %2481 = vmatprep.subr.mxu0 0.0
      %2482 = vmatpush1.msra.mxu0 0.0
      %2483 = vmatprep.subr.mxu0 0.0
      %2484 = vmatpush1.msra.mxu0 0.0
      %2485 = vmatprep.subr.mxu0 0.0
      %2486 = vmatpush1.msra.mxu0 0.0
      %2487 = vmatprep.subr.mxu0 0.0
      %2488 = vmatpush1.msra.mxu0 0.0
      %2489 = vmatprep.subr.mxu0 0.0
      %2490 = vmatpush1.msra.mxu0 0.0
      %2491 = vmatprep.subr.mxu0 0.0
      %2492 = vmatpush1.msra.mxu0 0.0
      %2493 = vmatprep.subr.mxu0 0.0
      %2494 = vmatpush1.msra.mxu0 0.0
      %2495 = vmatprep.subr.mxu0 0.0
      %2496 = vmatpush1.msra.mxu0 0.0
      %2497 = vmatprep.subr.mxu0 0.0
      %2498 = vmatpush1.msra.mxu0 0.0
      %2499 = vmatprep.subr.mxu0 0.0
      %2500 = vmatpush1.msra.mxu0 0.0
      %2501 = vmatprep.subr.mxu0 0.0
      %2502 = vmatpush1.msra.mxu0 0.0
      %2503 = vmatprep.subr.mxu0 0.0
      %2504 = vmatpush1.msra.mxu0 0.0
      %2505 = vmatprep.subr.mxu0 0.0
      %2506 = vmatpush1.msra.mxu0 0.0
      %2507 = vmatprep.subr.mxu0 0.0
      %2508 = vmatpush1.msra.mxu0 0.0
      %2509 = vmatprep.subr.mxu0 0.0
      %2510 = vmatpush1.msra.mxu0 0.0
      %2511 = vmatprep.subr.mxu0 0.0
      %2512 = vmatpush1.msra.mxu0 0.0
      %2513 = vmatprep.subr.mxu0 0.0
      %2514 = vmatpush1.msra.mxu0 0.0
      %2515 = vmatprep.subr.mxu0 0.0
      %2516 = vmatpush1.msra.mxu0 0.0
      %2517 = vmatprep.mubr.f32.mxu0 0.0
      %2518 = vmatmul.mubr.f32.gmra.mrb[0].mxu0 %v1911
      %v2519 = vpop.f32.mrb[0].mxu0
      %v2520 = vadd.f32 0.0, %v2519
      %v2521 = vpop.f32.mrb[0].mxu0
      %2522 = vdwg.mxu0
      %v2523 = vadd.f32 %v2447, %v2520
      %s2524 = scalar_lea.vmem %s8, 96
      %v2525 = vld [vmem:[%s2524] sm:$0xff]
      %v2526 = vld [vmem:[%s2524 + $0x8] sm:$0xff]
      %v2527 = vld [vmem:[%s2524 + $0x10] sm:$0xff]
      %v2528 = vld [vmem:[%s2524 + $0x18] sm:$0xff]
      %2529 = vmatprep.subr.mxu0 0.0
      %2530 = vmatpush1.msra.mxu0 %v2525
      %2531 = vmatprep.subr.mxu0 0.0
      %2532 = vmatpush1.msra.mxu0 %v2526
      %2533 = vmatprep.subr.mxu0 0.0
      %2534 = vmatpush1.msra.mxu0 %v2527
      %2535 = vmatprep.subr.mxu0 0.0
      %2536 = vmatpush1.msra.mxu0 %v2528
      %2537 = vmatprep.subr.mxu0 0.0
      %2538 = vmatpush1.msra.mxu0 0.0
      %2539 = vmatprep.subr.mxu0 0.0
      %2540 = vmatpush1.msra.mxu0 0.0
      %2541 = vmatprep.subr.mxu0 0.0
      %2542 = vmatpush1.msra.mxu0 0.0
      %2543 = vmatprep.subr.mxu0 0.0
      %2544 = vmatpush1.msra.mxu0 0.0
      %2545 = vmatprep.subr.mxu0 0.0
      %2546 = vmatpush1.msra.mxu0 0.0
      %2547 = vmatprep.subr.mxu0 0.0
      %2548 = vmatpush1.msra.mxu0 0.0
      %2549 = vmatprep.subr.mxu0 0.0
      %2550 = vmatpush1.msra.mxu0 0.0
      %2551 = vmatprep.subr.mxu0 0.0
      %2552 = vmatpush1.msra.mxu0 0.0
      %2553 = vmatprep.subr.mxu0 0.0
      %2554 = vmatpush1.msra.mxu0 0.0
      %2555 = vmatprep.subr.mxu0 0.0
      %2556 = vmatpush1.msra.mxu0 0.0
      %2557 = vmatprep.subr.mxu0 0.0
      %2558 = vmatpush1.msra.mxu0 0.0
      %2559 = vmatprep.subr.mxu0 0.0
      %2560 = vmatpush1.msra.mxu0 0.0
      %2561 = vmatprep.subr.mxu0 0.0
      %2562 = vmatpush1.msra.mxu0 0.0
      %2563 = vmatprep.subr.mxu0 0.0
      %2564 = vmatpush1.msra.mxu0 0.0
      %2565 = vmatprep.subr.mxu0 0.0
      %2566 = vmatpush1.msra.mxu0 0.0
      %2567 = vmatprep.subr.mxu0 0.0
      %2568 = vmatpush1.msra.mxu0 0.0
      %2569 = vmatprep.subr.mxu0 0.0
      %2570 = vmatpush1.msra.mxu0 0.0
      %2571 = vmatprep.subr.mxu0 0.0
      %2572 = vmatpush1.msra.mxu0 0.0
      %2573 = vmatprep.subr.mxu0 0.0
      %2574 = vmatpush1.msra.mxu0 0.0
      %2575 = vmatprep.subr.mxu0 0.0
      %2576 = vmatpush1.msra.mxu0 0.0
      %2577 = vmatprep.subr.mxu0 0.0
      %2578 = vmatpush1.msra.mxu0 0.0
      %2579 = vmatprep.subr.mxu0 0.0
      %2580 = vmatpush1.msra.mxu0 0.0
      %2581 = vmatprep.subr.mxu0 0.0
      %2582 = vmatpush1.msra.mxu0 0.0
      %2583 = vmatprep.subr.mxu0 0.0
      %2584 = vmatpush1.msra.mxu0 0.0
      %2585 = vmatprep.subr.mxu0 0.0
      %2586 = vmatpush1.msra.mxu0 0.0
      %2587 = vmatprep.subr.mxu0 0.0
      %2588 = vmatpush1.msra.mxu0 0.0
      %2589 = vmatprep.subr.mxu0 0.0
      %2590 = vmatpush1.msra.mxu0 0.0
      %2591 = vmatprep.subr.mxu0 0.0
      %2592 = vmatpush1.msra.mxu0 0.0
      %2593 = vmatprep.mubr.f32.mxu0 0.0
      %2594 = vmatmul.mubr.f32.gmra.mrb[0].mxu0 %v1988
      %v2595 = vpop.f32.mrb[0].mxu0
      %v2596 = vadd.f32 0.0, %v2595
      %v2597 = vpop.f32.mrb[0].mxu0
      %2598 = vdwg.mxu0
      %v2599 = vadd.f32 %v2523, %v2596
      %s2600 = scalar_lea.vmem %s9, 3
      %v2601 = vld [vmem:[%s2600] sm:$0x1]
      %v2603 = vlaneseq
      %v2604 = vshrl.u32 %v2603, 7
      %v2605 = vsub.s32 0, %v2604
      %v2606 = vrot.slane %v2601, %v2605
      %v2608 = vadd.f32 %v2599, %v2606
      %v2609 = vxor.u32 %v2068, 2147483648
      %v2610 = vmul.f32 %v2609, 1.442695
      %v2611 = vpow.pop %v2610
      %v2612 = vadd.f32 %v2611, 1.0
      %v2613 = vrcp.pop %v2612
      %v2614 = vmul.f32 1.0, %v2613
      %v2615 = vxor.u32 %v2248, 2147483648
      %v2616 = vmul.f32 %v2615, 1.442695
      %v2617 = vpow.pop %v2616
      %v2618 = vadd.f32 %v2617, 1.0
      %v2619 = vrcp.pop %v2618
      %v2620 = vmul.f32 1.0, %v2619
      %v2621 = vtanh.pop %v2428
      %v2622 = vxor.u32 %v2608, 2147483648
      %v2623 = vmul.f32 %v2622, 1.442695
      %v2624 = vpow.pop %v2623
      %v2625 = vadd.f32 %v2624, 1.0
      %v2626 = vrcp.pop %v2625
      %v2627 = vmul.f32 1.0, %v2626
      %v2628 = vmul.f32 %v2620, %v512
      %v2629 = vmul.f32 %v2614, %v2621
      %v2630 = vadd.f32 %v2628, %v2629
      %v2631 = vtanh.pop %v2630
      %v2632 = vmul.f32 %v2627, %v2631
      %2633 = vst.msk [vmem:[#allocation2] sm:$0xff] %vm571, %v2632
      %2634 = vst.msk [vmem:[#allocation3] sm:$0xff] %vm571, %v2630
      %v2635 = vld [vmem:[%s10] sm:$0xff]
      %v2636 = vld [vmem:[%s10 + $0x8] sm:$0xff]
      %v2637 = vld [vmem:[%s10 + $0x10] sm:$0xff]
      %v2638 = vld [vmem:[%s10 + $0x18] sm:$0xff]
      %v2639 = vld [vmem:[%s11] sm:$0x1]
      %v2641 = vlaneseq
      %v2642 = vshrl.u32 %v2641, 7
      %v2643 = vsub.s32 0, %v2642
      %v2644 = vrot.slane %v2639, %v2643
      %v2647 = vsel %vm571, %v2632, 0
      %2649 = vmatprep.subr.mxu0 0.0
      %2650 = vmatpush1.msra.mxu0 %v2635
      %2651 = vmatprep.subr.mxu0 0.0
      %2652 = vmatpush1.msra.mxu0 %v2636
      %2653 = vmatprep.subr.mxu0 0.0
      %2654 = vmatpush1.msra.mxu0 %v2637
      %2655 = vmatprep.subr.mxu0 0.0
      %2656 = vmatpush1.msra.mxu0 %v2638
      %2657 = vmatprep.subr.mxu0 0.0
      %2658 = vmatpush1.msra.mxu0 0.0
      %2659 = vmatprep.subr.mxu0 0.0
      %2660 = vmatpush1.msra.mxu0 0.0
      %2661 = vmatprep.subr.mxu0 0.0
      %2662 = vmatpush1.msra.mxu0 0.0
      %2663 = vmatprep.subr.mxu0 0.0
      %2664 = vmatpush1.msra.mxu0 0.0
      %2665 = vmatprep.subr.mxu0 0.0
      %2666 = vmatpush1.msra.mxu0 0.0
      %2667 = vmatprep.subr.mxu0 0.0
      %2668 = vmatpush1.msra.mxu0 0.0
      %2669 = vmatprep.subr.mxu0 0.0
      %2670 = vmatpush1.msra.mxu0 0.0
      %2671 = vmatprep.subr.mxu0 0.0
      %2672 = vmatpush1.msra.mxu0 0.0
      %2673 = vmatprep.subr.mxu0 0.0
      %2674 = vmatpush1.msra.mxu0 0.0
      %2675 = vmatprep.subr.mxu0 0.0
      %2676 = vmatpush1.msra.mxu0 0.0
      %2677 = vmatprep.subr.mxu0 0.0
      %2678 = vmatpush1.msra.mxu0 0.0
      %2679 = vmatprep.subr.mxu0 0.0
      %2680 = vmatpush1.msra.mxu0 0.0
      %2681 = vmatprep.subr.mxu0 0.0
      %2682 = vmatpush1.msra.mxu0 0.0
      %2683 = vmatprep.subr.mxu0 0.0
      %2684 = vmatpush1.msra.mxu0 0.0
      %2685 = vmatprep.subr.mxu0 0.0
      %2686 = vmatpush1.msra.mxu0 0.0
      %2687 = vmatprep.subr.mxu0 0.0
      %2688 = vmatpush1.msra.mxu0 0.0
      %2689 = vmatprep.subr.mxu0 0.0
      %2690 = vmatpush1.msra.mxu0 0.0
      %2691 = vmatprep.subr.mxu0 0.0
      %2692 = vmatpush1.msra.mxu0 0.0
      %2693 = vmatprep.subr.mxu0 0.0
      %2694 = vmatpush1.msra.mxu0 0.0
      %2695 = vmatprep.subr.mxu0 0.0
      %2696 = vmatpush1.msra.mxu0 0.0
      %2697 = vmatprep.subr.mxu0 0.0
      %2698 = vmatpush1.msra.mxu0 0.0
      %2699 = vmatprep.subr.mxu0 0.0
      %2700 = vmatpush1.msra.mxu0 0.0
      %2701 = vmatprep.subr.mxu0 0.0
      %2702 = vmatpush1.msra.mxu0 0.0
      %2703 = vmatprep.subr.mxu0 0.0
      %2704 = vmatpush1.msra.mxu0 0.0
      %2705 = vmatprep.subr.mxu0 0.0
      %2706 = vmatpush1.msra.mxu0 0.0
      %2707 = vmatprep.subr.mxu0 0.0
      %2708 = vmatpush1.msra.mxu0 0.0
      %2709 = vmatprep.subr.mxu0 0.0
      %2710 = vmatpush1.msra.mxu0 0.0
      %2711 = vmatprep.subr.mxu0 0.0
      %2712 = vmatpush1.msra.mxu0 0.0
      %2713 = vmatprep.mubr.f32.mxu0 0.0
      %2714 = vmatmul.mubr.f32.gmra.mrb[0].mxu0 %v2647
      %v2715 = vpop.f32.mrb[0].mxu0
      %v2716 = vadd.f32 %v2644, %v2715
      %v2717 = vpop.f32.mrb[0].mxu0
      %2718 = vdwg.mxu0
      %vm2719 = vcmask 195584
      %2720 = vst.msk [vmem:[%s501] sm:$0xff] %vm2719, %v2716
      %p2721 = scmp.lt.s32.totalorder %s28, 5
      %s2722 = scalar_select %p2721, %s28, 5
      %p2723 = scmp.lt.s32.totalorder %s27, 0
      %s2724 = scalar_select %p2723, %s27, 0
      %s2725 = sadd.s32 %s2724, %s2722
      %s2726 = smul.addr %s2725, 8
      %s2727 = scalar_lea.vmem %s12, %s2726
      // Predicated region
      $region73: #{att_encoder_decoder_forward.3} parent=67 // pred_check
        %p2728 = pneg %p332
      $region74: #{att_encoder_decoder_forward.3} parent=67 // pred_check_branch
        %2730 = sbr.rel (%p2728) target = $region76
      $region75: #{att_encoder_decoder_forward.3} parent=67 // pred_region
        _
      $region76: #{att_encoder_decoder_forward.3} parent=67 // pred_fallthru
        _
    $region68: #{att_encoder_decoder_forward.3} parent=5 // pred_fallthru
      _
    %p2731 = scmp.le.s32.totalorder 2, %s18
    // Predicated region
    $region77: #{att_encoder_decoder_forward.3} parent=5 // pred_check
      %p2732 = pneg %p2731
    $region78: #{att_encoder_decoder_forward.3} parent=5 // pred_check_branch
      %2734 = sbr.rel (%p2732) target = $region80
    $region79: #{att_encoder_decoder_forward.3} parent=5 // pred_region
      %s2735 = ssub.s32 %s18, 2
      // Predicated region
      $region81: #{att_encoder_decoder_forward.3} parent=79 // pred_check
        %p2736 = pneg %p338
      $region82: #{att_encoder_decoder_forward.3} parent=79 // pred_check_branch
        %2738 = sbr.rel (%p2736) target = $region84
      $region83: #{att_encoder_decoder_forward.3} parent=79 // pred_region
        %p2739 = scmp.lt.s32.totalorder %s30, 5
        %s2740 = scalar_select %p2739, %s30, 5
        %p2741 = scmp.lt.s32.totalorder %s29, 0
        %s2742 = scalar_select %p2741, %s29, 0
        %s2743 = sadd.s32 %s2742, %s2740
        %s2744 = smul.addr %s2743, 8
        %s2745 = scalar_lea.vmem %s12, %s2744
      $region84: #{att_encoder_decoder_forward.3} parent=79 // pred_fallthru
        _
    $region80: #{att_encoder_decoder_forward.3} parent=5 // pred_fallthru
      _
  $region6: #{att_encoder_decoder_forward.3} parent=0 // loop_footer
    %s22 = sadd.s32 1, %s18
  $region7: #{att_encoder_decoder_forward.3} parent=0 // loop_footer_branch
    %17 = sbr.rel target = $region3
  $region8: #{att_encoder_decoder_forward.3} parent=0 // loop_exit
    _

// kernel: att_encoder_decoder_forward.2
$region0: #{att_encoder_decoder_forward.2}
  #allocation0 [shape = 'u32[]', space=smem, size = 0x4, offset = 0x4, fixed_abs, tag = 'smem constant byte address 0x4 - core index']
  #allocation1 [shape = 'u32[144,128]{1,0:T(1,128)}', space=vmem, size = 0x12000, scoped, tag = 'internal scratch']
  #allocation2 [shape = 'f32[8,8,32]{2,1,0:T(8,128)}', space=vmem, size = 0x8000, scoped, tag = 'scratch operand']
  #allocation3 [shape = 'f32[8,8,32]{2,1,0:T(8,128)}', space=vmem, size = 0x8000, scoped, tag = 'scratch operand']
  #allocation4 [shape = 'f32[8,8,32]{2,1,0:T(8,128)}', space=vmem, size = 0x8000, scoped, tag = 'scratch operand']
  #allocation5 [shape = 'f32[8,8,32]{2,1,0:T(8,128)}', space=vmem, size = 0x8000, scoped, tag = 'scratch operand']
  %s0 = inlined_call_operand.vmem [shape: f32[64,4], index: 0, kind: input, shape index: {}]
  %s1 = inlined_call_operand.vmem [shape: f32[4,4,32], index: 1, kind: input, shape index: {}]
  %s2 = inlined_call_operand.vmem [shape: f32[4,32,32], index: 2, kind: input, shape index: {}]
  %s3 = inlined_call_operand.vmem [shape: f32[4,1,32], index: 3, kind: input, shape index: {}]
  %s4 = inlined_call_operand.vmem [shape: f32[8,8,32], index: 4, kind: output, shape index: {0}]
  %s5 = inlined_call_operand.vmem [shape: f32[8,32], index: 5, kind: output, shape index: {1}]
  %s6 = inlined_call_operand.vmem [shape: f32[8,32], index: 6, kind: output, shape index: {2}]
  %7 = xla_tuple %s4, %s5, %s6
  %s8 = sld [smem:[#allocation0]]
  $region42: #{att_encoder_decoder_forward.2} parent=0
    _
  %s10 = ssub.s32 1, %s8
  %s11 = scalar_select 0, %s10, %s8
  // Predicated region
  $region2: #{att_encoder_decoder_forward.2} parent=0 // pred_check
    _
  $region3: #{att_encoder_decoder_forward.2} parent=0 // pred_check_branch
    %13 = sbr.rel (0) target = $region5
  $region4: #{att_encoder_decoder_forward.2} parent=0 // pred_region
    _
  $region5: #{att_encoder_decoder_forward.2} parent=0 // pred_fallthru
    _
  // Predicated region
  $region6: #{att_encoder_decoder_forward.2} parent=0 // pred_check
    _
  $region7: #{att_encoder_decoder_forward.2} parent=0 // pred_check_branch
    %15 = sbr.rel (0) target = $region9
  $region8: #{att_encoder_decoder_forward.2} parent=0 // pred_region
    _
  $region9: #{att_encoder_decoder_forward.2} parent=0 // pred_fallthru
    _
  // Predicated region
  $region10: #{att_encoder_decoder_forward.2} parent=0 // pred_check
    _
  $region11: #{att_encoder_decoder_forward.2} parent=0 // pred_check_branch
    %17 = sbr.rel (0) target = $region13
  $region12: #{att_encoder_decoder_forward.2} parent=0 // pred_region
    _
  $region13: #{att_encoder_decoder_forward.2} parent=0 // pred_fallthru
    _
  // Predicated region
  $region14: #{att_encoder_decoder_forward.2} parent=0 // pred_check
    _
  $region15: #{att_encoder_decoder_forward.2} parent=0 // pred_check_branch
    %19 = sbr.rel (0) target = $region17
  $region16: #{att_encoder_decoder_forward.2} parent=0 // pred_region
    _
  $region17: #{att_encoder_decoder_forward.2} parent=0 // pred_fallthru
    _
  %v20 = vld [vmem:[%s0] sm:$0xff]
  %v21 = vld [vmem:[%s0 + $0x8] sm:$0xff]
  %v22 = vld [vmem:[%s0 + $0x10] sm:$0xff]
  %v23 = vld [vmem:[%s0 + $0x18] sm:$0xff]
  %v24 = vld [vmem:[%s0 + $0x20] sm:$0xff]
  %v25 = vld [vmem:[%s0 + $0x28] sm:$0xff]
  %v26 = vld [vmem:[%s0 + $0x30] sm:$0xff]
  %v27 = vld [vmem:[%s0 + $0x38] sm:$0xff]
  %v28 = vld [vmem:[%s1] sm:$0xf]
  %vm29 = vcmask 31744
  %v31 = vsel %vm29, %v20, 0
  %v34 = vsel %vm29, %v21, 0
  %v37 = vsel %vm29, %v22, 0
  %v40 = vsel %vm29, %v23, 0
  %v43 = vsel %vm29, %v24, 0
  %v46 = vsel %vm29, %v25, 0
  %v49 = vsel %vm29, %v26, 0
  %v52 = vsel %vm29, %v27, 0
  %vm54 = vcmask 1043456
  %v56 = vsel %vm54, %v28, 0
  %58 = vmatprep.subr.mxu0 0.0
  %59 = vmatpush1.msra.mxu0 %v56
  %60 = vmatprep.subr.mxu0 0.0
  %61 = vmatpush1.msra.mxu0 0.0
  %62 = vmatprep.subr.mxu0 0.0
  %63 = vmatpush1.msra.mxu0 0.0
  %64 = vmatprep.subr.mxu0 0.0
  %65 = vmatpush1.msra.mxu0 0.0
  %66 = vmatprep.subr.mxu0 0.0
  %67 = vmatpush1.msra.mxu0 0.0
  %68 = vmatprep.subr.mxu0 0.0
  %69 = vmatpush1.msra.mxu0 0.0
  %70 = vmatprep.subr.mxu0 0.0
  %71 = vmatpush1.msra.mxu0 0.0
  %72 = vmatprep.subr.mxu0 0.0
  %73 = vmatpush1.msra.mxu0 0.0
  %74 = vmatprep.subr.mxu0 0.0
  %75 = vmatpush1.msra.mxu0 0.0
  %76 = vmatprep.subr.mxu0 0.0
  %77 = vmatpush1.msra.mxu0 0.0
  %78 = vmatprep.subr.mxu0 0.0
  %79 = vmatpush1.msra.mxu0 0.0
  %80 = vmatprep.subr.mxu0 0.0
  %81 = vmatpush1.msra.mxu0 0.0
  %82 = vmatprep.subr.mxu0 0.0
  %83 = vmatpush1.msra.mxu0 0.0
  %84 = vmatprep.subr.mxu0 0.0
  %85 = vmatpush1.msra.mxu0 0.0
  %86 = vmatprep.subr.mxu0 0.0
  %87 = vmatpush1.msra.mxu0 0.0
  %88 = vmatprep.subr.mxu0 0.0
  %89 = vmatpush1.msra.mxu0 0.0
  %90 = vmatprep.subr.mxu0 0.0
  %91 = vmatpush1.msra.mxu0 0.0
  %92 = vmatprep.subr.mxu0 0.0
  %93 = vmatpush1.msra.mxu0 0.0
  %94 = vmatprep.subr.mxu0 0.0
  %95 = vmatpush1.msra.mxu0 0.0
  %96 = vmatprep.subr.mxu0 0.0
  %97 = vmatpush1.msra.mxu0 0.0
  %98 = vmatprep.subr.mxu0 0.0
  %99 = vmatpush1.msra.mxu0 0.0
  %100 = vmatprep.subr.mxu0 0.0
  %101 = vmatpush1.msra.mxu0 0.0
  %102 = vmatprep.subr.mxu0 0.0
  %103 = vmatpush1.msra.mxu0 0.0
  %104 = vmatprep.subr.mxu0 0.0
  %105 = vmatpush1.msra.mxu0 0.0
  %106 = vmatprep.subr.mxu0 0.0
  %107 = vmatpush1.msra.mxu0 0.0
  %108 = vmatprep.subr.mxu0 0.0
  %109 = vmatpush1.msra.mxu0 0.0
  %110 = vmatprep.subr.mxu0 0.0
  %111 = vmatpush1.msra.mxu0 0.0
  %112 = vmatprep.subr.mxu0 0.0
  %113 = vmatpush1.msra.mxu0 0.0
  %114 = vmatprep.subr.mxu0 0.0
  %115 = vmatpush1.msra.mxu0 0.0
  %116 = vmatprep.subr.mxu0 0.0
  %117 = vmatpush1.msra.mxu0 0.0
  %118 = vmatprep.subr.mxu0 0.0
  %119 = vmatpush1.msra.mxu0 0.0
  %120 = vmatprep.subr.mxu0 0.0
  %121 = vmatpush1.msra.mxu0 0.0
  %122 = vmatprep.mubr.f32.mxu0 0.0
  %123 = vmatmul.mubr.f32.gmra.mrb[0].mxu0 %v31
  %v124 = vpop.f32.mrb[0].mxu0
  %v125 = vadd.f32 0.0, %v124
  %v126 = vpop.f32.mrb[0].mxu0
  %127 = vmatprep.mubr.f32.mxu0 0.0
  %128 = vmatmul.mubr.f32.gmra.mrb[0].mxu0 %v34
  %v129 = vpop.f32.mrb[0].mxu0
  %v130 = vadd.f32 0.0, %v129
  %v131 = vpop.f32.mrb[0].mxu0
  %132 = vmatprep.mubr.f32.mxu0 0.0
  %133 = vmatmul.mubr.f32.gmra.mrb[0].mxu0 %v37
  %v134 = vpop.f32.mrb[0].mxu0
  %v135 = vadd.f32 0.0, %v134
  %v136 = vpop.f32.mrb[0].mxu0
  %137 = vmatprep.mubr.f32.mxu0 0.0
  %138 = vmatmul.mubr.f32.gmra.mrb[0].mxu0 %v40
  %v139 = vpop.f32.mrb[0].mxu0
  %v140 = vadd.f32 0.0, %v139
  %v141 = vpop.f32.mrb[0].mxu0
  %142 = vmatprep.mubr.f32.mxu0 0.0
  %143 = vmatmul.mubr.f32.gmra.mrb[0].mxu0 %v43
  %v144 = vpop.f32.mrb[0].mxu0
  %v145 = vadd.f32 0.0, %v144
  %v146 = vpop.f32.mrb[0].mxu0
  %147 = vmatprep.mubr.f32.mxu0 0.0
  %148 = vmatmul.mubr.f32.gmra.mrb[0].mxu0 %v46
  %v149 = vpop.f32.mrb[0].mxu0
  %v150 = vadd.f32 0.0, %v149
  %v151 = vpop.f32.mrb[0].mxu0
  %152 = vmatprep.mubr.f32.mxu0 0.0
  %153 = vmatmul.mubr.f32.gmra.mrb[0].mxu0 %v49
  %v154 = vpop.f32.mrb[0].mxu0
  %v155 = vadd.f32 0.0, %v154
  %v156 = vpop.f32.mrb[0].mxu0
  %157 = vmatprep.mubr.f32.mxu0 0.0
  %158 = vmatmul.mubr.f32.gmra.mrb[0].mxu0 %v52
  %v159 = vpop.f32.mrb[0].mxu0
  %v160 = vadd.f32 0.0, %v159
  %v161 = vpop.f32.mrb[0].mxu0
  %162 = vdwg.mxu0
  %vm163 = vcmask 261120
  %164 = vst.msk [vmem:[#allocation2] sm:$0xff] %vm163, %v125
  %165 = vst.msk [vmem:[#allocation2 + $0x8] sm:$0xff] %vm163, %v130
  %166 = vst.msk [vmem:[#allocation2 + $0x10] sm:$0xff] %vm163, %v135
  %167 = vst.msk [vmem:[#allocation2 + $0x18] sm:$0xff] %vm163, %v140
  %168 = vst.msk [vmem:[#allocation2 + $0x20] sm:$0xff] %vm163, %v145
  %169 = vst.msk [vmem:[#allocation2 + $0x28] sm:$0xff] %vm163, %v150
  %170 = vst.msk [vmem:[#allocation2 + $0x30] sm:$0xff] %vm163, %v155
  %171 = vst.msk [vmem:[#allocation2 + $0x38] sm:$0xff] %vm163, %v160
  %s172 = scalar_lea.vmem %s1, 4
  %v173 = vld [vmem:[%s172] sm:$0xf]
  %v175 = vsel %vm54, %v173, 0
  %177 = vmatprep.subr.mxu0 0.0
  %178 = vmatpush1.msra.mxu0 %v175
  %179 = vmatprep.subr.mxu0 0.0
  %180 = vmatpush1.msra.mxu0 0.0
  %181 = vmatprep.subr.mxu0 0.0
  %182 = vmatpush1.msra.mxu0 0.0
  %183 = vmatprep.subr.mxu0 0.0
  %184 = vmatpush1.msra.mxu0 0.0
  %185 = vmatprep.subr.mxu0 0.0
  %186 = vmatpush1.msra.mxu0 0.0
  %187 = vmatprep.subr.mxu0 0.0
  %188 = vmatpush1.msra.mxu0 0.0
  %189 = vmatprep.subr.mxu0 0.0
  %190 = vmatpush1.msra.mxu0 0.0
  %191 = vmatprep.subr.mxu0 0.0
  %192 = vmatpush1.msra.mxu0 0.0
  %193 = vmatprep.subr.mxu0 0.0
  %194 = vmatpush1.msra.mxu0 0.0
  %195 = vmatprep.subr.mxu0 0.0
  %196 = vmatpush1.msra.mxu0 0.0
  %197 = vmatprep.subr.mxu0 0.0
  %198 = vmatpush1.msra.mxu0 0.0
  %199 = vmatprep.subr.mxu0 0.0
  %200 = vmatpush1.msra.mxu0 0.0
  %201 = vmatprep.subr.mxu0 0.0
  %202 = vmatpush1.msra.mxu0 0.0
  %203 = vmatprep.subr.mxu0 0.0
  %204 = vmatpush1.msra.mxu0 0.0
  %205 = vmatprep.subr.mxu0 0.0
  %206 = vmatpush1.msra.mxu0 0.0
  %207 = vmatprep.subr.mxu0 0.0
  %208 = vmatpush1.msra.mxu0 0.0
  %209 = vmatprep.subr.mxu0 0.0
  %210 = vmatpush1.msra.mxu0 0.0
  %211 = vmatprep.subr.mxu0 0.0
  %212 = vmatpush1.msra.mxu0 0.0
  %213 = vmatprep.subr.mxu0 0.0
  %214 = vmatpush1.msra.mxu0 0.0
  %215 = vmatprep.subr.mxu0 0.0
  %216 = vmatpush1.msra.mxu0 0.0
  %217 = vmatprep.subr.mxu0 0.0
  %218 = vmatpush1.msra.mxu0 0.0
  %219 = vmatprep.subr.mxu0 0.0
  %220 = vmatpush1.msra.mxu0 0.0
  %221 = vmatprep.subr.mxu0 0.0
  %222 = vmatpush1.msra.mxu0 0.0
  %223 = vmatprep.subr.mxu0 0.0
  %224 = vmatpush1.msra.mxu0 0.0
  %225 = vmatprep.subr.mxu0 0.0
  %226 = vmatpush1.msra.mxu0 0.0
  %227 = vmatprep.subr.mxu0 0.0
  %228 = vmatpush1.msra.mxu0 0.0
  %229 = vmatprep.subr.mxu0 0.0
  %230 = vmatpush1.msra.mxu0 0.0
  %231 = vmatprep.subr.mxu0 0.0
  %232 = vmatpush1.msra.mxu0 0.0
  %233 = vmatprep.subr.mxu0 0.0
  %234 = vmatpush1.msra.mxu0 0.0
  %235 = vmatprep.subr.mxu0 0.0
  %236 = vmatpush1.msra.mxu0 0.0
  %237 = vmatprep.subr.mxu0 0.0
  %238 = vmatpush1.msra.mxu0 0.0
  %239 = vmatprep.subr.mxu0 0.0
  %240 = vmatpush1.msra.mxu0 0.0
  %241 = vmatprep.mubr.f32.mxu0 0.0
  %242 = vmatmul.mubr.f32.gmra.mrb[0].mxu0 %v31
  %v243 = vpop.f32.mrb[0].mxu0
  %v244 = vadd.f32 0.0, %v243
  %v245 = vpop.f32.mrb[0].mxu0
  %246 = vmatprep.mubr.f32.mxu0 0.0
  %247 = vmatmul.mubr.f32.gmra.mrb[0].mxu0 %v34
  %v248 = vpop.f32.mrb[0].mxu0
  %v249 = vadd.f32 0.0, %v248
  %v250 = vpop.f32.mrb[0].mxu0
  %251 = vmatprep.mubr.f32.mxu0 0.0
  %252 = vmatmul.mubr.f32.gmra.mrb[0].mxu0 %v37
  %v253 = vpop.f32.mrb[0].mxu0
  %v254 = vadd.f32 0.0, %v253
  %v255 = vpop.f32.mrb[0].mxu0
  %256 = vmatprep.mubr.f32.mxu0 0.0
  %257 = vmatmul.mubr.f32.gmra.mrb[0].mxu0 %v40
  %v258 = vpop.f32.mrb[0].mxu0
  %v259 = vadd.f32 0.0, %v258
  %v260 = vpop.f32.mrb[0].mxu0
  %261 = vmatprep.mubr.f32.mxu0 0.0
  %262 = vmatmul.mubr.f32.gmra.mrb[0].mxu0 %v43
  %v263 = vpop.f32.mrb[0].mxu0
  %v264 = vadd.f32 0.0, %v263
  %v265 = vpop.f32.mrb[0].mxu0
  %266 = vmatprep.mubr.f32.mxu0 0.0
  %267 = vmatmul.mubr.f32.gmra.mrb[0].mxu0 %v46
  %v268 = vpop.f32.mrb[0].mxu0
  %v269 = vadd.f32 0.0, %v268
  %v270 = vpop.f32.mrb[0].mxu0
  %271 = vmatprep.mubr.f32.mxu0 0.0
  %272 = vmatmul.mubr.f32.gmra.mrb[0].mxu0 %v49
  %v273 = vpop.f32.mrb[0].mxu0
  %v274 = vadd.f32 0.0, %v273
  %v275 = vpop.f32.mrb[0].mxu0
  %276 = vmatprep.mubr.f32.mxu0 0.0
  %277 = vmatmul.mubr.f32.gmra.mrb[0].mxu0 %v52
  %v278 = vpop.f32.mrb[0].mxu0
  %v279 = vadd.f32 0.0, %v278
  %v280 = vpop.f32.mrb[0].mxu0
  %281 = vdwg.mxu0
  %282 = vst.msk [vmem:[#allocation3] sm:$0xff] %vm163, %v244
  %283 = vst.msk [vmem:[#allocation3 + $0x8] sm:$0xff] %vm163, %v249
  %284 = vst.msk [vmem:[#allocation3 + $0x10] sm:$0xff] %vm163, %v254
  %285 = vst.msk [vmem:[#allocation3 + $0x18] sm:$0xff] %vm163, %v259
  %286 = vst.msk [vmem:[#allocation3 + $0x20] sm:$0xff] %vm163, %v264
  %287 = vst.msk [vmem:[#allocation3 + $0x28] sm:$0xff] %vm163, %v269
  %288 = vst.msk [vmem:[#allocation3 + $0x30] sm:$0xff] %vm163, %v274
  %289 = vst.msk [vmem:[#allocation3 + $0x38] sm:$0xff] %vm163, %v279
  %s290 = scalar_lea.vmem %s1, 8
  %v291 = vld [vmem:[%s290] sm:$0xf]
  %v293 = vsel %vm54, %v291, 0
  %295 = vmatprep.subr.mxu0 0.0
  %296 = vmatpush1.msra.mxu0 %v293
  %297 = vmatprep.subr.mxu0 0.0
  %298 = vmatpush1.msra.mxu0 0.0
  %299 = vmatprep.subr.mxu0 0.0
  %300 = vmatpush1.msra.mxu0 0.0
  %301 = vmatprep.subr.mxu0 0.0
  %302 = vmatpush1.msra.mxu0 0.0
  %303 = vmatprep.subr.mxu0 0.0
  %304 = vmatpush1.msra.mxu0 0.0
  %305 = vmatprep.subr.mxu0 0.0
  %306 = vmatpush1.msra.mxu0 0.0
  %307 = vmatprep.subr.mxu0 0.0
  %308 = vmatpush1.msra.mxu0 0.0
  %309 = vmatprep.subr.mxu0 0.0
  %310 = vmatpush1.msra.mxu0 0.0
  %311 = vmatprep.subr.mxu0 0.0
  %312 = vmatpush1.msra.mxu0 0.0
  %313 = vmatprep.subr.mxu0 0.0
  %314 = vmatpush1.msra.mxu0 0.0
  %315 = vmatprep.subr.mxu0 0.0
  %316 = vmatpush1.msra.mxu0 0.0
  %317 = vmatprep.subr.mxu0 0.0
  %318 = vmatpush1.msra.mxu0 0.0
  %319 = vmatprep.subr.mxu0 0.0
  %320 = vmatpush1.msra.mxu0 0.0
  %321 = vmatprep.subr.mxu0 0.0
  %322 = vmatpush1.msra.mxu0 0.0
  %323 = vmatprep.subr.mxu0 0.0
  %324 = vmatpush1.msra.mxu0 0.0
  %325 = vmatprep.subr.mxu0 0.0
  %326 = vmatpush1.msra.mxu0 0.0
  %327 = vmatprep.subr.mxu0 0.0
  %328 = vmatpush1.msra.mxu0 0.0
  %329 = vmatprep.subr.mxu0 0.0
  %330 = vmatpush1.msra.mxu0 0.0
  %331 = vmatprep.subr.mxu0 0.0
  %332 = vmatpush1.msra.mxu0 0.0
  %333 = vmatprep.subr.mxu0 0.0
  %334 = vmatpush1.msra.mxu0 0.0
  %335 = vmatprep.subr.mxu0 0.0
  %336 = vmatpush1.msra.mxu0 0.0
  %337 = vmatprep.subr.mxu0 0.0
  %338 = vmatpush1.msra.mxu0 0.0
  %339 = vmatprep.subr.mxu0 0.0
  %340 = vmatpush1.msra.mxu0 0.0
  %341 = vmatprep.subr.mxu0 0.0
  %342 = vmatpush1.msra.mxu0 0.0
  %343 = vmatprep.subr.mxu0 0.0
  %344 = vmatpush1.msra.mxu0 0.0
  %345 = vmatprep.subr.mxu0 0.0
  %346 = vmatpush1.msra.mxu0 0.0
  %347 = vmatprep.subr.mxu0 0.0
  %348 = vmatpush1.msra.mxu0 0.0
  %349 = vmatprep.subr.mxu0 0.0
  %350 = vmatpush1.msra.mxu0 0.0
  %351 = vmatprep.subr.mxu0 0.0
  %352 = vmatpush1.msra.mxu0 0.0
  %353 = vmatprep.subr.mxu0 0.0
  %354 = vmatpush1.msra.mxu0 0.0
  %355 = vmatprep.subr.mxu0 0.0
  %356 = vmatpush1.msra.mxu0 0.0
  %357 = vmatprep.subr.mxu0 0.0
  %358 = vmatpush1.msra.mxu0 0.0
  %359 = vmatprep.mubr.f32.mxu0 0.0
  %360 = vmatmul.mubr.f32.gmra.mrb[0].mxu0 %v31
  %v361 = vpop.f32.mrb[0].mxu0
  %v362 = vadd.f32 0.0, %v361
  %v363 = vpop.f32.mrb[0].mxu0
  %364 = vmatprep.mubr.f32.mxu0 0.0
  %365 = vmatmul.mubr.f32.gmra.mrb[0].mxu0 %v34
  %v366 = vpop.f32.mrb[0].mxu0
  %v367 = vadd.f32 0.0, %v366
  %v368 = vpop.f32.mrb[0].mxu0
  %369 = vmatprep.mubr.f32.mxu0 0.0
  %370 = vmatmul.mubr.f32.gmra.mrb[0].mxu0 %v37
  %v371 = vpop.f32.mrb[0].mxu0
  %v372 = vadd.f32 0.0, %v371
  %v373 = vpop.f32.mrb[0].mxu0
  %374 = vmatprep.mubr.f32.mxu0 0.0
  %375 = vmatmul.mubr.f32.gmra.mrb[0].mxu0 %v40
  %v376 = vpop.f32.mrb[0].mxu0
  %v377 = vadd.f32 0.0, %v376
  %v378 = vpop.f32.mrb[0].mxu0
  %379 = vmatprep.mubr.f32.mxu0 0.0
  %380 = vmatmul.mubr.f32.gmra.mrb[0].mxu0 %v43
  %v381 = vpop.f32.mrb[0].mxu0
  %v382 = vadd.f32 0.0, %v381
  %v383 = vpop.f32.mrb[0].mxu0
  %384 = vmatprep.mubr.f32.mxu0 0.0
  %385 = vmatmul.mubr.f32.gmra.mrb[0].mxu0 %v46
  %v386 = vpop.f32.mrb[0].mxu0
  %v387 = vadd.f32 0.0, %v386
  %v388 = vpop.f32.mrb[0].mxu0
  %389 = vmatprep.mubr.f32.mxu0 0.0
  %390 = vmatmul.mubr.f32.gmra.mrb[0].mxu0 %v49
  %v391 = vpop.f32.mrb[0].mxu0
  %v392 = vadd.f32 0.0, %v391
  %v393 = vpop.f32.mrb[0].mxu0
  %394 = vmatprep.mubr.f32.mxu0 0.0
  %395 = vmatmul.mubr.f32.gmra.mrb[0].mxu0 %v52
  %v396 = vpop.f32.mrb[0].mxu0
  %v397 = vadd.f32 0.0, %v396
  %v398 = vpop.f32.mrb[0].mxu0
  %399 = vdwg.mxu0
  %400 = vst.msk [vmem:[#allocation4] sm:$0xff] %vm163, %v362
  %401 = vst.msk [vmem:[#allocation4 + $0x8] sm:$0xff] %vm163, %v367
  %402 = vst.msk [vmem:[#allocation4 + $0x10] sm:$0xff] %vm163, %v372
  %403 = vst.msk [vmem:[#allocation4 + $0x18] sm:$0xff] %vm163, %v377
  %404 = vst.msk [vmem:[#allocation4 + $0x20] sm:$0xff] %vm163, %v382
  %405 = vst.msk [vmem:[#allocation4 + $0x28] sm:$0xff] %vm163, %v387
  %406 = vst.msk [vmem:[#allocation4 + $0x30] sm:$0xff] %vm163, %v392
  %407 = vst.msk [vmem:[#allocation4 + $0x38] sm:$0xff] %vm163, %v397
  %s408 = scalar_lea.vmem %s1, 12
  %v409 = vld [vmem:[%s408] sm:$0xf]
  %v411 = vsel %vm54, %v409, 0
  %413 = vmatprep.subr.mxu0 0.0
  %414 = vmatpush1.msra.mxu0 %v411
  %415 = vmatprep.subr.mxu0 0.0
  %416 = vmatpush1.msra.mxu0 0.0
  %417 = vmatprep.subr.mxu0 0.0
  %418 = vmatpush1.msra.mxu0 0.0
  %419 = vmatprep.subr.mxu0 0.0
  %420 = vmatpush1.msra.mxu0 0.0
  %421 = vmatprep.subr.mxu0 0.0
  %422 = vmatpush1.msra.mxu0 0.0
  %423 = vmatprep.subr.mxu0 0.0
  %424 = vmatpush1.msra.mxu0 0.0
  %425 = vmatprep.subr.mxu0 0.0
  %426 = vmatpush1.msra.mxu0 0.0
  %427 = vmatprep.subr.mxu0 0.0
  %428 = vmatpush1.msra.mxu0 0.0
  %429 = vmatprep.subr.mxu0 0.0
  %430 = vmatpush1.msra.mxu0 0.0
  %431 = vmatprep.subr.mxu0 0.0
  %432 = vmatpush1.msra.mxu0 0.0
  %433 = vmatprep.subr.mxu0 0.0
  %434 = vmatpush1.msra.mxu0 0.0
  %435 = vmatprep.subr.mxu0 0.0
  %436 = vmatpush1.msra.mxu0 0.0
  %437 = vmatprep.subr.mxu0 0.0
  %438 = vmatpush1.msra.mxu0 0.0
  %439 = vmatprep.subr.mxu0 0.0
  %440 = vmatpush1.msra.mxu0 0.0
  %441 = vmatprep.subr.mxu0 0.0
  %442 = vmatpush1.msra.mxu0 0.0
  %443 = vmatprep.subr.mxu0 0.0
  %444 = vmatpush1.msra.mxu0 0.0
  %445 = vmatprep.subr.mxu0 0.0
  %446 = vmatpush1.msra.mxu0 0.0
  %447 = vmatprep.subr.mxu0 0.0
  %448 = vmatpush1.msra.mxu0 0.0
  %449 = vmatprep.subr.mxu0 0.0
  %450 = vmatpush1.msra.mxu0 0.0
  %451 = vmatprep.subr.mxu0 0.0
  %452 = vmatpush1.msra.mxu0 0.0
  %453 = vmatprep.subr.mxu0 0.0
  %454 = vmatpush1.msra.mxu0 0.0
  %455 = vmatprep.subr.mxu0 0.0
  %456 = vmatpush1.msra.mxu0 0.0
  %457 = vmatprep.subr.mxu0 0.0
  %458 = vmatpush1.msra.mxu0 0.0
  %459 = vmatprep.subr.mxu0 0.0
  %460 = vmatpush1.msra.mxu0 0.0
  %461 = vmatprep.subr.mxu0 0.0
  %462 = vmatpush1.msra.mxu0 0.0
  %463 = vmatprep.subr.mxu0 0.0
  %464 = vmatpush1.msra.mxu0 0.0
  %465 = vmatprep.subr.mxu0 0.0
  %466 = vmatpush1.msra.mxu0 0.0
  %467 = vmatprep.subr.mxu0 0.0
  %468 = vmatpush1.msra.mxu0 0.0
  %469 = vmatprep.subr.mxu0 0.0
  %470 = vmatpush1.msra.mxu0 0.0
  %471 = vmatprep.subr.mxu0 0.0
  %472 = vmatpush1.msra.mxu0 0.0
  %473 = vmatprep.subr.mxu0 0.0
  %474 = vmatpush1.msra.mxu0 0.0
  %475 = vmatprep.subr.mxu0 0.0
  %476 = vmatpush1.msra.mxu0 0.0
  %477 = vmatprep.mubr.f32.mxu0 0.0
  %478 = vmatmul.mubr.f32.gmra.mrb[0].mxu0 %v31
  %v479 = vpop.f32.mrb[0].mxu0
  %v480 = vadd.f32 0.0, %v479
  %v481 = vpop.f32.mrb[0].mxu0
  %482 = vmatprep.mubr.f32.mxu0 0.0
  %483 = vmatmul.mubr.f32.gmra.mrb[0].mxu0 %v34
  %v484 = vpop.f32.mrb[0].mxu0
  %v485 = vadd.f32 0.0, %v484
  %v486 = vpop.f32.mrb[0].mxu0
  %487 = vmatprep.mubr.f32.mxu0 0.0
  %488 = vmatmul.mubr.f32.gmra.mrb[0].mxu0 %v37
  %v489 = vpop.f32.mrb[0].mxu0
  %v490 = vadd.f32 0.0, %v489
  %v491 = vpop.f32.mrb[0].mxu0
  %492 = vmatprep.mubr.f32.mxu0 0.0
  %493 = vmatmul.mubr.f32.gmra.mrb[0].mxu0 %v40
  %v494 = vpop.f32.mrb[0].mxu0
  %v495 = vadd.f32 0.0, %v494
  %v496 = vpop.f32.mrb[0].mxu0
  %497 = vmatprep.mubr.f32.mxu0 0.0
  %498 = vmatmul.mubr.f32.gmra.mrb[0].mxu0 %v43
  %v499 = vpop.f32.mrb[0].mxu0
  %v500 = vadd.f32 0.0, %v499
  %v501 = vpop.f32.mrb[0].mxu0
  %502 = vmatprep.mubr.f32.mxu0 0.0
  %503 = vmatmul.mubr.f32.gmra.mrb[0].mxu0 %v46
  %v504 = vpop.f32.mrb[0].mxu0
  %v505 = vadd.f32 0.0, %v504
  %v506 = vpop.f32.mrb[0].mxu0
  %507 = vmatprep.mubr.f32.mxu0 0.0
  %508 = vmatmul.mubr.f32.gmra.mrb[0].mxu0 %v49
  %v509 = vpop.f32.mrb[0].mxu0
  %v510 = vadd.f32 0.0, %v509
  %v511 = vpop.f32.mrb[0].mxu0
  %512 = vmatprep.mubr.f32.mxu0 0.0
  %513 = vmatmul.mubr.f32.gmra.mrb[0].mxu0 %v52
  %v514 = vpop.f32.mrb[0].mxu0
  %v515 = vadd.f32 0.0, %v514
  %v516 = vpop.f32.mrb[0].mxu0
  %517 = vdwg.mxu0
  %518 = vst.msk [vmem:[#allocation5] sm:$0xff] %vm163, %v480
  %519 = vst.msk [vmem:[#allocation5 + $0x8] sm:$0xff] %vm163, %v485
  %520 = vst.msk [vmem:[#allocation5 + $0x10] sm:$0xff] %vm163, %v490
  %521 = vst.msk [vmem:[#allocation5 + $0x18] sm:$0xff] %vm163, %v495
  %522 = vst.msk [vmem:[#allocation5 + $0x20] sm:$0xff] %vm163, %v500
  %523 = vst.msk [vmem:[#allocation5 + $0x28] sm:$0xff] %vm163, %v505
  %524 = vst.msk [vmem:[#allocation5 + $0x30] sm:$0xff] %vm163, %v510
  %525 = vst.msk [vmem:[#allocation5 + $0x38] sm:$0xff] %vm163, %v515
  %v526 = vld [vmem:[%s2] sm:$0xff]
  %v527 = vld [vmem:[%s2 + $0x8] sm:$0xff]
  %v528 = vld [vmem:[%s2 + $0x10] sm:$0xff]
  %v529 = vld [vmem:[%s2 + $0x18] sm:$0xff]
  %s530 = scalar_lea.vmem %s2, 32
  %v531 = vld [vmem:[%s530] sm:$0xff]
  %v532 = vld [vmem:[%s530 + $0x8] sm:$0xff]
  %v533 = vld [vmem:[%s530 + $0x10] sm:$0xff]
  %v534 = vld [vmem:[%s530 + $0x18] sm:$0xff]
  %s535 = scalar_lea.vmem %s2, 64
  %v536 = vld [vmem:[%s535] sm:$0xff]
  %v537 = vld [vmem:[%s535 + $0x8] sm:$0xff]
  %v538 = vld [vmem:[%s535 + $0x10] sm:$0xff]
  %v539 = vld [vmem:[%s535 + $0x18] sm:$0xff]
  %s540 = scalar_lea.vmem %s2, 96
  %v541 = vld [vmem:[%s540] sm:$0xff]
  %v542 = vld [vmem:[%s540 + $0x8] sm:$0xff]
  %v543 = vld [vmem:[%s540 + $0x10] sm:$0xff]
  %v544 = vld [vmem:[%s540 + $0x18] sm:$0xff]
  %v545 = vld [vmem:[%s3] sm:$0x1]
  %s546 = scalar_lea.vmem %s3, 1
  %v547 = vld [vmem:[%s546] sm:$0x1]
  %s548 = scalar_lea.vmem %s3, 2
  %v549 = vld [vmem:[%s548] sm:$0x1]
  %s550 = scalar_lea.vmem %s3, 3
  %v551 = vld [vmem:[%s550] sm:$0x1]
  %v552 = vld [vmem:[#allocation2] sm:$0xff]
  %v554 = vsel %vm163, 0.0, 0
  %556 = vmatprep.subr.mxu0 0.0
  %557 = vmatpush1.msra.mxu0 %v526
  %558 = vmatprep.subr.mxu0 0.0
  %559 = vmatpush1.msra.mxu0 %v527
  %560 = vmatprep.subr.mxu0 0.0
  %561 = vmatpush1.msra.mxu0 %v528
  %562 = vmatprep.subr.mxu0 0.0
  %563 = vmatpush1.msra.mxu0 %v529
  %564 = vmatprep.subr.mxu0 0.0
  %565 = vmatpush1.msra.mxu0 0.0
  %566 = vmatprep.subr.mxu0 0.0
  %567 = vmatpush1.msra.mxu0 0.0
  %568 = vmatprep.subr.mxu0 0.0
  %569 = vmatpush1.msra.mxu0 0.0
  %570 = vmatprep.subr.mxu0 0.0
  %571 = vmatpush1.msra.mxu0 0.0
  %572 = vmatprep.subr.mxu0 0.0
  %573 = vmatpush1.msra.mxu0 0.0
  %574 = vmatprep.subr.mxu0 0.0
  %575 = vmatpush1.msra.mxu0 0.0
  %576 = vmatprep.subr.mxu0 0.0
  %577 = vmatpush1.msra.mxu0 0.0
  %578 = vmatprep.subr.mxu0 0.0
  %579 = vmatpush1.msra.mxu0 0.0
  %580 = vmatprep.subr.mxu0 0.0
  %581 = vmatpush1.msra.mxu0 0.0
  %582 = vmatprep.subr.mxu0 0.0
  %583 = vmatpush1.msra.mxu0 0.0
  %584 = vmatprep.subr.mxu0 0.0
  %585 = vmatpush1.msra.mxu0 0.0
  %586 = vmatprep.subr.mxu0 0.0
  %587 = vmatpush1.msra.mxu0 0.0
  %588 = vmatprep.subr.mxu0 0.0
  %589 = vmatpush1.msra.mxu0 0.0
  %590 = vmatprep.subr.mxu0 0.0
  %591 = vmatpush1.msra.mxu0 0.0
  %592 = vmatprep.subr.mxu0 0.0
  %593 = vmatpush1.msra.mxu0 0.0
  %594 = vmatprep.subr.mxu0 0.0
  %595 = vmatpush1.msra.mxu0 0.0
  %596 = vmatprep.subr.mxu0 0.0
  %597 = vmatpush1.msra.mxu0 0.0
  %598 = vmatprep.subr.mxu0 0.0
  %599 = vmatpush1.msra.mxu0 0.0
  %600 = vmatprep.subr.mxu0 0.0
  %601 = vmatpush1.msra.mxu0 0.0
  %602 = vmatprep.subr.mxu0 0.0
  %603 = vmatpush1.msra.mxu0 0.0
  %604 = vmatprep.subr.mxu0 0.0
  %605 = vmatpush1.msra.mxu0 0.0
  %606 = vmatprep.subr.mxu0 0.0
  %607 = vmatpush1.msra.mxu0 0.0
  %608 = vmatprep.subr.mxu0 0.0
  %609 = vmatpush1.msra.mxu0 0.0
  %610 = vmatprep.subr.mxu0 0.0
  %611 = vmatpush1.msra.mxu0 0.0
  %612 = vmatprep.subr.mxu0 0.0
  %613 = vmatpush1.msra.mxu0 0.0
  %614 = vmatprep.subr.mxu0 0.0
  %615 = vmatpush1.msra.mxu0 0.0
  %616 = vmatprep.subr.mxu0 0.0
  %617 = vmatpush1.msra.mxu0 0.0
  %618 = vmatprep.subr.mxu0 0.0
  %619 = vmatpush1.msra.mxu0 0.0
  %620 = vmatprep.mubr.f32.mxu0 0.0
  %621 = vmatmul.mubr.f32.gmra.mrb[0].mxu0 %v554
  %v622 = vpop.f32.mrb[0].mxu0
  %v623 = vadd.f32 0.0, %v622
  %v624 = vpop.f32.mrb[0].mxu0
  %625 = vdwg.mxu0
  %v626 = vadd.f32 %v552, %v623
  %v628 = vlaneseq
  %v629 = vshrl.u32 %v628, 7
  %v630 = vsub.s32 0, %v629
  %v631 = vrot.slane %v545, %v630
  %v633 = vadd.f32 %v626, %v631
  %v634 = vld [vmem:[#allocation3] sm:$0xff]
  %635 = vmatprep.subr.mxu0 0.0
  %636 = vmatpush1.msra.mxu0 %v531
  %637 = vmatprep.subr.mxu0 0.0
  %638 = vmatpush1.msra.mxu0 %v532
  %639 = vmatprep.subr.mxu0 0.0
  %640 = vmatpush1.msra.mxu0 %v533
  %641 = vmatprep.subr.mxu0 0.0
  %642 = vmatpush1.msra.mxu0 %v534
  %643 = vmatprep.subr.mxu0 0.0
  %644 = vmatpush1.msra.mxu0 0.0
  %645 = vmatprep.subr.mxu0 0.0
  %646 = vmatpush1.msra.mxu0 0.0
  %647 = vmatprep.subr.mxu0 0.0
  %648 = vmatpush1.msra.mxu0 0.0
  %649 = vmatprep.subr.mxu0 0.0
  %650 = vmatpush1.msra.mxu0 0.0
  %651 = vmatprep.subr.mxu0 0.0
  %652 = vmatpush1.msra.mxu0 0.0
  %653 = vmatprep.subr.mxu0 0.0
  %654 = vmatpush1.msra.mxu0 0.0
  %655 = vmatprep.subr.mxu0 0.0
  %656 = vmatpush1.msra.mxu0 0.0
  %657 = vmatprep.subr.mxu0 0.0
  %658 = vmatpush1.msra.mxu0 0.0
  %659 = vmatprep.subr.mxu0 0.0
  %660 = vmatpush1.msra.mxu0 0.0
  %661 = vmatprep.subr.mxu0 0.0
  %662 = vmatpush1.msra.mxu0 0.0
  %663 = vmatprep.subr.mxu0 0.0
  %664 = vmatpush1.msra.mxu0 0.0
  %665 = vmatprep.subr.mxu0 0.0
  %666 = vmatpush1.msra.mxu0 0.0
  %667 = vmatprep.subr.mxu0 0.0
  %668 = vmatpush1.msra.mxu0 0.0
  %669 = vmatprep.subr.mxu0 0.0
  %670 = vmatpush1.msra.mxu0 0.0
  %671 = vmatprep.subr.mxu0 0.0
  %672 = vmatpush1.msra.mxu0 0.0
  %673 = vmatprep.subr.mxu0 0.0
  %674 = vmatpush1.msra.mxu0 0.0
  %675 = vmatprep.subr.mxu0 0.0
  %676 = vmatpush1.msra.mxu0 0.0
  %677 = vmatprep.subr.mxu0 0.0
  %678 = vmatpush1.msra.mxu0 0.0
  %679 = vmatprep.subr.mxu0 0.0
  %680 = vmatpush1.msra.mxu0 0.0
  %681 = vmatprep.subr.mxu0 0.0
  %682 = vmatpush1.msra.mxu0 0.0
  %683 = vmatprep.subr.mxu0 0.0
  %684 = vmatpush1.msra.mxu0 0.0
  %685 = vmatprep.subr.mxu0 0.0
  %686 = vmatpush1.msra.mxu0 0.0
  %687 = vmatprep.subr.mxu0 0.0
  %688 = vmatpush1.msra.mxu0 0.0
  %689 = vmatprep.subr.mxu0 0.0
  %690 = vmatpush1.msra.mxu0 0.0
  %691 = vmatprep.subr.mxu0 0.0
  %692 = vmatpush1.msra.mxu0 0.0
  %693 = vmatprep.subr.mxu0 0.0
  %694 = vmatpush1.msra.mxu0 0.0
  %695 = vmatprep.subr.mxu0 0.0
  %696 = vmatpush1.msra.mxu0 0.0
  %697 = vmatprep.subr.mxu0 0.0
  %698 = vmatpush1.msra.mxu0 0.0
  %699 = vmatprep.mubr.f32.mxu0 0.0
  %700 = vmatmul.mubr.f32.gmra.mrb[0].mxu0 %v554
  %v701 = vpop.f32.mrb[0].mxu0
  %v702 = vadd.f32 0.0, %v701
  %v703 = vpop.f32.mrb[0].mxu0
  %704 = vdwg.mxu0
  %v705 = vadd.f32 %v634, %v702
  %v707 = vlaneseq
  %v708 = vshrl.u32 %v707, 7
  %v709 = vsub.s32 0, %v708
  %v710 = vrot.slane %v547, %v709
  %v712 = vadd.f32 %v705, %v710
  %v713 = vld [vmem:[#allocation4] sm:$0xff]
  %714 = vmatprep.subr.mxu0 0.0
  %715 = vmatpush1.msra.mxu0 %v536
  %716 = vmatprep.subr.mxu0 0.0
  %717 = vmatpush1.msra.mxu0 %v537
  %718 = vmatprep.subr.mxu0 0.0
  %719 = vmatpush1.msra.mxu0 %v538
  %720 = vmatprep.subr.mxu0 0.0
  %721 = vmatpush1.msra.mxu0 %v539
  %722 = vmatprep.subr.mxu0 0.0
  %723 = vmatpush1.msra.mxu0 0.0
  %724 = vmatprep.subr.mxu0 0.0
  %725 = vmatpush1.msra.mxu0 0.0
  %726 = vmatprep.subr.mxu0 0.0
  %727 = vmatpush1.msra.mxu0 0.0
  %728 = vmatprep.subr.mxu0 0.0
  %729 = vmatpush1.msra.mxu0 0.0
  %730 = vmatprep.subr.mxu0 0.0
  %731 = vmatpush1.msra.mxu0 0.0
  %732 = vmatprep.subr.mxu0 0.0
  %733 = vmatpush1.msra.mxu0 0.0
  %734 = vmatprep.subr.mxu0 0.0
  %735 = vmatpush1.msra.mxu0 0.0
  %736 = vmatprep.subr.mxu0 0.0
  %737 = vmatpush1.msra.mxu0 0.0
  %738 = vmatprep.subr.mxu0 0.0
  %739 = vmatpush1.msra.mxu0 0.0
  %740 = vmatprep.subr.mxu0 0.0
  %741 = vmatpush1.msra.mxu0 0.0
  %742 = vmatprep.subr.mxu0 0.0
  %743 = vmatpush1.msra.mxu0 0.0
  %744 = vmatprep.subr.mxu0 0.0
  %745 = vmatpush1.msra.mxu0 0.0
  %746 = vmatprep.subr.mxu0 0.0
  %747 = vmatpush1.msra.mxu0 0.0
  %748 = vmatprep.subr.mxu0 0.0
  %749 = vmatpush1.msra.mxu0 0.0
  %750 = vmatprep.subr.mxu0 0.0
  %751 = vmatpush1.msra.mxu0 0.0
  %752 = vmatprep.subr.mxu0 0.0
  %753 = vmatpush1.msra.mxu0 0.0
  %754 = vmatprep.subr.mxu0 0.0
  %755 = vmatpush1.msra.mxu0 0.0
  %756 = vmatprep.subr.mxu0 0.0
  %757 = vmatpush1.msra.mxu0 0.0
  %758 = vmatprep.subr.mxu0 0.0
  %759 = vmatpush1.msra.mxu0 0.0
  %760 = vmatprep.subr.mxu0 0.0
  %761 = vmatpush1.msra.mxu0 0.0
  %762 = vmatprep.subr.mxu0 0.0
  %763 = vmatpush1.msra.mxu0 0.0
  %764 = vmatprep.subr.mxu0 0.0
  %765 = vmatpush1.msra.mxu0 0.0
  %766 = vmatprep.subr.mxu0 0.0
  %767 = vmatpush1.msra.mxu0 0.0
  %768 = vmatprep.subr.mxu0 0.0
  %769 = vmatpush1.msra.mxu0 0.0
  %770 = vmatprep.subr.mxu0 0.0
  %771 = vmatpush1.msra.mxu0 0.0
  %772 = vmatprep.subr.mxu0 0.0
  %773 = vmatpush1.msra.mxu0 0.0
  %774 = vmatprep.subr.mxu0 0.0
  %775 = vmatpush1.msra.mxu0 0.0
  %776 = vmatprep.subr.mxu0 0.0
  %777 = vmatpush1.msra.mxu0 0.0
  %778 = vmatprep.mubr.f32.mxu0 0.0
  %779 = vmatmul.mubr.f32.gmra.mrb[0].mxu0 %v554
  %v780 = vpop.f32.mrb[0].mxu0
  %v781 = vadd.f32 0.0, %v780
  %v782 = vpop.f32.mrb[0].mxu0
  %783 = vdwg.mxu0
  %v784 = vadd.f32 %v713, %v781
  %v786 = vlaneseq
  %v787 = vshrl.u32 %v786, 7
  %v788 = vsub.s32 0, %v787
  %v789 = vrot.slane %v549, %v788
  %v791 = vadd.f32 %v784, %v789
  %v792 = vld [vmem:[#allocation5] sm:$0xff]
  %793 = vmatprep.subr.mxu0 0.0
  %794 = vmatpush1.msra.mxu0 %v541
  %795 = vmatprep.subr.mxu0 0.0
  %796 = vmatpush1.msra.mxu0 %v542
  %797 = vmatprep.subr.mxu0 0.0
  %798 = vmatpush1.msra.mxu0 %v543
  %799 = vmatprep.subr.mxu0 0.0
  %800 = vmatpush1.msra.mxu0 %v544
  %801 = vmatprep.subr.mxu0 0.0
  %802 = vmatpush1.msra.mxu0 0.0
  %803 = vmatprep.subr.mxu0 0.0
  %804 = vmatpush1.msra.mxu0 0.0
  %805 = vmatprep.subr.mxu0 0.0
  %806 = vmatpush1.msra.mxu0 0.0
  %807 = vmatprep.subr.mxu0 0.0
  %808 = vmatpush1.msra.mxu0 0.0
  %809 = vmatprep.subr.mxu0 0.0
  %810 = vmatpush1.msra.mxu0 0.0
  %811 = vmatprep.subr.mxu0 0.0
  %812 = vmatpush1.msra.mxu0 0.0
  %813 = vmatprep.subr.mxu0 0.0
  %814 = vmatpush1.msra.mxu0 0.0
  %815 = vmatprep.subr.mxu0 0.0
  %816 = vmatpush1.msra.mxu0 0.0
  %817 = vmatprep.subr.mxu0 0.0
  %818 = vmatpush1.msra.mxu0 0.0
  %819 = vmatprep.subr.mxu0 0.0
  %820 = vmatpush1.msra.mxu0 0.0
  %821 = vmatprep.subr.mxu0 0.0
  %822 = vmatpush1.msra.mxu0 0.0
  %823 = vmatprep.subr.mxu0 0.0
  %824 = vmatpush1.msra.mxu0 0.0
  %825 = vmatprep.subr.mxu0 0.0
  %826 = vmatpush1.msra.mxu0 0.0
  %827 = vmatprep.subr.mxu0 0.0
  %828 = vmatpush1.msra.mxu0 0.0
  %829 = vmatprep.subr.mxu0 0.0
  %830 = vmatpush1.msra.mxu0 0.0
  %831 = vmatprep.subr.mxu0 0.0
  %832 = vmatpush1.msra.mxu0 0.0
  %833 = vmatprep.subr.mxu0 0.0
  %834 = vmatpush1.msra.mxu0 0.0
  %835 = vmatprep.subr.mxu0 0.0
  %836 = vmatpush1.msra.mxu0 0.0
  %837 = vmatprep.subr.mxu0 0.0
  %838 = vmatpush1.msra.mxu0 0.0
  %839 = vmatprep.subr.mxu0 0.0
  %840 = vmatpush1.msra.mxu0 0.0
  %841 = vmatprep.subr.mxu0 0.0
  %842 = vmatpush1.msra.mxu0 0.0
  %843 = vmatprep.subr.mxu0 0.0
  %844 = vmatpush1.msra.mxu0 0.0
  %845 = vmatprep.subr.mxu0 0.0
  %846 = vmatpush1.msra.mxu0 0.0
  %847 = vmatprep.subr.mxu0 0.0
  %848 = vmatpush1.msra.mxu0 0.0
  %849 = vmatprep.subr.mxu0 0.0
  %850 = vmatpush1.msra.mxu0 0.0
  %851 = vmatprep.subr.mxu0 0.0
  %852 = vmatpush1.msra.mxu0 0.0
  %853 = vmatprep.subr.mxu0 0.0
  %854 = vmatpush1.msra.mxu0 0.0
  %855 = vmatprep.subr.mxu0 0.0
  %856 = vmatpush1.msra.mxu0 0.0
  %857 = vmatprep.mubr.f32.mxu0 0.0
  %858 = vmatmul.mubr.f32.gmra.mrb[0].mxu0 %v554
  %v859 = vpop.f32.mrb[0].mxu0
  %v860 = vadd.f32 0.0, %v859
  %v861 = vpop.f32.mrb[0].mxu0
  %862 = vdwg.mxu0
  %v863 = vadd.f32 %v792, %v860
  %v865 = vlaneseq
  %v866 = vshrl.u32 %v865, 7
  %v867 = vsub.s32 0, %v866
  %v868 = vrot.slane %v551, %v867
  %v870 = vadd.f32 %v863, %v868
  %v871 = vxor.u32 %v633, 2147483648
  %v872 = vmul.f32 %v871, 1.442695
  %v873 = vpow.pop %v872
  %v874 = vadd.f32 %v873, 1.0
  %v875 = vrcp.pop %v874
  %v876 = vmul.f32 1.0, %v875
  %v877 = vxor.u32 %v712, 2147483648
  %v878 = vmul.f32 %v877, 1.442695
  %v879 = vpow.pop %v878
  %v880 = vadd.f32 %v879, 1.0
  %v881 = vrcp.pop %v880
  %v882 = vmul.f32 1.0, %v881
  %v883 = vtanh.pop %v791
  %v884 = vxor.u32 %v870, 2147483648
  %v885 = vmul.f32 %v884, 1.442695
  %v886 = vpow.pop %v885
  %v887 = vadd.f32 %v886, 1.0
  %v888 = vrcp.pop %v887
  %v889 = vmul.f32 1.0, %v888
  %v890 = vmul.f32 %v882, 0.0
  %v891 = vmul.f32 %v876, %v883
  %v892 = vadd.f32 %v890, %v891
  %v893 = vtanh.pop %v892
  %v894 = vmul.f32 %v889, %v893
  %895 = vst.msk [vmem:[%s4] sm:$0xff] %vm163, %v894
  %s896 = scalar_lea.vmem [#allocation2], 8
  %v897 = vld [vmem:[%s896] sm:$0xff]
  %v899 = vsel %vm163, %v894, 0
  %901 = vmatprep.subr.mxu0 0.0
  %902 = vmatpush1.msra.mxu0 %v526
  %903 = vmatprep.subr.mxu0 0.0
  %904 = vmatpush1.msra.mxu0 %v527
  %905 = vmatprep.subr.mxu0 0.0
  %906 = vmatpush1.msra.mxu0 %v528
  %907 = vmatprep.subr.mxu0 0.0
  %908 = vmatpush1.msra.mxu0 %v529
  %909 = vmatprep.subr.mxu0 0.0
  %910 = vmatpush1.msra.mxu0 0.0
  %911 = vmatprep.subr.mxu0 0.0
  %912 = vmatpush1.msra.mxu0 0.0
  %913 = vmatprep.subr.mxu0 0.0
  %914 = vmatpush1.msra.mxu0 0.0
  %915 = vmatprep.subr.mxu0 0.0
  %916 = vmatpush1.msra.mxu0 0.0
  %917 = vmatprep.subr.mxu0 0.0
  %918 = vmatpush1.msra.mxu0 0.0
  %919 = vmatprep.subr.mxu0 0.0
  %920 = vmatpush1.msra.mxu0 0.0
  %921 = vmatprep.subr.mxu0 0.0
  %922 = vmatpush1.msra.mxu0 0.0
  %923 = vmatprep.subr.mxu0 0.0
  %924 = vmatpush1.msra.mxu0 0.0
  %925 = vmatprep.subr.mxu0 0.0
  %926 = vmatpush1.msra.mxu0 0.0
  %927 = vmatprep.subr.mxu0 0.0
  %928 = vmatpush1.msra.mxu0 0.0
  %929 = vmatprep.subr.mxu0 0.0
  %930 = vmatpush1.msra.mxu0 0.0
  %931 = vmatprep.subr.mxu0 0.0
  %932 = vmatpush1.msra.mxu0 0.0
  %933 = vmatprep.subr.mxu0 0.0
  %934 = vmatpush1.msra.mxu0 0.0
  %935 = vmatprep.subr.mxu0 0.0
  %936 = vmatpush1.msra.mxu0 0.0
  %937 = vmatprep.subr.mxu0 0.0
  %938 = vmatpush1.msra.mxu0 0.0
  %939 = vmatprep.subr.mxu0 0.0
  %940 = vmatpush1.msra.mxu0 0.0
  %941 = vmatprep.subr.mxu0 0.0
  %942 = vmatpush1.msra.mxu0 0.0
  %943 = vmatprep.subr.mxu0 0.0
  %944 = vmatpush1.msra.mxu0 0.0
  %945 = vmatprep.subr.mxu0 0.0
  %946 = vmatpush1.msra.mxu0 0.0
  %947 = vmatprep.subr.mxu0 0.0
  %948 = vmatpush1.msra.mxu0 0.0
  %949 = vmatprep.subr.mxu0 0.0
  %950 = vmatpush1.msra.mxu0 0.0
  %951 = vmatprep.subr.mxu0 0.0
  %952 = vmatpush1.msra.mxu0 0.0
  %953 = vmatprep.subr.mxu0 0.0
  %954 = vmatpush1.msra.mxu0 0.0
  %955 = vmatprep.subr.mxu0 0.0
  %956 = vmatpush1.msra.mxu0 0.0
  %957 = vmatprep.subr.mxu0 0.0
  %958 = vmatpush1.msra.mxu0 0.0
  %959 = vmatprep.subr.mxu0 0.0
  %960 = vmatpush1.msra.mxu0 0.0
  %961 = vmatprep.subr.mxu0 0.0
  %962 = vmatpush1.msra.mxu0 0.0
  %963 = vmatprep.subr.mxu0 0.0
  %964 = vmatpush1.msra.mxu0 0.0
  %965 = vmatprep.mubr.f32.mxu0 0.0
  %966 = vmatmul.mubr.f32.gmra.mrb[0].mxu0 %v899
  %v967 = vpop.f32.mrb[0].mxu0
  %v968 = vadd.f32 0.0, %v967
  %v969 = vpop.f32.mrb[0].mxu0
  %970 = vdwg.mxu0
  %v971 = vadd.f32 %v897, %v968
  %v972 = vadd.f32 %v971, %v631
  %s973 = scalar_lea.vmem [#allocation3], 8
  %v974 = vld [vmem:[%s973] sm:$0xff]
  %975 = vmatprep.subr.mxu0 0.0
  %976 = vmatpush1.msra.mxu0 %v531
  %977 = vmatprep.subr.mxu0 0.0
  %978 = vmatpush1.msra.mxu0 %v532
  %979 = vmatprep.subr.mxu0 0.0
  %980 = vmatpush1.msra.mxu0 %v533
  %981 = vmatprep.subr.mxu0 0.0
  %982 = vmatpush1.msra.mxu0 %v534
  %983 = vmatprep.subr.mxu0 0.0
  %984 = vmatpush1.msra.mxu0 0.0
  %985 = vmatprep.subr.mxu0 0.0
  %986 = vmatpush1.msra.mxu0 0.0
  %987 = vmatprep.subr.mxu0 0.0
  %988 = vmatpush1.msra.mxu0 0.0
  %989 = vmatprep.subr.mxu0 0.0
  %990 = vmatpush1.msra.mxu0 0.0
  %991 = vmatprep.subr.mxu0 0.0
  %992 = vmatpush1.msra.mxu0 0.0
  %993 = vmatprep.subr.mxu0 0.0
  %994 = vmatpush1.msra.mxu0 0.0
  %995 = vmatprep.subr.mxu0 0.0
  %996 = vmatpush1.msra.mxu0 0.0
  %997 = vmatprep.subr.mxu0 0.0
  %998 = vmatpush1.msra.mxu0 0.0
  %999 = vmatprep.subr.mxu0 0.0
  %1000 = vmatpush1.msra.mxu0 0.0
  %1001 = vmatprep.subr.mxu0 0.0
  %1002 = vmatpush1.msra.mxu0 0.0
  %1003 = vmatprep.subr.mxu0 0.0
  %1004 = vmatpush1.msra.mxu0 0.0
  %1005 = vmatprep.subr.mxu0 0.0
  %1006 = vmatpush1.msra.mxu0 0.0
  %1007 = vmatprep.subr.mxu0 0.0
  %1008 = vmatpush1.msra.mxu0 0.0
  %1009 = vmatprep.subr.mxu0 0.0
  %1010 = vmatpush1.msra.mxu0 0.0
  %1011 = vmatprep.subr.mxu0 0.0
  %1012 = vmatpush1.msra.mxu0 0.0
  %1013 = vmatprep.subr.mxu0 0.0
  %1014 = vmatpush1.msra.mxu0 0.0
  %1015 = vmatprep.subr.mxu0 0.0
  %1016 = vmatpush1.msra.mxu0 0.0
  %1017 = vmatprep.subr.mxu0 0.0
  %1018 = vmatpush1.msra.mxu0 0.0
  %1019 = vmatprep.subr.mxu0 0.0
  %1020 = vmatpush1.msra.mxu0 0.0
  %1021 = vmatprep.subr.mxu0 0.0
  %1022 = vmatpush1.msra.mxu0 0.0
  %1023 = vmatprep.subr.mxu0 0.0
  %1024 = vmatpush1.msra.mxu0 0.0
  %1025 = vmatprep.subr.mxu0 0.0
  %1026 = vmatpush1.msra.mxu0 0.0
  %1027 = vmatprep.subr.mxu0 0.0
  %1028 = vmatpush1.msra.mxu0 0.0
  %1029 = vmatprep.subr.mxu0 0.0
  %1030 = vmatpush1.msra.mxu0 0.0
  %1031 = vmatprep.subr.mxu0 0.0
  %1032 = vmatpush1.msra.mxu0 0.0
  %1033 = vmatprep.subr.mxu0 0.0
  %1034 = vmatpush1.msra.mxu0 0.0
  %1035 = vmatprep.subr.mxu0 0.0
  %1036 = vmatpush1.msra.mxu0 0.0
  %1037 = vmatprep.subr.mxu0 0.0
  %1038 = vmatpush1.msra.mxu0 0.0
  %1039 = vmatprep.mubr.f32.mxu0 0.0
  %1040 = vmatmul.mubr.f32.gmra.mrb[0].mxu0 %v899
  %v1041 = vpop.f32.mrb[0].mxu0
  %v1042 = vadd.f32 0.0, %v1041
  %v1043 = vpop.f32.mrb[0].mxu0
  %1044 = vdwg.mxu0
  %v1045 = vadd.f32 %v974, %v1042
  %v1046 = vadd.f32 %v1045, %v710
  %s1047 = scalar_lea.vmem [#allocation4], 8
  %v1048 = vld [vmem:[%s1047] sm:$0xff]
  %1049 = vmatprep.subr.mxu0 0.0
  %1050 = vmatpush1.msra.mxu0 %v536
  %1051 = vmatprep.subr.mxu0 0.0
  %1052 = vmatpush1.msra.mxu0 %v537
  %1053 = vmatprep.subr.mxu0 0.0
  %1054 = vmatpush1.msra.mxu0 %v538
  %1055 = vmatprep.subr.mxu0 0.0
  %1056 = vmatpush1.msra.mxu0 %v539
  %1057 = vmatprep.subr.mxu0 0.0
  %1058 = vmatpush1.msra.mxu0 0.0
  %1059 = vmatprep.subr.mxu0 0.0
  %1060 = vmatpush1.msra.mxu0 0.0
  %1061 = vmatprep.subr.mxu0 0.0
  %1062 = vmatpush1.msra.mxu0 0.0
  %1063 = vmatprep.subr.mxu0 0.0
  %1064 = vmatpush1.msra.mxu0 0.0
  %1065 = vmatprep.subr.mxu0 0.0
  %1066 = vmatpush1.msra.mxu0 0.0
  %1067 = vmatprep.subr.mxu0 0.0
  %1068 = vmatpush1.msra.mxu0 0.0
  %1069 = vmatprep.subr.mxu0 0.0
  %1070 = vmatpush1.msra.mxu0 0.0
  %1071 = vmatprep.subr.mxu0 0.0
  %1072 = vmatpush1.msra.mxu0 0.0
  %1073 = vmatprep.subr.mxu0 0.0
  %1074 = vmatpush1.msra.mxu0 0.0
  %1075 = vmatprep.subr.mxu0 0.0
  %1076 = vmatpush1.msra.mxu0 0.0
  %1077 = vmatprep.subr.mxu0 0.0
  %1078 = vmatpush1.msra.mxu0 0.0
  %1079 = vmatprep.subr.mxu0 0.0
  %1080 = vmatpush1.msra.mxu0 0.0
  %1081 = vmatprep.subr.mxu0 0.0
  %1082 = vmatpush1.msra.mxu0 0.0
  %1083 = vmatprep.subr.mxu0 0.0
  %1084 = vmatpush1.msra.mxu0 0.0
  %1085 = vmatprep.subr.mxu0 0.0
  %1086 = vmatpush1.msra.mxu0 0.0
  %1087 = vmatprep.subr.mxu0 0.0
  %1088 = vmatpush1.msra.mxu0 0.0
  %1089 = vmatprep.subr.mxu0 0.0
  %1090 = vmatpush1.msra.mxu0 0.0
  %1091 = vmatprep.subr.mxu0 0.0
  %1092 = vmatpush1.msra.mxu0 0.0
  %1093 = vmatprep.subr.mxu0 0.0
  %1094 = vmatpush1.msra.mxu0 0.0
  %1095 = vmatprep.subr.mxu0 0.0
  %1096 = vmatpush1.msra.mxu0 0.0
  %1097 = vmatprep.subr.mxu0 0.0
  %1098 = vmatpush1.msra.mxu0 0.0
  %1099 = vmatprep.subr.mxu0 0.0
  %1100 = vmatpush1.msra.mxu0 0.0
  %1101 = vmatprep.subr.mxu0 0.0
  %1102 = vmatpush1.msra.mxu0 0.0
  %1103 = vmatprep.subr.mxu0 0.0
  %1104 = vmatpush1.msra.mxu0 0.0
  %1105 = vmatprep.subr.mxu0 0.0
  %1106 = vmatpush1.msra.mxu0 0.0
  %1107 = vmatprep.subr.mxu0 0.0
  %1108 = vmatpush1.msra.mxu0 0.0
  %1109 = vmatprep.subr.mxu0 0.0
  %1110 = vmatpush1.msra.mxu0 0.0
  %1111 = vmatprep.subr.mxu0 0.0
  %1112 = vmatpush1.msra.mxu0 0.0
  %1113 = vmatprep.mubr.f32.mxu0 0.0
  %1114 = vmatmul.mubr.f32.gmra.mrb[0].mxu0 %v899
  %v1115 = vpop.f32.mrb[0].mxu0
  %v1116 = vadd.f32 0.0, %v1115
  %v1117 = vpop.f32.mrb[0].mxu0
  %1118 = vdwg.mxu0
  %v1119 = vadd.f32 %v1048, %v1116
  %v1120 = vadd.f32 %v1119, %v789
  %s1121 = scalar_lea.vmem [#allocation5], 8
  %v1122 = vld [vmem:[%s1121] sm:$0xff]
  %1123 = vmatprep.subr.mxu0 0.0
  %1124 = vmatpush1.msra.mxu0 %v541
  %1125 = vmatprep.subr.mxu0 0.0
  %1126 = vmatpush1.msra.mxu0 %v542
  %1127 = vmatprep.subr.mxu0 0.0
  %1128 = vmatpush1.msra.mxu0 %v543
  %1129 = vmatprep.subr.mxu0 0.0
  %1130 = vmatpush1.msra.mxu0 %v544
  %1131 = vmatprep.subr.mxu0 0.0
  %1132 = vmatpush1.msra.mxu0 0.0
  %1133 = vmatprep.subr.mxu0 0.0
  %1134 = vmatpush1.msra.mxu0 0.0
  %1135 = vmatprep.subr.mxu0 0.0
  %1136 = vmatpush1.msra.mxu0 0.0
  %1137 = vmatprep.subr.mxu0 0.0
  %1138 = vmatpush1.msra.mxu0 0.0
  %1139 = vmatprep.subr.mxu0 0.0
  %1140 = vmatpush1.msra.mxu0 0.0
  %1141 = vmatprep.subr.mxu0 0.0
  %1142 = vmatpush1.msra.mxu0 0.0
  %1143 = vmatprep.subr.mxu0 0.0
  %1144 = vmatpush1.msra.mxu0 0.0
  %1145 = vmatprep.subr.mxu0 0.0
  %1146 = vmatpush1.msra.mxu0 0.0
  %1147 = vmatprep.subr.mxu0 0.0
  %1148 = vmatpush1.msra.mxu0 0.0
  %1149 = vmatprep.subr.mxu0 0.0
  %1150 = vmatpush1.msra.mxu0 0.0
  %1151 = vmatprep.subr.mxu0 0.0
  %1152 = vmatpush1.msra.mxu0 0.0
  %1153 = vmatprep.subr.mxu0 0.0
  %1154 = vmatpush1.msra.mxu0 0.0
  %1155 = vmatprep.subr.mxu0 0.0
  %1156 = vmatpush1.msra.mxu0 0.0
  %1157 = vmatprep.subr.mxu0 0.0
  %1158 = vmatpush1.msra.mxu0 0.0
  %1159 = vmatprep.subr.mxu0 0.0
  %1160 = vmatpush1.msra.mxu0 0.0
  %1161 = vmatprep.subr.mxu0 0.0
  %1162 = vmatpush1.msra.mxu0 0.0
  %1163 = vmatprep.subr.mxu0 0.0
  %1164 = vmatpush1.msra.mxu0 0.0
  %1165 = vmatprep.subr.mxu0 0.0
  %1166 = vmatpush1.msra.mxu0 0.0
  %1167 = vmatprep.subr.mxu0 0.0
  %1168 = vmatpush1.msra.mxu0 0.0
  %1169 = vmatprep.subr.mxu0 0.0
  %1170 = vmatpush1.msra.mxu0 0.0
  %1171 = vmatprep.subr.mxu0 0.0
  %1172 = vmatpush1.msra.mxu0 0.0
  %1173 = vmatprep.subr.mxu0 0.0
  %1174 = vmatpush1.msra.mxu0 0.0
  %1175 = vmatprep.subr.mxu0 0.0
  %1176 = vmatpush1.msra.mxu0 0.0
  %1177 = vmatprep.subr.mxu0 0.0
  %1178 = vmatpush1.msra.mxu0 0.0
  %1179 = vmatprep.subr.mxu0 0.0
  %1180 = vmatpush1.msra.mxu0 0.0
  %1181 = vmatprep.subr.mxu0 0.0
  %1182 = vmatpush1.msra.mxu0 0.0
  %1183 = vmatprep.subr.mxu0 0.0
  %1184 = vmatpush1.msra.mxu0 0.0
  %1185 = vmatprep.subr.mxu0 0.0
  %1186 = vmatpush1.msra.mxu0 0.0
  %1187 = vmatprep.mubr.f32.mxu0 0.0
  %1188 = vmatmul.mubr.f32.gmra.mrb[0].mxu0 %v899
  %v1189 = vpop.f32.mrb[0].mxu0
  %v1190 = vadd.f32 0.0, %v1189
  %v1191 = vpop.f32.mrb[0].mxu0
  %1192 = vdwg.mxu0
  %v1193 = vadd.f32 %v1122, %v1190
  %v1194 = vadd.f32 %v1193, %v868
  %v1195 = vxor.u32 %v972, 2147483648
  %v1196 = vmul.f32 %v1195, 1.442695
  %v1197 = vpow.pop %v1196
  %v1198 = vadd.f32 %v1197, 1.0
  %v1199 = vrcp.pop %v1198
  %v1200 = vmul.f32 1.0, %v1199
  %v1201 = vxor.u32 %v1046, 2147483648
  %v1202 = vmul.f32 %v1201, 1.442695
  %v1203 = vpow.pop %v1202
  %v1204 = vadd.f32 %v1203, 1.0
  %v1205 = vrcp.pop %v1204
  %v1206 = vmul.f32 1.0, %v1205
  %v1207 = vtanh.pop %v1120
  %v1208 = vxor.u32 %v1194, 2147483648
  %v1209 = vmul.f32 %v1208, 1.442695
  %v1210 = vpow.pop %v1209
  %v1211 = vadd.f32 %v1210, 1.0
  %v1212 = vrcp.pop %v1211
  %v1213 = vmul.f32 1.0, %v1212
  %v1214 = vmul.f32 %v1206, %v892
  %v1215 = vmul.f32 %v1200, %v1207
  %v1216 = vadd.f32 %v1214, %v1215
  %v1217 = vtanh.pop %v1216
  %v1218 = vmul.f32 %v1213, %v1217
  %s1219 = scalar_lea.vmem %s4, 8
  %1220 = vst.msk [vmem:[%s1219] sm:$0xff] %vm163, %v1218
  %s1221 = scalar_lea.vmem [#allocation2], 16
  %v1222 = vld [vmem:[%s1221] sm:$0xff]
  %v1224 = vsel %vm163, %v1218, 0
  %1226 = vmatprep.subr.mxu0 0.0
  %1227 = vmatpush1.msra.mxu0 %v526
  %1228 = vmatprep.subr.mxu0 0.0
  %1229 = vmatpush1.msra.mxu0 %v527
  %1230 = vmatprep.subr.mxu0 0.0
  %1231 = vmatpush1.msra.mxu0 %v528
  %1232 = vmatprep.subr.mxu0 0.0
  %1233 = vmatpush1.msra.mxu0 %v529
  %1234 = vmatprep.subr.mxu0 0.0
  %1235 = vmatpush1.msra.mxu0 0.0
  %1236 = vmatprep.subr.mxu0 0.0
  %1237 = vmatpush1.msra.mxu0 0.0
  %1238 = vmatprep.subr.mxu0 0.0
  %1239 = vmatpush1.msra.mxu0 0.0
  %1240 = vmatprep.subr.mxu0 0.0
  %1241 = vmatpush1.msra.mxu0 0.0
  %1242 = vmatprep.subr.mxu0 0.0
  %1243 = vmatpush1.msra.mxu0 0.0
  %1244 = vmatprep.subr.mxu0 0.0
  %1245 = vmatpush1.msra.mxu0 0.0
  %1246 = vmatprep.subr.mxu0 0.0
  %1247 = vmatpush1.msra.mxu0 0.0
  %1248 = vmatprep.subr.mxu0 0.0
  %1249 = vmatpush1.msra.mxu0 0.0
  %1250 = vmatprep.subr.mxu0 0.0
  %1251 = vmatpush1.msra.mxu0 0.0
  %1252 = vmatprep.subr.mxu0 0.0
  %1253 = vmatpush1.msra.mxu0 0.0
  %1254 = vmatprep.subr.mxu0 0.0
  %1255 = vmatpush1.msra.mxu0 0.0
  %1256 = vmatprep.subr.mxu0 0.0
  %1257 = vmatpush1.msra.mxu0 0.0
  %1258 = vmatprep.subr.mxu0 0.0
  %1259 = vmatpush1.msra.mxu0 0.0
  %1260 = vmatprep.subr.mxu0 0.0
  %1261 = vmatpush1.msra.mxu0 0.0
  %1262 = vmatprep.subr.mxu0 0.0
  %1263 = vmatpush1.msra.mxu0 0.0
  %1264 = vmatprep.subr.mxu0 0.0
  %1265 = vmatpush1.msra.mxu0 0.0
  %1266 = vmatprep.subr.mxu0 0.0
  %1267 = vmatpush1.msra.mxu0 0.0
  %1268 = vmatprep.subr.mxu0 0.0
  %1269 = vmatpush1.msra.mxu0 0.0
  %1270 = vmatprep.subr.mxu0 0.0
  %1271 = vmatpush1.msra.mxu0 0.0
  %1272 = vmatprep.subr.mxu0 0.0
  %1273 = vmatpush1.msra.mxu0 0.0
  %1274 = vmatprep.subr.mxu0 0.0
  %1275 = vmatpush1.msra.mxu0 0.0
  %1276 = vmatprep.subr.mxu0 0.0
  %1277 = vmatpush1.msra.mxu0 0.0
  %1278 = vmatprep.subr.mxu0 0.0
  %1279 = vmatpush1.msra.mxu0 0.0
  %1280 = vmatprep.subr.mxu0 0.0
  %1281 = vmatpush1.msra.mxu0 0.0
  %1282 = vmatprep.subr.mxu0 0.0
  %1283 = vmatpush1.msra.mxu0 0.0
  %1284 = vmatprep.subr.mxu0 0.0
  %1285 = vmatpush1.msra.mxu0 0.0
  %1286 = vmatprep.subr.mxu0 0.0
  %1287 = vmatpush1.msra.mxu0 0.0
  %1288 = vmatprep.subr.mxu0 0.0
  %1289 = vmatpush1.msra.mxu0 0.0
  %1290 = vmatprep.mubr.f32.mxu0 0.0
  %1291 = vmatmul.mubr.f32.gmra.mrb[0].mxu0 %v1224
  %v1292 = vpop.f32.mrb[0].mxu0
  %v1293 = vadd.f32 0.0, %v1292
  %v1294 = vpop.f32.mrb[0].mxu0
  %1295 = vdwg.mxu0
  %v1296 = vadd.f32 %v1222, %v1293
  %v1297 = vadd.f32 %v1296, %v631
  %s1298 = scalar_lea.vmem [#allocation3], 16
  %v1299 = vld [vmem:[%s1298] sm:$0xff]
  %1300 = vmatprep.subr.mxu0 0.0
  %1301 = vmatpush1.msra.mxu0 %v531
  %1302 = vmatprep.subr.mxu0 0.0
  %1303 = vmatpush1.msra.mxu0 %v532
  %1304 = vmatprep.subr.mxu0 0.0
  %1305 = vmatpush1.msra.mxu0 %v533
  %1306 = vmatprep.subr.mxu0 0.0
  %1307 = vmatpush1.msra.mxu0 %v534
  %1308 = vmatprep.subr.mxu0 0.0
  %1309 = vmatpush1.msra.mxu0 0.0
  %1310 = vmatprep.subr.mxu0 0.0
  %1311 = vmatpush1.msra.mxu0 0.0
  %1312 = vmatprep.subr.mxu0 0.0
  %1313 = vmatpush1.msra.mxu0 0.0
  %1314 = vmatprep.subr.mxu0 0.0
  %1315 = vmatpush1.msra.mxu0 0.0
  %1316 = vmatprep.subr.mxu0 0.0
  %1317 = vmatpush1.msra.mxu0 0.0
  %1318 = vmatprep.subr.mxu0 0.0
  %1319 = vmatpush1.msra.mxu0 0.0
  %1320 = vmatprep.subr.mxu0 0.0
  %1321 = vmatpush1.msra.mxu0 0.0
  %1322 = vmatprep.subr.mxu0 0.0
  %1323 = vmatpush1.msra.mxu0 0.0
  %1324 = vmatprep.subr.mxu0 0.0
  %1325 = vmatpush1.msra.mxu0 0.0
  %1326 = vmatprep.subr.mxu0 0.0
  %1327 = vmatpush1.msra.mxu0 0.0
  %1328 = vmatprep.subr.mxu0 0.0
  %1329 = vmatpush1.msra.mxu0 0.0
  %1330 = vmatprep.subr.mxu0 0.0
  %1331 = vmatpush1.msra.mxu0 0.0
  %1332 = vmatprep.subr.mxu0 0.0
  %1333 = vmatpush1.msra.mxu0 0.0
  %1334 = vmatprep.subr.mxu0 0.0
  %1335 = vmatpush1.msra.mxu0 0.0
  %1336 = vmatprep.subr.mxu0 0.0
  %1337 = vmatpush1.msra.mxu0 0.0
  %1338 = vmatprep.subr.mxu0 0.0
  %1339 = vmatpush1.msra.mxu0 0.0
  %1340 = vmatprep.subr.mxu0 0.0
  %1341 = vmatpush1.msra.mxu0 0.0
  %1342 = vmatprep.subr.mxu0 0.0
  %1343 = vmatpush1.msra.mxu0 0.0
  %1344 = vmatprep.subr.mxu0 0.0
  %1345 = vmatpush1.msra.mxu0 0.0
  %1346 = vmatprep.subr.mxu0 0.0
  %1347 = vmatpush1.msra.mxu0 0.0
  %1348 = vmatprep.subr.mxu0 0.0
  %1349 = vmatpush1.msra.mxu0 0.0
  %1350 = vmatprep.subr.mxu0 0.0
  %1351 = vmatpush1.msra.mxu0 0.0
  %1352 = vmatprep.subr.mxu0 0.0
  %1353 = vmatpush1.msra.mxu0 0.0
  %1354 = vmatprep.subr.mxu0 0.0
  %1355 = vmatpush1.msra.mxu0 0.0
  %1356 = vmatprep.subr.mxu0 0.0
  %1357 = vmatpush1.msra.mxu0 0.0
  %1358 = vmatprep.subr.mxu0 0.0
  %1359 = vmatpush1.msra.mxu0 0.0
  %1360 = vmatprep.subr.mxu0 0.0
  %1361 = vmatpush1.msra.mxu0 0.0
  %1362 = vmatprep.subr.mxu0 0.0
  %1363 = vmatpush1.msra.mxu0 0.0
  %1364 = vmatprep.mubr.f32.mxu0 0.0
  %1365 = vmatmul.mubr.f32.gmra.mrb[0].mxu0 %v1224
  %v1366 = vpop.f32.mrb[0].mxu0
  %v1367 = vadd.f32 0.0, %v1366
  %v1368 = vpop.f32.mrb[0].mxu0
  %1369 = vdwg.mxu0
  %v1370 = vadd.f32 %v1299, %v1367
  %v1371 = vadd.f32 %v1370, %v710
  %s1372 = scalar_lea.vmem [#allocation4], 16
  %v1373 = vld [vmem:[%s1372] sm:$0xff]
  %1374 = vmatprep.subr.mxu0 0.0
  %1375 = vmatpush1.msra.mxu0 %v536
  %1376 = vmatprep.subr.mxu0 0.0
  %1377 = vmatpush1.msra.mxu0 %v537
  %1378 = vmatprep.subr.mxu0 0.0
  %1379 = vmatpush1.msra.mxu0 %v538
  %1380 = vmatprep.subr.mxu0 0.0
  %1381 = vmatpush1.msra.mxu0 %v539
  %1382 = vmatprep.subr.mxu0 0.0
  %1383 = vmatpush1.msra.mxu0 0.0
  %1384 = vmatprep.subr.mxu0 0.0
  %1385 = vmatpush1.msra.mxu0 0.0
  %1386 = vmatprep.subr.mxu0 0.0
  %1387 = vmatpush1.msra.mxu0 0.0
  %1388 = vmatprep.subr.mxu0 0.0
  %1389 = vmatpush1.msra.mxu0 0.0
  %1390 = vmatprep.subr.mxu0 0.0
  %1391 = vmatpush1.msra.mxu0 0.0
  %1392 = vmatprep.subr.mxu0 0.0
  %1393 = vmatpush1.msra.mxu0 0.0
  %1394 = vmatprep.subr.mxu0 0.0
  %1395 = vmatpush1.msra.mxu0 0.0
  %1396 = vmatprep.subr.mxu0 0.0
  %1397 = vmatpush1.msra.mxu0 0.0
  %1398 = vmatprep.subr.mxu0 0.0
  %1399 = vmatpush1.msra.mxu0 0.0
  %1400 = vmatprep.subr.mxu0 0.0
  %1401 = vmatpush1.msra.mxu0 0.0
  %1402 = vmatprep.subr.mxu0 0.0
  %1403 = vmatpush1.msra.mxu0 0.0
  %1404 = vmatprep.subr.mxu0 0.0
  %1405 = vmatpush1.msra.mxu0 0.0
  %1406 = vmatprep.subr.mxu0 0.0
  %1407 = vmatpush1.msra.mxu0 0.0
  %1408 = vmatprep.subr.mxu0 0.0
  %1409 = vmatpush1.msra.mxu0 0.0
  %1410 = vmatprep.subr.mxu0 0.0
  %1411 = vmatpush1.msra.mxu0 0.0
  %1412 = vmatprep.subr.mxu0 0.0
  %1413 = vmatpush1.msra.mxu0 0.0
  %1414 = vmatprep.subr.mxu0 0.0
  %1415 = vmatpush1.msra.mxu0 0.0
  %1416 = vmatprep.subr.mxu0 0.0
  %1417 = vmatpush1.msra.mxu0 0.0
  %1418 = vmatprep.subr.mxu0 0.0
  %1419 = vmatpush1.msra.mxu0 0.0
  %1420 = vmatprep.subr.mxu0 0.0
  %1421 = vmatpush1.msra.mxu0 0.0
  %1422 = vmatprep.subr.mxu0 0.0
  %1423 = vmatpush1.msra.mxu0 0.0
  %1424 = vmatprep.subr.mxu0 0.0
  %1425 = vmatpush1.msra.mxu0 0.0
  %1426 = vmatprep.subr.mxu0 0.0
  %1427 = vmatpush1.msra.mxu0 0.0
  %1428 = vmatprep.subr.mxu0 0.0
  %1429 = vmatpush1.msra.mxu0 0.0
  %1430 = vmatprep.subr.mxu0 0.0
  %1431 = vmatpush1.msra.mxu0 0.0
  %1432 = vmatprep.subr.mxu0 0.0
  %1433 = vmatpush1.msra.mxu0 0.0
  %1434 = vmatprep.subr.mxu0 0.0
  %1435 = vmatpush1.msra.mxu0 0.0
  %1436 = vmatprep.subr.mxu0 0.0
  %1437 = vmatpush1.msra.mxu0 0.0
  %1438 = vmatprep.mubr.f32.mxu0 0.0
  %1439 = vmatmul.mubr.f32.gmra.mrb[0].mxu0 %v1224
  %v1440 = vpop.f32.mrb[0].mxu0
  %v1441 = vadd.f32 0.0, %v1440
  %v1442 = vpop.f32.mrb[0].mxu0
  %1443 = vdwg.mxu0
  %v1444 = vadd.f32 %v1373, %v1441
  %v1445 = vadd.f32 %v1444, %v789
  %s1446 = scalar_lea.vmem [#allocation5], 16
  %v1447 = vld [vmem:[%s1446] sm:$0xff]
  %1448 = vmatprep.subr.mxu0 0.0
  %1449 = vmatpush1.msra.mxu0 %v541
  %1450 = vmatprep.subr.mxu0 0.0
  %1451 = vmatpush1.msra.mxu0 %v542
  %1452 = vmatprep.subr.mxu0 0.0
  %1453 = vmatpush1.msra.mxu0 %v543
  %1454 = vmatprep.subr.mxu0 0.0
  %1455 = vmatpush1.msra.mxu0 %v544
  %1456 = vmatprep.subr.mxu0 0.0
  %1457 = vmatpush1.msra.mxu0 0.0
  %1458 = vmatprep.subr.mxu0 0.0
  %1459 = vmatpush1.msra.mxu0 0.0
  %1460 = vmatprep.subr.mxu0 0.0
  %1461 = vmatpush1.msra.mxu0 0.0
  %1462 = vmatprep.subr.mxu0 0.0
  %1463 = vmatpush1.msra.mxu0 0.0
  %1464 = vmatprep.subr.mxu0 0.0
  %1465 = vmatpush1.msra.mxu0 0.0
  %1466 = vmatprep.subr.mxu0 0.0
  %1467 = vmatpush1.msra.mxu0 0.0
  %1468 = vmatprep.subr.mxu0 0.0
  %1469 = vmatpush1.msra.mxu0 0.0
  %1470 = vmatprep.subr.mxu0 0.0
  %1471 = vmatpush1.msra.mxu0 0.0
  %1472 = vmatprep.subr.mxu0 0.0
  %1473 = vmatpush1.msra.mxu0 0.0
  %1474 = vmatprep.subr.mxu0 0.0
  %1475 = vmatpush1.msra.mxu0 0.0
  %1476 = vmatprep.subr.mxu0 0.0
  %1477 = vmatpush1.msra.mxu0 0.0
  %1478 = vmatprep.subr.mxu0 0.0
  %1479 = vmatpush1.msra.mxu0 0.0
  %1480 = vmatprep.subr.mxu0 0.0
  %1481 = vmatpush1.msra.mxu0 0.0
  %1482 = vmatprep.subr.mxu0 0.0
  %1483 = vmatpush1.msra.mxu0 0.0
  %1484 = vmatprep.subr.mxu0 0.0
  %1485 = vmatpush1.msra.mxu0 0.0
  %1486 = vmatprep.subr.mxu0 0.0
  %1487 = vmatpush1.msra.mxu0 0.0
  %1488 = vmatprep.subr.mxu0 0.0
  %1489 = vmatpush1.msra.mxu0 0.0
  %1490 = vmatprep.subr.mxu0 0.0
  %1491 = vmatpush1.msra.mxu0 0.0
  %1492 = vmatprep.subr.mxu0 0.0
  %1493 = vmatpush1.msra.mxu0 0.0
  %1494 = vmatprep.subr.mxu0 0.0
  %1495 = vmatpush1.msra.mxu0 0.0
  %1496 = vmatprep.subr.mxu0 0.0
  %1497 = vmatpush1.msra.mxu0 0.0
  %1498 = vmatprep.subr.mxu0 0.0
  %1499 = vmatpush1.msra.mxu0 0.0
  %1500 = vmatprep.subr.mxu0 0.0
  %1501 = vmatpush1.msra.mxu0 0.0
  %1502 = vmatprep.subr.mxu0 0.0
  %1503 = vmatpush1.msra.mxu0 0.0
  %1504 = vmatprep.subr.mxu0 0.0
  %1505 = vmatpush1.msra.mxu0 0.0
  %1506 = vmatprep.subr.mxu0 0.0
  %1507 = vmatpush1.msra.mxu0 0.0
  %1508 = vmatprep.subr.mxu0 0.0
  %1509 = vmatpush1.msra.mxu0 0.0
  %1510 = vmatprep.subr.mxu0 0.0
  %1511 = vmatpush1.msra.mxu0 0.0
  %1512 = vmatprep.mubr.f32.mxu0 0.0
  %1513 = vmatmul.mubr.f32.gmra.mrb[0].mxu0 %v1224
  %v1514 = vpop.f32.mrb[0].mxu0
  %v1515 = vadd.f32 0.0, %v1514
  %v1516 = vpop.f32.mrb[0].mxu0
  %1517 = vdwg.mxu0
  %v1518 = vadd.f32 %v1447, %v1515
  %v1519 = vadd.f32 %v1518, %v868
  %v1520 = vxor.u32 %v1297, 2147483648
  %v1521 = vmul.f32 %v1520, 1.442695
  %v1522 = vpow.pop %v1521
  %v1523 = vadd.f32 %v1522, 1.0
  %v1524 = vrcp.pop %v1523
  %v1525 = vmul.f32 1.0, %v1524
  %v1526 = vxor.u32 %v1371, 2147483648
  %v1527 = vmul.f32 %v1526, 1.442695
  %v1528 = vpow.pop %v1527
  %v1529 = vadd.f32 %v1528, 1.0
  %v1530 = vrcp.pop %v1529
  %v1531 = vmul.f32 1.0, %v1530
  %v1532 = vtanh.pop %v1445
  %v1533 = vxor.u32 %v1519, 2147483648
  %v1534 = vmul.f32 %v1533, 1.442695
  %v1535 = vpow.pop %v1534
  %v1536 = vadd.f32 %v1535, 1.0
  %v1537 = vrcp.pop %v1536
  %v1538 = vmul.f32 1.0, %v1537
  %v1539 = vmul.f32 %v1531, %v1216
  %v1540 = vmul.f32 %v1525, %v1532
  %v1541 = vadd.f32 %v1539, %v1540
  %v1542 = vtanh.pop %v1541
  %v1543 = vmul.f32 %v1538, %v1542
  %s1544 = scalar_lea.vmem %s4, 16
  %1545 = vst.msk [vmem:[%s1544] sm:$0xff] %vm163, %v1543
  %s1546 = scalar_lea.vmem [#allocation2], 24
  %v1547 = vld [vmem:[%s1546] sm:$0xff]
  %v1549 = vsel %vm163, %v1543, 0
  %1551 = vmatprep.subr.mxu0 0.0
  %1552 = vmatpush1.msra.mxu0 %v526
  %1553 = vmatprep.subr.mxu0 0.0
  %1554 = vmatpush1.msra.mxu0 %v527
  %1555 = vmatprep.subr.mxu0 0.0
  %1556 = vmatpush1.msra.mxu0 %v528
  %1557 = vmatprep.subr.mxu0 0.0
  %1558 = vmatpush1.msra.mxu0 %v529
  %1559 = vmatprep.subr.mxu0 0.0
  %1560 = vmatpush1.msra.mxu0 0.0
  %1561 = vmatprep.subr.mxu0 0.0
  %1562 = vmatpush1.msra.mxu0 0.0
  %1563 = vmatprep.subr.mxu0 0.0
  %1564 = vmatpush1.msra.mxu0 0.0
  %1565 = vmatprep.subr.mxu0 0.0
  %1566 = vmatpush1.msra.mxu0 0.0
  %1567 = vmatprep.subr.mxu0 0.0
  %1568 = vmatpush1.msra.mxu0 0.0
  %1569 = vmatprep.subr.mxu0 0.0
  %1570 = vmatpush1.msra.mxu0 0.0
  %1571 = vmatprep.subr.mxu0 0.0
  %1572 = vmatpush1.msra.mxu0 0.0
  %1573 = vmatprep.subr.mxu0 0.0
  %1574 = vmatpush1.msra.mxu0 0.0
  %1575 = vmatprep.subr.mxu0 0.0
  %1576 = vmatpush1.msra.mxu0 0.0
  %1577 = vmatprep.subr.mxu0 0.0
  %1578 = vmatpush1.msra.mxu0 0.0
  %1579 = vmatprep.subr.mxu0 0.0
  %1580 = vmatpush1.msra.mxu0 0.0
  %1581 = vmatprep.subr.mxu0 0.0
  %1582 = vmatpush1.msra.mxu0 0.0
  %1583 = vmatprep.subr.mxu0 0.0
  %1584 = vmatpush1.msra.mxu0 0.0
  %1585 = vmatprep.subr.mxu0 0.0
  %1586 = vmatpush1.msra.mxu0 0.0
  %1587 = vmatprep.subr.mxu0 0.0
  %1588 = vmatpush1.msra.mxu0 0.0
  %1589 = vmatprep.subr.mxu0 0.0
  %1590 = vmatpush1.msra.mxu0 0.0
  %1591 = vmatprep.subr.mxu0 0.0
  %1592 = vmatpush1.msra.mxu0 0.0
  %1593 = vmatprep.subr.mxu0 0.0
  %1594 = vmatpush1.msra.mxu0 0.0
  %1595 = vmatprep.subr.mxu0 0.0
  %1596 = vmatpush1.msra.mxu0 0.0
  %1597 = vmatprep.subr.mxu0 0.0
  %1598 = vmatpush1.msra.mxu0 0.0
  %1599 = vmatprep.subr.mxu0 0.0
  %1600 = vmatpush1.msra.mxu0 0.0
  %1601 = vmatprep.subr.mxu0 0.0
  %1602 = vmatpush1.msra.mxu0 0.0
  %1603 = vmatprep.subr.mxu0 0.0
  %1604 = vmatpush1.msra.mxu0 0.0
  %1605 = vmatprep.subr.mxu0 0.0
  %1606 = vmatpush1.msra.mxu0 0.0
  %1607 = vmatprep.subr.mxu0 0.0
  %1608 = vmatpush1.msra.mxu0 0.0
  %1609 = vmatprep.subr.mxu0 0.0
  %1610 = vmatpush1.msra.mxu0 0.0
  %1611 = vmatprep.subr.mxu0 0.0
  %1612 = vmatpush1.msra.mxu0 0.0
  %1613 = vmatprep.subr.mxu0 0.0
  %1614 = vmatpush1.msra.mxu0 0.0
  %1615 = vmatprep.mubr.f32.mxu0 0.0
  %1616 = vmatmul.mubr.f32.gmra.mrb[0].mxu0 %v1549
  %v1617 = vpop.f32.mrb[0].mxu0
  %v1618 = vadd.f32 0.0, %v1617
  %v1619 = vpop.f32.mrb[0].mxu0
  %1620 = vdwg.mxu0
  %v1621 = vadd.f32 %v1547, %v1618
  %v1622 = vadd.f32 %v1621, %v631
  %s1623 = scalar_lea.vmem [#allocation3], 24
  %v1624 = vld [vmem:[%s1623] sm:$0xff]
  %1625 = vmatprep.subr.mxu0 0.0
  %1626 = vmatpush1.msra.mxu0 %v531
  %1627 = vmatprep.subr.mxu0 0.0
  %1628 = vmatpush1.msra.mxu0 %v532
  %1629 = vmatprep.subr.mxu0 0.0
  %1630 = vmatpush1.msra.mxu0 %v533
  %1631 = vmatprep.subr.mxu0 0.0
  %1632 = vmatpush1.msra.mxu0 %v534
  %1633 = vmatprep.subr.mxu0 0.0
  %1634 = vmatpush1.msra.mxu0 0.0
  %1635 = vmatprep.subr.mxu0 0.0
  %1636 = vmatpush1.msra.mxu0 0.0
  %1637 = vmatprep.subr.mxu0 0.0
  %1638 = vmatpush1.msra.mxu0 0.0
  %1639 = vmatprep.subr.mxu0 0.0
  %1640 = vmatpush1.msra.mxu0 0.0
  %1641 = vmatprep.subr.mxu0 0.0
  %1642 = vmatpush1.msra.mxu0 0.0
  %1643 = vmatprep.subr.mxu0 0.0
  %1644 = vmatpush1.msra.mxu0 0.0
  %1645 = vmatprep.subr.mxu0 0.0
  %1646 = vmatpush1.msra.mxu0 0.0
  %1647 = vmatprep.subr.mxu0 0.0
  %1648 = vmatpush1.msra.mxu0 0.0
  %1649 = vmatprep.subr.mxu0 0.0
  %1650 = vmatpush1.msra.mxu0 0.0
  %1651 = vmatprep.subr.mxu0 0.0
  %1652 = vmatpush1.msra.mxu0 0.0
  %1653 = vmatprep.subr.mxu0 0.0
  %1654 = vmatpush1.msra.mxu0 0.0
  %1655 = vmatprep.subr.mxu0 0.0
  %1656 = vmatpush1.msra.mxu0 0.0
  %1657 = vmatprep.subr.mxu0 0.0
  %1658 = vmatpush1.msra.mxu0 0.0
  %1659 = vmatprep.subr.mxu0 0.0
  %1660 = vmatpush1.msra.mxu0 0.0
  %1661 = vmatprep.subr.mxu0 0.0
  %1662 = vmatpush1.msra.mxu0 0.0
  %1663 = vmatprep.subr.mxu0 0.0
  %1664 = vmatpush1.msra.mxu0 0.0
  %1665 = vmatprep.subr.mxu0 0.0
  %1666 = vmatpush1.msra.mxu0 0.0
  %1667 = vmatprep.subr.mxu0 0.0
  %1668 = vmatpush1.msra.mxu0 0.0
  %1669 = vmatprep.subr.mxu0 0.0
  %1670 = vmatpush1.msra.mxu0 0.0
  %1671 = vmatprep.subr.mxu0 0.0
  %1672 = vmatpush1.msra.mxu0 0.0
  %1673 = vmatprep.subr.mxu0 0.0
  %1674 = vmatpush1.msra.mxu0 0.0
  %1675 = vmatprep.subr.mxu0 0.0
  %1676 = vmatpush1.msra.mxu0 0.0
  %1677 = vmatprep.subr.mxu0 0.0
  %1678 = vmatpush1.msra.mxu0 0.0
  %1679 = vmatprep.subr.mxu0 0.0
  %1680 = vmatpush1.msra.mxu0 0.0
  %1681 = vmatprep.subr.mxu0 0.0
  %1682 = vmatpush1.msra.mxu0 0.0
  %1683 = vmatprep.subr.mxu0 0.0
  %1684 = vmatpush1.msra.mxu0 0.0
  %1685 = vmatprep.subr.mxu0 0.0
  %1686 = vmatpush1.msra.mxu0 0.0
  %1687 = vmatprep.subr.mxu0 0.0
  %1688 = vmatpush1.msra.mxu0 0.0
  %1689 = vmatprep.mubr.f32.mxu0 0.0
  %1690 = vmatmul.mubr.f32.gmra.mrb[0].mxu0 %v1549
  %v1691 = vpop.f32.mrb[0].mxu0
  %v1692 = vadd.f32 0.0, %v1691
  %v1693 = vpop.f32.mrb[0].mxu0
  %1694 = vdwg.mxu0
  %v1695 = vadd.f32 %v1624, %v1692
  %v1696 = vadd.f32 %v1695, %v710
  %s1697 = scalar_lea.vmem [#allocation4], 24
  %v1698 = vld [vmem:[%s1697] sm:$0xff]
  %1699 = vmatprep.subr.mxu0 0.0
  %1700 = vmatpush1.msra.mxu0 %v536
  %1701 = vmatprep.subr.mxu0 0.0
  %1702 = vmatpush1.msra.mxu0 %v537
  %1703 = vmatprep.subr.mxu0 0.0
  %1704 = vmatpush1.msra.mxu0 %v538
  %1705 = vmatprep.subr.mxu0 0.0
  %1706 = vmatpush1.msra.mxu0 %v539
  %1707 = vmatprep.subr.mxu0 0.0
  %1708 = vmatpush1.msra.mxu0 0.0
  %1709 = vmatprep.subr.mxu0 0.0
  %1710 = vmatpush1.msra.mxu0 0.0
  %1711 = vmatprep.subr.mxu0 0.0
  %1712 = vmatpush1.msra.mxu0 0.0
  %1713 = vmatprep.subr.mxu0 0.0
  %1714 = vmatpush1.msra.mxu0 0.0
  %1715 = vmatprep.subr.mxu0 0.0
  %1716 = vmatpush1.msra.mxu0 0.0
  %1717 = vmatprep.subr.mxu0 0.0
  %1718 = vmatpush1.msra.mxu0 0.0
  %1719 = vmatprep.subr.mxu0 0.0
  %1720 = vmatpush1.msra.mxu0 0.0
  %1721 = vmatprep.subr.mxu0 0.0
  %1722 = vmatpush1.msra.mxu0 0.0
  %1723 = vmatprep.subr.mxu0 0.0
  %1724 = vmatpush1.msra.mxu0 0.0
  %1725 = vmatprep.subr.mxu0 0.0
  %1726 = vmatpush1.msra.mxu0 0.0
  %1727 = vmatprep.subr.mxu0 0.0
  %1728 = vmatpush1.msra.mxu0 0.0
  %1729 = vmatprep.subr.mxu0 0.0
  %1730 = vmatpush1.msra.mxu0 0.0
  %1731 = vmatprep.subr.mxu0 0.0
  %1732 = vmatpush1.msra.mxu0 0.0
  %1733 = vmatprep.subr.mxu0 0.0
  %1734 = vmatpush1.msra.mxu0 0.0
  %1735 = vmatprep.subr.mxu0 0.0
  %1736 = vmatpush1.msra.mxu0 0.0
  %1737 = vmatprep.subr.mxu0 0.0
  %1738 = vmatpush1.msra.mxu0 0.0
  %1739 = vmatprep.subr.mxu0 0.0
  %1740 = vmatpush1.msra.mxu0 0.0
  %1741 = vmatprep.subr.mxu0 0.0
  %1742 = vmatpush1.msra.mxu0 0.0
  %1743 = vmatprep.subr.mxu0 0.0
  %1744 = vmatpush1.msra.mxu0 0.0
  %1745 = vmatprep.subr.mxu0 0.0
  %1746 = vmatpush1.msra.mxu0 0.0
  %1747 = vmatprep.subr.mxu0 0.0
  %1748 = vmatpush1.msra.mxu0 0.0
  %1749 = vmatprep.subr.mxu0 0.0
  %1750 = vmatpush1.msra.mxu0 0.0
  %1751 = vmatprep.subr.mxu0 0.0
  %1752 = vmatpush1.msra.mxu0 0.0
  %1753 = vmatprep.subr.mxu0 0.0
  %1754 = vmatpush1.msra.mxu0 0.0
  %1755 = vmatprep.subr.mxu0 0.0
  %1756 = vmatpush1.msra.mxu0 0.0
  %1757 = vmatprep.subr.mxu0 0.0
  %1758 = vmatpush1.msra.mxu0 0.0
  %1759 = vmatprep.subr.mxu0 0.0
  %1760 = vmatpush1.msra.mxu0 0.0
  %1761 = vmatprep.subr.mxu0 0.0
  %1762 = vmatpush1.msra.mxu0 0.0
  %1763 = vmatprep.mubr.f32.mxu0 0.0
  %1764 = vmatmul.mubr.f32.gmra.mrb[0].mxu0 %v1549
  %v1765 = vpop.f32.mrb[0].mxu0
  %v1766 = vadd.f32 0.0, %v1765
  %v1767 = vpop.f32.mrb[0].mxu0
  %1768 = vdwg.mxu0
  %v1769 = vadd.f32 %v1698, %v1766
  %v1770 = vadd.f32 %v1769, %v789
  %s1771 = scalar_lea.vmem [#allocation5], 24
  %v1772 = vld [vmem:[%s1771] sm:$0xff]
  %1773 = vmatprep.subr.mxu0 0.0
  %1774 = vmatpush1.msra.mxu0 %v541
  %1775 = vmatprep.subr.mxu0 0.0
  %1776 = vmatpush1.msra.mxu0 %v542
  %1777 = vmatprep.subr.mxu0 0.0
  %1778 = vmatpush1.msra.mxu0 %v543
  %1779 = vmatprep.subr.mxu0 0.0
  %1780 = vmatpush1.msra.mxu0 %v544
  %1781 = vmatprep.subr.mxu0 0.0
  %1782 = vmatpush1.msra.mxu0 0.0
  %1783 = vmatprep.subr.mxu0 0.0
  %1784 = vmatpush1.msra.mxu0 0.0
  %1785 = vmatprep.subr.mxu0 0.0
  %1786 = vmatpush1.msra.mxu0 0.0
  %1787 = vmatprep.subr.mxu0 0.0
  %1788 = vmatpush1.msra.mxu0 0.0
  %1789 = vmatprep.subr.mxu0 0.0
  %1790 = vmatpush1.msra.mxu0 0.0
  %1791 = vmatprep.subr.mxu0 0.0
  %1792 = vmatpush1.msra.mxu0 0.0
  %1793 = vmatprep.subr.mxu0 0.0
  %1794 = vmatpush1.msra.mxu0 0.0
  %1795 = vmatprep.subr.mxu0 0.0
  %1796 = vmatpush1.msra.mxu0 0.0
  %1797 = vmatprep.subr.mxu0 0.0
  %1798 = vmatpush1.msra.mxu0 0.0
  %1799 = vmatprep.subr.mxu0 0.0
  %1800 = vmatpush1.msra.mxu0 0.0
  %1801 = vmatprep.subr.mxu0 0.0
  %1802 = vmatpush1.msra.mxu0 0.0
  %1803 = vmatprep.subr.mxu0 0.0
  %1804 = vmatpush1.msra.mxu0 0.0
  %1805 = vmatprep.subr.mxu0 0.0
  %1806 = vmatpush1.msra.mxu0 0.0
  %1807 = vmatprep.subr.mxu0 0.0
  %1808 = vmatpush1.msra.mxu0 0.0
  %1809 = vmatprep.subr.mxu0 0.0
  %1810 = vmatpush1.msra.mxu0 0.0
  %1811 = vmatprep.subr.mxu0 0.0
  %1812 = vmatpush1.msra.mxu0 0.0
  %1813 = vmatprep.subr.mxu0 0.0
  %1814 = vmatpush1.msra.mxu0 0.0
  %1815 = vmatprep.subr.mxu0 0.0
  %1816 = vmatpush1.msra.mxu0 0.0
  %1817 = vmatprep.subr.mxu0 0.0
  %1818 = vmatpush1.msra.mxu0 0.0
  %1819 = vmatprep.subr.mxu0 0.0
  %1820 = vmatpush1.msra.mxu0 0.0
  %1821 = vmatprep.subr.mxu0 0.0
  %1822 = vmatpush1.msra.mxu0 0.0
  %1823 = vmatprep.subr.mxu0 0.0
  %1824 = vmatpush1.msra.mxu0 0.0
  %1825 = vmatprep.subr.mxu0 0.0
  %1826 = vmatpush1.msra.mxu0 0.0
  %1827 = vmatprep.subr.mxu0 0.0
  %1828 = vmatpush1.msra.mxu0 0.0
  %1829 = vmatprep.subr.mxu0 0.0
  %1830 = vmatpush1.msra.mxu0 0.0
  %1831 = vmatprep.subr.mxu0 0.0
  %1832 = vmatpush1.msra.mxu0 0.0
  %1833 = vmatprep.subr.mxu0 0.0
  %1834 = vmatpush1.msra.mxu0 0.0
  %1835 = vmatprep.subr.mxu0 0.0
  %1836 = vmatpush1.msra.mxu0 0.0
  %1837 = vmatprep.mubr.f32.mxu0 0.0
  %1838 = vmatmul.mubr.f32.gmra.mrb[0].mxu0 %v1549
  %v1839 = vpop.f32.mrb[0].mxu0
  %v1840 = vadd.f32 0.0, %v1839
  %v1841 = vpop.f32.mrb[0].mxu0
  %1842 = vdwg.mxu0
  %v1843 = vadd.f32 %v1772, %v1840
  %v1844 = vadd.f32 %v1843, %v868
  %v1845 = vxor.u32 %v1622, 2147483648
  %v1846 = vmul.f32 %v1845, 1.442695
  %v1847 = vpow.pop %v1846
  %v1848 = vadd.f32 %v1847, 1.0
  %v1849 = vrcp.pop %v1848
  %v1850 = vmul.f32 1.0, %v1849
  %v1851 = vxor.u32 %v1696, 2147483648
  %v1852 = vmul.f32 %v1851, 1.442695
  %v1853 = vpow.pop %v1852
  %v1854 = vadd.f32 %v1853, 1.0
  %v1855 = vrcp.pop %v1854
  %v1856 = vmul.f32 1.0, %v1855
  %v1857 = vtanh.pop %v1770
  %v1858 = vxor.u32 %v1844, 2147483648
  %v1859 = vmul.f32 %v1858, 1.442695
  %v1860 = vpow.pop %v1859
  %v1861 = vadd.f32 %v1860, 1.0
  %v1862 = vrcp.pop %v1861
  %v1863 = vmul.f32 1.0, %v1862
  %v1864 = vmul.f32 %v1856, %v1541
  %v1865 = vmul.f32 %v1850, %v1857
  %v1866 = vadd.f32 %v1864, %v1865
  %v1867 = vtanh.pop %v1866
  %v1868 = vmul.f32 %v1863, %v1867
  %s1869 = scalar_lea.vmem %s4, 24
  %1870 = vst.msk [vmem:[%s1869] sm:$0xff] %vm163, %v1868
  %s1871 = scalar_lea.vmem [#allocation2], 32
  %v1872 = vld [vmem:[%s1871] sm:$0xff]
  %v1874 = vsel %vm163, %v1868, 0
  %1876 = vmatprep.subr.mxu0 0.0
  %1877 = vmatpush1.msra.mxu0 %v526
  %1878 = vmatprep.subr.mxu0 0.0
  %1879 = vmatpush1.msra.mxu0 %v527
  %1880 = vmatprep.subr.mxu0 0.0
  %1881 = vmatpush1.msra.mxu0 %v528
  %1882 = vmatprep.subr.mxu0 0.0
  %1883 = vmatpush1.msra.mxu0 %v529
  %1884 = vmatprep.subr.mxu0 0.0
  %1885 = vmatpush1.msra.mxu0 0.0
  %1886 = vmatprep.subr.mxu0 0.0
  %1887 = vmatpush1.msra.mxu0 0.0
  %1888 = vmatprep.subr.mxu0 0.0
  %1889 = vmatpush1.msra.mxu0 0.0
  %1890 = vmatprep.subr.mxu0 0.0
  %1891 = vmatpush1.msra.mxu0 0.0
  %1892 = vmatprep.subr.mxu0 0.0
  %1893 = vmatpush1.msra.mxu0 0.0
  %1894 = vmatprep.subr.mxu0 0.0
  %1895 = vmatpush1.msra.mxu0 0.0
  %1896 = vmatprep.subr.mxu0 0.0
  %1897 = vmatpush1.msra.mxu0 0.0
  %1898 = vmatprep.subr.mxu0 0.0
  %1899 = vmatpush1.msra.mxu0 0.0
  %1900 = vmatprep.subr.mxu0 0.0
  %1901 = vmatpush1.msra.mxu0 0.0
  %1902 = vmatprep.subr.mxu0 0.0
  %1903 = vmatpush1.msra.mxu0 0.0
  %1904 = vmatprep.subr.mxu0 0.0
  %1905 = vmatpush1.msra.mxu0 0.0
  %1906 = vmatprep.subr.mxu0 0.0
  %1907 = vmatpush1.msra.mxu0 0.0
  %1908 = vmatprep.subr.mxu0 0.0
  %1909 = vmatpush1.msra.mxu0 0.0
  %1910 = vmatprep.subr.mxu0 0.0
  %1911 = vmatpush1.msra.mxu0 0.0
  %1912 = vmatprep.subr.mxu0 0.0
  %1913 = vmatpush1.msra.mxu0 0.0
  %1914 = vmatprep.subr.mxu0 0.0
  %1915 = vmatpush1.msra.mxu0 0.0
  %1916 = vmatprep.subr.mxu0 0.0
  %1917 = vmatpush1.msra.mxu0 0.0
  %1918 = vmatprep.subr.mxu0 0.0
  %1919 = vmatpush1.msra.mxu0 0.0
  %1920 = vmatprep.subr.mxu0 0.0
  %1921 = vmatpush1.msra.mxu0 0.0
  %1922 = vmatprep.subr.mxu0 0.0
  %1923 = vmatpush1.msra.mxu0 0.0
  %1924 = vmatprep.subr.mxu0 0.0
  %1925 = vmatpush1.msra.mxu0 0.0
  %1926 = vmatprep.subr.mxu0 0.0
  %1927 = vmatpush1.msra.mxu0 0.0
  %1928 = vmatprep.subr.mxu0 0.0
  %1929 = vmatpush1.msra.mxu0 0.0
  %1930 = vmatprep.subr.mxu0 0.0
  %1931 = vmatpush1.msra.mxu0 0.0
  %1932 = vmatprep.subr.mxu0 0.0
  %1933 = vmatpush1.msra.mxu0 0.0
  %1934 = vmatprep.subr.mxu0 0.0
  %1935 = vmatpush1.msra.mxu0 0.0
  %1936 = vmatprep.subr.mxu0 0.0
  %1937 = vmatpush1.msra.mxu0 0.0
  %1938 = vmatprep.subr.mxu0 0.0
  %1939 = vmatpush1.msra.mxu0 0.0
  %1940 = vmatprep.mubr.f32.mxu0 0.0
  %1941 = vmatmul.mubr.f32.gmra.mrb[0].mxu0 %v1874
  %v1942 = vpop.f32.mrb[0].mxu0
  %v1943 = vadd.f32 0.0, %v1942
  %v1944 = vpop.f32.mrb[0].mxu0
  %1945 = vdwg.mxu0
  %v1946 = vadd.f32 %v1872, %v1943
  %v1947 = vadd.f32 %v1946, %v631
  %s1948 = scalar_lea.vmem [#allocation3], 32
  %v1949 = vld [vmem:[%s1948] sm:$0xff]
  %1950 = vmatprep.subr.mxu0 0.0
  %1951 = vmatpush1.msra.mxu0 %v531
  %1952 = vmatprep.subr.mxu0 0.0
  %1953 = vmatpush1.msra.mxu0 %v532
  %1954 = vmatprep.subr.mxu0 0.0
  %1955 = vmatpush1.msra.mxu0 %v533
  %1956 = vmatprep.subr.mxu0 0.0
  %1957 = vmatpush1.msra.mxu0 %v534
  %1958 = vmatprep.subr.mxu0 0.0
  %1959 = vmatpush1.msra.mxu0 0.0
  %1960 = vmatprep.subr.mxu0 0.0
  %1961 = vmatpush1.msra.mxu0 0.0
  %1962 = vmatprep.subr.mxu0 0.0
  %1963 = vmatpush1.msra.mxu0 0.0
  %1964 = vmatprep.subr.mxu0 0.0
  %1965 = vmatpush1.msra.mxu0 0.0
  %1966 = vmatprep.subr.mxu0 0.0
  %1967 = vmatpush1.msra.mxu0 0.0
  %1968 = vmatprep.subr.mxu0 0.0
  %1969 = vmatpush1.msra.mxu0 0.0
  %1970 = vmatprep.subr.mxu0 0.0
  %1971 = vmatpush1.msra.mxu0 0.0
  %1972 = vmatprep.subr.mxu0 0.0
  %1973 = vmatpush1.msra.mxu0 0.0
  %1974 = vmatprep.subr.mxu0 0.0
  %1975 = vmatpush1.msra.mxu0 0.0
  %1976 = vmatprep.subr.mxu0 0.0
  %1977 = vmatpush1.msra.mxu0 0.0
  %1978 = vmatprep.subr.mxu0 0.0
  %1979 = vmatpush1.msra.mxu0 0.0
  %1980 = vmatprep.subr.mxu0 0.0
  %1981 = vmatpush1.msra.mxu0 0.0
  %1982 = vmatprep.subr.mxu0 0.0
  %1983 = vmatpush1.msra.mxu0 0.0
  %1984 = vmatprep.subr.mxu0 0.0
  %1985 = vmatpush1.msra.mxu0 0.0
  %1986 = vmatprep.subr.mxu0 0.0
  %1987 = vmatpush1.msra.mxu0 0.0
  %1988 = vmatprep.subr.mxu0 0.0
  %1989 = vmatpush1.msra.mxu0 0.0
  %1990 = vmatprep.subr.mxu0 0.0
  %1991 = vmatpush1.msra.mxu0 0.0
  %1992 = vmatprep.subr.mxu0 0.0
  %1993 = vmatpush1.msra.mxu0 0.0
  %1994 = vmatprep.subr.mxu0 0.0
  %1995 = vmatpush1.msra.mxu0 0.0
  %1996 = vmatprep.subr.mxu0 0.0
  %1997 = vmatpush1.msra.mxu0 0.0
  %1998 = vmatprep.subr.mxu0 0.0
  %1999 = vmatpush1.msra.mxu0 0.0
  %2000 = vmatprep.subr.mxu0 0.0
  %2001 = vmatpush1.msra.mxu0 0.0
  %2002 = vmatprep.subr.mxu0 0.0
  %2003 = vmatpush1.msra.mxu0 0.0
  %2004 = vmatprep.subr.mxu0 0.0
  %2005 = vmatpush1.msra.mxu0 0.0
  %2006 = vmatprep.subr.mxu0 0.0
  %2007 = vmatpush1.msra.mxu0 0.0
  %2008 = vmatprep.subr.mxu0 0.0
  %2009 = vmatpush1.msra.mxu0 0.0
  %2010 = vmatprep.subr.mxu0 0.0
  %2011 = vmatpush1.msra.mxu0 0.0
  %2012 = vmatprep.subr.mxu0 0.0
  %2013 = vmatpush1.msra.mxu0 0.0
  %2014 = vmatprep.mubr.f32.mxu0 0.0
  %2015 = vmatmul.mubr.f32.gmra.mrb[0].mxu0 %v1874
  %v2016 = vpop.f32.mrb[0].mxu0
  %v2017 = vadd.f32 0.0, %v2016
  %v2018 = vpop.f32.mrb[0].mxu0
  %2019 = vdwg.mxu0
  %v2020 = vadd.f32 %v1949, %v2017
  %v2021 = vadd.f32 %v2020, %v710
  %s2022 = scalar_lea.vmem [#allocation4], 32
  %v2023 = vld [vmem:[%s2022] sm:$0xff]
  %2024 = vmatprep.subr.mxu0 0.0
  %2025 = vmatpush1.msra.mxu0 %v536
  %2026 = vmatprep.subr.mxu0 0.0
  %2027 = vmatpush1.msra.mxu0 %v537
  %2028 = vmatprep.subr.mxu0 0.0
  %2029 = vmatpush1.msra.mxu0 %v538
  %2030 = vmatprep.subr.mxu0 0.0
  %2031 = vmatpush1.msra.mxu0 %v539
  %2032 = vmatprep.subr.mxu0 0.0
  %2033 = vmatpush1.msra.mxu0 0.0
  %2034 = vmatprep.subr.mxu0 0.0
  %2035 = vmatpush1.msra.mxu0 0.0
  %2036 = vmatprep.subr.mxu0 0.0
  %2037 = vmatpush1.msra.mxu0 0.0
  %2038 = vmatprep.subr.mxu0 0.0
  %2039 = vmatpush1.msra.mxu0 0.0
  %2040 = vmatprep.subr.mxu0 0.0
  %2041 = vmatpush1.msra.mxu0 0.0
  %2042 = vmatprep.subr.mxu0 0.0
  %2043 = vmatpush1.msra.mxu0 0.0
  %2044 = vmatprep.subr.mxu0 0.0
  %2045 = vmatpush1.msra.mxu0 0.0
  %2046 = vmatprep.subr.mxu0 0.0
  %2047 = vmatpush1.msra.mxu0 0.0
  %2048 = vmatprep.subr.mxu0 0.0
  %2049 = vmatpush1.msra.mxu0 0.0
  %2050 = vmatprep.subr.mxu0 0.0
  %2051 = vmatpush1.msra.mxu0 0.0
  %2052 = vmatprep.subr.mxu0 0.0
  %2053 = vmatpush1.msra.mxu0 0.0
  %2054 = vmatprep.subr.mxu0 0.0
  %2055 = vmatpush1.msra.mxu0 0.0
  %2056 = vmatprep.subr.mxu0 0.0
  %2057 = vmatpush1.msra.mxu0 0.0
  %2058 = vmatprep.subr.mxu0 0.0
  %2059 = vmatpush1.msra.mxu0 0.0
  %2060 = vmatprep.subr.mxu0 0.0
  %2061 = vmatpush1.msra.mxu0 0.0
  %2062 = vmatprep.subr.mxu0 0.0
  %2063 = vmatpush1.msra.mxu0 0.0
  %2064 = vmatprep.subr.mxu0 0.0
  %2065 = vmatpush1.msra.mxu0 0.0
  %2066 = vmatprep.subr.mxu0 0.0
  %2067 = vmatpush1.msra.mxu0 0.0
  %2068 = vmatprep.subr.mxu0 0.0
  %2069 = vmatpush1.msra.mxu0 0.0
  %2070 = vmatprep.subr.mxu0 0.0
  %2071 = vmatpush1.msra.mxu0 0.0
  %2072 = vmatprep.subr.mxu0 0.0
  %2073 = vmatpush1.msra.mxu0 0.0
  %2074 = vmatprep.subr.mxu0 0.0
  %2075 = vmatpush1.msra.mxu0 0.0
  %2076 = vmatprep.subr.mxu0 0.0
  %2077 = vmatpush1.msra.mxu0 0.0
  %2078 = vmatprep.subr.mxu0 0.0
  %2079 = vmatpush1.msra.mxu0 0.0
  %2080 = vmatprep.subr.mxu0 0.0
  %2081 = vmatpush1.msra.mxu0 0.0
  %2082 = vmatprep.subr.mxu0 0.0
  %2083 = vmatpush1.msra.mxu0 0.0
  %2084 = vmatprep.subr.mxu0 0.0
  %2085 = vmatpush1.msra.mxu0 0.0
  %2086 = vmatprep.subr.mxu0 0.0
  %2087 = vmatpush1.msra.mxu0 0.0
  %2088 = vmatprep.mubr.f32.mxu0 0.0
  %2089 = vmatmul.mubr.f32.gmra.mrb[0].mxu0 %v1874
  %v2090 = vpop.f32.mrb[0].mxu0
  %v2091 = vadd.f32 0.0, %v2090
  %v2092 = vpop.f32.mrb[0].mxu0
  %2093 = vdwg.mxu0
  %v2094 = vadd.f32 %v2023, %v2091
  %v2095 = vadd.f32 %v2094, %v789
  %s2096 = scalar_lea.vmem [#allocation5], 32
  %v2097 = vld [vmem:[%s2096] sm:$0xff]
  %2098 = vmatprep.subr.mxu0 0.0
  %2099 = vmatpush1.msra.mxu0 %v541
  %2100 = vmatprep.subr.mxu0 0.0
  %2101 = vmatpush1.msra.mxu0 %v542
  %2102 = vmatprep.subr.mxu0 0.0
  %2103 = vmatpush1.msra.mxu0 %v543
  %2104 = vmatprep.subr.mxu0 0.0
  %2105 = vmatpush1.msra.mxu0 %v544
  %2106 = vmatprep.subr.mxu0 0.0
  %2107 = vmatpush1.msra.mxu0 0.0
  %2108 = vmatprep.subr.mxu0 0.0
  %2109 = vmatpush1.msra.mxu0 0.0
  %2110 = vmatprep.subr.mxu0 0.0
  %2111 = vmatpush1.msra.mxu0 0.0
  %2112 = vmatprep.subr.mxu0 0.0
  %2113 = vmatpush1.msra.mxu0 0.0
  %2114 = vmatprep.subr.mxu0 0.0
  %2115 = vmatpush1.msra.mxu0 0.0
  %2116 = vmatprep.subr.mxu0 0.0
  %2117 = vmatpush1.msra.mxu0 0.0
  %2118 = vmatprep.subr.mxu0 0.0
  %2119 = vmatpush1.msra.mxu0 0.0
  %2120 = vmatprep.subr.mxu0 0.0
  %2121 = vmatpush1.msra.mxu0 0.0
  %2122 = vmatprep.subr.mxu0 0.0
  %2123 = vmatpush1.msra.mxu0 0.0
  %2124 = vmatprep.subr.mxu0 0.0
  %2125 = vmatpush1.msra.mxu0 0.0
  %2126 = vmatprep.subr.mxu0 0.0
  %2127 = vmatpush1.msra.mxu0 0.0
  %2128 = vmatprep.subr.mxu0 0.0
  %2129 = vmatpush1.msra.mxu0 0.0
  %2130 = vmatprep.subr.mxu0 0.0
  %2131 = vmatpush1.msra.mxu0 0.0
  %2132 = vmatprep.subr.mxu0 0.0
  %2133 = vmatpush1.msra.mxu0 0.0
  %2134 = vmatprep.subr.mxu0 0.0
  %2135 = vmatpush1.msra.mxu0 0.0
  %2136 = vmatprep.subr.mxu0 0.0
  %2137 = vmatpush1.msra.mxu0 0.0
  %2138 = vmatprep.subr.mxu0 0.0
  %2139 = vmatpush1.msra.mxu0 0.0
  %2140 = vmatprep.subr.mxu0 0.0
  %2141 = vmatpush1.msra.mxu0 0.0
  %2142 = vmatprep.subr.mxu0 0.0
  %2143 = vmatpush1.msra.mxu0 0.0
  %2144 = vmatprep.subr.mxu0 0.0
  %2145 = vmatpush1.msra.mxu0 0.0
  %2146 = vmatprep.subr.mxu0 0.0
  %2147 = vmatpush1.msra.mxu0 0.0
  %2148 = vmatprep.subr.mxu0 0.0
  %2149 = vmatpush1.msra.mxu0 0.0
  %2150 = vmatprep.subr.mxu0 0.0
  %2151 = vmatpush1.msra.mxu0 0.0
  %2152 = vmatprep.subr.mxu0 0.0
  %2153 = vmatpush1.msra.mxu0 0.0
  %2154 = vmatprep.subr.mxu0 0.0
  %2155 = vmatpush1.msra.mxu0 0.0
  %2156 = vmatprep.subr.mxu0 0.0
  %2157 = vmatpush1.msra.mxu0 0.0
  %2158 = vmatprep.subr.mxu0 0.0
  %2159 = vmatpush1.msra.mxu0 0.0
  %2160 = vmatprep.subr.mxu0 0.0
  %2161 = vmatpush1.msra.mxu0 0.0
  %2162 = vmatprep.mubr.f32.mxu0 0.0
  %2163 = vmatmul.mubr.f32.gmra.mrb[0].mxu0 %v1874
  %v2164 = vpop.f32.mrb[0].mxu0
  %v2165 = vadd.f32 0.0, %v2164
  %v2166 = vpop.f32.mrb[0].mxu0
  %2167 = vdwg.mxu0
  %v2168 = vadd.f32 %v2097, %v2165
  %v2169 = vadd.f32 %v2168, %v868
  %v2170 = vxor.u32 %v1947, 2147483648
  %v2171 = vmul.f32 %v2170, 1.442695
  %v2172 = vpow.pop %v2171
  %v2173 = vadd.f32 %v2172, 1.0
  %v2174 = vrcp.pop %v2173
  %v2175 = vmul.f32 1.0, %v2174
  %v2176 = vxor.u32 %v2021, 2147483648
  %v2177 = vmul.f32 %v2176, 1.442695
  %v2178 = vpow.pop %v2177
  %v2179 = vadd.f32 %v2178, 1.0
  %v2180 = vrcp.pop %v2179
  %v2181 = vmul.f32 1.0, %v2180
  %v2182 = vtanh.pop %v2095
  %v2183 = vxor.u32 %v2169, 2147483648
  %v2184 = vmul.f32 %v2183, 1.442695
  %v2185 = vpow.pop %v2184
  %v2186 = vadd.f32 %v2185, 1.0
  %v2187 = vrcp.pop %v2186
  %v2188 = vmul.f32 1.0, %v2187
  %v2189 = vmul.f32 %v2181, %v1866
  %v2190 = vmul.f32 %v2175, %v2182
  %v2191 = vadd.f32 %v2189, %v2190
  %v2192 = vtanh.pop %v2191
  %v2193 = vmul.f32 %v2188, %v2192
  %s2194 = scalar_lea.vmem %s4, 32
  %2195 = vst.msk [vmem:[%s2194] sm:$0xff] %vm163, %v2193
  %s2196 = scalar_lea.vmem [#allocation2], 40
  %v2197 = vld [vmem:[%s2196] sm:$0xff]
  %v2199 = vsel %vm163, %v2193, 0
  %2201 = vmatprep.subr.mxu0 0.0
  %2202 = vmatpush1.msra.mxu0 %v526
  %2203 = vmatprep.subr.mxu0 0.0
  %2204 = vmatpush1.msra.mxu0 %v527
  %2205 = vmatprep.subr.mxu0 0.0
  %2206 = vmatpush1.msra.mxu0 %v528
  %2207 = vmatprep.subr.mxu0 0.0
  %2208 = vmatpush1.msra.mxu0 %v529
  %2209 = vmatprep.subr.mxu0 0.0
  %2210 = vmatpush1.msra.mxu0 0.0
  %2211 = vmatprep.subr.mxu0 0.0
  %2212 = vmatpush1.msra.mxu0 0.0
  %2213 = vmatprep.subr.mxu0 0.0
  %2214 = vmatpush1.msra.mxu0 0.0
  %2215 = vmatprep.subr.mxu0 0.0
  %2216 = vmatpush1.msra.mxu0 0.0
  %2217 = vmatprep.subr.mxu0 0.0
  %2218 = vmatpush1.msra.mxu0 0.0
  %2219 = vmatprep.subr.mxu0 0.0
  %2220 = vmatpush1.msra.mxu0 0.0
  %2221 = vmatprep.subr.mxu0 0.0
  %2222 = vmatpush1.msra.mxu0 0.0
  %2223 = vmatprep.subr.mxu0 0.0
  %2224 = vmatpush1.msra.mxu0 0.0
  %2225 = vmatprep.subr.mxu0 0.0
  %2226 = vmatpush1.msra.mxu0 0.0
  %2227 = vmatprep.subr.mxu0 0.0
  %2228 = vmatpush1.msra.mxu0 0.0
  %2229 = vmatprep.subr.mxu0 0.0
  %2230 = vmatpush1.msra.mxu0 0.0
  %2231 = vmatprep.subr.mxu0 0.0
  %2232 = vmatpush1.msra.mxu0 0.0
  %2233 = vmatprep.subr.mxu0 0.0
  %2234 = vmatpush1.msra.mxu0 0.0
  %2235 = vmatprep.subr.mxu0 0.0
  %2236 = vmatpush1.msra.mxu0 0.0
  %2237 = vmatprep.subr.mxu0 0.0
  %2238 = vmatpush1.msra.mxu0 0.0
  %2239 = vmatprep.subr.mxu0 0.0
  %2240 = vmatpush1.msra.mxu0 0.0
  %2241 = vmatprep.subr.mxu0 0.0
  %2242 = vmatpush1.msra.mxu0 0.0
  %2243 = vmatprep.subr.mxu0 0.0
  %2244 = vmatpush1.msra.mxu0 0.0
  %2245 = vmatprep.subr.mxu0 0.0
  %2246 = vmatpush1.msra.mxu0 0.0
  %2247 = vmatprep.subr.mxu0 0.0
  %2248 = vmatpush1.msra.mxu0 0.0
  %2249 = vmatprep.subr.mxu0 0.0
  %2250 = vmatpush1.msra.mxu0 0.0
  %2251 = vmatprep.subr.mxu0 0.0
  %2252 = vmatpush1.msra.mxu0 0.0
  %2253 = vmatprep.subr.mxu0 0.0
  %2254 = vmatpush1.msra.mxu0 0.0
  %2255 = vmatprep.subr.mxu0 0.0
  %2256 = vmatpush1.msra.mxu0 0.0
  %2257 = vmatprep.subr.mxu0 0.0
  %2258 = vmatpush1.msra.mxu0 0.0
  %2259 = vmatprep.subr.mxu0 0.0
  %2260 = vmatpush1.msra.mxu0 0.0
  %2261 = vmatprep.subr.mxu0 0.0
  %2262 = vmatpush1.msra.mxu0 0.0
  %2263 = vmatprep.subr.mxu0 0.0
  %2264 = vmatpush1.msra.mxu0 0.0
  %2265 = vmatprep.mubr.f32.mxu0 0.0
  %2266 = vmatmul.mubr.f32.gmra.mrb[0].mxu0 %v2199
  %v2267 = vpop.f32.mrb[0].mxu0
  %v2268 = vadd.f32 0.0, %v2267
  %v2269 = vpop.f32.mrb[0].mxu0
  %2270 = vdwg.mxu0
  %v2271 = vadd.f32 %v2197, %v2268
  %v2272 = vadd.f32 %v2271, %v631
  %s2273 = scalar_lea.vmem [#allocation3], 40
  %v2274 = vld [vmem:[%s2273] sm:$0xff]
  %2275 = vmatprep.subr.mxu0 0.0
  %2276 = vmatpush1.msra.mxu0 %v531
  %2277 = vmatprep.subr.mxu0 0.0
  %2278 = vmatpush1.msra.mxu0 %v532
  %2279 = vmatprep.subr.mxu0 0.0
  %2280 = vmatpush1.msra.mxu0 %v533
  %2281 = vmatprep.subr.mxu0 0.0
  %2282 = vmatpush1.msra.mxu0 %v534
  %2283 = vmatprep.subr.mxu0 0.0
  %2284 = vmatpush1.msra.mxu0 0.0
  %2285 = vmatprep.subr.mxu0 0.0
  %2286 = vmatpush1.msra.mxu0 0.0
  %2287 = vmatprep.subr.mxu0 0.0
  %2288 = vmatpush1.msra.mxu0 0.0
  %2289 = vmatprep.subr.mxu0 0.0
  %2290 = vmatpush1.msra.mxu0 0.0
  %2291 = vmatprep.subr.mxu0 0.0
  %2292 = vmatpush1.msra.mxu0 0.0
  %2293 = vmatprep.subr.mxu0 0.0
  %2294 = vmatpush1.msra.mxu0 0.0
  %2295 = vmatprep.subr.mxu0 0.0
  %2296 = vmatpush1.msra.mxu0 0.0
  %2297 = vmatprep.subr.mxu0 0.0
  %2298 = vmatpush1.msra.mxu0 0.0
  %2299 = vmatprep.subr.mxu0 0.0
  %2300 = vmatpush1.msra.mxu0 0.0
  %2301 = vmatprep.subr.mxu0 0.0
  %2302 = vmatpush1.msra.mxu0 0.0
  %2303 = vmatprep.subr.mxu0 0.0
  %2304 = vmatpush1.msra.mxu0 0.0
  %2305 = vmatprep.subr.mxu0 0.0
  %2306 = vmatpush1.msra.mxu0 0.0
  %2307 = vmatprep.subr.mxu0 0.0
  %2308 = vmatpush1.msra.mxu0 0.0
  %2309 = vmatprep.subr.mxu0 0.0
  %2310 = vmatpush1.msra.mxu0 0.0
  %2311 = vmatprep.subr.mxu0 0.0
  %2312 = vmatpush1.msra.mxu0 0.0
  %2313 = vmatprep.subr.mxu0 0.0
  %2314 = vmatpush1.msra.mxu0 0.0
  %2315 = vmatprep.subr.mxu0 0.0
  %2316 = vmatpush1.msra.mxu0 0.0
  %2317 = vmatprep.subr.mxu0 0.0
  %2318 = vmatpush1.msra.mxu0 0.0
  %2319 = vmatprep.subr.mxu0 0.0
  %2320 = vmatpush1.msra.mxu0 0.0
  %2321 = vmatprep.subr.mxu0 0.0
  %2322 = vmatpush1.msra.mxu0 0.0
  %2323 = vmatprep.subr.mxu0 0.0
  %2324 = vmatpush1.msra.mxu0 0.0
  %2325 = vmatprep.subr.mxu0 0.0
  %2326 = vmatpush1.msra.mxu0 0.0
  %2327 = vmatprep.subr.mxu0 0.0
  %2328 = vmatpush1.msra.mxu0 0.0
  %2329 = vmatprep.subr.mxu0 0.0
  %2330 = vmatpush1.msra.mxu0 0.0
  %2331 = vmatprep.subr.mxu0 0.0
  %2332 = vmatpush1.msra.mxu0 0.0
  %2333 = vmatprep.subr.mxu0 0.0
  %2334 = vmatpush1.msra.mxu0 0.0
  %2335 = vmatprep.subr.mxu0 0.0
  %2336 = vmatpush1.msra.mxu0 0.0
  %2337 = vmatprep.subr.mxu0 0.0
  %2338 = vmatpush1.msra.mxu0 0.0
  %2339 = vmatprep.mubr.f32.mxu0 0.0
  %2340 = vmatmul.mubr.f32.gmra.mrb[0].mxu0 %v2199
  %v2341 = vpop.f32.mrb[0].mxu0
  %v2342 = vadd.f32 0.0, %v2341
  %v2343 = vpop.f32.mrb[0].mxu0
  %2344 = vdwg.mxu0
  %v2345 = vadd.f32 %v2274, %v2342
  %v2346 = vadd.f32 %v2345, %v710
  %s2347 = scalar_lea.vmem [#allocation4], 40
  %v2348 = vld [vmem:[%s2347] sm:$0xff]
  %2349 = vmatprep.subr.mxu0 0.0
  %2350 = vmatpush1.msra.mxu0 %v536
  %2351 = vmatprep.subr.mxu0 0.0
  %2352 = vmatpush1.msra.mxu0 %v537
  %2353 = vmatprep.subr.mxu0 0.0
  %2354 = vmatpush1.msra.mxu0 %v538
  %2355 = vmatprep.subr.mxu0 0.0
  %2356 = vmatpush1.msra.mxu0 %v539
  %2357 = vmatprep.subr.mxu0 0.0
  %2358 = vmatpush1.msra.mxu0 0.0
  %2359 = vmatprep.subr.mxu0 0.0
  %2360 = vmatpush1.msra.mxu0 0.0
  %2361 = vmatprep.subr.mxu0 0.0
  %2362 = vmatpush1.msra.mxu0 0.0
  %2363 = vmatprep.subr.mxu0 0.0
  %2364 = vmatpush1.msra.mxu0 0.0
  %2365 = vmatprep.subr.mxu0 0.0
  %2366 = vmatpush1.msra.mxu0 0.0
  %2367 = vmatprep.subr.mxu0 0.0
  %2368 = vmatpush1.msra.mxu0 0.0
  %2369 = vmatprep.subr.mxu0 0.0
  %2370 = vmatpush1.msra.mxu0 0.0
  %2371 = vmatprep.subr.mxu0 0.0
  %2372 = vmatpush1.msra.mxu0 0.0
  %2373 = vmatprep.subr.mxu0 0.0
  %2374 = vmatpush1.msra.mxu0 0.0
  %2375 = vmatprep.subr.mxu0 0.0
  %2376 = vmatpush1.msra.mxu0 0.0
  %2377 = vmatprep.subr.mxu0 0.0
  %2378 = vmatpush1.msra.mxu0 0.0
  %2379 = vmatprep.subr.mxu0 0.0
  %2380 = vmatpush1.msra.mxu0 0.0
  %2381 = vmatprep.subr.mxu0 0.0
  %2382 = vmatpush1.msra.mxu0 0.0
  %2383 = vmatprep.subr.mxu0 0.0
  %2384 = vmatpush1.msra.mxu0 0.0
  %2385 = vmatprep.subr.mxu0 0.0
  %2386 = vmatpush1.msra.mxu0 0.0
  %2387 = vmatprep.subr.mxu0 0.0
  %2388 = vmatpush1.msra.mxu0 0.0
  %2389 = vmatprep.subr.mxu0 0.0
  %2390 = vmatpush1.msra.mxu0 0.0
  %2391 = vmatprep.subr.mxu0 0.0
  %2392 = vmatpush1.msra.mxu0 0.0
  %2393 = vmatprep.subr.mxu0 0.0
  %2394 = vmatpush1.msra.mxu0 0.0
  %2395 = vmatprep.subr.mxu0 0.0
  %2396 = vmatpush1.msra.mxu0 0.0
  %2397 = vmatprep.subr.mxu0 0.0
  %2398 = vmatpush1.msra.mxu0 0.0
  %2399 = vmatprep.subr.mxu0 0.0
  %2400 = vmatpush1.msra.mxu0 0.0
  %2401 = vmatprep.subr.mxu0 0.0
  %2402 = vmatpush1.msra.mxu0 0.0
  %2403 = vmatprep.subr.mxu0 0.0
  %2404 = vmatpush1.msra.mxu0 0.0
  %2405 = vmatprep.subr.mxu0 0.0
  %2406 = vmatpush1.msra.mxu0 0.0
  %2407 = vmatprep.subr.mxu0 0.0
  %2408 = vmatpush1.msra.mxu0 0.0
  %2409 = vmatprep.subr.mxu0 0.0
  %2410 = vmatpush1.msra.mxu0 0.0
  %2411 = vmatprep.subr.mxu0 0.0
  %2412 = vmatpush1.msra.mxu0 0.0
  %2413 = vmatprep.mubr.f32.mxu0 0.0
  %2414 = vmatmul.mubr.f32.gmra.mrb[0].mxu0 %v2199
  %v2415 = vpop.f32.mrb[0].mxu0
  %v2416 = vadd.f32 0.0, %v2415
  %v2417 = vpop.f32.mrb[0].mxu0
  %2418 = vdwg.mxu0
  %v2419 = vadd.f32 %v2348, %v2416
  %v2420 = vadd.f32 %v2419, %v789
  %s2421 = scalar_lea.vmem [#allocation5], 40
  %v2422 = vld [vmem:[%s2421] sm:$0xff]
  %2423 = vmatprep.subr.mxu0 0.0
  %2424 = vmatpush1.msra.mxu0 %v541
  %2425 = vmatprep.subr.mxu0 0.0
  %2426 = vmatpush1.msra.mxu0 %v542
  %2427 = vmatprep.subr.mxu0 0.0
  %2428 = vmatpush1.msra.mxu0 %v543
  %2429 = vmatprep.subr.mxu0 0.0
  %2430 = vmatpush1.msra.mxu0 %v544
  %2431 = vmatprep.subr.mxu0 0.0
  %2432 = vmatpush1.msra.mxu0 0.0
  %2433 = vmatprep.subr.mxu0 0.0
  %2434 = vmatpush1.msra.mxu0 0.0
  %2435 = vmatprep.subr.mxu0 0.0
  %2436 = vmatpush1.msra.mxu0 0.0
  %2437 = vmatprep.subr.mxu0 0.0
  %2438 = vmatpush1.msra.mxu0 0.0
  %2439 = vmatprep.subr.mxu0 0.0
  %2440 = vmatpush1.msra.mxu0 0.0
  %2441 = vmatprep.subr.mxu0 0.0
  %2442 = vmatpush1.msra.mxu0 0.0
  %2443 = vmatprep.subr.mxu0 0.0
  %2444 = vmatpush1.msra.mxu0 0.0
  %2445 = vmatprep.subr.mxu0 0.0
  %2446 = vmatpush1.msra.mxu0 0.0
  %2447 = vmatprep.subr.mxu0 0.0
  %2448 = vmatpush1.msra.mxu0 0.0
  %2449 = vmatprep.subr.mxu0 0.0
  %2450 = vmatpush1.msra.mxu0 0.0
  %2451 = vmatprep.subr.mxu0 0.0
  %2452 = vmatpush1.msra.mxu0 0.0
  %2453 = vmatprep.subr.mxu0 0.0
  %2454 = vmatpush1.msra.mxu0 0.0
  %2455 = vmatprep.subr.mxu0 0.0
  %2456 = vmatpush1.msra.mxu0 0.0
  %2457 = vmatprep.subr.mxu0 0.0
  %2458 = vmatpush1.msra.mxu0 0.0
  %2459 = vmatprep.subr.mxu0 0.0
  %2460 = vmatpush1.msra.mxu0 0.0
  %2461 = vmatprep.subr.mxu0 0.0
  %2462 = vmatpush1.msra.mxu0 0.0
  %2463 = vmatprep.subr.mxu0 0.0
  %2464 = vmatpush1.msra.mxu0 0.0
  %2465 = vmatprep.subr.mxu0 0.0
  %2466 = vmatpush1.msra.mxu0 0.0
  %2467 = vmatprep.subr.mxu0 0.0
  %2468 = vmatpush1.msra.mxu0 0.0
  %2469 = vmatprep.subr.mxu0 0.0
  %2470 = vmatpush1.msra.mxu0 0.0
  %2471 = vmatprep.subr.mxu0 0.0
  %2472 = vmatpush1.msra.mxu0 0.0
  %2473 = vmatprep.subr.mxu0 0.0
  %2474 = vmatpush1.msra.mxu0 0.0
  %2475 = vmatprep.subr.mxu0 0.0
  %2476 = vmatpush1.msra.mxu0 0.0
  %2477 = vmatprep.subr.mxu0 0.0
  %2478 = vmatpush1.msra.mxu0 0.0
  %2479 = vmatprep.subr.mxu0 0.0
  %2480 = vmatpush1.msra.mxu0 0.0
  %2481 = vmatprep.subr.mxu0 0.0
  %2482 = vmatpush1.msra.mxu0 0.0
  %2483 = vmatprep.subr.mxu0 0.0
  %2484 = vmatpush1.msra.mxu0 0.0
  %2485 = vmatprep.subr.mxu0 0.0
  %2486 = vmatpush1.msra.mxu0 0.0
  %2487 = vmatprep.mubr.f32.mxu0 0.0
  %2488 = vmatmul.mubr.f32.gmra.mrb[0].mxu0 %v2199
  %v2489 = vpop.f32.mrb[0].mxu0
  %v2490 = vadd.f32 0.0, %v2489
  %v2491 = vpop.f32.mrb[0].mxu0
  %2492 = vdwg.mxu0
  %v2493 = vadd.f32 %v2422, %v2490
  %v2494 = vadd.f32 %v2493, %v868
  %v2495 = vxor.u32 %v2272, 2147483648
  %v2496 = vmul.f32 %v2495, 1.442695
  %v2497 = vpow.pop %v2496
  %v2498 = vadd.f32 %v2497, 1.0
  %v2499 = vrcp.pop %v2498
  %v2500 = vmul.f32 1.0, %v2499
  %v2501 = vxor.u32 %v2346, 2147483648
  %v2502 = vmul.f32 %v2501, 1.442695
  %v2503 = vpow.pop %v2502
  %v2504 = vadd.f32 %v2503, 1.0
  %v2505 = vrcp.pop %v2504
  %v2506 = vmul.f32 1.0, %v2505
  %v2507 = vtanh.pop %v2420
  %v2508 = vxor.u32 %v2494, 2147483648
  %v2509 = vmul.f32 %v2508, 1.442695
  %v2510 = vpow.pop %v2509
  %v2511 = vadd.f32 %v2510, 1.0
  %v2512 = vrcp.pop %v2511
  %v2513 = vmul.f32 1.0, %v2512
  %v2514 = vmul.f32 %v2506, %v2191
  %v2515 = vmul.f32 %v2500, %v2507
  %v2516 = vadd.f32 %v2514, %v2515
  %v2517 = vtanh.pop %v2516
  %v2518 = vmul.f32 %v2513, %v2517
  %s2519 = scalar_lea.vmem %s4, 40
  %2520 = vst.msk [vmem:[%s2519] sm:$0xff] %vm163, %v2518
  %s2521 = scalar_lea.vmem [#allocation2], 48
  %v2522 = vld [vmem:[%s2521] sm:$0xff]
  %v2524 = vsel %vm163, %v2518, 0
  %2526 = vmatprep.subr.mxu0 0.0
  %2527 = vmatpush1.msra.mxu0 %v526
  %2528 = vmatprep.subr.mxu0 0.0
  %2529 = vmatpush1.msra.mxu0 %v527
  %2530 = vmatprep.subr.mxu0 0.0
  %2531 = vmatpush1.msra.mxu0 %v528
  %2532 = vmatprep.subr.mxu0 0.0
  %2533 = vmatpush1.msra.mxu0 %v529
  %2534 = vmatprep.subr.mxu0 0.0
  %2535 = vmatpush1.msra.mxu0 0.0
  %2536 = vmatprep.subr.mxu0 0.0
  %2537 = vmatpush1.msra.mxu0 0.0
  %2538 = vmatprep.subr.mxu0 0.0
  %2539 = vmatpush1.msra.mxu0 0.0
  %2540 = vmatprep.subr.mxu0 0.0
  %2541 = vmatpush1.msra.mxu0 0.0
  %2542 = vmatprep.subr.mxu0 0.0
  %2543 = vmatpush1.msra.mxu0 0.0
  %2544 = vmatprep.subr.mxu0 0.0
  %2545 = vmatpush1.msra.mxu0 0.0
  %2546 = vmatprep.subr.mxu0 0.0
  %2547 = vmatpush1.msra.mxu0 0.0
  %2548 = vmatprep.subr.mxu0 0.0
  %2549 = vmatpush1.msra.mxu0 0.0
  %2550 = vmatprep.subr.mxu0 0.0
  %2551 = vmatpush1.msra.mxu0 0.0
  %2552 = vmatprep.subr.mxu0 0.0
  %2553 = vmatpush1.msra.mxu0 0.0
  %2554 = vmatprep.subr.mxu0 0.0
  %2555 = vmatpush1.msra.mxu0 0.0
  %2556 = vmatprep.subr.mxu0 0.0
  %2557 = vmatpush1.msra.mxu0 0.0
  %2558 = vmatprep.subr.mxu0 0.0
  %2559 = vmatpush1.msra.mxu0 0.0
  %2560 = vmatprep.subr.mxu0 0.0
  %2561 = vmatpush1.msra.mxu0 0.0
  %2562 = vmatprep.subr.mxu0 0.0
  %2563 = vmatpush1.msra.mxu0 0.0
  %2564 = vmatprep.subr.mxu0 0.0
  %2565 = vmatpush1.msra.mxu0 0.0
  %2566 = vmatprep.subr.mxu0 0.0
  %2567 = vmatpush1.msra.mxu0 0.0
  %2568 = vmatprep.subr.mxu0 0.0
  %2569 = vmatpush1.msra.mxu0 0.0
  %2570 = vmatprep.subr.mxu0 0.0
  %2571 = vmatpush1.msra.mxu0 0.0
  %2572 = vmatprep.subr.mxu0 0.0
  %2573 = vmatpush1.msra.mxu0 0.0
  %2574 = vmatprep.subr.mxu0 0.0
  %2575 = vmatpush1.msra.mxu0 0.0
  %2576 = vmatprep.subr.mxu0 0.0
  %2577 = vmatpush1.msra.mxu0 0.0
  %2578 = vmatprep.subr.mxu0 0.0
  %2579 = vmatpush1.msra.mxu0 0.0
  %2580 = vmatprep.subr.mxu0 0.0
  %2581 = vmatpush1.msra.mxu0 0.0
  %2582 = vmatprep.subr.mxu0 0.0
  %2583 = vmatpush1.msra.mxu0 0.0
  %2584 = vmatprep.subr.mxu0 0.0
  %2585 = vmatpush1.msra.mxu0 0.0
  %2586 = vmatprep.subr.mxu0 0.0
  %2587 = vmatpush1.msra.mxu0 0.0
  %2588 = vmatprep.subr.mxu0 0.0
  %2589 = vmatpush1.msra.mxu0 0.0
  %2590 = vmatprep.mubr.f32.mxu0 0.0
  %2591 = vmatmul.mubr.f32.gmra.mrb[0].mxu0 %v2524
  %v2592 = vpop.f32.mrb[0].mxu0
  %v2593 = vadd.f32 0.0, %v2592
  %v2594 = vpop.f32.mrb[0].mxu0
  %2595 = vdwg.mxu0
  %v2596 = vadd.f32 %v2522, %v2593
  %v2597 = vadd.f32 %v2596, %v631
  %s2598 = scalar_lea.vmem [#allocation3], 48
  %v2599 = vld [vmem:[%s2598] sm:$0xff]
  %2600 = vmatprep.subr.mxu0 0.0
  %2601 = vmatpush1.msra.mxu0 %v531
  %2602 = vmatprep.subr.mxu0 0.0
  %2603 = vmatpush1.msra.mxu0 %v532
  %2604 = vmatprep.subr.mxu0 0.0
  %2605 = vmatpush1.msra.mxu0 %v533
  %2606 = vmatprep.subr.mxu0 0.0
  %2607 = vmatpush1.msra.mxu0 %v534
  %2608 = vmatprep.subr.mxu0 0.0
  %2609 = vmatpush1.msra.mxu0 0.0
  %2610 = vmatprep.subr.mxu0 0.0
  %2611 = vmatpush1.msra.mxu0 0.0
  %2612 = vmatprep.subr.mxu0 0.0
  %2613 = vmatpush1.msra.mxu0 0.0
  %2614 = vmatprep.subr.mxu0 0.0
  %2615 = vmatpush1.msra.mxu0 0.0
  %2616 = vmatprep.subr.mxu0 0.0
  %2617 = vmatpush1.msra.mxu0 0.0
  %2618 = vmatprep.subr.mxu0 0.0
  %2619 = vmatpush1.msra.mxu0 0.0
  %2620 = vmatprep.subr.mxu0 0.0
  %2621 = vmatpush1.msra.mxu0 0.0
  %2622 = vmatprep.subr.mxu0 0.0
  %2623 = vmatpush1.msra.mxu0 0.0
  %2624 = vmatprep.subr.mxu0 0.0
  %2625 = vmatpush1.msra.mxu0 0.0
  %2626 = vmatprep.subr.mxu0 0.0
  %2627 = vmatpush1.msra.mxu0 0.0
  %2628 = vmatprep.subr.mxu0 0.0
  %2629 = vmatpush1.msra.mxu0 0.0
  %2630 = vmatprep.subr.mxu0 0.0
  %2631 = vmatpush1.msra.mxu0 0.0
  %2632 = vmatprep.subr.mxu0 0.0
  %2633 = vmatpush1.msra.mxu0 0.0
  %2634 = vmatprep.subr.mxu0 0.0
  %2635 = vmatpush1.msra.mxu0 0.0
  %2636 = vmatprep.subr.mxu0 0.0
  %2637 = vmatpush1.msra.mxu0 0.0
  %2638 = vmatprep.subr.mxu0 0.0
  %2639 = vmatpush1.msra.mxu0 0.0
  %2640 = vmatprep.subr.mxu0 0.0
  %2641 = vmatpush1.msra.mxu0 0.0
  %2642 = vmatprep.subr.mxu0 0.0
  %2643 = vmatpush1.msra.mxu0 0.0
  %2644 = vmatprep.subr.mxu0 0.0
  %2645 = vmatpush1.msra.mxu0 0.0
  %2646 = vmatprep.subr.mxu0 0.0
  %2647 = vmatpush1.msra.mxu0 0.0
  %2648 = vmatprep.subr.mxu0 0.0
  %2649 = vmatpush1.msra.mxu0 0.0
  %2650 = vmatprep.subr.mxu0 0.0
  %2651 = vmatpush1.msra.mxu0 0.0
  %2652 = vmatprep.subr.mxu0 0.0
  %2653 = vmatpush1.msra.mxu0 0.0
  %2654 = vmatprep.subr.mxu0 0.0
  %2655 = vmatpush1.msra.mxu0 0.0
  %2656 = vmatprep.subr.mxu0 0.0
  %2657 = vmatpush1.msra.mxu0 0.0
  %2658 = vmatprep.subr.mxu0 0.0
  %2659 = vmatpush1.msra.mxu0 0.0
  %2660 = vmatprep.subr.mxu0 0.0
  %2661 = vmatpush1.msra.mxu0 0.0
  %2662 = vmatprep.subr.mxu0 0.0
  %2663 = vmatpush1.msra.mxu0 0.0
  %2664 = vmatprep.mubr.f32.mxu0 0.0
  %2665 = vmatmul.mubr.f32.gmra.mrb[0].mxu0 %v2524
  %v2666 = vpop.f32.mrb[0].mxu0
  %v2667 = vadd.f32 0.0, %v2666
  %v2668 = vpop.f32.mrb[0].mxu0
  %2669 = vdwg.mxu0
  %v2670 = vadd.f32 %v2599, %v2667
  %v2671 = vadd.f32 %v2670, %v710
  %s2672 = scalar_lea.vmem [#allocation4], 48
  %v2673 = vld [vmem:[%s2672] sm:$0xff]
  %2674 = vmatprep.subr.mxu0 0.0
  %2675 = vmatpush1.msra.mxu0 %v536
  %2676 = vmatprep.subr.mxu0 0.0
  %2677 = vmatpush1.msra.mxu0 %v537
  %2678 = vmatprep.subr.mxu0 0.0
  %2679 = vmatpush1.msra.mxu0 %v538
  %2680 = vmatprep.subr.mxu0 0.0
  %2681 = vmatpush1.msra.mxu0 %v539
  %2682 = vmatprep.subr.mxu0 0.0
  %2683 = vmatpush1.msra.mxu0 0.0
  %2684 = vmatprep.subr.mxu0 0.0
  %2685 = vmatpush1.msra.mxu0 0.0
  %2686 = vmatprep.subr.mxu0 0.0
  %2687 = vmatpush1.msra.mxu0 0.0
  %2688 = vmatprep.subr.mxu0 0.0
  %2689 = vmatpush1.msra.mxu0 0.0
  %2690 = vmatprep.subr.mxu0 0.0
  %2691 = vmatpush1.msra.mxu0 0.0
  %2692 = vmatprep.subr.mxu0 0.0
  %2693 = vmatpush1.msra.mxu0 0.0
  %2694 = vmatprep.subr.mxu0 0.0
  %2695 = vmatpush1.msra.mxu0 0.0
  %2696 = vmatprep.subr.mxu0 0.0
  %2697 = vmatpush1.msra.mxu0 0.0
  %2698 = vmatprep.subr.mxu0 0.0
  %2699 = vmatpush1.msra.mxu0 0.0
  %2700 = vmatprep.subr.mxu0 0.0
  %2701 = vmatpush1.msra.mxu0 0.0
  %2702 = vmatprep.subr.mxu0 0.0
  %2703 = vmatpush1.msra.mxu0 0.0
  %2704 = vmatprep.subr.mxu0 0.0
  %2705 = vmatpush1.msra.mxu0 0.0
  %2706 = vmatprep.subr.mxu0 0.0
  %2707 = vmatpush1.msra.mxu0 0.0
  %2708 = vmatprep.subr.mxu0 0.0
  %2709 = vmatpush1.msra.mxu0 0.0
  %2710 = vmatprep.subr.mxu0 0.0
  %2711 = vmatpush1.msra.mxu0 0.0
  %2712 = vmatprep.subr.mxu0 0.0
  %2713 = vmatpush1.msra.mxu0 0.0
  %2714 = vmatprep.subr.mxu0 0.0
  %2715 = vmatpush1.msra.mxu0 0.0
  %2716 = vmatprep.subr.mxu0 0.0
  %2717 = vmatpush1.msra.mxu0 0.0
  %2718 = vmatprep.subr.mxu0 0.0
  %2719 = vmatpush1.msra.mxu0 0.0
  %2720 = vmatprep.subr.mxu0 0.0
  %2721 = vmatpush1.msra.mxu0 0.0
  %2722 = vmatprep.subr.mxu0 0.0
  %2723 = vmatpush1.msra.mxu0 0.0
  %2724 = vmatprep.subr.mxu0 0.0
  %2725 = vmatpush1.msra.mxu0 0.0
  %2726 = vmatprep.subr.mxu0 0.0
  %2727 = vmatpush1.msra.mxu0 0.0
  %2728 = vmatprep.subr.mxu0 0.0
  %2729 = vmatpush1.msra.mxu0 0.0
  %2730 = vmatprep.subr.mxu0 0.0
  %2731 = vmatpush1.msra.mxu0 0.0
  %2732 = vmatprep.subr.mxu0 0.0
  %2733 = vmatpush1.msra.mxu0 0.0
  %2734 = vmatprep.subr.mxu0 0.0
  %2735 = vmatpush1.msra.mxu0 0.0
  %2736 = vmatprep.subr.mxu0 0.0
  %2737 = vmatpush1.msra.mxu0 0.0
  %2738 = vmatprep.mubr.f32.mxu0 0.0
  %2739 = vmatmul.mubr.f32.gmra.mrb[0].mxu0 %v2524
  %v2740 = vpop.f32.mrb[0].mxu0
  %v2741 = vadd.f32 0.0, %v2740
  %v2742 = vpop.f32.mrb[0].mxu0
  %2743 = vdwg.mxu0
  %v2744 = vadd.f32 %v2673, %v2741
  %v2745 = vadd.f32 %v2744, %v789
  %s2746 = scalar_lea.vmem [#allocation5], 48
  %v2747 = vld [vmem:[%s2746] sm:$0xff]
  %2748 = vmatprep.subr.mxu0 0.0
  %2749 = vmatpush1.msra.mxu0 %v541
  %2750 = vmatprep.subr.mxu0 0.0
  %2751 = vmatpush1.msra.mxu0 %v542
  %2752 = vmatprep.subr.mxu0 0.0
  %2753 = vmatpush1.msra.mxu0 %v543
  %2754 = vmatprep.subr.mxu0 0.0
  %2755 = vmatpush1.msra.mxu0 %v544
  %2756 = vmatprep.subr.mxu0 0.0
  %2757 = vmatpush1.msra.mxu0 0.0
  %2758 = vmatprep.subr.mxu0 0.0
  %2759 = vmatpush1.msra.mxu0 0.0
  %2760 = vmatprep.subr.mxu0 0.0
  %2761 = vmatpush1.msra.mxu0 0.0
  %2762 = vmatprep.subr.mxu0 0.0
  %2763 = vmatpush1.msra.mxu0 0.0
  %2764 = vmatprep.subr.mxu0 0.0
  %2765 = vmatpush1.msra.mxu0 0.0
  %2766 = vmatprep.subr.mxu0 0.0
  %2767 = vmatpush1.msra.mxu0 0.0
  %2768 = vmatprep.subr.mxu0 0.0
  %2769 = vmatpush1.msra.mxu0 0.0
  %2770 = vmatprep.subr.mxu0 0.0
  %2771 = vmatpush1.msra.mxu0 0.0
  %2772 = vmatprep.subr.mxu0 0.0
  %2773 = vmatpush1.msra.mxu0 0.0
  %2774 = vmatprep.subr.mxu0 0.0
  %2775 = vmatpush1.msra.mxu0 0.0
  %2776 = vmatprep.subr.mxu0 0.0
  %2777 = vmatpush1.msra.mxu0 0.0
  %2778 = vmatprep.subr.mxu0 0.0
  %2779 = vmatpush1.msra.mxu0 0.0
  %2780 = vmatprep.subr.mxu0 0.0
  %2781 = vmatpush1.msra.mxu0 0.0
  %2782 = vmatprep.subr.mxu0 0.0
  %2783 = vmatpush1.msra.mxu0 0.0
  %2784 = vmatprep.subr.mxu0 0.0
  %2785 = vmatpush1.msra.mxu0 0.0
  %2786 = vmatprep.subr.mxu0 0.0
  %2787 = vmatpush1.msra.mxu0 0.0
  %2788 = vmatprep.subr.mxu0 0.0
  %2789 = vmatpush1.msra.mxu0 0.0
  %2790 = vmatprep.subr.mxu0 0.0
  %2791 = vmatpush1.msra.mxu0 0.0
  %2792 = vmatprep.subr.mxu0 0.0
  %2793 = vmatpush1.msra.mxu0 0.0
  %2794 = vmatprep.subr.mxu0 0.0
  %2795 = vmatpush1.msra.mxu0 0.0
  %2796 = vmatprep.subr.mxu0 0.0
  %2797 = vmatpush1.msra.mxu0 0.0
  %2798 = vmatprep.subr.mxu0 0.0
  %2799 = vmatpush1.msra.mxu0 0.0
  %2800 = vmatprep.subr.mxu0 0.0
  %2801 = vmatpush1.msra.mxu0 0.0
  %2802 = vmatprep.subr.mxu0 0.0
  %2803 = vmatpush1.msra.mxu0 0.0
  %2804 = vmatprep.subr.mxu0 0.0
  %2805 = vmatpush1.msra.mxu0 0.0
  %2806 = vmatprep.subr.mxu0 0.0
  %2807 = vmatpush1.msra.mxu0 0.0
  %2808 = vmatprep.subr.mxu0 0.0
  %2809 = vmatpush1.msra.mxu0 0.0
  %2810 = vmatprep.subr.mxu0 0.0
  %2811 = vmatpush1.msra.mxu0 0.0
  %2812 = vmatprep.mubr.f32.mxu0 0.0
  %2813 = vmatmul.mubr.f32.gmra.mrb[0].mxu0 %v2524
  %v2814 = vpop.f32.mrb[0].mxu0
  %v2815 = vadd.f32 0.0, %v2814
  %v2816 = vpop.f32.mrb[0].mxu0
  %2817 = vdwg.mxu0
  %v2818 = vadd.f32 %v2747, %v2815
  %v2819 = vadd.f32 %v2818, %v868
  %v2820 = vxor.u32 %v2597, 2147483648
  %v2821 = vmul.f32 %v2820, 1.442695
  %v2822 = vpow.pop %v2821
  %v2823 = vadd.f32 %v2822, 1.0
  %v2824 = vrcp.pop %v2823
  %v2825 = vmul.f32 1.0, %v2824
  %v2826 = vxor.u32 %v2671, 2147483648
  %v2827 = vmul.f32 %v2826, 1.442695
  %v2828 = vpow.pop %v2827
  %v2829 = vadd.f32 %v2828, 1.0
  %v2830 = vrcp.pop %v2829
  %v2831 = vmul.f32 1.0, %v2830
  %v2832 = vtanh.pop %v2745
  %v2833 = vxor.u32 %v2819, 2147483648
  %v2834 = vmul.f32 %v2833, 1.442695
  %v2835 = vpow.pop %v2834
  %v2836 = vadd.f32 %v2835, 1.0
  %v2837 = vrcp.pop %v2836
  %v2838 = vmul.f32 1.0, %v2837
  %v2839 = vmul.f32 %v2831, %v2516
  %v2840 = vmul.f32 %v2825, %v2832
  %v2841 = vadd.f32 %v2839, %v2840
  %v2842 = vtanh.pop %v2841
  %v2843 = vmul.f32 %v2838, %v2842
  %s2844 = scalar_lea.vmem %s4, 48
  %2845 = vst.msk [vmem:[%s2844] sm:$0xff] %vm163, %v2843
  %s2846 = scalar_lea.vmem [#allocation2], 56
  %v2847 = vld [vmem:[%s2846] sm:$0xff]
  %v2849 = vsel %vm163, %v2843, 0
  %2851 = vmatprep.subr.mxu0 0.0
  %2852 = vmatpush1.msra.mxu0 %v526
  %2853 = vmatprep.subr.mxu0 0.0
  %2854 = vmatpush1.msra.mxu0 %v527
  %2855 = vmatprep.subr.mxu0 0.0
  %2856 = vmatpush1.msra.mxu0 %v528
  %2857 = vmatprep.subr.mxu0 0.0
  %2858 = vmatpush1.msra.mxu0 %v529
  %2859 = vmatprep.subr.mxu0 0.0
  %2860 = vmatpush1.msra.mxu0 0.0
  %2861 = vmatprep.subr.mxu0 0.0
  %2862 = vmatpush1.msra.mxu0 0.0
  %2863 = vmatprep.subr.mxu0 0.0
  %2864 = vmatpush1.msra.mxu0 0.0
  %2865 = vmatprep.subr.mxu0 0.0
  %2866 = vmatpush1.msra.mxu0 0.0
  %2867 = vmatprep.subr.mxu0 0.0
  %2868 = vmatpush1.msra.mxu0 0.0
  %2869 = vmatprep.subr.mxu0 0.0
  %2870 = vmatpush1.msra.mxu0 0.0
  %2871 = vmatprep.subr.mxu0 0.0
  %2872 = vmatpush1.msra.mxu0 0.0
  %2873 = vmatprep.subr.mxu0 0.0
  %2874 = vmatpush1.msra.mxu0 0.0
  %2875 = vmatprep.subr.mxu0 0.0
  %2876 = vmatpush1.msra.mxu0 0.0
  %2877 = vmatprep.subr.mxu0 0.0
  %2878 = vmatpush1.msra.mxu0 0.0
  %2879 = vmatprep.subr.mxu0 0.0
  %2880 = vmatpush1.msra.mxu0 0.0
  %2881 = vmatprep.subr.mxu0 0.0
  %2882 = vmatpush1.msra.mxu0 0.0
  %2883 = vmatprep.subr.mxu0 0.0
  %2884 = vmatpush1.msra.mxu0 0.0
  %2885 = vmatprep.subr.mxu0 0.0
  %2886 = vmatpush1.msra.mxu0 0.0
  %2887 = vmatprep.subr.mxu0 0.0
  %2888 = vmatpush1.msra.mxu0 0.0
  %2889 = vmatprep.subr.mxu0 0.0
  %2890 = vmatpush1.msra.mxu0 0.0
  %2891 = vmatprep.subr.mxu0 0.0
  %2892 = vmatpush1.msra.mxu0 0.0
  %2893 = vmatprep.subr.mxu0 0.0
  %2894 = vmatpush1.msra.mxu0 0.0
  %2895 = vmatprep.subr.mxu0 0.0
  %2896 = vmatpush1.msra.mxu0 0.0
  %2897 = vmatprep.subr.mxu0 0.0
  %2898 = vmatpush1.msra.mxu0 0.0
  %2899 = vmatprep.subr.mxu0 0.0
  %2900 = vmatpush1.msra.mxu0 0.0
  %2901 = vmatprep.subr.mxu0 0.0
  %2902 = vmatpush1.msra.mxu0 0.0
  %2903 = vmatprep.subr.mxu0 0.0
  %2904 = vmatpush1.msra.mxu0 0.0
  %2905 = vmatprep.subr.mxu0 0.0
  %2906 = vmatpush1.msra.mxu0 0.0
  %2907 = vmatprep.subr.mxu0 0.0
  %2908 = vmatpush1.msra.mxu0 0.0
  %2909 = vmatprep.subr.mxu0 0.0
  %2910 = vmatpush1.msra.mxu0 0.0
  %2911 = vmatprep.subr.mxu0 0.0
  %2912 = vmatpush1.msra.mxu0 0.0
  %2913 = vmatprep.subr.mxu0 0.0
  %2914 = vmatpush1.msra.mxu0 0.0
  %2915 = vmatprep.mubr.f32.mxu0 0.0
  %2916 = vmatmul.mubr.f32.gmra.mrb[0].mxu0 %v2849
  %v2917 = vpop.f32.mrb[0].mxu0
  %v2918 = vadd.f32 0.0, %v2917
  %v2919 = vpop.f32.mrb[0].mxu0
  %2920 = vdwg.mxu0
  %v2921 = vadd.f32 %v2847, %v2918
  %v2922 = vadd.f32 %v2921, %v631
  %s2923 = scalar_lea.vmem [#allocation3], 56
  %v2924 = vld [vmem:[%s2923] sm:$0xff]
  %2925 = vmatprep.subr.mxu0 0.0
  %2926 = vmatpush1.msra.mxu0 %v531
  %2927 = vmatprep.subr.mxu0 0.0
  %2928 = vmatpush1.msra.mxu0 %v532
  %2929 = vmatprep.subr.mxu0 0.0
  %2930 = vmatpush1.msra.mxu0 %v533
  %2931 = vmatprep.subr.mxu0 0.0
  %2932 = vmatpush1.msra.mxu0 %v534
  %2933 = vmatprep.subr.mxu0 0.0
  %2934 = vmatpush1.msra.mxu0 0.0
  %2935 = vmatprep.subr.mxu0 0.0
  %2936 = vmatpush1.msra.mxu0 0.0
  %2937 = vmatprep.subr.mxu0 0.0
  %2938 = vmatpush1.msra.mxu0 0.0
  %2939 = vmatprep.subr.mxu0 0.0
  %2940 = vmatpush1.msra.mxu0 0.0
  %2941 = vmatprep.subr.mxu0 0.0
  %2942 = vmatpush1.msra.mxu0 0.0
  %2943 = vmatprep.subr.mxu0 0.0
  %2944 = vmatpush1.msra.mxu0 0.0
  %2945 = vmatprep.subr.mxu0 0.0
  %2946 = vmatpush1.msra.mxu0 0.0
  %2947 = vmatprep.subr.mxu0 0.0
  %2948 = vmatpush1.msra.mxu0 0.0
  %2949 = vmatprep.subr.mxu0 0.0
  %2950 = vmatpush1.msra.mxu0 0.0
  %2951 = vmatprep.subr.mxu0 0.0
  %2952 = vmatpush1.msra.mxu0 0.0
  %2953 = vmatprep.subr.mxu0 0.0
  %2954 = vmatpush1.msra.mxu0 0.0
  %2955 = vmatprep.subr.mxu0 0.0
  %2956 = vmatpush1.msra.mxu0 0.0
  %2957 = vmatprep.subr.mxu0 0.0
  %2958 = vmatpush1.msra.mxu0 0.0
  %2959 = vmatprep.subr.mxu0 0.0
  %2960 = vmatpush1.msra.mxu0 0.0
  %2961 = vmatprep.subr.mxu0 0.0
  %2962 = vmatpush1.msra.mxu0 0.0
  %2963 = vmatprep.subr.mxu0 0.0
  %2964 = vmatpush1.msra.mxu0 0.0
  %2965 = vmatprep.subr.mxu0 0.0
  %2966 = vmatpush1.msra.mxu0 0.0
  %2967 = vmatprep.subr.mxu0 0.0
  %2968 = vmatpush1.msra.mxu0 0.0
  %2969 = vmatprep.subr.mxu0 0.0
  %2970 = vmatpush1.msra.mxu0 0.0
  %2971 = vmatprep.subr.mxu0 0.0
  %2972 = vmatpush1.msra.mxu0 0.0
  %2973 = vmatprep.subr.mxu0 0.0
  %2974 = vmatpush1.msra.mxu0 0.0
  %2975 = vmatprep.subr.mxu0 0.0
  %2976 = vmatpush1.msra.mxu0 0.0
  %2977 = vmatprep.subr.mxu0 0.0
  %2978 = vmatpush1.msra.mxu0 0.0
  %2979 = vmatprep.subr.mxu0 0.0
  %2980 = vmatpush1.msra.mxu0 0.0
  %2981 = vmatprep.subr.mxu0 0.0
  %2982 = vmatpush1.msra.mxu0 0.0
  %2983 = vmatprep.subr.mxu0 0.0
  %2984 = vmatpush1.msra.mxu0 0.0
  %2985 = vmatprep.subr.mxu0 0.0
  %2986 = vmatpush1.msra.mxu0 0.0
  %2987 = vmatprep.subr.mxu0 0.0
  %2988 = vmatpush1.msra.mxu0 0.0
  %2989 = vmatprep.mubr.f32.mxu0 0.0
  %2990 = vmatmul.mubr.f32.gmra.mrb[0].mxu0 %v2849
  %v2991 = vpop.f32.mrb[0].mxu0
  %v2992 = vadd.f32 0.0, %v2991
  %v2993 = vpop.f32.mrb[0].mxu0
  %2994 = vdwg.mxu0
  %v2995 = vadd.f32 %v2924, %v2992
  %v2996 = vadd.f32 %v2995, %v710
  %s2997 = scalar_lea.vmem [#allocation4], 56
  %v2998 = vld [vmem:[%s2997] sm:$0xff]
  %2999 = vmatprep.subr.mxu0 0.0
  %3000 = vmatpush1.msra.mxu0 %v536
  %3001 = vmatprep.subr.mxu0 0.0
  %3002 = vmatpush1.msra.mxu0 %v537
  %3003 = vmatprep.subr.mxu0 0.0
  %3004 = vmatpush1.msra.mxu0 %v538
  %3005 = vmatprep.subr.mxu0 0.0
  %3006 = vmatpush1.msra.mxu0 %v539
  %3007 = vmatprep.subr.mxu0 0.0
  %3008 = vmatpush1.msra.mxu0 0.0
  %3009 = vmatprep.subr.mxu0 0.0
  %3010 = vmatpush1.msra.mxu0 0.0
  %3011 = vmatprep.subr.mxu0 0.0
  %3012 = vmatpush1.msra.mxu0 0.0
  %3013 = vmatprep.subr.mxu0 0.0
  %3014 = vmatpush1.msra.mxu0 0.0
  %3015 = vmatprep.subr.mxu0 0.0
  %3016 = vmatpush1.msra.mxu0 0.0
  %3017 = vmatprep.subr.mxu0 0.0
  %3018 = vmatpush1.msra.mxu0 0.0
  %3019 = vmatprep.subr.mxu0 0.0
  %3020 = vmatpush1.msra.mxu0 0.0
  %3021 = vmatprep.subr.mxu0 0.0
  %3022 = vmatpush1.msra.mxu0 0.0
  %3023 = vmatprep.subr.mxu0 0.0
  %3024 = vmatpush1.msra.mxu0 0.0
  %3025 = vmatprep.subr.mxu0 0.0
  %3026 = vmatpush1.msra.mxu0 0.0
  %3027 = vmatprep.subr.mxu0 0.0
  %3028 = vmatpush1.msra.mxu0 0.0
  %3029 = vmatprep.subr.mxu0 0.0
  %3030 = vmatpush1.msra.mxu0 0.0
  %3031 = vmatprep.subr.mxu0 0.0
  %3032 = vmatpush1.msra.mxu0 0.0
  %3033 = vmatprep.subr.mxu0 0.0
  %3034 = vmatpush1.msra.mxu0 0.0
  %3035 = vmatprep.subr.mxu0 0.0
  %3036 = vmatpush1.msra.mxu0 0.0
  %3037 = vmatprep.subr.mxu0 0.0
  %3038 = vmatpush1.msra.mxu0 0.0
  %3039 = vmatprep.subr.mxu0 0.0
  %3040 = vmatpush1.msra.mxu0 0.0
  %3041 = vmatprep.subr.mxu0 0.0
  %3042 = vmatpush1.msra.mxu0 0.0
  %3043 = vmatprep.subr.mxu0 0.0
  %3044 = vmatpush1.msra.mxu0 0.0
  %3045 = vmatprep.subr.mxu0 0.0
  %3046 = vmatpush1.msra.mxu0 0.0
  %3047 = vmatprep.subr.mxu0 0.0
  %3048 = vmatpush1.msra.mxu0 0.0
  %3049 = vmatprep.subr.mxu0 0.0
  %3050 = vmatpush1.msra.mxu0 0.0
  %3051 = vmatprep.subr.mxu0 0.0
  %3052 = vmatpush1.msra.mxu0 0.0
  %3053 = vmatprep.subr.mxu0 0.0
  %3054 = vmatpush1.msra.mxu0 0.0
  %3055 = vmatprep.subr.mxu0 0.0
  %3056 = vmatpush1.msra.mxu0 0.0
  %3057 = vmatprep.subr.mxu0 0.0
  %3058 = vmatpush1.msra.mxu0 0.0
  %3059 = vmatprep.subr.mxu0 0.0
  %3060 = vmatpush1.msra.mxu0 0.0
  %3061 = vmatprep.subr.mxu0 0.0
  %3062 = vmatpush1.msra.mxu0 0.0
  %3063 = vmatprep.mubr.f32.mxu0 0.0
  %3064 = vmatmul.mubr.f32.gmra.mrb[0].mxu0 %v2849
  %v3065 = vpop.f32.mrb[0].mxu0
  %v3066 = vadd.f32 0.0, %v3065
  %v3067 = vpop.f32.mrb[0].mxu0
  %3068 = vdwg.mxu0
  %v3069 = vadd.f32 %v2998, %v3066
  %v3070 = vadd.f32 %v3069, %v789
  %s3071 = scalar_lea.vmem [#allocation5], 56
  %v3072 = vld [vmem:[%s3071] sm:$0xff]
  %3073 = vmatprep.subr.mxu0 0.0
  %3074 = vmatpush1.msra.mxu0 %v541
  %3075 = vmatprep.subr.mxu0 0.0
  %3076 = vmatpush1.msra.mxu0 %v542
  %3077 = vmatprep.subr.mxu0 0.0
  %3078 = vmatpush1.msra.mxu0 %v543
  %3079 = vmatprep.subr.mxu0 0.0
  %3080 = vmatpush1.msra.mxu0 %v544
  %3081 = vmatprep.subr.mxu0 0.0
  %3082 = vmatpush1.msra.mxu0 0.0
  %3083 = vmatprep.subr.mxu0 0.0
  %3084 = vmatpush1.msra.mxu0 0.0
  %3085 = vmatprep.subr.mxu0 0.0
  %3086 = vmatpush1.msra.mxu0 0.0
  %3087 = vmatprep.subr.mxu0 0.0
  %3088 = vmatpush1.msra.mxu0 0.0
  %3089 = vmatprep.subr.mxu0 0.0
  %3090 = vmatpush1.msra.mxu0 0.0
  %3091 = vmatprep.subr.mxu0 0.0
  %3092 = vmatpush1.msra.mxu0 0.0
  %3093 = vmatprep.subr.mxu0 0.0
  %3094 = vmatpush1.msra.mxu0 0.0
  %3095 = vmatprep.subr.mxu0 0.0
  %3096 = vmatpush1.msra.mxu0 0.0
  %3097 = vmatprep.subr.mxu0 0.0
  %3098 = vmatpush1.msra.mxu0 0.0
  %3099 = vmatprep.subr.mxu0 0.0
  %3100 = vmatpush1.msra.mxu0 0.0
  %3101 = vmatprep.subr.mxu0 0.0
  %3102 = vmatpush1.msra.mxu0 0.0
  %3103 = vmatprep.subr.mxu0 0.0
  %3104 = vmatpush1.msra.mxu0 0.0
  %3105 = vmatprep.subr.mxu0 0.0
  %3106 = vmatpush1.msra.mxu0 0.0
  %3107 = vmatprep.subr.mxu0 0.0
  %3108 = vmatpush1.msra.mxu0 0.0
  %3109 = vmatprep.subr.mxu0 0.0
  %3110 = vmatpush1.msra.mxu0 0.0
  %3111 = vmatprep.subr.mxu0 0.0
  %3112 = vmatpush1.msra.mxu0 0.0
  %3113 = vmatprep.subr.mxu0 0.0
  %3114 = vmatpush1.msra.mxu0 0.0
  %3115 = vmatprep.subr.mxu0 0.0
  %3116 = vmatpush1.msra.mxu0 0.0
  %3117 = vmatprep.subr.mxu0 0.0
  %3118 = vmatpush1.msra.mxu0 0.0
  %3119 = vmatprep.subr.mxu0 0.0
  %3120 = vmatpush1.msra.mxu0 0.0
  %3121 = vmatprep.subr.mxu0 0.0
  %3122 = vmatpush1.msra.mxu0 0.0
  %3123 = vmatprep.subr.mxu0 0.0
  %3124 = vmatpush1.msra.mxu0 0.0
  %3125 = vmatprep.subr.mxu0 0.0
  %3126 = vmatpush1.msra.mxu0 0.0
  %3127 = vmatprep.subr.mxu0 0.0
  %3128 = vmatpush1.msra.mxu0 0.0
  %3129 = vmatprep.subr.mxu0 0.0
  %3130 = vmatpush1.msra.mxu0 0.0
  %3131 = vmatprep.subr.mxu0 0.0
  %3132 = vmatpush1.msra.mxu0 0.0
  %3133 = vmatprep.subr.mxu0 0.0
  %3134 = vmatpush1.msra.mxu0 0.0
  %3135 = vmatprep.subr.mxu0 0.0
  %3136 = vmatpush1.msra.mxu0 0.0
  %3137 = vmatprep.mubr.f32.mxu0 0.0
  %3138 = vmatmul.mubr.f32.gmra.mrb[0].mxu0 %v2849
  %v3139 = vpop.f32.mrb[0].mxu0
  %v3140 = vadd.f32 0.0, %v3139
  %v3141 = vpop.f32.mrb[0].mxu0
  %3142 = vdwg.mxu0
  %v3143 = vadd.f32 %v3072, %v3140
  %v3144 = vadd.f32 %v3143, %v868
  %v3145 = vxor.u32 %v2922, 2147483648
  %v3146 = vmul.f32 %v3145, 1.442695
  %v3147 = vpow.pop %v3146
  %v3148 = vadd.f32 %v3147, 1.0
  %v3149 = vrcp.pop %v3148
  %v3150 = vmul.f32 1.0, %v3149
  %v3151 = vxor.u32 %v2996, 2147483648
  %v3152 = vmul.f32 %v3151, 1.442695
  %v3153 = vpow.pop %v3152
  %v3154 = vadd.f32 %v3153, 1.0
  %v3155 = vrcp.pop %v3154
  %v3156 = vmul.f32 1.0, %v3155
  %v3157 = vtanh.pop %v3070
  %v3158 = vxor.u32 %v3144, 2147483648
  %v3159 = vmul.f32 %v3158, 1.442695
  %v3160 = vpow.pop %v3159
  %v3161 = vadd.f32 %v3160, 1.0
  %v3162 = vrcp.pop %v3161
  %v3163 = vmul.f32 1.0, %v3162
  %v3164 = vmul.f32 %v3156, %v2841
  %v3165 = vmul.f32 %v3150, %v3157
  %v3166 = vadd.f32 %v3164, %v3165
  %v3167 = vtanh.pop %v3166
  %v3168 = vmul.f32 %v3163, %v3167
  %s3169 = scalar_lea.vmem %s4, 56
  %3170 = vst.msk [vmem:[%s3169] sm:$0xff] %vm163, %v3168
  %3171 = vst.msk [vmem:[%s5] sm:$0xff] %vm163, %v3168
  %3172 = vst.msk [vmem:[%s6] sm:$0xff] %vm163, %v3166
  // Predicated region
  $region18: #{att_encoder_decoder_forward.2} parent=0 // pred_check
    _
  $region19: #{att_encoder_decoder_forward.2} parent=0 // pred_check_branch
    %3174 = sbr.rel (0) target = $region21
  $region20: #{att_encoder_decoder_forward.2} parent=0 // pred_region
    _
  $region21: #{att_encoder_decoder_forward.2} parent=0 // pred_fallthru
    _
  // Predicated region
  $region22: #{att_encoder_decoder_forward.2} parent=0 // pred_check
    _
  $region23: #{att_encoder_decoder_forward.2} parent=0 // pred_check_branch
    %3176 = sbr.rel (0) target = $region25
  $region24: #{att_encoder_decoder_forward.2} parent=0 // pred_region
    _
  $region25: #{att_encoder_decoder_forward.2} parent=0 // pred_fallthru
    _
  // Predicated region
  $region26: #{att_encoder_decoder_forward.2} parent=0 // pred_check
    _
  $region27: #{att_encoder_decoder_forward.2} parent=0 // pred_check_branch
    %3178 = sbr.rel (0) target = $region29
  $region28: #{att_encoder_decoder_forward.2} parent=0 // pred_region
    _
  $region29: #{att_encoder_decoder_forward.2} parent=0 // pred_fallthru
    _
  // Predicated region
  $region30: #{att_encoder_decoder_forward.2} parent=0 // pred_check
    _
  $region31: #{att_encoder_decoder_forward.2} parent=0 // pred_check_branch
    %3180 = sbr.rel (0) target = $region33
  $region32: #{att_encoder_decoder_forward.2} parent=0 // pred_region
    _
  $region33: #{att_encoder_decoder_forward.2} parent=0 // pred_fallthru
    _
  // Predicated region
  $region34: #{att_encoder_decoder_forward.2} parent=0 // pred_check
    _
  $region35: #{att_encoder_decoder_forward.2} parent=0 // pred_check_branch
    %3182 = sbr.rel (0) target = $region37
  $region36: #{att_encoder_decoder_forward.2} parent=0 // pred_region
    _
  $region37: #{att_encoder_decoder_forward.2} parent=0 // pred_fallthru
    _
  // Predicated region
  $region38: #{att_encoder_decoder_forward.2} parent=0 // pred_check
    _
  $region39: #{att_encoder_decoder_forward.2} parent=0 // pred_check_branch
    %3184 = sbr.rel (0) target = $region41
  $region40: #{att_encoder_decoder_forward.2} parent=0 // pred_region
    _
  $region41: #{att_encoder_decoder_forward.2} parent=0 // pred_fallthru
    _

</llo_original>
